<compile_context>
chip_gen: v7x
topology: tpu7x:2x2x1
jax: 0.10.0
libtpu: 0.0.40
codegen_flags: <defaults>
</compile_context>

<pallas_src>
import functools
import math

import jax
import jax.numpy as jnp
import numpy as np
from jax import lax
from jax.experimental import pallas as pl
from jax.experimental.pallas import tpu as pltpu

ALPHA = 0.2  # LeakyReLU negative slope
F32 = jnp.float32
BF16 = jnp.bfloat16


# ---------------------------------------------------------------------------
# Host-side weight pre-transforms.  In-kernel activations are channels-last
# slabs A[h, w*C + c].
# ---------------------------------------------------------------------------
def merged_tap_matrices(w, w_in, stride, upsample_cols=False):
    """w: (Co, Ci, 3, 3) -> (3, w_in*Ci, N) merged-dw tap matrices.

    Tap dh multiplies the full (unpadded) channels-last row slab; zero padding,
    the column stride and (optionally) the x2 nearest column upsample are
    folded into the block structure of the matrices."""
    w = np.asarray(w, np.float32)
    co, ci, _, _ = w.shape
    wo = (w_in + 2 - 3) // stride + 1
    taps = np.zeros((3, w_in * ci, wo * co), np.float32)
    for dh in range(3):
        for dw in range(3):
            blk = w[:, :, dh, dw].T                       # (Ci, Co)
            for wi in range(wo):
                j = stride * wi + dw - 1                  # unpadded input col
                if 0 <= j < w_in:
                    taps[dh, j * ci:(j + 1) * ci, wi * co:(wi + 1) * co] += blk
    if upsample_cols:
        up = np.zeros((3, w_in * ci, 2 * wo * co), np.float32)
        for wi in range(wo):
            for a in range(2):
                up[:, :, (2 * wi + a) * co:(2 * wi + a + 1) * co] = \
                    taps[:, :, wi * co:(wi + 1) * co]
        taps = up
    return taps


def enc_row_select(h_in, h_out):
    """(3, h_out, h_in) 0/1 matrices: sel[dh] @ X = rows (2r+dh-1) of X
    (all-zero row where that index is the conv zero padding)."""
    sel = np.zeros((3, h_out, h_in), np.float32)
    for dh in range(3):
        for r in range(h_out):
            i = 2 * r + dh - 1
            if 0 <= i < h_in:
                sel[dh, r, i] = 1.0
    return sel


def dec_upsample_matrix(h, nb):
    """0/1 matrix: stacked conv1 rows (block pitch h+2) -> stacked, row-padded,
    x2 row-upsampled conv2 input slab (pitch 2h+2, plus 1 guard row on each end
    so all downstream slab stores are full-slab, offset-0 stores)."""
    ps, qs = h + 2, 2 * h + 2
    d = np.zeros((nb * qs + 2, nb * ps - 2), np.float32)
    for k in range(nb):
        for r in range(h):
            src = k * ps + r
            dst = 2 + k * qs + 2 * r
            d[dst, src] = 1.0
            d[dst + 1, src] = 1.0
    return d


def dec_valid_row_mask(h, nb):
    """(nb*(2h+2), 1) mask of the stacked conv2 output rows that hold real
    pixels; the rest (cross-block garbage) must become zero padding."""
    qs = 2 * h + 2
    m = np.zeros((nb * qs, 1), np.float32)
    for k in range(nb):
        for r in range(2 * h):
            m[1 + k * qs + r, 0] = 1.0
    return m


def bias_row(b, w_out):
    return np.tile(np.asarray(b, np.float32)[None, :], (1, w_out))


# ---------------------------------------------------------------------------
# Parameters (deterministic, PyTorch-default-like uniform init)
# ---------------------------------------------------------------------------
def init_conv(key, cin, cout, k=3):
    k1, k2 = jax.random.split(key)
    bound = 1.0 / math.sqrt(cin * k * k)
    w = jax.random.uniform(k1, (cout, cin, k, k), jnp.float32, -bound, bound)
    b = jax.random.uniform(k2, (cout,), jnp.float32, -bound, bound)
    return w, b


def init_linear(key, din, dout):
    k1, k2 = jax.random.split(key)
    bound = 1.0 / math.sqrt(din)
    w = jax.random.uniform(k1, (din, dout), jnp.float32, -bound, bound)
    b = jax.random.uniform(k2, (dout,), jnp.float32, -bound, bound)
    return w, b


def build_params(key, cfg):
    ch = [cfg["n_channels_in"], 32, 16, 8, 8, 8, 8]          # channel_list
    n_enc = int(math.log2(min(cfg["block_size"]) // cfg["z_spatial_size"]))
    n_dec = int(math.log2(min(cfg["img_size"]) // cfg["z_spatial_size"]))
    nb = (cfg["img_size"][0] // cfg["block_size"][0]) * \
         (cfg["img_size"][1] // cfg["block_size"][1])
    z_ch_enc, z_ch_dec = ch[n_enc], ch[n_dec]
    z_size_full = cfg["z_size"] * nb
    z_conv_size_full = (cfg["img_size"][0] >> n_enc) * \
                       (cfg["img_size"][1] >> n_enc) * z_ch_enc
    z_conv_size = cfg["z_spatial_size"] ** 2 * z_ch_dec

    keys = iter(jax.random.split(key, 64))
    params = dict(
        conv_enc=[init_conv(next(keys), ch[i], ch[i + 1]) for i in range(n_enc)],
        mlp_enc=[init_linear(next(keys), z_conv_size_full, z_conv_size_full),
                 init_linear(next(keys), z_conv_size_full, z_size_full)],
        mlp_dec=[init_linear(next(keys), cfg["z_size"], z_conv_size),
                 init_linear(next(keys), z_conv_size, z_conv_size)],
        conv_dec=[(init_conv(next(keys), ch[i], ch[i - 1]),
                   init_conv(next(keys), ch[i - 1], ch[i - 1]))
                  for i in range(n_dec, 0, -1)],
    )
    meta = dict(n_enc=n_enc, n_dec=n_dec, nb=nb, z_ch_enc=z_ch_enc,
                z_ch_dec=z_ch_dec, z_size_full=z_size_full,
                z_conv_size_full=z_conv_size_full, z_conv_size=z_conv_size)
    return params, meta


# ---------------------------------------------------------------------------
# Pure-JAX f32 reference of the PyTorch forward pass (for the numeric check).
# ---------------------------------------------------------------------------
def leaky(x):
    return jnp.maximum(x, ALPHA * x)


def reference_forward(params, cfg, meta, x):
    a = x
    for (w, b) in params["conv_enc"]:
        a = lax.conv_general_dilated(a, w, (2, 2), ((1, 1), (1, 1)),
                                     dimension_numbers=("NCHW", "OIHW", "NCHW"))
        a = leaky(a + b[None, :, None, None])
    bsz = x.shape[0]
    a = a.reshape(bsz, -1)
    (wm1, bm1), (wm2, bm2) = params["mlp_enc"]
    a = leaky(a @ wm1 + bm1)
    z = leaky(a @ wm2 + bm2)
    (wd1, bd1), (wd2, bd2) = params["mlp_dec"]
    zs = cfg["z_size"]
    out = jnp.zeros((bsz, cfg["n_channels_in"], *cfg["img_size"]), jnp.float32)
    for k in range(meta["nb"]):
        h = leaky(z[:, k * zs:(k + 1) * zs] @ wd1 + bd1)
        h = leaky(h @ wd2 + bd2)
        a = h.reshape(bsz, meta["z_ch_dec"],
                      cfg["z_spatial_size"], cfg["z_spatial_size"])
        for (cv1, cv2) in params["conv_dec"]:
            (w1, b1), (w2, b2) = cv1, cv2
            a = lax.conv_general_dilated(a, w1, (1, 1), ((1, 1), (1, 1)),
                                         dimension_numbers=("NCHW", "OIHW", "NCHW"))
            a = a + b1[None, :, None, None]
            a = jnp.repeat(jnp.repeat(a, 2, axis=2), 2, axis=3)   # nearest x2
            a = leaky(a)
            a = lax.conv_general_dilated(a, w2, (1, 1), ((1, 1), (1, 1)),
                                         dimension_numbers=("NCHW", "OIHW", "NCHW"))
            a = leaky(a + b2[None, :, None, None])
        out = out + a
    return out


# ---------------------------------------------------------------------------
# Kernel-ready parameters
# ---------------------------------------------------------------------------
def prepare(params, meta, cfg):
    hs, ws = cfg["img_size"]
    cin = cfg["n_channels_in"]
    zs = cfg["z_spatial_size"]
    nb = meta["nb"]

    # ---- encoder strided convs ----
    enc_specs, enc_arrays = [], []
    h, w = hs, ws
    for (cw, cb) in params["conv_enc"]:
        co, ci = int(cw.shape[0]), int(cw.shape[1])
        ho, wo = h // 2, w // 2
        enc_specs.append(dict(H=h, W=w, Ci=ci, Co=co, Ho=ho, Wo=wo))
        enc_arrays.append((
            jnp.asarray(enc_row_select(h, ho), BF16),
            jnp.asarray(merged_tap_matrices(cw, w, 2), BF16),
            jnp.asarray(bias_row(cb, wo), F32),
        ))
        h, w = ho, wo
    hl, wl = h, w
    cl = enc_specs[-1]["Co"]

    # ---- encoder MLP: rows permuted torch-(c,h,w) -> kernel-(h,w,c) ----
    (wm1, bm1), (wm2, bm2) = params["mlp_enc"]
    wm1 = np.asarray(wm1, np.float32)
    perm = np.empty(hl * wl * cl, np.int64)
    for hh in range(hl):
        for ww in range(wl):
            for cc in range(cl):
                perm[hh * wl * cl + ww * cl + cc] = cc * hl * wl + hh * wl + ww
    wm1p = wm1[perm, :]

    # ---- decoder MLP: block-diagonal over the nb blocks (lane-dense, no
    #      reshapes in-kernel); 2nd layer output columns permuted to (h,w,c).
    (wd1, bd1), (wd2, bd2) = params["mlp_dec"]
    wd1 = np.asarray(wd1, np.float32); bd1 = np.asarray(bd1, np.float32)
    wd2 = np.asarray(wd2, np.float32); bd2 = np.asarray(bd2, np.float32)
    zsize = cfg["z_size"]
    czd = meta["z_ch_dec"]
    zc = zs * zs * czd
    wd1_big = np.zeros((nb * zsize, nb * zc), np.float32)
    bd1_big = np.tile(bd1[None, :], (1, nb))
    wd2_big = np.zeros((nb * zc, nb * zc), np.float32)
    bd2_big = np.zeros((1, nb * zc), np.float32)
    for k in range(nb):
        wd1_big[k * zsize:(k + 1) * zsize, k * zc:(k + 1) * zc] = wd1
        for hh in range(zs):
            for ww in range(zs):
                for cc in range(czd):
                    new = hh * zs * czd + ww * czd + cc
                    old = cc * zs * zs + hh * zs + ww
                    wd2_big[k * zc:(k + 1) * zc, k * zc + new] = wd2[:, old]
                    bd2_big[0, k * zc + new] = bd2[old]

    # ---- decoder conv stages (conv1 + fused x2 upsample, conv2) ----
    stage_specs, stage_arrays = [], []
    h, w = zs, zs
    for (cv1, cv2) in params["conv_dec"]:
        (w1, b1), (w2, b2) = cv1, cv2
        ci, cm = int(w1.shape[1]), int(w1.shape[0])
        stage_specs.append(dict(H=h, W=w, Ci=ci, Cm=cm))
        stage_arrays.append([
            jnp.asarray(merged_tap_matrices(w1, w, 1, upsample_cols=True), BF16),
            jnp.asarray(bias_row(b1, 2 * w), F32),
            jnp.asarray(dec_upsample_matrix(h, nb), BF16),
            jnp.asarray(merged_tap_matrices(w2, 2 * w, 1), BF16),
            jnp.asarray(bias_row(b2, 2 * w), F32),
            jnp.asarray(dec_valid_row_mask(h, nb), F32),
        ])
        h, w = 2 * h, 2 * w

    spec = dict(img=(hs, ws), cin=cin, nb=nb, zsize=zsize,
                enc=enc_specs, stages=stage_specs, hl=hl, wl=wl, cl=cl,
                alpha=ALPHA)
    arrays = dict(enc=enc_arrays,
                  wm1=jnp.asarray(wm1p, BF16),
                  bm1=jnp.asarray(bm1, F32)[None, :],
                  wm2=jnp.asarray(np.asarray(wm2), BF16),
                  bm2=jnp.asarray(bm2, F32)[None, :],
                  wd1=jnp.asarray(wd1_big, BF16), bd1=jnp.asarray(bd1_big, F32),
                  wd2=jnp.asarray(wd2_big, BF16), bd2=jnp.asarray(bd2_big, F32),
                  stages=stage_arrays)
    return spec, arrays


# ---------------------------------------------------------------------------
# The single fused kernel: encoder + MLP + all-blocks decoder + block sum.
# ---------------------------------------------------------------------------
def make_kernel(spec):
    nb = spec["nb"]
    enc = spec["enc"]
    stages = spec["stages"]
    hl, wl, cl = spec["hl"], spec["wl"], spec["cl"]
    alpha = spec["alpha"]
    n_enc, n_stage = len(enc), len(stages)

    def lrelu(v):
        return jnp.maximum(v, alpha * v)

    def kernel(*args):
        it = iter(args)
        x_ref = next(it)
        enc_refs = [(next(it), next(it), next(it)) for _ in range(n_enc)]
        wm1_ref, bm1_ref, wm2_ref, bm2_ref = (next(it) for _ in range(4))
        wd1_ref, bd1_ref, wd2_ref, bd2_ref = (next(it) for _ in range(4))
        stage_refs = [tuple(next(it) for _ in range(6)) for _ in range(n_stage)]
        o_ref = next(it)
        hlast_ref = next(it)
        flat_ref = next(it)
        ymlp_ref = next(it)
        slab_refs = [next(it) for _ in range(2 * n_stage)]   # p0,q0,p1,q1,p2,q2
        yf_ref = next(it)

        # ----------------------------- encoder ------------------------------
        act = None
        cur = x_ref[0].astype(BF16)                     # (H, W*Cin)
        for i, e in enumerate(enc):
            sel_ref, tap_ref, b_ref = enc_refs[i]
            acc = jnp.zeros((e["Ho"], e["Wo"] * e["Co"]), F32)
            for dh in range(3):
                # stride-2 row selection (exact 0/1 bf16 matmul), then one
                # merged-dw tap matmul per kernel row.
                rows = jnp.dot(sel_ref[dh], cur, preferred_element_type=F32)
                acc = acc + jnp.dot(rows.astype(BF16), tap_ref[dh],
                                    preferred_element_type=F32)
            act = lrelu(acc + b_ref[...])
            cur = act.astype(BF16)                      # (Ho, Wo*Co)

        # flatten (h, w*c) -> (1, Hl*Wl*Cl) through scratch so the encoder
        # MLP layer 1 is a single K=256 matmul.
        hlast_ref[...] = act
        for hh in range(hl):
            flat_ref[0:1, hh * wl * cl:(hh + 1) * wl * cl] = hlast_ref[hh:hh + 1, :]
        zin = flat_ref[...].astype(BF16)                # (1, 256)

        m1 = lrelu(jnp.dot(zin, wm1_ref[...], preferred_element_type=F32)
                   + bm1_ref[...])
        zfull = lrelu(jnp.dot(m1.astype(BF16), wm2_ref[...],
                              preferred_element_type=F32) + bm2_ref[...])

        # ---------------- decoder MLP, all nb blocks at once ----------------
        y1 = lrelu(jnp.dot(zfull.astype(BF16), wd1_ref[...],
                           preferred_element_type=F32) + bd1_ref[...])
        ymlp = lrelu(jnp.dot(y1.astype(BF16), wd2_ref[...],
                             preferred_element_type=F32) + bd2_ref[...])
        ymlp_ref[...] = ymlp                            # (1, nb*zs*zs*Cz)

        # scatter per-block MLP output into the stage-0 stacked row-padded slab
        s0 = stages[0]
        rowd = s0["W"] * s0["Ci"]
        pitch0 = s0["H"] + 2
        p0_ref = slab_refs[0]
        p0_ref[...] = jnp.zeros_like(p0_ref)            # tiny (16,16) clear
        for k in range(nb):
            for hh in range(s0["H"]):
                src = k * (s0["H"] * rowd) + hh * rowd
                p0_ref[k * pitch0 + 1 + hh:k * pitch0 + 2 + hh, :] = \
                    ymlp_ref[0:1, src:src + rowd]

        # --------------- decoder conv stages (all blocks stacked) -----------
        for s, sc in enumerate(stages):
            w1t_ref, b1_ref, d_ref, w2t_ref, b2_ref, m_ref = stage_refs[s]
            H, W, Ci, Cm = sc["H"], sc["W"], sc["Ci"], sc["Cm"]
            ps, qs = H + 2, 2 * H + 2
            nra = nb * ps - 2                # conv1 rows (incl. junk)
            nrb = nb * qs                    # conv2 rows (incl. junk)
            nw = 2 * W * Cm
            p_ref = slab_refs[2 * s]
            q_ref = slab_refs[2 * s + 1]

            # conv1 (+ fused x2 nearest column upsample): 3 merged-dh matmuls.
            acc = jnp.zeros((nra, nw), F32)
            for dh in range(3):
                acc = acc + jnp.dot(p_ref[dh:dh + nra, :].astype(BF16),
                                    w1t_ref[dh], preferred_element_type=F32)
            t1 = (acc + b1_ref[...]).astype(BF16)

            # x2 nearest row upsample + scatter into the row-padded conv2 slab
            # as one 0/1 matmul (LeakyReLU commutes with duplication).
            q_ref[...] = lrelu(jnp.dot(d_ref[...], t1,
                                       preferred_element_type=F32))

            # conv2: 3 merged-dh matmuls.
            acc2 = jnp.zeros((nrb, nw), F32)
            for dh in range(3):
                acc2 = acc2 + jnp.dot(q_ref[dh:dh + nrb, :].astype(BF16),
                                      w2t_ref[dh], preferred_element_type=F32)
            y = lrelu(acc2 + b2_ref[...])

            if s + 1 < n_stage:
                # zero the cross-block junk rows -> they become the pad rows of
                # the next stage's slab; single full-slab store, no re-zeroing.
                slab_refs[2 * (s + 1)][...] = y * m_ref[...]
            else:
                yf_ref[...] = y

        # --------------- sum of the nb per-block reconstructions ------------
        last = stages[-1]
        qs_l = 2 * last["H"] + 2
        h2 = 2 * last["H"]
        out = yf_ref[1:1 + h2, :]
        for k in range(1, nb):
            out = out + yf_ref[1 + k * qs_l:1 + k * qs_l + h2, :]
        o_ref[0] = out

    return kernel


# ---------------------------------------------------------------------------
# Forward pass: ONE pallas_call, grid=(B,)
# ---------------------------------------------------------------------------
def forward(spec, arrays, x):
    b = x.shape[0]
    hs, ws = spec["img"]
    cin = spec["cin"]
    nb = spec["nb"]
    stages = spec["stages"]
    hl, wl, cl = spec["hl"], spec["wl"], spec["cl"]

    # NCHW -> channels-last slab (B, H, W*C)
    x2d = jnp.transpose(x, (0, 2, 3, 1)).reshape(b, hs, ws * cin).astype(F32)

    inputs = [x2d]
    for arrs in arrays["enc"]:
        inputs.extend(arrs)
    inputs += [arrays["wm1"], arrays["bm1"], arrays["wm2"], arrays["bm2"],
               arrays["wd1"], arrays["bd1"], arrays["wd2"], arrays["bd2"]]
    for arrs in arrays["stages"]:
        inputs.extend(arrs)

    def const_spec(a):
        zero = (0,) * a.ndim
        return pl.BlockSpec(a.shape, lambda *_, _z=zero: _z)

    in_specs = [pl.BlockSpec((1, hs, ws * cin), lambda bb: (bb, 0, 0))]
    in_specs += [const_spec(a) for a in inputs[1:]]

    zc = stages[0]["H"] * stages[0]["W"] * stages[0]["Ci"]
    scratch = [
        pltpu.VMEM((hl, wl * cl), F32),          # last encoder conv slab
        pltpu.VMEM((1, hl * wl * cl), F32),      # flattened conv features
        pltpu.VMEM((1, nb * zc), F32),           # decoder-MLP output (all blocks)
    ]
    for s in stages:
        ps, qs = s["H"] + 2, 2 * s["H"] + 2
        scratch.append(pltpu.VMEM((nb * ps, s["W"] * s["Ci"]), F32))       # conv1 in
        scratch.append(pltpu.VMEM((nb * qs + 2, 2 * s["W"] * s["Cm"]), F32))  # conv2 in
    last = stages[-1]
    scratch.append(pltpu.VMEM((nb * (2 * last["H"] + 2),
                               2 * last["W"] * last["Cm"]), F32))           # final stack

    # rough advisory cost estimate
    macs = 0
    for e in spec["enc"]:
        macs += 3 * e["Ho"] * e["H"] * e["W"] * e["Ci"]
        macs += 3 * e["Ho"] * (e["W"] * e["Ci"]) * (e["Wo"] * e["Co"])
    nfl = hl * wl * cl
    macs += nfl * nfl + nfl * nb * spec["zsize"]
    macs += (nb * spec["zsize"]) * (nb * zc) + (nb * zc) * (nb * zc)
    for s in stages:
        ps, qs = s["H"] + 2, 2 * s["H"] + 2
        nw = 2 * s["W"] * s["Cm"]
        macs += 3 * (nb * ps - 2) * (s["W"] * s["Ci"]) * nw
        macs += (nb * qs + 2) * (nb * ps - 2) * nw
        macs += 3 * (nb * qs) * nw * nw
    wbytes = sum(int(np.prod(a.shape)) * a.dtype.itemsize for a in inputs[1:])
    cost = pl.CostEstimate(flops=int(2 * macs * b), transcendentals=0,
                           bytes_accessed=int(wbytes + 2 * x2d.size * 4))

    out = pl.pallas_call(
        make_kernel(spec),
        out_shape=jax.ShapeDtypeStruct((b, hs, ws * cin), F32),
        grid=(b,),
        in_specs=in_specs,
        out_specs=pl.BlockSpec((1, hs, ws * cin), lambda bb: (bb, 0, 0)),
        scratch_shapes=scratch,
        compiler_params=pltpu.CompilerParams(dimension_semantics=("parallel",)),
        cost_estimate=cost,
    )(*inputs)

    # channels-last slab -> NCHW
    return jnp.transpose(out.reshape(b, hs, ws, cin), (0, 3, 1, 2))


# ---------------------------------------------------------------------------
if __name__ == "__main__":
    cfg = dict(img_size=(16, 16), block_size=(8, 8),
               z_spatial_size=2, z_size=6, n_channels_in=3)
    B = 2

    key = jax.random.PRNGKey(0)
    k_params, k_x = jax.random.split(key)
    params, meta = build_params(k_params, cfg)
    spec, arrays = prepare(params, meta, cfg)

    x = jax.random.uniform(
        k_x, (B, cfg["n_channels_in"], cfg["img_size"][0], cfg["img_size"][1]),
        dtype=jnp.float32)

    run = jax.jit(functools.partial(forward, spec))
    y = run(arrays, x)
    jax.block_until_ready(y)

    assert y.shape == (B, cfg["n_channels_in"],
                       cfg["img_size"][0], cfg["img_size"][1]), y.shape
    assert y.dtype == jnp.float32
    assert bool(jnp.isfinite(y).all())

    # numerical check against a pure-JAX f32 reference of the PyTorch module
    # (kernel runs its matmuls in bf16, hence the tolerance).
    y_ref = reference_forward(params, cfg, meta, x)
    err = float(jnp.max(jnp.abs(y - y_ref)))
    scale = float(jnp.max(jnp.abs(y_ref))) + 1e-6
    assert err <= 6e-2 * scale + 2e-3, ("mismatch vs reference", err, scale)

    print("KERNEL_OK")
</pallas_src>

<mosaic_0001>
module attributes {stable_mosaic.version = 11 : i64} {
  func.func @kernel(%arg0: i32, %arg1: memref<1x16x48xf32, #tpu.memory_space<vmem>>, %arg2: memref<3x8x16xbf16, #tpu.memory_space<vmem>>, %arg3: memref<3x48x256xbf16, #tpu.memory_space<vmem>>, %arg4: memref<1x256xf32, #tpu.memory_space<vmem>>, %arg5: memref<3x4x8xbf16, #tpu.memory_space<vmem>>, %arg6: memref<3x256x64xbf16, #tpu.memory_space<vmem>>, %arg7: memref<1x64xf32, #tpu.memory_space<vmem>>, %arg8: memref<256x256xbf16, #tpu.memory_space<vmem>>, %arg9: memref<1x256xf32, #tpu.memory_space<vmem>>, %arg10: memref<256x24xbf16, #tpu.memory_space<vmem>>, %arg11: memref<1x24xf32, #tpu.memory_space<vmem>>, %arg12: memref<24x128xbf16, #tpu.memory_space<vmem>>, %arg13: memref<1x128xf32, #tpu.memory_space<vmem>>, %arg14: memref<128x128xbf16, #tpu.memory_space<vmem>>, %arg15: memref<1x128xf32, #tpu.memory_space<vmem>>, %arg16: memref<3x16x64xbf16, #tpu.memory_space<vmem>>, %arg17: memref<1x64xf32, #tpu.memory_space<vmem>>, %arg18: memref<26x14xbf16, #tpu.memory_space<vmem>>, %arg19: memref<3x64x64xbf16, #tpu.memory_space<vmem>>, %arg20: memref<1x64xf32, #tpu.memory_space<vmem>>, %arg21: memref<24x1xf32, #tpu.memory_space<vmem>>, %arg22: memref<3x64x256xbf16, #tpu.memory_space<vmem>>, %arg23: memref<1x256xf32, #tpu.memory_space<vmem>>, %arg24: memref<42x22xbf16, #tpu.memory_space<vmem>>, %arg25: memref<3x256x256xbf16, #tpu.memory_space<vmem>>, %arg26: memref<1x256xf32, #tpu.memory_space<vmem>>, %arg27: memref<40x1xf32, #tpu.memory_space<vmem>>, %arg28: memref<3x256x48xbf16, #tpu.memory_space<vmem>>, %arg29: memref<1x48xf32, #tpu.memory_space<vmem>>, %arg30: memref<74x38xbf16, #tpu.memory_space<vmem>>, %arg31: memref<3x48x48xbf16, #tpu.memory_space<vmem>>, %arg32: memref<1x48xf32, #tpu.memory_space<vmem>>, %arg33: memref<72x1xf32, #tpu.memory_space<vmem>>, %arg34: memref<1x16x48xf32, #tpu.memory_space<vmem>>, %arg35: memref<4x64xf32, #tpu.memory_space<vmem>>, %arg36: memref<1x256xf32, #tpu.memory_space<vmem>>, %arg37: memref<1x128xf32, #tpu.memory_space<vmem>>, %arg38: memref<16x16xf32, #tpu.memory_space<vmem>>, %arg39: memref<26x64xf32, #tpu.memory_space<vmem>>, %arg40: memref<24x64xf32, #tpu.memory_space<vmem>>, %arg41: memref<42x256xf32, #tpu.memory_space<vmem>>, %arg42: memref<40x256xf32, #tpu.memory_space<vmem>>, %arg43: memref<74x48xf32, #tpu.memory_space<vmem>>, %arg44: memref<72x48xf32, #tpu.memory_space<vmem>>) attributes {dimension_semantics = [#tpu.dimension_semantics<parallel>], iteration_bounds = array<i64: 2>, scalar_prefetch = 0 : i64, scratch_operands = 10 : i64, tpu.core_type = #tpu.core_type<tc>, window_params = [{transform_indices = @transform_0, window_bounds = array<i64: 1, 16, 48>}, {pipeline_mode = #tpu.pipeline_mode<synchronous>, transform_indices = @transform_1, window_bounds = array<i64: 3, 8, 16>}, {pipeline_mode = #tpu.pipeline_mode<synchronous>, transform_indices = @transform_2, window_bounds = array<i64: 3, 48, 256>}, {pipeline_mode = #tpu.pipeline_mode<synchronous>, transform_indices = @transform_3, window_bounds = array<i64: 1, 256>}, {pipeline_mode = #tpu.pipeline_mode<synchronous>, transform_indices = @transform_4, window_bounds = array<i64: 3, 4, 8>}, {pipeline_mode = #tpu.pipeline_mode<synchronous>, transform_indices = @transform_5, window_bounds = array<i64: 3, 256, 64>}, {pipeline_mode = #tpu.pipeline_mode<synchronous>, transform_indices = @transform_6, window_bounds = array<i64: 1, 64>}, {pipeline_mode = #tpu.pipeline_mode<synchronous>, transform_indices = @transform_7, window_bounds = array<i64: 256, 256>}, {pipeline_mode = #tpu.pipeline_mode<synchronous>, transform_indices = @transform_8, window_bounds = array<i64: 1, 256>}, {pipeline_mode = #tpu.pipeline_mode<synchronous>, transform_indices = @transform_9, window_bounds = array<i64: 256, 24>}, {pipeline_mode = #tpu.pipeline_mode<synchronous>, transform_indices = @transform_10, window_bounds = array<i64: 1, 24>}, {pipeline_mode = #tpu.pipeline_mode<synchronous>, transform_indices = @transform_11, window_bounds = array<i64: 24, 128>}, {pipeline_mode = #tpu.pipeline_mode<synchronous>, transform_indices = @transform_12, window_bounds = array<i64: 1, 128>}, {pipeline_mode = #tpu.pipeline_mode<synchronous>, transform_indices = @transform_13, window_bounds = array<i64: 128, 128>}, {pipeline_mode = #tpu.pipeline_mode<synchronous>, transform_indices = @transform_14, window_bounds = array<i64: 1, 128>}, {pipeline_mode = #tpu.pipeline_mode<synchronous>, transform_indices = @transform_15, window_bounds = array<i64: 3, 16, 64>}, {pipeline_mode = #tpu.pipeline_mode<synchronous>, transform_indices = @transform_16, window_bounds = array<i64: 1, 64>}, {pipeline_mode = #tpu.pipeline_mode<synchronous>, transform_indices = @transform_17, window_bounds = array<i64: 26, 14>}, {pipeline_mode = #tpu.pipeline_mode<synchronous>, transform_indices = @transform_18, window_bounds = array<i64: 3, 64, 64>}, {pipeline_mode = #tpu.pipeline_mode<synchronous>, transform_indices = @transform_19, window_bounds = array<i64: 1, 64>}, {pipeline_mode = #tpu.pipeline_mode<synchronous>, transform_indices = @transform_20, window_bounds = array<i64: 24, 1>}, {pipeline_mode = #tpu.pipeline_mode<synchronous>, transform_indices = @transform_21, window_bounds = array<i64: 3, 64, 256>}, {pipeline_mode = #tpu.pipeline_mode<synchronous>, transform_indices = @transform_22, window_bounds = array<i64: 1, 256>}, {pipeline_mode = #tpu.pipeline_mode<synchronous>, transform_indices = @transform_23, window_bounds = array<i64: 42, 22>}, {pipeline_mode = #tpu.pipeline_mode<synchronous>, transform_indices = @transform_24, window_bounds = array<i64: 3, 256, 256>}, {pipeline_mode = #tpu.pipeline_mode<synchronous>, transform_indices = @transform_25, window_bounds = array<i64: 1, 256>}, {pipeline_mode = #tpu.pipeline_mode<synchronous>, transform_indices = @transform_26, window_bounds = array<i64: 40, 1>}, {pipeline_mode = #tpu.pipeline_mode<synchronous>, transform_indices = @transform_27, window_bounds = array<i64: 3, 256, 48>}, {pipeline_mode = #tpu.pipeline_mode<synchronous>, transform_indices = @transform_28, window_bounds = array<i64: 1, 48>}, {pipeline_mode = #tpu.pipeline_mode<synchronous>, transform_indices = @transform_29, window_bounds = array<i64: 74, 38>}, {pipeline_mode = #tpu.pipeline_mode<synchronous>, transform_indices = @transform_30, window_bounds = array<i64: 3, 48, 48>}, {pipeline_mode = #tpu.pipeline_mode<synchronous>, transform_indices = @transform_31, window_bounds = array<i64: 1, 48>}, {pipeline_mode = #tpu.pipeline_mode<synchronous>, transform_indices = @transform_32, window_bounds = array<i64: 72, 1>}, {transform_indices = @transform_33, window_bounds = array<i64: 1, 16, 48>}]} {
    %c0 = arith.constant 0 : index
    %c0_0 = arith.constant 0 : index
    %c0_1 = arith.constant 0 : index
    %0 = vector.load %arg1[%c0, %c0_0, %c0_1] : memref<1x16x48xf32, #tpu.memory_space<vmem>>, vector<1x16x48xf32>
    %1 = vector.shape_cast %0 : vector<1x16x48xf32> to vector<16x48xf32>
    %2 = arith.truncf %1 : vector<16x48xf32> to vector<16x48xbf16>
    %cst = arith.constant 0.000000e+00 : f32
    %3 = vector.broadcast %cst : f32 to vector<8x256xf32>
    %c0_2 = arith.constant 0 : index
    %c0_3 = arith.constant 0 : index
    %c0_4 = arith.constant 0 : index
    %4 = vector.load %arg2[%c0_2, %c0_3, %c0_4] : memref<3x8x16xbf16, #tpu.memory_space<vmem>>, vector<1x8x16xbf16>
    %5 = vector.shape_cast %4 : vector<1x8x16xbf16> to vector<8x16xbf16>
    %cst_5 = arith.constant dense<0.000000e+00> : vector<8x48xf32>
    %6 = tpu.matmul %5, %2, %cst_5 {dimension_numbers = #tpu.dot_dimension_numbers<[1], [0], [0], [1], [0, 0, 1, 1], [], []>} : vector<8x16xbf16>, vector<16x48xbf16>, vector<8x48xf32> -> vector<8x48xf32>
    %7 = arith.truncf %6 : vector<8x48xf32> to vector<8x48xbf16>
    %c0_6 = arith.constant 0 : index
    %c0_7 = arith.constant 0 : index
    %c0_8 = arith.constant 0 : index
    %8 = vector.load %arg3[%c0_6, %c0_7, %c0_8] : memref<3x48x256xbf16, #tpu.memory_space<vmem>>, vector<1x48x256xbf16>
    %9 = vector.shape_cast %8 : vector<1x48x256xbf16> to vector<48x256xbf16>
    %cst_9 = arith.constant dense<0.000000e+00> : vector<8x256xf32>
    %10 = tpu.matmul %7, %9, %cst_9 {dimension_numbers = #tpu.dot_dimension_numbers<[1], [0], [0], [1], [0, 0, 1, 1], [], []>} : vector<8x48xbf16>, vector<48x256xbf16>, vector<8x256xf32> -> vector<8x256xf32>
    %11 = arith.addf %3, %10 : vector<8x256xf32>
    %c1 = arith.constant 1 : index
    %c0_10 = arith.constant 0 : index
    %c0_11 = arith.constant 0 : index
    %12 = vector.load %arg2[%c1, %c0_10, %c0_11] : memref<3x8x16xbf16, #tpu.memory_space<vmem>>, vector<1x8x16xbf16>
    %13 = vector.shape_cast %12 : vector<1x8x16xbf16> to vector<8x16xbf16>
    %cst_12 = arith.constant dense<0.000000e+00> : vector<8x48xf32>
    %14 = tpu.matmul %13, %2, %cst_12 {dimension_numbers = #tpu.dot_dimension_numbers<[1], [0], [0], [1], [0, 0, 1, 1], [], []>} : vector<8x16xbf16>, vector<16x48xbf16>, vector<8x48xf32> -> vector<8x48xf32>
    %15 = arith.truncf %14 : vector<8x48xf32> to vector<8x48xbf16>
    %c1_13 = arith.constant 1 : index
    %c0_14 = arith.constant 0 : index
    %c0_15 = arith.constant 0 : index
    %16 = vector.load %arg3[%c1_13, %c0_14, %c0_15] : memref<3x48x256xbf16, #tpu.memory_space<vmem>>, vector<1x48x256xbf16>
    %17 = vector.shape_cast %16 : vector<1x48x256xbf16> to vector<48x256xbf16>
    %cst_16 = arith.constant dense<0.000000e+00> : vector<8x256xf32>
    %18 = tpu.matmul %15, %17, %cst_16 {dimension_numbers = #tpu.dot_dimension_numbers<[1], [0], [0], [1], [0, 0, 1, 1], [], []>} : vector<8x48xbf16>, vector<48x256xbf16>, vector<8x256xf32> -> vector<8x256xf32>
    %19 = arith.addf %11, %18 : vector<8x256xf32>
    %c2 = arith.constant 2 : index
    %c0_17 = arith.constant 0 : index
    %c0_18 = arith.constant 0 : index
    %20 = vector.load %arg2[%c2, %c0_17, %c0_18] : memref<3x8x16xbf16, #tpu.memory_space<vmem>>, vector<1x8x16xbf16>
    %21 = vector.shape_cast %20 : vector<1x8x16xbf16> to vector<8x16xbf16>
    %cst_19 = arith.constant dense<0.000000e+00> : vector<8x48xf32>
    %22 = tpu.matmul %21, %2, %cst_19 {dimension_numbers = #tpu.dot_dimension_numbers<[1], [0], [0], [1], [0, 0, 1, 1], [], []>} : vector<8x16xbf16>, vector<16x48xbf16>, vector<8x48xf32> -> vector<8x48xf32>
    %23 = arith.truncf %22 : vector<8x48xf32> to vector<8x48xbf16>
    %c2_20 = arith.constant 2 : index
    %c0_21 = arith.constant 0 : index
    %c0_22 = arith.constant 0 : index
    %24 = vector.load %arg3[%c2_20, %c0_21, %c0_22] : memref<3x48x256xbf16, #tpu.memory_space<vmem>>, vector<1x48x256xbf16>
    %25 = vector.shape_cast %24 : vector<1x48x256xbf16> to vector<48x256xbf16>
    %cst_23 = arith.constant dense<0.000000e+00> : vector<8x256xf32>
    %26 = tpu.matmul %23, %25, %cst_23 {dimension_numbers = #tpu.dot_dimension_numbers<[1], [0], [0], [1], [0, 0, 1, 1], [], []>} : vector<8x48xbf16>, vector<48x256xbf16>, vector<8x256xf32> -> vector<8x256xf32>
    %27 = arith.addf %19, %26 : vector<8x256xf32>
    %c0_24 = arith.constant 0 : index
    %c0_25 = arith.constant 0 : index
    %28 = vector.load %arg4[%c0_24, %c0_25] : memref<1x256xf32, #tpu.memory_space<vmem>>, vector<1x256xf32>
    %29 = vector.broadcast %28 : vector<1x256xf32> to vector<8x256xf32>
    %30 = arith.addf %27, %29 : vector<8x256xf32>
    %cst_26 = arith.constant 2.000000e-01 : f32
    %31 = vector.broadcast %cst_26 : f32 to vector<8x256xf32>
    %32 = arith.mulf %31, %30 : vector<8x256xf32>
    %33 = arith.maximumf %30, %32 : vector<8x256xf32>
    %34 = arith.truncf %33 : vector<8x256xf32> to vector<8x256xbf16>
    %cst_27 = arith.constant 0.000000e+00 : f32
    %35 = vector.broadcast %cst_27 : f32 to vector<4x64xf32>
    %c0_28 = arith.constant 0 : index
    %c0_29 = arith.constant 0 : index
    %c0_30 = arith.constant 0 : index
    %36 = vector.load %arg5[%c0_28, %c0_29, %c0_30] : memref<3x4x8xbf16, #tpu.memory_space<vmem>>, vector<1x4x8xbf16>
    %37 = vector.shape_cast %36 : vector<1x4x8xbf16> to vector<4x8xbf16>
    %cst_31 = arith.constant dense<0.000000e+00> : vector<4x256xf32>
    %38 = tpu.matmul %37, %34, %cst_31 {dimension_numbers = #tpu.dot_dimension_numbers<[1], [0], [0], [1], [0, 0, 1, 1], [], []>} : vector<4x8xbf16>, vector<8x256xbf16>, vector<4x256xf32> -> vector<4x256xf32>
    %39 = arith.truncf %38 : vector<4x256xf32> to vector<4x256xbf16>
    %c0_32 = arith.constant 0 : index
    %c0_33 = arith.constant 0 : index
    %c0_34 = arith.constant 0 : index
    %40 = vector.load %arg6[%c0_32, %c0_33, %c0_34] : memref<3x256x64xbf16, #tpu.memory_space<vmem>>, vector<1x256x64xbf16>
    %41 = vector.shape_cast %40 : vector<1x256x64xbf16> to vector<256x64xbf16>
    %cst_35 = arith.constant dense<0.000000e+00> : vector<4x64xf32>
    %42 = tpu.matmul %39, %41, %cst_35 {dimension_numbers = #tpu.dot_dimension_numbers<[1], [0], [0], [1], [0, 0, 1, 1], [], []>} : vector<4x256xbf16>, vector<256x64xbf16>, vector<4x64xf32> -> vector<4x64xf32>
    %43 = arith.addf %35, %42 : vector<4x64xf32>
    %c1_36 = arith.constant 1 : index
    %c0_37 = arith.constant 0 : index
    %c0_38 = arith.constant 0 : index
    %44 = vector.load %arg5[%c1_36, %c0_37, %c0_38] : memref<3x4x8xbf16, #tpu.memory_space<vmem>>, vector<1x4x8xbf16>
    %45 = vector.shape_cast %44 : vector<1x4x8xbf16> to vector<4x8xbf16>
    %cst_39 = arith.constant dense<0.000000e+00> : vector<4x256xf32>
    %46 = tpu.matmul %45, %34, %cst_39 {dimension_numbers = #tpu.dot_dimension_numbers<[1], [0], [0], [1], [0, 0, 1, 1], [], []>} : vector<4x8xbf16>, vector<8x256xbf16>, vector<4x256xf32> -> vector<4x256xf32>
    %47 = arith.truncf %46 : vector<4x256xf32> to vector<4x256xbf16>
    %c1_40 = arith.constant 1 : index
    %c0_41 = arith.constant 0 : index
    %c0_42 = arith.constant 0 : index
    %48 = vector.load %arg6[%c1_40, %c0_41, %c0_42] : memref<3x256x64xbf16, #tpu.memory_space<vmem>>, vector<1x256x64xbf16>
    %49 = vector.shape_cast %48 : vector<1x256x64xbf16> to vector<256x64xbf16>
    %cst_43 = arith.constant dense<0.000000e+00> : vector<4x64xf32>
    %50 = tpu.matmul %47, %49, %cst_43 {dimension_numbers = #tpu.dot_dimension_numbers<[1], [0], [0], [1], [0, 0, 1, 1], [], []>} : vector<4x256xbf16>, vector<256x64xbf16>, vector<4x64xf32> -> vector<4x64xf32>
    %51 = arith.addf %43, %50 : vector<4x64xf32>
    %c2_44 = arith.constant 2 : index
    %c0_45 = arith.constant 0 : index
    %c0_46 = arith.constant 0 : index
    %52 = vector.load %arg5[%c2_44, %c0_45, %c0_46] : memref<3x4x8xbf16, #tpu.memory_space<vmem>>, vector<1x4x8xbf16>
    %53 = vector.shape_cast %52 : vector<1x4x8xbf16> to vector<4x8xbf16>
    %cst_47 = arith.constant dense<0.000000e+00> : vector<4x256xf32>
    %54 = tpu.matmul %53, %34, %cst_47 {dimension_numbers = #tpu.dot_dimension_numbers<[1], [0], [0], [1], [0, 0, 1, 1], [], []>} : vector<4x8xbf16>, vector<8x256xbf16>, vector<4x256xf32> -> vector<4x256xf32>
    %55 = arith.truncf %54 : vector<4x256xf32> to vector<4x256xbf16>
    %c2_48 = arith.constant 2 : index
    %c0_49 = arith.constant 0 : index
    %c0_50 = arith.constant 0 : index
    %56 = vector.load %arg6[%c2_48, %c0_49, %c0_50] : memref<3x256x64xbf16, #tpu.memory_space<vmem>>, vector<1x256x64xbf16>
    %57 = vector.shape_cast %56 : vector<1x256x64xbf16> to vector<256x64xbf16>
    %cst_51 = arith.constant dense<0.000000e+00> : vector<4x64xf32>
    %58 = tpu.matmul %55, %57, %cst_51 {dimension_numbers = #tpu.dot_dimension_numbers<[1], [0], [0], [1], [0, 0, 1, 1], [], []>} : vector<4x256xbf16>, vector<256x64xbf16>, vector<4x64xf32> -> vector<4x64xf32>
    %59 = arith.addf %51, %58 : vector<4x64xf32>
    %c0_52 = arith.constant 0 : index
    %c0_53 = arith.constant 0 : index
    %60 = vector.load %arg7[%c0_52, %c0_53] : memref<1x64xf32, #tpu.memory_space<vmem>>, vector<1x64xf32>
    %61 = vector.broadcast %60 : vector<1x64xf32> to vector<4x64xf32>
    %62 = arith.addf %59, %61 : vector<4x64xf32>
    %cst_54 = arith.constant 2.000000e-01 : f32
    %63 = vector.broadcast %cst_54 : f32 to vector<4x64xf32>
    %64 = arith.mulf %63, %62 : vector<4x64xf32>
    %65 = arith.maximumf %62, %64 : vector<4x64xf32>
    %c0_55 = arith.constant 0 : index
    %c0_56 = arith.constant 0 : index
    %66 = vector.load %arg35[%c0_55, %c0_56] : memref<4x64xf32, #tpu.memory_space<vmem>>, vector<4x64xf32>
    tpu.vector_store %arg35[%c0_55, %c0_56], %65 {strides = array<i32>} : memref<4x64xf32, #tpu.memory_space<vmem>>, vector<4x64xf32>,
    %c0_57 = arith.constant 0 : index
    %c0_58 = arith.constant 0 : index
    %67 = vector.load %arg35[%c0_57, %c0_58] : memref<4x64xf32, #tpu.memory_space<vmem>>, vector<1x64xf32>
    %c0_59 = arith.constant 0 : index
    %c0_60 = arith.constant 0 : index
    %68 = vector.load %arg36[%c0_59, %c0_60] : memref<1x256xf32, #tpu.memory_space<vmem>>, vector<1x64xf32>
    tpu.vector_store %arg36[%c0_59, %c0_60], %67 {strides = array<i32>} : memref<1x256xf32, #tpu.memory_space<vmem>>, vector<1x64xf32>,
    %c1_61 = arith.constant 1 : index
    %c0_62 = arith.constant 0 : index
    %69 = vector.load %arg35[%c1_61, %c0_62] : memref<4x64xf32, #tpu.memory_space<vmem>>, vector<1x64xf32>
    %c0_63 = arith.constant 0 : index
    %c64 = arith.constant 64 : index
    %70 = vector.load %arg36[%c0_63, %c64] : memref<1x256xf32, #tpu.memory_space<vmem>>, vector<1x64xf32>
    tpu.vector_store %arg36[%c0_63, %c64], %69 {strides = array<i32>} : memref<1x256xf32, #tpu.memory_space<vmem>>, vector<1x64xf32>,
    %c2_64 = arith.constant 2 : index
    %c0_65 = arith.constant 0 : index
    %71 = vector.load %arg35[%c2_64, %c0_65] : memref<4x64xf32, #tpu.memory_space<vmem>>, vector<1x64xf32>
    %c0_66 = arith.constant 0 : index
    %c128 = arith.constant 128 : index
    %72 = vector.load %arg36[%c0_66, %c128] : memref<1x256xf32, #tpu.memory_space<vmem>>, vector<1x64xf32>
    tpu.vector_store %arg36[%c0_66, %c128], %71 {strides = array<i32>} : memref<1x256xf32, #tpu.memory_space<vmem>>, vector<1x64xf32>,
    %c3 = arith.constant 3 : index
    %c0_67 = arith.constant 0 : index
    %73 = vector.load %arg35[%c3, %c0_67] : memref<4x64xf32, #tpu.memory_space<vmem>>, vector<1x64xf32>
    %c0_68 = arith.constant 0 : index
    %c192 = arith.constant 192 : index
    %74 = vector.load %arg36[%c0_68, %c192] : memref<1x256xf32, #tpu.memory_space<vmem>>, vector<1x64xf32>
    tpu.vector_store %arg36[%c0_68, %c192], %73 {strides = array<i32>} : memref<1x256xf32, #tpu.memory_space<vmem>>, vector<1x64xf32>,
    %c0_69 = arith.constant 0 : index
    %c0_70 = arith.constant 0 : index
    %75 = vector.load %arg36[%c0_69, %c0_70] : memref<1x256xf32, #tpu.memory_space<vmem>>, vector<1x256xf32>
    %76 = arith.truncf %75 : vector<1x256xf32> to vector<1x256xbf16>
    %c0_71 = arith.constant 0 : index
    %c0_72 = arith.constant 0 : index
    %77 = vector.load %arg8[%c0_71, %c0_72] : memref<256x256xbf16, #tpu.memory_space<vmem>>, vector<256x256xbf16>
    %cst_73 = arith.constant dense<0.000000e+00> : vector<1x256xf32>
    %78 = tpu.matmul %76, %77, %cst_73 {dimension_numbers = #tpu.dot_dimension_numbers<[1], [0], [0], [1], [0, 0, 1, 1], [], []>} : vector<1x256xbf16>, vector<256x256xbf16>, vector<1x256xf32> -> vector<1x256xf32>
    %c0_74 = arith.constant 0 : index
    %c0_75 = arith.constant 0 : index
    %79 = vector.load %arg9[%c0_74, %c0_75] : memref<1x256xf32, #tpu.memory_space<vmem>>, vector<1x256xf32>
    %80 = arith.addf %78, %79 : vector<1x256xf32>
    %cst_76 = arith.constant 2.000000e-01 : f32
    %81 = vector.broadcast %cst_76 : f32 to vector<1x256xf32>
    %82 = arith.mulf %81, %80 : vector<1x256xf32>
    %83 = arith.maximumf %80, %82 : vector<1x256xf32>
    %84 = arith.truncf %83 : vector<1x256xf32> to vector<1x256xbf16>
    %c0_77 = arith.constant 0 : index
    %c0_78 = arith.constant 0 : index
    %85 = vector.load %arg10[%c0_77, %c0_78] : memref<256x24xbf16, #tpu.memory_space<vmem>>, vector<256x24xbf16>
    %cst_79 = arith.constant dense<0.000000e+00> : vector<1x24xf32>
    %86 = tpu.matmul %84, %85, %cst_79 {dimension_numbers = #tpu.dot_dimension_numbers<[1], [0], [0], [1], [0, 0, 1, 1], [], []>} : vector<1x256xbf16>, vector<256x24xbf16>, vector<1x24xf32> -> vector<1x24xf32>
    %c0_80 = arith.constant 0 : index
    %c0_81 = arith.constant 0 : index
    %87 = vector.load %arg11[%c0_80, %c0_81] : memref<1x24xf32, #tpu.memory_space<vmem>>, vector<1x24xf32>
    %88 = arith.addf %86, %87 : vector<1x24xf32>
    %cst_82 = arith.constant 2.000000e-01 : f32
    %89 = vector.broadcast %cst_82 : f32 to vector<1x24xf32>
    %90 = arith.mulf %89, %88 : vector<1x24xf32>
    %91 = arith.maximumf %88, %90 : vector<1x24xf32>
    %92 = arith.truncf %91 : vector<1x24xf32> to vector<1x24xbf16>
    %c0_83 = arith.constant 0 : index
    %c0_84 = arith.constant 0 : index
    %93 = vector.load %arg12[%c0_83, %c0_84] : memref<24x128xbf16, #tpu.memory_space<vmem>>, vector<24x128xbf16>
    %cst_85 = arith.constant dense<0.000000e+00> : vector<1x128xf32>
    %94 = tpu.matmul %92, %93, %cst_85 {dimension_numbers = #tpu.dot_dimension_numbers<[1], [0], [0], [1], [0, 0, 1, 1], [], []>} : vector<1x24xbf16>, vector<24x128xbf16>, vector<1x128xf32> -> vector<1x128xf32>
    %c0_86 = arith.constant 0 : index
    %c0_87 = arith.constant 0 : index
    %95 = vector.load %arg13[%c0_86, %c0_87] : memref<1x128xf32, #tpu.memory_space<vmem>>, vector<1x128xf32>
    %96 = arith.addf %94, %95 : vector<1x128xf32>
    %cst_88 = arith.constant 2.000000e-01 : f32
    %97 = vector.broadcast %cst_88 : f32 to vector<1x128xf32>
    %98 = arith.mulf %97, %96 : vector<1x128xf32>
    %99 = arith.maximumf %96, %98 : vector<1x128xf32>
    %100 = arith.truncf %99 : vector<1x128xf32> to vector<1x128xbf16>
    %c0_89 = arith.constant 0 : index
    %c0_90 = arith.constant 0 : index
    %101 = vector.load %arg14[%c0_89, %c0_90] : memref<128x128xbf16, #tpu.memory_space<vmem>>, vector<128x128xbf16>
    %cst_91 = arith.constant dense<0.000000e+00> : vector<1x128xf32>
    %102 = tpu.matmul %100, %101, %cst_91 {dimension_numbers = #tpu.dot_dimension_numbers<[1], [0], [0], [1], [0, 0, 1, 1], [], []>} : vector<1x128xbf16>, vector<128x128xbf16>, vector<1x128xf32> -> vector<1x128xf32>
    %c0_92 = arith.constant 0 : index
    %c0_93 = arith.constant 0 : index
    %103 = vector.load %arg15[%c0_92, %c0_93] : memref<1x128xf32, #tpu.memory_space<vmem>>, vector<1x128xf32>
    %104 = arith.addf %102, %103 : vector<1x128xf32>
    %cst_94 = arith.constant 2.000000e-01 : f32
    %105 = vector.broadcast %cst_94 : f32 to vector<1x128xf32>
    %106 = arith.mulf %105, %104 : vector<1x128xf32>
    %107 = arith.maximumf %104, %106 : vector<1x128xf32>
    %c0_95 = arith.constant 0 : index
    %c0_96 = arith.constant 0 : index
    %108 = vector.load %arg37[%c0_95, %c0_96] : memref<1x128xf32, #tpu.memory_space<vmem>>, vector<1x128xf32>
    tpu.vector_store %arg37[%c0_95, %c0_96], %107 {strides = array<i32>} : memref<1x128xf32, #tpu.memory_space<vmem>>, vector<1x128xf32>,
    %cst_97 = arith.constant 0.000000e+00 : f32
    %109 = vector.broadcast %cst_97 : f32 to vector<16x16xf32>
    %c0_98 = arith.constant 0 : index
    %c0_99 = arith.constant 0 : index
    %110 = vector.load %arg38[%c0_98, %c0_99] : memref<16x16xf32, #tpu.memory_space<vmem>>, vector<16x16xf32>
    tpu.vector_store %arg38[%c0_98, %c0_99], %109 {strides = array<i32>} : memref<16x16xf32, #tpu.memory_space<vmem>>, vector<16x16xf32>,
    %c0_100 = arith.constant 0 : index
    %c0_101 = arith.constant 0 : index
    %111 = vector.load %arg37[%c0_100, %c0_101] : memref<1x128xf32, #tpu.memory_space<vmem>>, vector<1x16xf32>
    %c1_102 = arith.constant 1 : index
    %c0_103 = arith.constant 0 : index
    %112 = vector.load %arg38[%c1_102, %c0_103] : memref<16x16xf32, #tpu.memory_space<vmem>>, vector<1x16xf32>
    tpu.vector_store %arg38[%c1_102, %c0_103], %111 {strides = array<i32>} : memref<16x16xf32, #tpu.memory_space<vmem>>, vector<1x16xf32>,
    %c0_104 = arith.constant 0 : index
    %c16 = arith.constant 16 : index
    %113 = vector.load %arg37[%c0_104, %c16] : memref<1x128xf32, #tpu.memory_space<vmem>>, vector<1x16xf32>
    %c2_105 = arith.constant 2 : index
    %c0_106 = arith.constant 0 : index
    %114 = vector.load %arg38[%c2_105, %c0_106] : memref<16x16xf32, #tpu.memory_space<vmem>>, vector<1x16xf32>
    tpu.vector_store %arg38[%c2_105, %c0_106], %113 {strides = array<i32>} : memref<16x16xf32, #tpu.memory_space<vmem>>, vector<1x16xf32>,
    %c0_107 = arith.constant 0 : index
    %c32 = arith.constant 32 : index
    %115 = vector.load %arg37[%c0_107, %c32] : memref<1x128xf32, #tpu.memory_space<vmem>>, vector<1x16xf32>
    %c5 = arith.constant 5 : index
    %c0_108 = arith.constant 0 : index
    %116 = vector.load %arg38[%c5, %c0_108] : memref<16x16xf32, #tpu.memory_space<vmem>>, vector<1x16xf32>
    tpu.vector_store %arg38[%c5, %c0_108], %115 {strides = array<i32>} : memref<16x16xf32, #tpu.memory_space<vmem>>, vector<1x16xf32>,
    %c0_109 = arith.constant 0 : index
    %c48 = arith.constant 48 : index
    %117 = vector.load %arg37[%c0_109, %c48] : memref<1x128xf32, #tpu.memory_space<vmem>>, vector<1x16xf32>
    %c6 = arith.constant 6 : index
    %c0_110 = arith.constant 0 : index
    %118 = vector.load %arg38[%c6, %c0_110] : memref<16x16xf32, #tpu.memory_space<vmem>>, vector<1x16xf32>
    tpu.vector_store %arg38[%c6, %c0_110], %117 {strides = array<i32>} : memref<16x16xf32, #tpu.memory_space<vmem>>, vector<1x16xf32>,
    %c0_111 = arith.constant 0 : index
    %c64_112 = arith.constant 64 : index
    %119 = vector.load %arg37[%c0_111, %c64_112] : memref<1x128xf32, #tpu.memory_space<vmem>>, vector<1x16xf32>
    %c9 = arith.constant 9 : index
    %c0_113 = arith.constant 0 : index
    %120 = vector.load %arg38[%c9, %c0_113] : memref<16x16xf32, #tpu.memory_space<vmem>>, vector<1x16xf32>
    tpu.vector_store %arg38[%c9, %c0_113], %119 {strides = array<i32>} : memref<16x16xf32, #tpu.memory_space<vmem>>, vector<1x16xf32>,
    %c0_114 = arith.constant 0 : index
    %c80 = arith.constant 80 : index
    %121 = vector.load %arg37[%c0_114, %c80] : memref<1x128xf32, #tpu.memory_space<vmem>>, vector<1x16xf32>
    %c10 = arith.constant 10 : index
    %c0_115 = arith.constant 0 : index
    %122 = vector.load %arg38[%c10, %c0_115] : memref<16x16xf32, #tpu.memory_space<vmem>>, vector<1x16xf32>
    tpu.vector_store %arg38[%c10, %c0_115], %121 {strides = array<i32>} : memref<16x16xf32, #tpu.memory_space<vmem>>, vector<1x16xf32>,
    %c0_116 = arith.constant 0 : index
    %c96 = arith.constant 96 : index
    %123 = vector.load %arg37[%c0_116, %c96] : memref<1x128xf32, #tpu.memory_space<vmem>>, vector<1x16xf32>
    %c13 = arith.constant 13 : index
    %c0_117 = arith.constant 0 : index
    %124 = vector.load %arg38[%c13, %c0_117] : memref<16x16xf32, #tpu.memory_space<vmem>>, vector<1x16xf32>
    tpu.vector_store %arg38[%c13, %c0_117], %123 {strides = array<i32>} : memref<16x16xf32, #tpu.memory_space<vmem>>, vector<1x16xf32>,
    %c0_118 = arith.constant 0 : index
    %c112 = arith.constant 112 : index
    %125 = vector.load %arg37[%c0_118, %c112] : memref<1x128xf32, #tpu.memory_space<vmem>>, vector<1x16xf32>
    %c14 = arith.constant 14 : index
    %c0_119 = arith.constant 0 : index
    %126 = vector.load %arg38[%c14, %c0_119] : memref<16x16xf32, #tpu.memory_space<vmem>>, vector<1x16xf32>
    tpu.vector_store %arg38[%c14, %c0_119], %125 {strides = array<i32>} : memref<16x16xf32, #tpu.memory_space<vmem>>, vector<1x16xf32>,
    %cst_120 = arith.constant 0.000000e+00 : f32
    %127 = vector.broadcast %cst_120 : f32 to vector<14x64xf32>
    %c0_121 = arith.constant 0 : index
    %c0_122 = arith.constant 0 : index
    %128 = vector.load %arg38[%c0_121, %c0_122] : memref<16x16xf32, #tpu.memory_space<vmem>>, vector<14x16xf32>
    %129 = arith.truncf %128 : vector<14x16xf32> to vector<14x16xbf16>
    %c0_123 = arith.constant 0 : index
    %c0_124 = arith.constant 0 : index
    %c0_125 = arith.constant 0 : index
    %130 = vector.load %arg16[%c0_123, %c0_124, %c0_125] : memref<3x16x64xbf16, #tpu.memory_space<vmem>>, vector<1x16x64xbf16>
    %131 = vector.shape_cast %130 : vector<1x16x64xbf16> to vector<16x64xbf16>
    %cst_126 = arith.constant dense<0.000000e+00> : vector<14x64xf32>
    %132 = tpu.matmul %129, %131, %cst_126 {dimension_numbers = #tpu.dot_dimension_numbers<[1], [0], [0], [1], [0, 0, 1, 1], [], []>} : vector<14x16xbf16>, vector<16x64xbf16>, vector<14x64xf32> -> vector<14x64xf32>
    %133 = arith.addf %127, %132 : vector<14x64xf32>
    %c1_127 = arith.constant 1 : index
    %c0_128 = arith.constant 0 : index
    %134 = vector.load %arg38[%c1_127, %c0_128] : memref<16x16xf32, #tpu.memory_space<vmem>>, vector<14x16xf32>
    %135 = arith.truncf %134 : vector<14x16xf32> to vector<14x16xbf16>
    %c1_129 = arith.constant 1 : index
    %c0_130 = arith.constant 0 : index
    %c0_131 = arith.constant 0 : index
    %136 = vector.load %arg16[%c1_129, %c0_130, %c0_131] : memref<3x16x64xbf16, #tpu.memory_space<vmem>>, vector<1x16x64xbf16>
    %137 = vector.shape_cast %136 : vector<1x16x64xbf16> to vector<16x64xbf16>
    %cst_132 = arith.constant dense<0.000000e+00> : vector<14x64xf32>
    %138 = tpu.matmul %135, %137, %cst_132 {dimension_numbers = #tpu.dot_dimension_numbers<[1], [0], [0], [1], [0, 0, 1, 1], [], []>} : vector<14x16xbf16>, vector<16x64xbf16>, vector<14x64xf32> -> vector<14x64xf32>
    %139 = arith.addf %133, %138 : vector<14x64xf32>
    %c2_133 = arith.constant 2 : index
    %c0_134 = arith.constant 0 : index
    %140 = vector.load %arg38[%c2_133, %c0_134] : memref<16x16xf32, #tpu.memory_space<vmem>>, vector<14x16xf32>
    %141 = arith.truncf %140 : vector<14x16xf32> to vector<14x16xbf16>
    %c2_135 = arith.constant 2 : index
    %c0_136 = arith.constant 0 : index
    %c0_137 = arith.constant 0 : index
    %142 = vector.load %arg16[%c2_135, %c0_136, %c0_137] : memref<3x16x64xbf16, #tpu.memory_space<vmem>>, vector<1x16x64xbf16>
    %143 = vector.shape_cast %142 : vector<1x16x64xbf16> to vector<16x64xbf16>
    %cst_138 = arith.constant dense<0.000000e+00> : vector<14x64xf32>
    %144 = tpu.matmul %141, %143, %cst_138 {dimension_numbers = #tpu.dot_dimension_numbers<[1], [0], [0], [1], [0, 0, 1, 1], [], []>} : vector<14x16xbf16>, vector<16x64xbf16>, vector<14x64xf32> -> vector<14x64xf32>
    %145 = arith.addf %139, %144 : vector<14x64xf32>
    %c0_139 = arith.constant 0 : index
    %c0_140 = arith.constant 0 : index
    %146 = vector.load %arg17[%c0_139, %c0_140] : memref<1x64xf32, #tpu.memory_space<vmem>>, vector<1x64xf32>
    %147 = vector.broadcast %146 : vector<1x64xf32> to vector<14x64xf32>
    %148 = arith.addf %145, %147 : vector<14x64xf32>
    %149 = arith.truncf %148 : vector<14x64xf32> to vector<14x64xbf16>
    %c0_141 = arith.constant 0 : index
    %c0_142 = arith.constant 0 : index
    %150 = vector.load %arg18[%c0_141, %c0_142] : memref<26x14xbf16, #tpu.memory_space<vmem>>, vector<26x14xbf16>
    %cst_143 = arith.constant dense<0.000000e+00> : vector<26x64xf32>
    %151 = tpu.matmul %150, %149, %cst_143 {dimension_numbers = #tpu.dot_dimension_numbers<[1], [0], [0], [1], [0, 0, 1, 1], [], []>} : vector<26x14xbf16>, vector<14x64xbf16>, vector<26x64xf32> -> vector<26x64xf32>
    %cst_144 = arith.constant 2.000000e-01 : f32
    %152 = vector.broadcast %cst_144 : f32 to vector<26x64xf32>
    %153 = arith.mulf %152, %151 : vector<26x64xf32>
    %154 = arith.maximumf %151, %153 : vector<26x64xf32>
    %c0_145 = arith.constant 0 : index
    %c0_146 = arith.constant 0 : index
    %155 = vector.load %arg39[%c0_145, %c0_146] : memref<26x64xf32, #tpu.memory_space<vmem>>, vector<26x64xf32>
    tpu.vector_store %arg39[%c0_145, %c0_146], %154 {strides = array<i32>} : memref<26x64xf32, #tpu.memory_space<vmem>>, vector<26x64xf32>,
    %cst_147 = arith.constant 0.000000e+00 : f32
    %156 = vector.broadcast %cst_147 : f32 to vector<24x64xf32>
    %c0_148 = arith.constant 0 : index
    %c0_149 = arith.constant 0 : index
    %157 = vector.load %arg39[%c0_148, %c0_149] : memref<26x64xf32, #tpu.memory_space<vmem>>, vector<24x64xf32>
    %158 = arith.truncf %157 : vector<24x64xf32> to vector<24x64xbf16>
    %c0_150 = arith.constant 0 : index
    %c0_151 = arith.constant 0 : index
    %c0_152 = arith.constant 0 : index
    %159 = vector.load %arg19[%c0_150, %c0_151, %c0_152] : memref<3x64x64xbf16, #tpu.memory_space<vmem>>, vector<1x64x64xbf16>
    %160 = vector.shape_cast %159 : vector<1x64x64xbf16> to vector<64x64xbf16>
    %cst_153 = arith.constant dense<0.000000e+00> : vector<24x64xf32>
    %161 = tpu.matmul %158, %160, %cst_153 {dimension_numbers = #tpu.dot_dimension_numbers<[1], [0], [0], [1], [0, 0, 1, 1], [], []>} : vector<24x64xbf16>, vector<64x64xbf16>, vector<24x64xf32> -> vector<24x64xf32>
    %162 = arith.addf %156, %161 : vector<24x64xf32>
    %c1_154 = arith.constant 1 : index
    %c0_155 = arith.constant 0 : index
    %163 = vector.load %arg39[%c1_154, %c0_155] : memref<26x64xf32, #tpu.memory_space<vmem>>, vector<24x64xf32>
    %164 = arith.truncf %163 : vector<24x64xf32> to vector<24x64xbf16>
    %c1_156 = arith.constant 1 : index
    %c0_157 = arith.constant 0 : index
    %c0_158 = arith.constant 0 : index
    %165 = vector.load %arg19[%c1_156, %c0_157, %c0_158] : memref<3x64x64xbf16, #tpu.memory_space<vmem>>, vector<1x64x64xbf16>
    %166 = vector.shape_cast %165 : vector<1x64x64xbf16> to vector<64x64xbf16>
    %cst_159 = arith.constant dense<0.000000e+00> : vector<24x64xf32>
    %167 = tpu.matmul %164, %166, %cst_159 {dimension_numbers = #tpu.dot_dimension_numbers<[1], [0], [0], [1], [0, 0, 1, 1], [], []>} : vector<24x64xbf16>, vector<64x64xbf16>, vector<24x64xf32> -> vector<24x64xf32>
    %168 = arith.addf %162, %167 : vector<24x64xf32>
    %c2_160 = arith.constant 2 : index
    %c0_161 = arith.constant 0 : index
    %169 = vector.load %arg39[%c2_160, %c0_161] : memref<26x64xf32, #tpu.memory_space<vmem>>, vector<24x64xf32>
    %170 = arith.truncf %169 : vector<24x64xf32> to vector<24x64xbf16>
    %c2_162 = arith.constant 2 : index
    %c0_163 = arith.constant 0 : index
    %c0_164 = arith.constant 0 : index
    %171 = vector.load %arg19[%c2_162, %c0_163, %c0_164] : memref<3x64x64xbf16, #tpu.memory_space<vmem>>, vector<1x64x64xbf16>
    %172 = vector.shape_cast %171 : vector<1x64x64xbf16> to vector<64x64xbf16>
    %cst_165 = arith.constant dense<0.000000e+00> : vector<24x64xf32>
    %173 = tpu.matmul %170, %172, %cst_165 {dimension_numbers = #tpu.dot_dimension_numbers<[1], [0], [0], [1], [0, 0, 1, 1], [], []>} : vector<24x64xbf16>, vector<64x64xbf16>, vector<24x64xf32> -> vector<24x64xf32>
    %174 = arith.addf %168, %173 : vector<24x64xf32>
    %c0_166 = arith.constant 0 : index
    %c0_167 = arith.constant 0 : index
    %175 = vector.load %arg20[%c0_166, %c0_167] : memref<1x64xf32, #tpu.memory_space<vmem>>, vector<1x64xf32>
    %176 = vector.broadcast %175 : vector<1x64xf32> to vector<24x64xf32>
    %177 = arith.addf %174, %176 : vector<24x64xf32>
    %cst_168 = arith.constant 2.000000e-01 : f32
    %178 = vector.broadcast %cst_168 : f32 to vector<24x64xf32>
    %179 = arith.mulf %178, %177 : vector<24x64xf32>
    %180 = arith.maximumf %177, %179 : vector<24x64xf32>
    %c0_169 = arith.constant 0 : index
    %c0_170 = arith.constant 0 : index
    %181 = vector.load %arg21[%c0_169, %c0_170] : memref<24x1xf32, #tpu.memory_space<vmem>>, vector<24x1xf32>
    %182 = vector.broadcast %181 : vector<24x1xf32> to vector<24x64xf32>
    %183 = arith.mulf %180, %182 : vector<24x64xf32>
    %c0_171 = arith.constant 0 : index
    %c0_172 = arith.constant 0 : index
    %184 = vector.load %arg40[%c0_171, %c0_172] : memref<24x64xf32, #tpu.memory_space<vmem>>, vector<24x64xf32>
    tpu.vector_store %arg40[%c0_171, %c0_172], %183 {strides = array<i32>} : memref<24x64xf32, #tpu.memory_space<vmem>>, vector<24x64xf32>,
    %cst_173 = arith.constant 0.000000e+00 : f32
    %185 = vector.broadcast %cst_173 : f32 to vector<22x256xf32>
    %c0_174 = arith.constant 0 : index
    %c0_175 = arith.constant 0 : index
    %186 = vector.load %arg40[%c0_174, %c0_175] : memref<24x64xf32, #tpu.memory_space<vmem>>, vector<22x64xf32>
    %187 = arith.truncf %186 : vector<22x64xf32> to vector<22x64xbf16>
    %c0_176 = arith.constant 0 : index
    %c0_177 = arith.constant 0 : index
    %c0_178 = arith.constant 0 : index
    %188 = vector.load %arg22[%c0_176, %c0_177, %c0_178] : memref<3x64x256xbf16, #tpu.memory_space<vmem>>, vector<1x64x256xbf16>
    %189 = vector.shape_cast %188 : vector<1x64x256xbf16> to vector<64x256xbf16>
    %cst_179 = arith.constant dense<0.000000e+00> : vector<22x256xf32>
    %190 = tpu.matmul %187, %189, %cst_179 {dimension_numbers = #tpu.dot_dimension_numbers<[1], [0], [0], [1], [0, 0, 1, 1], [], []>} : vector<22x64xbf16>, vector<64x256xbf16>, vector<22x256xf32> -> vector<22x256xf32>
    %191 = arith.addf %185, %190 : vector<22x256xf32>
    %c1_180 = arith.constant 1 : index
    %c0_181 = arith.constant 0 : index
    %192 = vector.load %arg40[%c1_180, %c0_181] : memref<24x64xf32, #tpu.memory_space<vmem>>, vector<22x64xf32>
    %193 = arith.truncf %192 : vector<22x64xf32> to vector<22x64xbf16>
    %c1_182 = arith.constant 1 : index
    %c0_183 = arith.constant 0 : index
    %c0_184 = arith.constant 0 : index
    %194 = vector.load %arg22[%c1_182, %c0_183, %c0_184] : memref<3x64x256xbf16, #tpu.memory_space<vmem>>, vector<1x64x256xbf16>
    %195 = vector.shape_cast %194 : vector<1x64x256xbf16> to vector<64x256xbf16>
    %cst_185 = arith.constant dense<0.000000e+00> : vector<22x256xf32>
    %196 = tpu.matmul %193, %195, %cst_185 {dimension_numbers = #tpu.dot_dimension_numbers<[1], [0], [0], [1], [0, 0, 1, 1], [], []>} : vector<22x64xbf16>, vector<64x256xbf16>, vector<22x256xf32> -> vector<22x256xf32>
    %197 = arith.addf %191, %196 : vector<22x256xf32>
    %c2_186 = arith.constant 2 : index
    %c0_187 = arith.constant 0 : index
    %198 = vector.load %arg40[%c2_186, %c0_187] : memref<24x64xf32, #tpu.memory_space<vmem>>, vector<22x64xf32>
    %199 = arith.truncf %198 : vector<22x64xf32> to vector<22x64xbf16>
    %c2_188 = arith.constant 2 : index
    %c0_189 = arith.constant 0 : index
    %c0_190 = arith.constant 0 : index
    %200 = vector.load %arg22[%c2_188, %c0_189, %c0_190] : memref<3x64x256xbf16, #tpu.memory_space<vmem>>, vector<1x64x256xbf16>
    %201 = vector.shape_cast %200 : vector<1x64x256xbf16> to vector<64x256xbf16>
    %cst_191 = arith.constant dense<0.000000e+00> : vector<22x256xf32>
    %202 = tpu.matmul %199, %201, %cst_191 {dimension_numbers = #tpu.dot_dimension_numbers<[1], [0], [0], [1], [0, 0, 1, 1], [], []>} : vector<22x64xbf16>, vector<64x256xbf16>, vector<22x256xf32> -> vector<22x256xf32>
    %203 = arith.addf %197, %202 : vector<22x256xf32>
    %c0_192 = arith.constant 0 : index
    %c0_193 = arith.constant 0 : index
    %204 = vector.load %arg23[%c0_192, %c0_193] : memref<1x256xf32, #tpu.memory_space<vmem>>, vector<1x256xf32>
    %205 = vector.broadcast %204 : vector<1x256xf32> to vector<22x256xf32>
    %206 = arith.addf %203, %205 : vector<22x256xf32>
    %207 = arith.truncf %206 : vector<22x256xf32> to vector<22x256xbf16>
    %c0_194 = arith.constant 0 : index
    %c0_195 = arith.constant 0 : index
    %208 = vector.load %arg24[%c0_194, %c0_195] : memref<42x22xbf16, #tpu.memory_space<vmem>>, vector<42x22xbf16>
    %cst_196 = arith.constant dense<0.000000e+00> : vector<42x256xf32>
    %209 = tpu.matmul %208, %207, %cst_196 {dimension_numbers = #tpu.dot_dimension_numbers<[1], [0], [0], [1], [0, 0, 1, 1], [], []>} : vector<42x22xbf16>, vector<22x256xbf16>, vector<42x256xf32> -> vector<42x256xf32>
    %cst_197 = arith.constant 2.000000e-01 : f32
    %210 = vector.broadcast %cst_197 : f32 to vector<42x256xf32>
    %211 = arith.mulf %210, %209 : vector<42x256xf32>
    %212 = arith.maximumf %209, %211 : vector<42x256xf32>
    %c0_198 = arith.constant 0 : index
    %c0_199 = arith.constant 0 : index
    %213 = vector.load %arg41[%c0_198, %c0_199] : memref<42x256xf32, #tpu.memory_space<vmem>>, vector<42x256xf32>
    tpu.vector_store %arg41[%c0_198, %c0_199], %212 {strides = array<i32>} : memref<42x256xf32, #tpu.memory_space<vmem>>, vector<42x256xf32>,
    %cst_200 = arith.constant 0.000000e+00 : f32
    %214 = vector.broadcast %cst_200 : f32 to vector<40x256xf32>
    %c0_201 = arith.constant 0 : index
    %c0_202 = arith.constant 0 : index
    %215 = vector.load %arg41[%c0_201, %c0_202] : memref<42x256xf32, #tpu.memory_space<vmem>>, vector<40x256xf32>
    %216 = arith.truncf %215 : vector<40x256xf32> to vector<40x256xbf16>
    %c0_203 = arith.constant 0 : index
    %c0_204 = arith.constant 0 : index
    %c0_205 = arith.constant 0 : index
    %217 = vector.load %arg25[%c0_203, %c0_204, %c0_205] : memref<3x256x256xbf16, #tpu.memory_space<vmem>>, vector<1x256x256xbf16>
    %218 = vector.shape_cast %217 : vector<1x256x256xbf16> to vector<256x256xbf16>
    %cst_206 = arith.constant dense<0.000000e+00> : vector<40x256xf32>
    %219 = tpu.matmul %216, %218, %cst_206 {dimension_numbers = #tpu.dot_dimension_numbers<[1], [0], [0], [1], [0, 0, 1, 1], [], []>} : vector<40x256xbf16>, vector<256x256xbf16>, vector<40x256xf32> -> vector<40x256xf32>
    %220 = arith.addf %214, %219 : vector<40x256xf32>
    %c1_207 = arith.constant 1 : index
    %c0_208 = arith.constant 0 : index
    %221 = vector.load %arg41[%c1_207, %c0_208] : memref<42x256xf32, #tpu.memory_space<vmem>>, vector<40x256xf32>
    %222 = arith.truncf %221 : vector<40x256xf32> to vector<40x256xbf16>
    %c1_209 = arith.constant 1 : index
    %c0_210 = arith.constant 0 : index
    %c0_211 = arith.constant 0 : index
    %223 = vector.load %arg25[%c1_209, %c0_210, %c0_211] : memref<3x256x256xbf16, #tpu.memory_space<vmem>>, vector<1x256x256xbf16>
    %224 = vector.shape_cast %223 : vector<1x256x256xbf16> to vector<256x256xbf16>
    %cst_212 = arith.constant dense<0.000000e+00> : vector<40x256xf32>
    %225 = tpu.matmul %222, %224, %cst_212 {dimension_numbers = #tpu.dot_dimension_numbers<[1], [0], [0], [1], [0, 0, 1, 1], [], []>} : vector<40x256xbf16>, vector<256x256xbf16>, vector<40x256xf32> -> vector<40x256xf32>
    %226 = arith.addf %220, %225 : vector<40x256xf32>
    %c2_213 = arith.constant 2 : index
    %c0_214 = arith.constant 0 : index
    %227 = vector.load %arg41[%c2_213, %c0_214] : memref<42x256xf32, #tpu.memory_space<vmem>>, vector<40x256xf32>
    %228 = arith.truncf %227 : vector<40x256xf32> to vector<40x256xbf16>
    %c2_215 = arith.constant 2 : index
    %c0_216 = arith.constant 0 : index
    %c0_217 = arith.constant 0 : index
    %229 = vector.load %arg25[%c2_215, %c0_216, %c0_217] : memref<3x256x256xbf16, #tpu.memory_space<vmem>>, vector<1x256x256xbf16>
    %230 = vector.shape_cast %229 : vector<1x256x256xbf16> to vector<256x256xbf16>
    %cst_218 = arith.constant dense<0.000000e+00> : vector<40x256xf32>
    %231 = tpu.matmul %228, %230, %cst_218 {dimension_numbers = #tpu.dot_dimension_numbers<[1], [0], [0], [1], [0, 0, 1, 1], [], []>} : vector<40x256xbf16>, vector<256x256xbf16>, vector<40x256xf32> -> vector<40x256xf32>
    %232 = arith.addf %226, %231 : vector<40x256xf32>
    %c0_219 = arith.constant 0 : index
    %c0_220 = arith.constant 0 : index
    %233 = vector.load %arg26[%c0_219, %c0_220] : memref<1x256xf32, #tpu.memory_space<vmem>>, vector<1x256xf32>
    %234 = vector.broadcast %233 : vector<1x256xf32> to vector<40x256xf32>
    %235 = arith.addf %232, %234 : vector<40x256xf32>
    %cst_221 = arith.constant 2.000000e-01 : f32
    %236 = vector.broadcast %cst_221 : f32 to vector<40x256xf32>
    %237 = arith.mulf %236, %235 : vector<40x256xf32>
    %238 = arith.maximumf %235, %237 : vector<40x256xf32>
    %c0_222 = arith.constant 0 : index
    %c0_223 = arith.constant 0 : index
    %239 = vector.load %arg27[%c0_222, %c0_223] : memref<40x1xf32, #tpu.memory_space<vmem>>, vector<40x1xf32>
    %240 = vector.broadcast %239 : vector<40x1xf32> to vector<40x256xf32>
    %241 = arith.mulf %238, %240 : vector<40x256xf32>
    %c0_224 = arith.constant 0 : index
    %c0_225 = arith.constant 0 : index
    %242 = vector.load %arg42[%c0_224, %c0_225] : memref<40x256xf32, #tpu.memory_space<vmem>>, vector<40x256xf32>
    tpu.vector_store %arg42[%c0_224, %c0_225], %241 {strides = array<i32>} : memref<40x256xf32, #tpu.memory_space<vmem>>, vector<40x256xf32>,
    %cst_226 = arith.constant 0.000000e+00 : f32
    %243 = vector.broadcast %cst_226 : f32 to vector<38x48xf32>
    %c0_227 = arith.constant 0 : index
    %c0_228 = arith.constant 0 : index
    %244 = vector.load %arg42[%c0_227, %c0_228] : memref<40x256xf32, #tpu.memory_space<vmem>>, vector<38x256xf32>
    %245 = arith.truncf %244 : vector<38x256xf32> to vector<38x256xbf16>
    %c0_229 = arith.constant 0 : index
    %c0_230 = arith.constant 0 : index
    %c0_231 = arith.constant 0 : index
    %246 = vector.load %arg28[%c0_229, %c0_230, %c0_231] : memref<3x256x48xbf16, #tpu.memory_space<vmem>>, vector<1x256x48xbf16>
    %247 = vector.shape_cast %246 : vector<1x256x48xbf16> to vector<256x48xbf16>
    %cst_232 = arith.constant dense<0.000000e+00> : vector<38x48xf32>
    %248 = tpu.matmul %245, %247, %cst_232 {dimension_numbers = #tpu.dot_dimension_numbers<[1], [0], [0], [1], [0, 0, 1, 1], [], []>} : vector<38x256xbf16>, vector<256x48xbf16>, vector<38x48xf32> -> vector<38x48xf32>
    %249 = arith.addf %243, %248 : vector<38x48xf32>
    %c1_233 = arith.constant 1 : index
    %c0_234 = arith.constant 0 : index
    %250 = vector.load %arg42[%c1_233, %c0_234] : memref<40x256xf32, #tpu.memory_space<vmem>>, vector<38x256xf32>
    %251 = arith.truncf %250 : vector<38x256xf32> to vector<38x256xbf16>
    %c1_235 = arith.constant 1 : index
    %c0_236 = arith.constant 0 : index
    %c0_237 = arith.constant 0 : index
    %252 = vector.load %arg28[%c1_235, %c0_236, %c0_237] : memref<3x256x48xbf16, #tpu.memory_space<vmem>>, vector<1x256x48xbf16>
    %253 = vector.shape_cast %252 : vector<1x256x48xbf16> to vector<256x48xbf16>
    %cst_238 = arith.constant dense<0.000000e+00> : vector<38x48xf32>
    %254 = tpu.matmul %251, %253, %cst_238 {dimension_numbers = #tpu.dot_dimension_numbers<[1], [0], [0], [1], [0, 0, 1, 1], [], []>} : vector<38x256xbf16>, vector<256x48xbf16>, vector<38x48xf32> -> vector<38x48xf32>
    %255 = arith.addf %249, %254 : vector<38x48xf32>
    %c2_239 = arith.constant 2 : index
    %c0_240 = arith.constant 0 : index
    %256 = vector.load %arg42[%c2_239, %c0_240] : memref<40x256xf32, #tpu.memory_space<vmem>>, vector<38x256xf32>
    %257 = arith.truncf %256 : vector<38x256xf32> to vector<38x256xbf16>
    %c2_241 = arith.constant 2 : index
    %c0_242 = arith.constant 0 : index
    %c0_243 = arith.constant 0 : index
    %258 = vector.load %arg28[%c2_241, %c0_242, %c0_243] : memref<3x256x48xbf16, #tpu.memory_space<vmem>>, vector<1x256x48xbf16>
    %259 = vector.shape_cast %258 : vector<1x256x48xbf16> to vector<256x48xbf16>
    %cst_244 = arith.constant dense<0.000000e+00> : vector<38x48xf32>
    %260 = tpu.matmul %257, %259, %cst_244 {dimension_numbers = #tpu.dot_dimension_numbers<[1], [0], [0], [1], [0, 0, 1, 1], [], []>} : vector<38x256xbf16>, vector<256x48xbf16>, vector<38x48xf32> -> vector<38x48xf32>
    %261 = arith.addf %255, %260 : vector<38x48xf32>
    %c0_245 = arith.constant 0 : index
    %c0_246 = arith.constant 0 : index
    %262 = vector.load %arg29[%c0_245, %c0_246] : memref<1x48xf32, #tpu.memory_space<vmem>>, vector<1x48xf32>
    %263 = vector.broadcast %262 : vector<1x48xf32> to vector<38x48xf32>
    %264 = arith.addf %261, %263 : vector<38x48xf32>
    %265 = arith.truncf %264 : vector<38x48xf32> to vector<38x48xbf16>
    %c0_247 = arith.constant 0 : index
    %c0_248 = arith.constant 0 : index
    %266 = vector.load %arg30[%c0_247, %c0_248] : memref<74x38xbf16, #tpu.memory_space<vmem>>, vector<74x38xbf16>
    %cst_249 = arith.constant dense<0.000000e+00> : vector<74x48xf32>
    %267 = tpu.matmul %266, %265, %cst_249 {dimension_numbers = #tpu.dot_dimension_numbers<[1], [0], [0], [1], [0, 0, 1, 1], [], []>} : vector<74x38xbf16>, vector<38x48xbf16>, vector<74x48xf32> -> vector<74x48xf32>
    %cst_250 = arith.constant 2.000000e-01 : f32
    %268 = vector.broadcast %cst_250 : f32 to vector<74x48xf32>
    %269 = arith.mulf %268, %267 : vector<74x48xf32>
    %270 = arith.maximumf %267, %269 : vector<74x48xf32>
    %c0_251 = arith.constant 0 : index
    %c0_252 = arith.constant 0 : index
    %271 = vector.load %arg43[%c0_251, %c0_252] : memref<74x48xf32, #tpu.memory_space<vmem>>, vector<74x48xf32>
    tpu.vector_store %arg43[%c0_251, %c0_252], %270 {strides = array<i32>} : memref<74x48xf32, #tpu.memory_space<vmem>>, vector<74x48xf32>,
    %cst_253 = arith.constant 0.000000e+00 : f32
    %272 = vector.broadcast %cst_253 : f32 to vector<72x48xf32>
    %c0_254 = arith.constant 0 : index
    %c0_255 = arith.constant 0 : index
    %273 = vector.load %arg43[%c0_254, %c0_255] : memref<74x48xf32, #tpu.memory_space<vmem>>, vector<72x48xf32>
    %274 = arith.truncf %273 : vector<72x48xf32> to vector<72x48xbf16>
    %c0_256 = arith.constant 0 : index
    %c0_257 = arith.constant 0 : index
    %c0_258 = arith.constant 0 : index
    %275 = vector.load %arg31[%c0_256, %c0_257, %c0_258] : memref<3x48x48xbf16, #tpu.memory_space<vmem>>, vector<1x48x48xbf16>
    %276 = vector.shape_cast %275 : vector<1x48x48xbf16> to vector<48x48xbf16>
    %cst_259 = arith.constant dense<0.000000e+00> : vector<72x48xf32>
    %277 = tpu.matmul %274, %276, %cst_259 {dimension_numbers = #tpu.dot_dimension_numbers<[1], [0], [0], [1], [0, 0, 1, 1], [], []>} : vector<72x48xbf16>, vector<48x48xbf16>, vector<72x48xf32> -> vector<72x48xf32>
    %278 = arith.addf %272, %277 : vector<72x48xf32>
    %c1_260 = arith.constant 1 : index
    %c0_261 = arith.constant 0 : index
    %279 = vector.load %arg43[%c1_260, %c0_261] : memref<74x48xf32, #tpu.memory_space<vmem>>, vector<72x48xf32>
    %280 = arith.truncf %279 : vector<72x48xf32> to vector<72x48xbf16>
    %c1_262 = arith.constant 1 : index
    %c0_263 = arith.constant 0 : index
    %c0_264 = arith.constant 0 : index
    %281 = vector.load %arg31[%c1_262, %c0_263, %c0_264] : memref<3x48x48xbf16, #tpu.memory_space<vmem>>, vector<1x48x48xbf16>
    %282 = vector.shape_cast %281 : vector<1x48x48xbf16> to vector<48x48xbf16>
    %cst_265 = arith.constant dense<0.000000e+00> : vector<72x48xf32>
    %283 = tpu.matmul %280, %282, %cst_265 {dimension_numbers = #tpu.dot_dimension_numbers<[1], [0], [0], [1], [0, 0, 1, 1], [], []>} : vector<72x48xbf16>, vector<48x48xbf16>, vector<72x48xf32> -> vector<72x48xf32>
    %284 = arith.addf %278, %283 : vector<72x48xf32>
    %c2_266 = arith.constant 2 : index
    %c0_267 = arith.constant 0 : index
    %285 = vector.load %arg43[%c2_266, %c0_267] : memref<74x48xf32, #tpu.memory_space<vmem>>, vector<72x48xf32>
    %286 = arith.truncf %285 : vector<72x48xf32> to vector<72x48xbf16>
    %c2_268 = arith.constant 2 : index
    %c0_269 = arith.constant 0 : index
    %c0_270 = arith.constant 0 : index
    %287 = vector.load %arg31[%c2_268, %c0_269, %c0_270] : memref<3x48x48xbf16, #tpu.memory_space<vmem>>, vector<1x48x48xbf16>
    %288 = vector.shape_cast %287 : vector<1x48x48xbf16> to vector<48x48xbf16>
    %cst_271 = arith.constant dense<0.000000e+00> : vector<72x48xf32>
    %289 = tpu.matmul %286, %288, %cst_271 {dimension_numbers = #tpu.dot_dimension_numbers<[1], [0], [0], [1], [0, 0, 1, 1], [], []>} : vector<72x48xbf16>, vector<48x48xbf16>, vector<72x48xf32> -> vector<72x48xf32>
    %290 = arith.addf %284, %289 : vector<72x48xf32>
    %c0_272 = arith.constant 0 : index
    %c0_273 = arith.constant 0 : index
    %291 = vector.load %arg32[%c0_272, %c0_273] : memref<1x48xf32, #tpu.memory_space<vmem>>, vector<1x48xf32>
    %292 = vector.broadcast %291 : vector<1x48xf32> to vector<72x48xf32>
    %293 = arith.addf %290, %292 : vector<72x48xf32>
    %cst_274 = arith.constant 2.000000e-01 : f32
    %294 = vector.broadcast %cst_274 : f32 to vector<72x48xf32>
    %295 = arith.mulf %294, %293 : vector<72x48xf32>
    %296 = arith.maximumf %293, %295 : vector<72x48xf32>
    %c0_275 = arith.constant 0 : index
    %c0_276 = arith.constant 0 : index
    %297 = vector.load %arg44[%c0_275, %c0_276] : memref<72x48xf32, #tpu.memory_space<vmem>>, vector<72x48xf32>
    tpu.vector_store %arg44[%c0_275, %c0_276], %296 {strides = array<i32>} : memref<72x48xf32, #tpu.memory_space<vmem>>, vector<72x48xf32>,
    %c1_277 = arith.constant 1 : index
    %c0_278 = arith.constant 0 : index
    %298 = vector.load %arg44[%c1_277, %c0_278] : memref<72x48xf32, #tpu.memory_space<vmem>>, vector<16x48xf32>
    %c19 = arith.constant 19 : index
    %c0_279 = arith.constant 0 : index
    %299 = vector.load %arg44[%c19, %c0_279] : memref<72x48xf32, #tpu.memory_space<vmem>>, vector<16x48xf32>
    %300 = arith.addf %298, %299 : vector<16x48xf32>
    %c37 = arith.constant 37 : index
    %c0_280 = arith.constant 0 : index
    %301 = vector.load %arg44[%c37, %c0_280] : memref<72x48xf32, #tpu.memory_space<vmem>>, vector<16x48xf32>
    %302 = arith.addf %300, %301 : vector<16x48xf32>
    %c55 = arith.constant 55 : index
    %c0_281 = arith.constant 0 : index
    %303 = vector.load %arg44[%c55, %c0_281] : memref<72x48xf32, #tpu.memory_space<vmem>>, vector<16x48xf32>
    %304 = arith.addf %302, %303 : vector<16x48xf32>
    %c0_282 = arith.constant 0 : index
    %c0_283 = arith.constant 0 : index
    %c0_284 = arith.constant 0 : index
    %305 = vector.load %arg34[%c0_282, %c0_283, %c0_284] : memref<1x16x48xf32, #tpu.memory_space<vmem>>, vector<1x16x48xf32>
    %306 = vector.shape_cast %305 : vector<1x16x48xf32> to vector<16x48xf32>
    %307 = vector.shape_cast %304 : vector<16x48xf32> to vector<1x16x48xf32>
    tpu.vector_store %arg34[%c0_282, %c0_283, %c0_284], %307 {strides = array<i32>} : memref<1x16x48xf32, #tpu.memory_space<vmem>>, vector<1x16x48xf32>,
    return
  }
  func.func @transform_0(%arg0: i32) -> (i32, i32, i32) {
    %c0_i32 = arith.constant 0 : i32
    %c0_i32_0 = arith.constant 0 : i32
    %c0_i32_1 = arith.constant 0 : i32
    return %arg0, %c0_i32, %c0_i32_0 : i32, i32, i32
  }
  func.func @transform_1(%arg0: i32) -> (i32, i32, i32) {
    %c0_i32 = arith.constant 0 : i32
    %c0_i32_0 = arith.constant 0 : i32
    %c0_i32_1 = arith.constant 0 : i32
    %c0_i32_2 = arith.constant 0 : i32
    return %c0_i32, %c0_i32_0, %c0_i32_1 : i32, i32, i32
  }
  func.func @transform_2(%arg0: i32) -> (i32, i32, i32) {
    %c0_i32 = arith.constant 0 : i32
    %c0_i32_0 = arith.constant 0 : i32
    %c0_i32_1 = arith.constant 0 : i32
    %c0_i32_2 = arith.constant 0 : i32
    return %c0_i32, %c0_i32_0, %c0_i32_1 : i32, i32, i32
  }
  func.func @transform_3(%arg0: i32) -> (i32, i32) {
    %c0_i32 = arith.constant 0 : i32
    %c0_i32_0 = arith.constant 0 : i32
    %c0_i32_1 = arith.constant 0 : i32
    return %c0_i32, %c0_i32_0 : i32, i32
  }
  func.func @transform_4(%arg0: i32) -> (i32, i32, i32) {
    %c0_i32 = arith.constant 0 : i32
    %c0_i32_0 = arith.constant 0 : i32
    %c0_i32_1 = arith.constant 0 : i32
    %c0_i32_2 = arith.constant 0 : i32
    return %c0_i32, %c0_i32_0, %c0_i32_1 : i32, i32, i32
  }
  func.func @transform_5(%arg0: i32) -> (i32, i32, i32) {
    %c0_i32 = arith.constant 0 : i32
    %c0_i32_0 = arith.constant 0 : i32
    %c0_i32_1 = arith.constant 0 : i32
    %c0_i32_2 = arith.constant 0 : i32
    return %c0_i32, %c0_i32_0, %c0_i32_1 : i32, i32, i32
  }
  func.func @transform_6(%arg0: i32) -> (i32, i32) {
    %c0_i32 = arith.constant 0 : i32
    %c0_i32_0 = arith.constant 0 : i32
    %c0_i32_1 = arith.constant 0 : i32
    return %c0_i32, %c0_i32_0 : i32, i32
  }
  func.func @transform_7(%arg0: i32) -> (i32, i32) {
    %c0_i32 = arith.constant 0 : i32
    %c0_i32_0 = arith.constant 0 : i32
    %c0_i32_1 = arith.constant 0 : i32
    return %c0_i32, %c0_i32_0 : i32, i32
  }
  func.func @transform_8(%arg0: i32) -> (i32, i32) {
    %c0_i32 = arith.constant 0 : i32
    %c0_i32_0 = arith.constant 0 : i32
    %c0_i32_1 = arith.constant 0 : i32
    return %c0_i32, %c0_i32_0 : i32, i32
  }
  func.func @transform_9(%arg0: i32) -> (i32, i32) {
    %c0_i32 = arith.constant 0 : i32
    %c0_i32_0 = arith.constant 0 : i32
    %c0_i32_1 = arith.constant 0 : i32
    return %c0_i32, %c0_i32_0 : i32, i32
  }
  func.func @transform_10(%arg0: i32) -> (i32, i32) {
    %c0_i32 = arith.constant 0 : i32
    %c0_i32_0 = arith.constant 0 : i32
    %c0_i32_1 = arith.constant 0 : i32
    return %c0_i32, %c0_i32_0 : i32, i32
  }
  func.func @transform_11(%arg0: i32) -> (i32, i32) {
    %c0_i32 = arith.constant 0 : i32
    %c0_i32_0 = arith.constant 0 : i32
    %c0_i32_1 = arith.constant 0 : i32
    return %c0_i32, %c0_i32_0 : i32, i32
  }
  func.func @transform_12(%arg0: i32) -> (i32, i32) {
    %c0_i32 = arith.constant 0 : i32
    %c0_i32_0 = arith.constant 0 : i32
    %c0_i32_1 = arith.constant 0 : i32
    return %c0_i32, %c0_i32_0 : i32, i32
  }
  func.func @transform_13(%arg0: i32) -> (i32, i32) {
    %c0_i32 = arith.constant 0 : i32
    %c0_i32_0 = arith.constant 0 : i32
    %c0_i32_1 = arith.constant 0 : i32
    return %c0_i32, %c0_i32_0 : i32, i32
  }
  func.func @transform_14(%arg0: i32) -> (i32, i32) {
    %c0_i32 = arith.constant 0 : i32
    %c0_i32_0 = arith.constant 0 : i32
    %c0_i32_1 = arith.constant 0 : i32
    return %c0_i32, %c0_i32_0 : i32, i32
  }
  func.func @transform_15(%arg0: i32) -> (i32, i32, i32) {
    %c0_i32 = arith.constant 0 : i32
    %c0_i32_0 = arith.constant 0 : i32
    %c0_i32_1 = arith.constant 0 : i32
    %c0_i32_2 = arith.constant 0 : i32
    return %c0_i32, %c0_i32_0, %c0_i32_1 : i32, i32, i32
  }
  func.func @transform_16(%arg0: i32) -> (i32, i32) {
    %c0_i32 = arith.constant 0 : i32
    %c0_i32_0 = arith.constant 0 : i32
    %c0_i32_1 = arith.constant 0 : i32
    return %c0_i32, %c0_i32_0 : i32, i32
  }
  func.func @transform_17(%arg0: i32) -> (i32, i32) {
    %c0_i32 = arith.constant 0 : i32
    %c0_i32_0 = arith.constant 0 : i32
    %c0_i32_1 = arith.constant 0 : i32
    return %c0_i32, %c0_i32_0 : i32, i32
  }
  func.func @transform_18(%arg0: i32) -> (i32, i32, i32) {
    %c0_i32 = arith.constant 0 : i32
    %c0_i32_0 = arith.constant 0 : i32
    %c0_i32_1 = arith.constant 0 : i32
    %c0_i32_2 = arith.constant 0 : i32
    return %c0_i32, %c0_i32_0, %c0_i32_1 : i32, i32, i32
  }
  func.func @transform_19(%arg0: i32) -> (i32, i32) {
    %c0_i32 = arith.constant 0 : i32
    %c0_i32_0 = arith.constant 0 : i32
    %c0_i32_1 = arith.constant 0 : i32
    return %c0_i32, %c0_i32_0 : i32, i32
  }
  func.func @transform_20(%arg0: i32) -> (i32, i32) {
    %c0_i32 = arith.constant 0 : i32
    %c0_i32_0 = arith.constant 0 : i32
    %c0_i32_1 = arith.constant 0 : i32
    return %c0_i32, %c0_i32_0 : i32, i32
  }
  func.func @transform_21(%arg0: i32) -> (i32, i32, i32) {
    %c0_i32 = arith.constant 0 : i32
    %c0_i32_0 = arith.constant 0 : i32
    %c0_i32_1 = arith.constant 0 : i32
    %c0_i32_2 = arith.constant 0 : i32
    return %c0_i32, %c0_i32_0, %c0_i32_1 : i32, i32, i32
  }
  func.func @transform_22(%arg0: i32) -> (i32, i32) {
    %c0_i32 = arith.constant 0 : i32
    %c0_i32_0 = arith.constant 0 : i32
    %c0_i32_1 = arith.constant 0 : i32
    return %c0_i32, %c0_i32_0 : i32, i32
  }
  func.func @transform_23(%arg0: i32) -> (i32, i32) {
    %c0_i32 = arith.constant 0 : i32
    %c0_i32_0 = arith.constant 0 : i32
    %c0_i32_1 = arith.constant 0 : i32
    return %c0_i32, %c0_i32_0 : i32, i32
  }
  func.func @transform_24(%arg0: i32) -> (i32, i32, i32) {
    %c0_i32 = arith.constant 0 : i32
    %c0_i32_0 = arith.constant 0 : i32
    %c0_i32_1 = arith.constant 0 : i32
    %c0_i32_2 = arith.constant 0 : i32
    return %c0_i32, %c0_i32_0, %c0_i32_1 : i32, i32, i32
  }
  func.func @transform_25(%arg0: i32) -> (i32, i32) {
    %c0_i32 = arith.constant 0 : i32
    %c0_i32_0 = arith.constant 0 : i32
    %c0_i32_1 = arith.constant 0 : i32
    return %c0_i32, %c0_i32_0 : i32, i32
  }
  func.func @transform_26(%arg0: i32) -> (i32, i32) {
    %c0_i32 = arith.constant 0 : i32
    %c0_i32_0 = arith.constant 0 : i32
    %c0_i32_1 = arith.constant 0 : i32
    return %c0_i32, %c0_i32_0 : i32, i32
  }
  func.func @transform_27(%arg0: i32) -> (i32, i32, i32) {
    %c0_i32 = arith.constant 0 : i32
    %c0_i32_0 = arith.constant 0 : i32
    %c0_i32_1 = arith.constant 0 : i32
    %c0_i32_2 = arith.constant 0 : i32
    return %c0_i32, %c0_i32_0, %c0_i32_1 : i32, i32, i32
  }
  func.func @transform_28(%arg0: i32) -> (i32, i32) {
    %c0_i32 = arith.constant 0 : i32
    %c0_i32_0 = arith.constant 0 : i32
    %c0_i32_1 = arith.constant 0 : i32
    return %c0_i32, %c0_i32_0 : i32, i32
  }
  func.func @transform_29(%arg0: i32) -> (i32, i32) {
    %c0_i32 = arith.constant 0 : i32
    %c0_i32_0 = arith.constant 0 : i32
    %c0_i32_1 = arith.constant 0 : i32
    return %c0_i32, %c0_i32_0 : i32, i32
  }
  func.func @transform_30(%arg0: i32) -> (i32, i32, i32) {
    %c0_i32 = arith.constant 0 : i32
    %c0_i32_0 = arith.constant 0 : i32
    %c0_i32_1 = arith.constant 0 : i32
    %c0_i32_2 = arith.constant 0 : i32
    return %c0_i32, %c0_i32_0, %c0_i32_1 : i32, i32, i32
  }
  func.func @transform_31(%arg0: i32) -> (i32, i32) {
    %c0_i32 = arith.constant 0 : i32
    %c0_i32_0 = arith.constant 0 : i32
    %c0_i32_1 = arith.constant 0 : i32
    return %c0_i32, %c0_i32_0 : i32, i32
  }
  func.func @transform_32(%arg0: i32) -> (i32, i32) {
    %c0_i32 = arith.constant 0 : i32
    %c0_i32_0 = arith.constant 0 : i32
    %c0_i32_1 = arith.constant 0 : i32
    return %c0_i32, %c0_i32_0 : i32, i32
  }
  func.func @transform_33(%arg0: i32) -> (i32, i32, i32) {
    %c0_i32 = arith.constant 0 : i32
    %c0_i32_0 = arith.constant 0 : i32
    %c0_i32_1 = arith.constant 0 : i32
    return %arg0, %c0_i32, %c0_i32_0 : i32, i32, i32
  }
}

</mosaic_0001>

<llo_original>
// kernel: forward.1
$region0: #{forward.1}
  #allocation0 [shape = 'u32[]', space=smem, size = 0x4, offset = 0x4, fixed_abs, tag = 'smem constant byte address 0x4 - core index']
  #allocation1 [shape = 'u32[144,128]{1,0:T(1,128)}', space=vmem, size = 0x12000, scoped, tag = 'internal scratch']
  #allocation2 [shape = 'f32[4,64]{1,0:T(4,128)}', space=vmem, size = 0x800, scoped, tag = 'scratch operand']
  #allocation3 [shape = 'f32[1,256]{1,0:T(1,128)}', space=vmem, size = 0x400, scoped, tag = 'scratch operand']
  #allocation4 [shape = 'f32[1,128]{1,0:T(1,128)}', space=vmem, size = 0x200, scoped, tag = 'scratch operand']
  #allocation5 [shape = 'f32[16,16]{1,0:T(8,128)}', space=vmem, size = 0x2000, scoped, tag = 'scratch operand']
  #allocation6 [shape = 'f32[26,64]{1,0:T(8,128)}', space=vmem, size = 0x4000, scoped, tag = 'scratch operand']
  #allocation7 [shape = 'f32[24,64]{1,0:T(8,128)}', space=vmem, size = 0x3000, scoped, tag = 'scratch operand']
  #allocation8 [shape = 'f32[42,256]{1,0:T(8,128)}', space=vmem, size = 0xc000, scoped, tag = 'scratch operand']
  #allocation9 [shape = 'f32[40,256]{1,0:T(8,128)}', space=vmem, size = 0xa000, scoped, tag = 'scratch operand']
  #allocation10 [shape = 'f32[74,48]{1,0:T(8,128)}', space=vmem, size = 0xa000, scoped, tag = 'scratch operand']
  #allocation11 [shape = 'f32[72,48]{1,0:T(8,128)}', space=vmem, size = 0x9000, scoped, tag = 'scratch operand']
  %s0 = inlined_call_operand.smem [shape: u32[34], index: -1, kind: input, shape index: {}]
  %s1 = sld [smem:[%s0]]
  %s2 = scalar_lea.smem %s0, 1
  %s3 = sld [smem:[%s2]]
  %s4 = scalar_lea.smem %s0, 2
  %s5 = sld [smem:[%s4]]
  %s6 = scalar_lea.smem %s0, 3
  %s7 = sld [smem:[%s6]]
  %s8 = scalar_lea.smem %s0, 4
  %s9 = sld [smem:[%s8]]
  %s10 = scalar_lea.smem %s0, 5
  %s11 = sld [smem:[%s10]]
  %s12 = scalar_lea.smem %s0, 6
  %s13 = sld [smem:[%s12]]
  %s14 = scalar_lea.smem %s0, 7
  %s15 = sld [smem:[%s14]]
  %s16 = scalar_lea.smem %s0, 8
  %s17 = sld [smem:[%s16]]
  %s18 = scalar_lea.smem %s0, 9
  %s19 = sld [smem:[%s18]]
  %s20 = scalar_lea.smem %s0, 10
  %s21 = sld [smem:[%s20]]
  %s22 = scalar_lea.smem %s0, 11
  %s23 = sld [smem:[%s22]]
  %s24 = scalar_lea.smem %s0, 12
  %s25 = sld [smem:[%s24]]
  %s26 = scalar_lea.smem %s0, 13
  %s27 = sld [smem:[%s26]]
  %s28 = scalar_lea.smem %s0, 14
  %s29 = sld [smem:[%s28]]
  %s30 = scalar_lea.smem %s0, 15
  %s31 = sld [smem:[%s30]]
  %s32 = scalar_lea.smem %s0, 16
  %s33 = sld [smem:[%s32]]
  %s34 = scalar_lea.smem %s0, 17
  %s35 = sld [smem:[%s34]]
  %s36 = scalar_lea.smem %s0, 18
  %s37 = sld [smem:[%s36]]
  %s38 = scalar_lea.smem %s0, 19
  %s39 = sld [smem:[%s38]]
  %s40 = scalar_lea.smem %s0, 20
  %s41 = sld [smem:[%s40]]
  %s42 = scalar_lea.smem %s0, 21
  %s43 = sld [smem:[%s42]]
  %s44 = scalar_lea.smem %s0, 22
  %s45 = sld [smem:[%s44]]
  %s46 = scalar_lea.smem %s0, 23
  %s47 = sld [smem:[%s46]]
  %s48 = scalar_lea.smem %s0, 24
  %s49 = sld [smem:[%s48]]
  %s50 = scalar_lea.smem %s0, 25
  %s51 = sld [smem:[%s50]]
  %s52 = scalar_lea.smem %s0, 26
  %s53 = sld [smem:[%s52]]
  %s54 = scalar_lea.smem %s0, 27
  %s55 = sld [smem:[%s54]]
  %s56 = scalar_lea.smem %s0, 28
  %s57 = sld [smem:[%s56]]
  %s58 = scalar_lea.smem %s0, 29
  %s59 = sld [smem:[%s58]]
  %s60 = scalar_lea.smem %s0, 30
  %s61 = sld [smem:[%s60]]
  %s62 = scalar_lea.smem %s0, 31
  %s63 = sld [smem:[%s62]]
  %s64 = scalar_lea.smem %s0, 32
  %s65 = sld [smem:[%s64]]
  %s66 = scalar_lea.smem %s0, 33
  %s67 = sld [smem:[%s66]]
  %s68 = sld [smem:[#allocation0]]
  $region233: #{forward.1} parent=0
    _
  %s70 = ssub.s32 1, %s68
  %s71 = scalar_select 0, %s70, %s68
  $region1: #{forward.1} parent=0
    #allocation12 [shape = 'u8[6144]{0}', space=vmem, size = 0x1800, scoped, tag = 'input window, operand 1, single buffered']
    #allocation13 [shape = 's32[2]{0}', space=sflag, size = 0x8, scoped, tag = 'scoped memory for forward.1']
    #allocation14 [shape = 'u8[1024]{0}', space=vmem, size = 0x400, scoped, tag = 'input window, operand 3, single buffered']
    #allocation15 [shape = 's32[1]{0}', space=sflag, size = 0x4, scoped, tag = 'scoped memory for forward.1']
    #allocation16 [shape = 'u8[3072]{0}', space=vmem, size = 0xc00, scoped, tag = 'input window, operand 4, single buffered']
    #allocation17 [shape = 'u8[512]{0}', space=vmem, size = 0x400, scoped, tag = 'input window, operand 6, single buffered']
    #allocation18 [shape = 's32[1]{0}', space=sflag, size = 0x4, scoped, tag = 'scoped memory for forward.1']
    #allocation19 [shape = 'u8[1024]{0}', space=vmem, size = 0x400, scoped, tag = 'input window, operand 8, single buffered']
    #allocation20 [shape = 'u8[512]{0}', space=vmem, size = 0x400, scoped, tag = 'input window, operand 10, single buffered']
    #allocation21 [shape = 's32[1]{0}', space=sflag, size = 0x4, scoped, tag = 'scoped memory for forward.1']
    #allocation22 [shape = 'u8[6144]{0}', space=vmem, size = 0x1800, scoped, tag = 'input window, operand 11, single buffered']
    #allocation23 [shape = 'u8[512]{0}', space=vmem, size = 0x400, scoped, tag = 'input window, operand 12, single buffered']
    #allocation24 [shape = 's32[1]{0}', space=sflag, size = 0x4, scoped, tag = 'scoped memory for forward.1']
    #allocation25 [shape = 'u8[512]{0}', space=vmem, size = 0x400, scoped, tag = 'input window, operand 14, single buffered']
    #allocation26 [shape = 'u8[12288]{0}', space=vmem, size = 0x3000, scoped, tag = 'input window, operand 15, single buffered']
    #allocation27 [shape = 's32[1]{0}', space=sflag, size = 0x4, scoped, tag = 'scoped memory for forward.1']
    #allocation28 [shape = 'u8[512]{0}', space=vmem, size = 0x400, scoped, tag = 'input window, operand 16, single buffered']
    #allocation29 [shape = 'u8[512]{0}', space=vmem, size = 0x400, scoped, tag = 'input window, operand 19, single buffered']
    #allocation30 [shape = 's32[1]{0}', space=sflag, size = 0x4, scoped, tag = 'scoped memory for forward.1']
    #allocation31 [shape = 'u8[1024]{0}', space=vmem, size = 0x400, scoped, tag = 'input window, operand 22, single buffered']
    #allocation32 [shape = 'u8[1024]{0}', space=vmem, size = 0x400, scoped, tag = 'input window, operand 25, single buffered']
    #allocation33 [shape = 's32[1]{0}', space=sflag, size = 0x4, scoped, tag = 'scoped memory for forward.1']
    #allocation34 [shape = 'u8[512]{0}', space=vmem, size = 0x400, scoped, tag = 'input window, operand 28, single buffered']
    #allocation35 [shape = 'u8[36864]{0}', space=vmem, size = 0x9000, scoped, tag = 'input window, operand 30, single buffered']
    #allocation36 [shape = 's32[1]{0}', space=sflag, size = 0x4, scoped, tag = 'scoped memory for forward.1']
    #allocation37 [shape = 'u8[512]{0}', space=vmem, size = 0x400, scoped, tag = 'input window, operand 31, single buffered']
    %72 = vsyncpa [#allocation13], 0
    %73 = vsyncpa [#allocation15], 0
    %74 = vsyncpa [#allocation18], 0
    %75 = vsyncpa [#allocation21], 0
    %76 = vsyncpa [#allocation24], 0
    %77 = vsyncpa [#allocation27], 0
    %78 = vsyncpa [#allocation30], 0
    %79 = vsyncpa [#allocation33], 0
    %80 = vsyncpa [#allocation36], 0
    loop: start=0, step=1, limit=4
    $region2: #{forward.1} parent=1 // loop_pre_header
      _
    $region3: #{forward.1} parent=1 // loop_header
      %s82 = sphi 0, %s86
      %p83 = scmp.ge.s32.totalorder %s82, 4
      %s92 = sphi 0, %s94
      %s95 = sphi 0, %s92
      %s96 = sphi 0, %s95
      %s112 = sphi 0, %s96
      %s116 = sphi 0, %s116
      %s118 = sphi 0, %s116
      %s119 = sphi 0, %s118
      %s133 = sphi 0, %s119
      %s137 = sphi 0, %s137
      %s139 = sphi 0, %s137
      %s140 = sphi 0, %s139
      %s154 = sphi 0, %s140
      %s158 = sphi 0, %s158
      %s160 = sphi 0, %s158
      %s161 = sphi 0, %s160
      %s175 = sphi 0, %s161
      %s179 = sphi 0, %s179
      %s181 = sphi 0, %s179
      %s182 = sphi 0, %s181
      %s196 = sphi 0, %s182
      %s200 = sphi 0, %s200
      %s202 = sphi 0, %s200
      %s203 = sphi 0, %s202
      %s217 = sphi 0, %s203
      %s221 = sphi 0, %s221
      %s223 = sphi 0, %s221
      %s224 = sphi 0, %s223
      %s238 = sphi 0, %s224
      %s242 = sphi 0, %s242
      %s244 = sphi 0, %s242
      %s245 = sphi 0, %s244
      %s259 = sphi 0, %s245
      %s263 = sphi 0, %s263
      %s265 = sphi 0, %s263
      %s266 = sphi 0, %s265
      %s280 = sphi 0, %s266
      %s284 = sphi 0, %s284
      %s286 = sphi 0, %s284
      %s287 = sphi 0, %s286
      %s301 = sphi 0, %s287
      %s305 = sphi 0, %s305
      %s307 = sphi 0, %s305
      %s308 = sphi 0, %s307
      %s322 = sphi 0, %s308
      %s326 = sphi 0, %s326
      %s328 = sphi 0, %s326
      %s329 = sphi 0, %s328
      %s343 = sphi 0, %s329
      %s347 = sphi 0, %s347
      %s349 = sphi 0, %s347
      %s350 = sphi 0, %s349
      %s364 = sphi 0, %s350
      %s368 = sphi 0, %s368
      %s370 = sphi 0, %s368
      %s371 = sphi 0, %s370
      %s385 = sphi 0, %s371
      %s389 = sphi 0, %s389
      %s391 = sphi 0, %s389
      %s392 = sphi 0, %s391
      %s406 = sphi 0, %s392
      %s410 = sphi 0, %s410
      %s412 = sphi 0, %s410
      %s413 = sphi 0, %s412
      %s427 = sphi 0, %s413
      %s431 = sphi 0, %s431
      %s433 = sphi 0, %s431
      %s434 = sphi 0, %s433
      %s448 = sphi 0, %s434
      %s452 = sphi 0, %s452
      %s454 = sphi 0, %s452
      %s455 = sphi 0, %s454
      %s469 = sphi 0, %s455
      %s473 = sphi 0, %s473
      %s475 = sphi 0, %s473
      %s476 = sphi 0, %s475
      %s490 = sphi 0, %s476
      %s494 = sphi 0, %s494
      %s496 = sphi 0, %s494
      %s497 = sphi 0, %s496
      %s511 = sphi 0, %s497
      %s515 = sphi 0, %s515
      %s517 = sphi 0, %s515
      %s518 = sphi 0, %s517
      %s532 = sphi 0, %s518
      %s536 = sphi 0, %s536
      %s538 = sphi 0, %s536
      %s539 = sphi 0, %s538
      %s553 = sphi 0, %s539
      %s557 = sphi 0, %s557
      %s559 = sphi 0, %s557
      %s560 = sphi 0, %s559
      %s574 = sphi 0, %s560
      %s578 = sphi 0, %s578
      %s580 = sphi 0, %s578
      %s581 = sphi 0, %s580
      %s595 = sphi 0, %s581
      %s599 = sphi 0, %s599
      %s601 = sphi 0, %s599
      %s602 = sphi 0, %s601
      %s616 = sphi 0, %s602
      %s620 = sphi 0, %s620
      %s622 = sphi 0, %s620
      %s623 = sphi 0, %s622
      %s637 = sphi 0, %s623
      %s641 = sphi 0, %s641
      %s643 = sphi 0, %s641
      %s644 = sphi 0, %s643
      %s658 = sphi 0, %s644
      %s662 = sphi 0, %s662
      %s664 = sphi 0, %s662
      %s665 = sphi 0, %s664
      %s679 = sphi 0, %s665
      %s683 = sphi 0, %s683
      %s685 = sphi 0, %s683
      %s686 = sphi 0, %s685
      %s700 = sphi 0, %s686
      %s704 = sphi 0, %s704
      %s706 = sphi 0, %s704
      %s707 = sphi 0, %s706
      %s721 = sphi 0, %s707
      %s725 = sphi 0, %s725
      %s727 = sphi 0, %s725
      %s728 = sphi 0, %s727
      %s742 = sphi 0, %s728
      %s746 = sphi 0, %s746
      %s748 = sphi 0, %s746
      %s749 = sphi 0, %s748
      %s763 = sphi 0, %s749
      %s767 = sphi 0, %s767
      %s769 = sphi 0, %s767
      %s770 = sphi 0, %s769
      %s784 = sphi 0, %s770
      %s790 = sphi 0, %s792
      %s793 = sphi 0, %s790
      %s794 = sphi 0, %s793
      %s810 = sphi 0, %s794
    $region4: #{forward.1} parent=1 // loop_header_branch
      %85 = sbr.rel (%p83) target = $region8
    $region5: #{forward.1} parent=1 // loop_body
      %s87 = ssub.s32 %s82, 1
      %s88 = ssub.s32 %s82, 2
      %s89 = sadd.s32 %s82, 1
      %s90 = ssub.s32 %s82, %s89
      %p91 = scmp.eq.s32.totalorder %s90, 0
      %s93 = sadd.s32 %s92, 1
      %s94 = scalar_select %p91, %s92, %s93
      %p97 = pneg %p91
      %p98 = scmp.eq.s32.totalorder %s82, 1
      %p99 = por %p97, %p98
      %p100 = scmp.ne.s32.totalorder %s92, %s95
      %p101 = scmp.eq.s32.totalorder %s82, 0
      %p102 = por %p100, %p101
      %p103 = scmp.ne.s32.totalorder %s92, %s95
      %p104 = scmp.eq.s32.totalorder %s87, 1
      %p105 = por %p103, %p104
      %p106 = scmp.ne.s32.totalorder %s95, %s96
      %p107 = scmp.eq.s32.totalorder %s87, 0
      %p108 = por %p106, %p107
      %p109 = scmp.ne.s32.totalorder %s95, %s96
      %p110 = scmp.eq.s32.totalorder %s88, 1
      %p111 = por %p109, %p110
      %p113 = scmp.ne.s32.totalorder %s96, %s112
      %p114 = scmp.eq.s32.totalorder %s88, 0
      %p115 = por %p113, %p114
      %s117 = sadd.s32 %s116, 1
      %p120 = scmp.eq.s32.totalorder %s82, 1
      %p121 = scmp.ne.s32.totalorder %s116, %s118
      %p122 = scmp.eq.s32.totalorder %s82, 0
      %p123 = por %p121, %p122
      %p124 = scmp.ne.s32.totalorder %s116, %s118
      %p125 = scmp.eq.s32.totalorder %s87, 1
      %p126 = por %p124, %p125
      %p127 = scmp.ne.s32.totalorder %s118, %s119
      %p128 = scmp.eq.s32.totalorder %s87, 0
      %p129 = por %p127, %p128
      %p130 = scmp.ne.s32.totalorder %s118, %s119
      %p131 = scmp.eq.s32.totalorder %s88, 1
      %p132 = por %p130, %p131
      %p134 = scmp.ne.s32.totalorder %s119, %s133
      %p135 = scmp.eq.s32.totalorder %s88, 0
      %p136 = por %p134, %p135
      %s138 = sadd.s32 %s137, 1
      %p141 = scmp.eq.s32.totalorder %s82, 1
      %p142 = scmp.ne.s32.totalorder %s137, %s139
      %p143 = scmp.eq.s32.totalorder %s82, 0
      %p144 = por %p142, %p143
      %p145 = scmp.ne.s32.totalorder %s137, %s139
      %p146 = scmp.eq.s32.totalorder %s87, 1
      %p147 = por %p145, %p146
      %p148 = scmp.ne.s32.totalorder %s139, %s140
      %p149 = scmp.eq.s32.totalorder %s87, 0
      %p150 = por %p148, %p149
      %p151 = scmp.ne.s32.totalorder %s139, %s140
      %p152 = scmp.eq.s32.totalorder %s88, 1
      %p153 = por %p151, %p152
      %p155 = scmp.ne.s32.totalorder %s140, %s154
      %p156 = scmp.eq.s32.totalorder %s88, 0
      %p157 = por %p155, %p156
      %s159 = sadd.s32 %s158, 1
      %p162 = scmp.eq.s32.totalorder %s82, 1
      %p163 = scmp.ne.s32.totalorder %s158, %s160
      %p164 = scmp.eq.s32.totalorder %s82, 0
      %p165 = por %p163, %p164
      %p166 = scmp.ne.s32.totalorder %s158, %s160
      %p167 = scmp.eq.s32.totalorder %s87, 1
      %p168 = por %p166, %p167
      %p169 = scmp.ne.s32.totalorder %s160, %s161
      %p170 = scmp.eq.s32.totalorder %s87, 0
      %p171 = por %p169, %p170
      %p172 = scmp.ne.s32.totalorder %s160, %s161
      %p173 = scmp.eq.s32.totalorder %s88, 1
      %p174 = por %p172, %p173
      %p176 = scmp.ne.s32.totalorder %s161, %s175
      %p177 = scmp.eq.s32.totalorder %s88, 0
      %p178 = por %p176, %p177
      %s180 = sadd.s32 %s179, 1
      %p183 = scmp.eq.s32.totalorder %s82, 1
      %p184 = scmp.ne.s32.totalorder %s179, %s181
      %p185 = scmp.eq.s32.totalorder %s82, 0
      %p186 = por %p184, %p185
      %p187 = scmp.ne.s32.totalorder %s179, %s181
      %p188 = scmp.eq.s32.totalorder %s87, 1
      %p189 = por %p187, %p188
      %p190 = scmp.ne.s32.totalorder %s181, %s182
      %p191 = scmp.eq.s32.totalorder %s87, 0
      %p192 = por %p190, %p191
      %p193 = scmp.ne.s32.totalorder %s181, %s182
      %p194 = scmp.eq.s32.totalorder %s88, 1
      %p195 = por %p193, %p194
      %p197 = scmp.ne.s32.totalorder %s182, %s196
      %p198 = scmp.eq.s32.totalorder %s88, 0
      %p199 = por %p197, %p198
      %s201 = sadd.s32 %s200, 1
      %p204 = scmp.eq.s32.totalorder %s82, 1
      %p205 = scmp.ne.s32.totalorder %s200, %s202
      %p206 = scmp.eq.s32.totalorder %s82, 0
      %p207 = por %p205, %p206
      %p208 = scmp.ne.s32.totalorder %s200, %s202
      %p209 = scmp.eq.s32.totalorder %s87, 1
      %p210 = por %p208, %p209
      %p211 = scmp.ne.s32.totalorder %s202, %s203
      %p212 = scmp.eq.s32.totalorder %s87, 0
      %p213 = por %p211, %p212
      %p214 = scmp.ne.s32.totalorder %s202, %s203
      %p215 = scmp.eq.s32.totalorder %s88, 1
      %p216 = por %p214, %p215
      %p218 = scmp.ne.s32.totalorder %s203, %s217
      %p219 = scmp.eq.s32.totalorder %s88, 0
      %p220 = por %p218, %p219
      %s222 = sadd.s32 %s221, 1
      %p225 = scmp.eq.s32.totalorder %s82, 1
      %p226 = scmp.ne.s32.totalorder %s221, %s223
      %p227 = scmp.eq.s32.totalorder %s82, 0
      %p228 = por %p226, %p227
      %p229 = scmp.ne.s32.totalorder %s221, %s223
      %p230 = scmp.eq.s32.totalorder %s87, 1
      %p231 = por %p229, %p230
      %p232 = scmp.ne.s32.totalorder %s223, %s224
      %p233 = scmp.eq.s32.totalorder %s87, 0
      %p234 = por %p232, %p233
      %p235 = scmp.ne.s32.totalorder %s223, %s224
      %p236 = scmp.eq.s32.totalorder %s88, 1
      %p237 = por %p235, %p236
      %p239 = scmp.ne.s32.totalorder %s224, %s238
      %p240 = scmp.eq.s32.totalorder %s88, 0
      %p241 = por %p239, %p240
      %s243 = sadd.s32 %s242, 1
      %p246 = scmp.eq.s32.totalorder %s82, 1
      %p247 = scmp.ne.s32.totalorder %s242, %s244
      %p248 = scmp.eq.s32.totalorder %s82, 0
      %p249 = por %p247, %p248
      %p250 = scmp.ne.s32.totalorder %s242, %s244
      %p251 = scmp.eq.s32.totalorder %s87, 1
      %p252 = por %p250, %p251
      %p253 = scmp.ne.s32.totalorder %s244, %s245
      %p254 = scmp.eq.s32.totalorder %s87, 0
      %p255 = por %p253, %p254
      %p256 = scmp.ne.s32.totalorder %s244, %s245
      %p257 = scmp.eq.s32.totalorder %s88, 1
      %p258 = por %p256, %p257
      %p260 = scmp.ne.s32.totalorder %s245, %s259
      %p261 = scmp.eq.s32.totalorder %s88, 0
      %p262 = por %p260, %p261
      %s264 = sadd.s32 %s263, 1
      %p267 = scmp.eq.s32.totalorder %s82, 1
      %p268 = scmp.ne.s32.totalorder %s263, %s265
      %p269 = scmp.eq.s32.totalorder %s82, 0
      %p270 = por %p268, %p269
      %p271 = scmp.ne.s32.totalorder %s263, %s265
      %p272 = scmp.eq.s32.totalorder %s87, 1
      %p273 = por %p271, %p272
      %p274 = scmp.ne.s32.totalorder %s265, %s266
      %p275 = scmp.eq.s32.totalorder %s87, 0
      %p276 = por %p274, %p275
      %p277 = scmp.ne.s32.totalorder %s265, %s266
      %p278 = scmp.eq.s32.totalorder %s88, 1
      %p279 = por %p277, %p278
      %p281 = scmp.ne.s32.totalorder %s266, %s280
      %p282 = scmp.eq.s32.totalorder %s88, 0
      %p283 = por %p281, %p282
      %s285 = sadd.s32 %s284, 1
      %p288 = scmp.eq.s32.totalorder %s82, 1
      %p289 = scmp.ne.s32.totalorder %s284, %s286
      %p290 = scmp.eq.s32.totalorder %s82, 0
      %p291 = por %p289, %p290
      %p292 = scmp.ne.s32.totalorder %s284, %s286
      %p293 = scmp.eq.s32.totalorder %s87, 1
      %p294 = por %p292, %p293
      %p295 = scmp.ne.s32.totalorder %s286, %s287
      %p296 = scmp.eq.s32.totalorder %s87, 0
      %p297 = por %p295, %p296
      %p298 = scmp.ne.s32.totalorder %s286, %s287
      %p299 = scmp.eq.s32.totalorder %s88, 1
      %p300 = por %p298, %p299
      %p302 = scmp.ne.s32.totalorder %s287, %s301
      %p303 = scmp.eq.s32.totalorder %s88, 0
      %p304 = por %p302, %p303
      %s306 = sadd.s32 %s305, 1
      %p309 = scmp.eq.s32.totalorder %s82, 1
      %p310 = scmp.ne.s32.totalorder %s305, %s307
      %p311 = scmp.eq.s32.totalorder %s82, 0
      %p312 = por %p310, %p311
      %p313 = scmp.ne.s32.totalorder %s305, %s307
      %p314 = scmp.eq.s32.totalorder %s87, 1
      %p315 = por %p313, %p314
      %p316 = scmp.ne.s32.totalorder %s307, %s308
      %p317 = scmp.eq.s32.totalorder %s87, 0
      %p318 = por %p316, %p317
      %p319 = scmp.ne.s32.totalorder %s307, %s308
      %p320 = scmp.eq.s32.totalorder %s88, 1
      %p321 = por %p319, %p320
      %p323 = scmp.ne.s32.totalorder %s308, %s322
      %p324 = scmp.eq.s32.totalorder %s88, 0
      %p325 = por %p323, %p324
      %s327 = sadd.s32 %s326, 1
      %p330 = scmp.eq.s32.totalorder %s82, 1
      %p331 = scmp.ne.s32.totalorder %s326, %s328
      %p332 = scmp.eq.s32.totalorder %s82, 0
      %p333 = por %p331, %p332
      %p334 = scmp.ne.s32.totalorder %s326, %s328
      %p335 = scmp.eq.s32.totalorder %s87, 1
      %p336 = por %p334, %p335
      %p337 = scmp.ne.s32.totalorder %s328, %s329
      %p338 = scmp.eq.s32.totalorder %s87, 0
      %p339 = por %p337, %p338
      %p340 = scmp.ne.s32.totalorder %s328, %s329
      %p341 = scmp.eq.s32.totalorder %s88, 1
      %p342 = por %p340, %p341
      %p344 = scmp.ne.s32.totalorder %s329, %s343
      %p345 = scmp.eq.s32.totalorder %s88, 0
      %p346 = por %p344, %p345
      %s348 = sadd.s32 %s347, 1
      %p351 = scmp.eq.s32.totalorder %s82, 1
      %p352 = scmp.ne.s32.totalorder %s347, %s349
      %p353 = scmp.eq.s32.totalorder %s82, 0
      %p354 = por %p352, %p353
      %p355 = scmp.ne.s32.totalorder %s347, %s349
      %p356 = scmp.eq.s32.totalorder %s87, 1
      %p357 = por %p355, %p356
      %p358 = scmp.ne.s32.totalorder %s349, %s350
      %p359 = scmp.eq.s32.totalorder %s87, 0
      %p360 = por %p358, %p359
      %p361 = scmp.ne.s32.totalorder %s349, %s350
      %p362 = scmp.eq.s32.totalorder %s88, 1
      %p363 = por %p361, %p362
      %p365 = scmp.ne.s32.totalorder %s350, %s364
      %p366 = scmp.eq.s32.totalorder %s88, 0
      %p367 = por %p365, %p366
      %s369 = sadd.s32 %s368, 1
      %p372 = scmp.eq.s32.totalorder %s82, 1
      %p373 = scmp.ne.s32.totalorder %s368, %s370
      %p374 = scmp.eq.s32.totalorder %s82, 0
      %p375 = por %p373, %p374
      %p376 = scmp.ne.s32.totalorder %s368, %s370
      %p377 = scmp.eq.s32.totalorder %s87, 1
      %p378 = por %p376, %p377
      %p379 = scmp.ne.s32.totalorder %s370, %s371
      %p380 = scmp.eq.s32.totalorder %s87, 0
      %p381 = por %p379, %p380
      %p382 = scmp.ne.s32.totalorder %s370, %s371
      %p383 = scmp.eq.s32.totalorder %s88, 1
      %p384 = por %p382, %p383
      %p386 = scmp.ne.s32.totalorder %s371, %s385
      %p387 = scmp.eq.s32.totalorder %s88, 0
      %p388 = por %p386, %p387
      %s390 = sadd.s32 %s389, 1
      %p393 = scmp.eq.s32.totalorder %s82, 1
      %p394 = scmp.ne.s32.totalorder %s389, %s391
      %p395 = scmp.eq.s32.totalorder %s82, 0
      %p396 = por %p394, %p395
      %p397 = scmp.ne.s32.totalorder %s389, %s391
      %p398 = scmp.eq.s32.totalorder %s87, 1
      %p399 = por %p397, %p398
      %p400 = scmp.ne.s32.totalorder %s391, %s392
      %p401 = scmp.eq.s32.totalorder %s87, 0
      %p402 = por %p400, %p401
      %p403 = scmp.ne.s32.totalorder %s391, %s392
      %p404 = scmp.eq.s32.totalorder %s88, 1
      %p405 = por %p403, %p404
      %p407 = scmp.ne.s32.totalorder %s392, %s406
      %p408 = scmp.eq.s32.totalorder %s88, 0
      %p409 = por %p407, %p408
      %s411 = sadd.s32 %s410, 1
      %p414 = scmp.eq.s32.totalorder %s82, 1
      %p415 = scmp.ne.s32.totalorder %s410, %s412
      %p416 = scmp.eq.s32.totalorder %s82, 0
      %p417 = por %p415, %p416
      %p418 = scmp.ne.s32.totalorder %s410, %s412
      %p419 = scmp.eq.s32.totalorder %s87, 1
      %p420 = por %p418, %p419
      %p421 = scmp.ne.s32.totalorder %s412, %s413
      %p422 = scmp.eq.s32.totalorder %s87, 0
      %p423 = por %p421, %p422
      %p424 = scmp.ne.s32.totalorder %s412, %s413
      %p425 = scmp.eq.s32.totalorder %s88, 1
      %p426 = por %p424, %p425
      %p428 = scmp.ne.s32.totalorder %s413, %s427
      %p429 = scmp.eq.s32.totalorder %s88, 0
      %p430 = por %p428, %p429
      %s432 = sadd.s32 %s431, 1
      %p435 = scmp.eq.s32.totalorder %s82, 1
      %p436 = scmp.ne.s32.totalorder %s431, %s433
      %p437 = scmp.eq.s32.totalorder %s82, 0
      %p438 = por %p436, %p437
      %p439 = scmp.ne.s32.totalorder %s431, %s433
      %p440 = scmp.eq.s32.totalorder %s87, 1
      %p441 = por %p439, %p440
      %p442 = scmp.ne.s32.totalorder %s433, %s434
      %p443 = scmp.eq.s32.totalorder %s87, 0
      %p444 = por %p442, %p443
      %p445 = scmp.ne.s32.totalorder %s433, %s434
      %p446 = scmp.eq.s32.totalorder %s88, 1
      %p447 = por %p445, %p446
      %p449 = scmp.ne.s32.totalorder %s434, %s448
      %p450 = scmp.eq.s32.totalorder %s88, 0
      %p451 = por %p449, %p450
      %s453 = sadd.s32 %s452, 1
      %p456 = scmp.eq.s32.totalorder %s82, 1
      %p457 = scmp.ne.s32.totalorder %s452, %s454
      %p458 = scmp.eq.s32.totalorder %s82, 0
      %p459 = por %p457, %p458
      %p460 = scmp.ne.s32.totalorder %s452, %s454
      %p461 = scmp.eq.s32.totalorder %s87, 1
      %p462 = por %p460, %p461
      %p463 = scmp.ne.s32.totalorder %s454, %s455
      %p464 = scmp.eq.s32.totalorder %s87, 0
      %p465 = por %p463, %p464
      %p466 = scmp.ne.s32.totalorder %s454, %s455
      %p467 = scmp.eq.s32.totalorder %s88, 1
      %p468 = por %p466, %p467
      %p470 = scmp.ne.s32.totalorder %s455, %s469
      %p471 = scmp.eq.s32.totalorder %s88, 0
      %p472 = por %p470, %p471
      %s474 = sadd.s32 %s473, 1
      %p477 = scmp.eq.s32.totalorder %s82, 1
      %p478 = scmp.ne.s32.totalorder %s473, %s475
      %p479 = scmp.eq.s32.totalorder %s82, 0
      %p480 = por %p478, %p479
      %p481 = scmp.ne.s32.totalorder %s473, %s475
      %p482 = scmp.eq.s32.totalorder %s87, 1
      %p483 = por %p481, %p482
      %p484 = scmp.ne.s32.totalorder %s475, %s476
      %p485 = scmp.eq.s32.totalorder %s87, 0
      %p486 = por %p484, %p485
      %p487 = scmp.ne.s32.totalorder %s475, %s476
      %p488 = scmp.eq.s32.totalorder %s88, 1
      %p489 = por %p487, %p488
      %p491 = scmp.ne.s32.totalorder %s476, %s490
      %p492 = scmp.eq.s32.totalorder %s88, 0
      %p493 = por %p491, %p492
      %s495 = sadd.s32 %s494, 1
      %p498 = scmp.eq.s32.totalorder %s82, 1
      %p499 = scmp.ne.s32.totalorder %s494, %s496
      %p500 = scmp.eq.s32.totalorder %s82, 0
      %p501 = por %p499, %p500
      %p502 = scmp.ne.s32.totalorder %s494, %s496
      %p503 = scmp.eq.s32.totalorder %s87, 1
      %p504 = por %p502, %p503
      %p505 = scmp.ne.s32.totalorder %s496, %s497
      %p506 = scmp.eq.s32.totalorder %s87, 0
      %p507 = por %p505, %p506
      %p508 = scmp.ne.s32.totalorder %s496, %s497
      %p509 = scmp.eq.s32.totalorder %s88, 1
      %p510 = por %p508, %p509
      %p512 = scmp.ne.s32.totalorder %s497, %s511
      %p513 = scmp.eq.s32.totalorder %s88, 0
      %p514 = por %p512, %p513
      %s516 = sadd.s32 %s515, 1
      %p519 = scmp.eq.s32.totalorder %s82, 1
      %p520 = scmp.ne.s32.totalorder %s515, %s517
      %p521 = scmp.eq.s32.totalorder %s82, 0
      %p522 = por %p520, %p521
      %p523 = scmp.ne.s32.totalorder %s515, %s517
      %p524 = scmp.eq.s32.totalorder %s87, 1
      %p525 = por %p523, %p524
      %p526 = scmp.ne.s32.totalorder %s517, %s518
      %p527 = scmp.eq.s32.totalorder %s87, 0
      %p528 = por %p526, %p527
      %p529 = scmp.ne.s32.totalorder %s517, %s518
      %p530 = scmp.eq.s32.totalorder %s88, 1
      %p531 = por %p529, %p530
      %p533 = scmp.ne.s32.totalorder %s518, %s532
      %p534 = scmp.eq.s32.totalorder %s88, 0
      %p535 = por %p533, %p534
      %s537 = sadd.s32 %s536, 1
      %p540 = scmp.eq.s32.totalorder %s82, 1
      %p541 = scmp.ne.s32.totalorder %s536, %s538
      %p542 = scmp.eq.s32.totalorder %s82, 0
      %p543 = por %p541, %p542
      %p544 = scmp.ne.s32.totalorder %s536, %s538
      %p545 = scmp.eq.s32.totalorder %s87, 1
      %p546 = por %p544, %p545
      %p547 = scmp.ne.s32.totalorder %s538, %s539
      %p548 = scmp.eq.s32.totalorder %s87, 0
      %p549 = por %p547, %p548
      %p550 = scmp.ne.s32.totalorder %s538, %s539
      %p551 = scmp.eq.s32.totalorder %s88, 1
      %p552 = por %p550, %p551
      %p554 = scmp.ne.s32.totalorder %s539, %s553
      %p555 = scmp.eq.s32.totalorder %s88, 0
      %p556 = por %p554, %p555
      %s558 = sadd.s32 %s557, 1
      %p561 = scmp.eq.s32.totalorder %s82, 1
      %p562 = scmp.ne.s32.totalorder %s557, %s559
      %p563 = scmp.eq.s32.totalorder %s82, 0
      %p564 = por %p562, %p563
      %p565 = scmp.ne.s32.totalorder %s557, %s559
      %p566 = scmp.eq.s32.totalorder %s87, 1
      %p567 = por %p565, %p566
      %p568 = scmp.ne.s32.totalorder %s559, %s560
      %p569 = scmp.eq.s32.totalorder %s87, 0
      %p570 = por %p568, %p569
      %p571 = scmp.ne.s32.totalorder %s559, %s560
      %p572 = scmp.eq.s32.totalorder %s88, 1
      %p573 = por %p571, %p572
      %p575 = scmp.ne.s32.totalorder %s560, %s574
      %p576 = scmp.eq.s32.totalorder %s88, 0
      %p577 = por %p575, %p576
      %s579 = sadd.s32 %s578, 1
      %p582 = scmp.eq.s32.totalorder %s82, 1
      %p583 = scmp.ne.s32.totalorder %s578, %s580
      %p584 = scmp.eq.s32.totalorder %s82, 0
      %p585 = por %p583, %p584
      %p586 = scmp.ne.s32.totalorder %s578, %s580
      %p587 = scmp.eq.s32.totalorder %s87, 1
      %p588 = por %p586, %p587
      %p589 = scmp.ne.s32.totalorder %s580, %s581
      %p590 = scmp.eq.s32.totalorder %s87, 0
      %p591 = por %p589, %p590
      %p592 = scmp.ne.s32.totalorder %s580, %s581
      %p593 = scmp.eq.s32.totalorder %s88, 1
      %p594 = por %p592, %p593
      %p596 = scmp.ne.s32.totalorder %s581, %s595
      %p597 = scmp.eq.s32.totalorder %s88, 0
      %p598 = por %p596, %p597
      %s600 = sadd.s32 %s599, 1
      %p603 = scmp.eq.s32.totalorder %s82, 1
      %p604 = scmp.ne.s32.totalorder %s599, %s601
      %p605 = scmp.eq.s32.totalorder %s82, 0
      %p606 = por %p604, %p605
      %p607 = scmp.ne.s32.totalorder %s599, %s601
      %p608 = scmp.eq.s32.totalorder %s87, 1
      %p609 = por %p607, %p608
      %p610 = scmp.ne.s32.totalorder %s601, %s602
      %p611 = scmp.eq.s32.totalorder %s87, 0
      %p612 = por %p610, %p611
      %p613 = scmp.ne.s32.totalorder %s601, %s602
      %p614 = scmp.eq.s32.totalorder %s88, 1
      %p615 = por %p613, %p614
      %p617 = scmp.ne.s32.totalorder %s602, %s616
      %p618 = scmp.eq.s32.totalorder %s88, 0
      %p619 = por %p617, %p618
      %s621 = sadd.s32 %s620, 1
      %p624 = scmp.eq.s32.totalorder %s82, 1
      %p625 = scmp.ne.s32.totalorder %s620, %s622
      %p626 = scmp.eq.s32.totalorder %s82, 0
      %p627 = por %p625, %p626
      %p628 = scmp.ne.s32.totalorder %s620, %s622
      %p629 = scmp.eq.s32.totalorder %s87, 1
      %p630 = por %p628, %p629
      %p631 = scmp.ne.s32.totalorder %s622, %s623
      %p632 = scmp.eq.s32.totalorder %s87, 0
      %p633 = por %p631, %p632
      %p634 = scmp.ne.s32.totalorder %s622, %s623
      %p635 = scmp.eq.s32.totalorder %s88, 1
      %p636 = por %p634, %p635
      %p638 = scmp.ne.s32.totalorder %s623, %s637
      %p639 = scmp.eq.s32.totalorder %s88, 0
      %p640 = por %p638, %p639
      %s642 = sadd.s32 %s641, 1
      %p645 = scmp.eq.s32.totalorder %s82, 1
      %p646 = scmp.ne.s32.totalorder %s641, %s643
      %p647 = scmp.eq.s32.totalorder %s82, 0
      %p648 = por %p646, %p647
      %p649 = scmp.ne.s32.totalorder %s641, %s643
      %p650 = scmp.eq.s32.totalorder %s87, 1
      %p651 = por %p649, %p650
      %p652 = scmp.ne.s32.totalorder %s643, %s644
      %p653 = scmp.eq.s32.totalorder %s87, 0
      %p654 = por %p652, %p653
      %p655 = scmp.ne.s32.totalorder %s643, %s644
      %p656 = scmp.eq.s32.totalorder %s88, 1
      %p657 = por %p655, %p656
      %p659 = scmp.ne.s32.totalorder %s644, %s658
      %p660 = scmp.eq.s32.totalorder %s88, 0
      %p661 = por %p659, %p660
      %s663 = sadd.s32 %s662, 1
      %p666 = scmp.eq.s32.totalorder %s82, 1
      %p667 = scmp.ne.s32.totalorder %s662, %s664
      %p668 = scmp.eq.s32.totalorder %s82, 0
      %p669 = por %p667, %p668
      %p670 = scmp.ne.s32.totalorder %s662, %s664
      %p671 = scmp.eq.s32.totalorder %s87, 1
      %p672 = por %p670, %p671
      %p673 = scmp.ne.s32.totalorder %s664, %s665
      %p674 = scmp.eq.s32.totalorder %s87, 0
      %p675 = por %p673, %p674
      %p676 = scmp.ne.s32.totalorder %s664, %s665
      %p677 = scmp.eq.s32.totalorder %s88, 1
      %p678 = por %p676, %p677
      %p680 = scmp.ne.s32.totalorder %s665, %s679
      %p681 = scmp.eq.s32.totalorder %s88, 0
      %p682 = por %p680, %p681
      %s684 = sadd.s32 %s683, 1
      %p687 = scmp.eq.s32.totalorder %s82, 1
      %p688 = scmp.ne.s32.totalorder %s683, %s685
      %p689 = scmp.eq.s32.totalorder %s82, 0
      %p690 = por %p688, %p689
      %p691 = scmp.ne.s32.totalorder %s683, %s685
      %p692 = scmp.eq.s32.totalorder %s87, 1
      %p693 = por %p691, %p692
      %p694 = scmp.ne.s32.totalorder %s685, %s686
      %p695 = scmp.eq.s32.totalorder %s87, 0
      %p696 = por %p694, %p695
      %p697 = scmp.ne.s32.totalorder %s685, %s686
      %p698 = scmp.eq.s32.totalorder %s88, 1
      %p699 = por %p697, %p698
      %p701 = scmp.ne.s32.totalorder %s686, %s700
      %p702 = scmp.eq.s32.totalorder %s88, 0
      %p703 = por %p701, %p702
      %s705 = sadd.s32 %s704, 1
      %p708 = scmp.eq.s32.totalorder %s82, 1
      %p709 = scmp.ne.s32.totalorder %s704, %s706
      %p710 = scmp.eq.s32.totalorder %s82, 0
      %p711 = por %p709, %p710
      %p712 = scmp.ne.s32.totalorder %s704, %s706
      %p713 = scmp.eq.s32.totalorder %s87, 1
      %p714 = por %p712, %p713
      %p715 = scmp.ne.s32.totalorder %s706, %s707
      %p716 = scmp.eq.s32.totalorder %s87, 0
      %p717 = por %p715, %p716
      %p718 = scmp.ne.s32.totalorder %s706, %s707
      %p719 = scmp.eq.s32.totalorder %s88, 1
      %p720 = por %p718, %p719
      %p722 = scmp.ne.s32.totalorder %s707, %s721
      %p723 = scmp.eq.s32.totalorder %s88, 0
      %p724 = por %p722, %p723
      %s726 = sadd.s32 %s725, 1
      %p729 = scmp.eq.s32.totalorder %s82, 1
      %p730 = scmp.ne.s32.totalorder %s725, %s727
      %p731 = scmp.eq.s32.totalorder %s82, 0
      %p732 = por %p730, %p731
      %p733 = scmp.ne.s32.totalorder %s725, %s727
      %p734 = scmp.eq.s32.totalorder %s87, 1
      %p735 = por %p733, %p734
      %p736 = scmp.ne.s32.totalorder %s727, %s728
      %p737 = scmp.eq.s32.totalorder %s87, 0
      %p738 = por %p736, %p737
      %p739 = scmp.ne.s32.totalorder %s727, %s728
      %p740 = scmp.eq.s32.totalorder %s88, 1
      %p741 = por %p739, %p740
      %p743 = scmp.ne.s32.totalorder %s728, %s742
      %p744 = scmp.eq.s32.totalorder %s88, 0
      %p745 = por %p743, %p744
      %s747 = sadd.s32 %s746, 1
      %p750 = scmp.eq.s32.totalorder %s82, 1
      %p751 = scmp.ne.s32.totalorder %s746, %s748
      %p752 = scmp.eq.s32.totalorder %s82, 0
      %p753 = por %p751, %p752
      %p754 = scmp.ne.s32.totalorder %s746, %s748
      %p755 = scmp.eq.s32.totalorder %s87, 1
      %p756 = por %p754, %p755
      %p757 = scmp.ne.s32.totalorder %s748, %s749
      %p758 = scmp.eq.s32.totalorder %s87, 0
      %p759 = por %p757, %p758
      %p760 = scmp.ne.s32.totalorder %s748, %s749
      %p761 = scmp.eq.s32.totalorder %s88, 1
      %p762 = por %p760, %p761
      %p764 = scmp.ne.s32.totalorder %s749, %s763
      %p765 = scmp.eq.s32.totalorder %s88, 0
      %p766 = por %p764, %p765
      %s768 = sadd.s32 %s767, 1
      %p771 = scmp.eq.s32.totalorder %s82, 1
      %p772 = scmp.ne.s32.totalorder %s767, %s769
      %p773 = scmp.eq.s32.totalorder %s82, 0
      %p774 = por %p772, %p773
      %p775 = scmp.ne.s32.totalorder %s767, %s769
      %p776 = scmp.eq.s32.totalorder %s87, 1
      %p777 = por %p775, %p776
      %p778 = scmp.ne.s32.totalorder %s769, %s770
      %p779 = scmp.eq.s32.totalorder %s87, 0
      %p780 = por %p778, %p779
      %p781 = scmp.ne.s32.totalorder %s769, %s770
      %p782 = scmp.eq.s32.totalorder %s88, 1
      %p783 = por %p781, %p782
      %p785 = scmp.ne.s32.totalorder %s770, %s784
      %p786 = scmp.eq.s32.totalorder %s88, 0
      %p787 = por %p785, %p786
      %s788 = ssub.s32 %s82, %s89
      %p789 = scmp.eq.s32.totalorder %s788, 0
      %s791 = sadd.s32 %s790, 1
      %s792 = scalar_select %p789, %s790, %s791
      %p795 = pneg %p789
      %p796 = scmp.eq.s32.totalorder %s82, 1
      %p797 = por %p795, %p796
      %p798 = scmp.ne.s32.totalorder %s790, %s793
      %p799 = scmp.eq.s32.totalorder %s82, 0
      %p800 = por %p798, %p799
      %p801 = scmp.ne.s32.totalorder %s790, %s793
      %p802 = scmp.eq.s32.totalorder %s87, 1
      %p803 = por %p801, %p802
      %p804 = scmp.ne.s32.totalorder %s793, %s794
      %p805 = scmp.eq.s32.totalorder %s87, 0
      %p806 = por %p804, %p805
      %p807 = scmp.ne.s32.totalorder %s793, %s794
      %p808 = scmp.eq.s32.totalorder %s88, 1
      %p809 = por %p807, %p808
      %p811 = scmp.ne.s32.totalorder %s794, %s810
      %p812 = scmp.eq.s32.totalorder %s88, 0
      %p813 = por %p811, %p812
      %p814 = scmp.le.s32.totalorder 1, %s82
      %p815 = scmp.lt.s32.totalorder %s82, 3
      %p816 = pnand %p814, %p815
      %p817 = pneg %p816
      // Predicated region
      $region9: #{forward.1} parent=5 // pred_check
        _
      $region10: #{forward.1} parent=5 // pred_check_branch
        %819 = sbr.rel (%p816) target = $region12
      $region11: #{forward.1} parent=5 // pred_region
        %s820 = ssub.s32 %s82, 1
        // Predicated region
        $region13: #{forward.1} parent=11 // pred_check
          %p821 = pneg %p129
        $region14: #{forward.1} parent=11 // pred_check_branch
          %823 = sbr.rel (%p821) target = $region16
        $region15: #{forward.1} parent=11 // pred_region
          %s825 = ssub.s32 192, 192
          %826 = vsyncadd [#allocation13], %s825
          %s827 = sshll.u32 [#allocation12], 4
          %s828 = int_to_ptr.vmem [resolvable:$true] %s827
          %833 = dma.hbm_to_vmem [thread:$0]  %s3, 192, %s828, [#allocation13], 64, 64, 4
        $region16: #{forward.1} parent=11 // pred_fallthru
          _
        // Predicated region
        $region17: #{forward.1} parent=11 // pred_check
          %p834 = pneg %p150
        $region18: #{forward.1} parent=11 // pred_check_branch
          %836 = sbr.rel (%p834) target = $region20
        $region19: #{forward.1} parent=11 // pred_region
          _
        $region20: #{forward.1} parent=11 // pred_fallthru
          _
        // Predicated region
        $region21: #{forward.1} parent=11 // pred_check
          %p837 = pneg %p171
        $region22: #{forward.1} parent=11 // pred_check_branch
          %839 = sbr.rel (%p837) target = $region24
        $region23: #{forward.1} parent=11 // pred_region
          %s841 = ssub.s32 32, 32
          %842 = vsyncadd [#allocation15], %s841
          %s844 = sshll.u32 [#allocation14], 4
          %s845 = int_to_ptr.vmem [resolvable:$true] %s844
          %847 = dma.hbm_to_vmem [thread:$0]  %s7, 32, %s845, [#allocation15]
        $region24: #{forward.1} parent=11 // pred_fallthru
          _
        // Predicated region
        $region25: #{forward.1} parent=11 // pred_check
          %p848 = pneg %p192
        $region26: #{forward.1} parent=11 // pred_check_branch
          %850 = sbr.rel (%p848) target = $region28
        $region27: #{forward.1} parent=11 // pred_region
          %s852 = ssub.s32 96, 96
          %853 = vsyncadd [#allocation15], %s852
          %s854 = sshll.u32 [#allocation16], 4
          %s855 = int_to_ptr.vmem [resolvable:$true] %s854
          %860 = dma.hbm_to_vmem [thread:$0]  %s9, 96, %s855, [#allocation15], 32, 32, 2
        $region28: #{forward.1} parent=11 // pred_fallthru
          _
        // Predicated region
        $region29: #{forward.1} parent=11 // pred_check
          %p861 = pneg %p213
        $region30: #{forward.1} parent=11 // pred_check_branch
          %863 = sbr.rel (%p861) target = $region32
        $region31: #{forward.1} parent=11 // pred_region
          _
        $region32: #{forward.1} parent=11 // pred_fallthru
          _
        // Predicated region
        $region33: #{forward.1} parent=11 // pred_check
          %p864 = pneg %p234
        $region34: #{forward.1} parent=11 // pred_check_branch
          %866 = sbr.rel (%p864) target = $region36
        $region35: #{forward.1} parent=11 // pred_region
          %s868 = ssub.s32 16, 16
          %869 = vsyncadd [#allocation18], %s868
          %s871 = sshll.u32 [#allocation17], 4
          %s872 = int_to_ptr.vmem [resolvable:$true] %s871
          %874 = dma.hbm_to_vmem [thread:$0]  %s13, 16, %s872, [#allocation18]
        $region36: #{forward.1} parent=11 // pred_fallthru
          _
        // Predicated region
        $region37: #{forward.1} parent=11 // pred_check
          %p875 = pneg %p255
        $region38: #{forward.1} parent=11 // pred_check_branch
          %877 = sbr.rel (%p875) target = $region40
        $region39: #{forward.1} parent=11 // pred_region
          _
        $region40: #{forward.1} parent=11 // pred_fallthru
          _
        // Predicated region
        $region41: #{forward.1} parent=11 // pred_check
          %p878 = pneg %p276
        $region42: #{forward.1} parent=11 // pred_check_branch
          %880 = sbr.rel (%p878) target = $region44
        $region43: #{forward.1} parent=11 // pred_region
          %s882 = ssub.s32 32, 32
          %883 = vsyncadd [#allocation18], %s882
          %s885 = sshll.u32 [#allocation19], 4
          %s886 = int_to_ptr.vmem [resolvable:$true] %s885
          %888 = dma.hbm_to_vmem [thread:$0]  %s17, 32, %s886, [#allocation18]
        $region44: #{forward.1} parent=11 // pred_fallthru
          _
        // Predicated region
        $region45: #{forward.1} parent=11 // pred_check
          %p889 = pneg %p297
        $region46: #{forward.1} parent=11 // pred_check_branch
          %891 = sbr.rel (%p889) target = $region48
        $region47: #{forward.1} parent=11 // pred_region
          _
        $region48: #{forward.1} parent=11 // pred_fallthru
          _
        // Predicated region
        $region49: #{forward.1} parent=11 // pred_check
          %p892 = pneg %p318
        $region50: #{forward.1} parent=11 // pred_check_branch
          %894 = sbr.rel (%p892) target = $region52
        $region51: #{forward.1} parent=11 // pred_region
          %s896 = ssub.s32 16, 16
          %897 = vsyncadd [#allocation21], %s896
          %s899 = sshll.u32 [#allocation20], 4
          %s900 = int_to_ptr.vmem [resolvable:$true] %s899
          %902 = dma.hbm_to_vmem [thread:$0]  %s21, 16, %s900, [#allocation21]
        $region52: #{forward.1} parent=11 // pred_fallthru
          _
        // Predicated region
        $region53: #{forward.1} parent=11 // pred_check
          %p903 = pneg %p339
        $region54: #{forward.1} parent=11 // pred_check_branch
          %905 = sbr.rel (%p903) target = $region56
        $region55: #{forward.1} parent=11 // pred_region
          %s907 = ssub.s32 192, 192
          %908 = vsyncadd [#allocation21], %s907
          %s909 = sshll.u32 [#allocation22], 4
          %s910 = int_to_ptr.vmem [resolvable:$true] %s909
          %915 = dma.hbm_to_vmem [thread:$0]  %s23, 192, %s910, [#allocation21], 64, 64, 4
        $region56: #{forward.1} parent=11 // pred_fallthru
          _
        // Predicated region
        $region57: #{forward.1} parent=11 // pred_check
          %p916 = pneg %p360
        $region58: #{forward.1} parent=11 // pred_check_branch
          %918 = sbr.rel (%p916) target = $region60
        $region59: #{forward.1} parent=11 // pred_region
          %s920 = ssub.s32 16, 16
          %921 = vsyncadd [#allocation24], %s920
          %s923 = sshll.u32 [#allocation23], 4
          %s924 = int_to_ptr.vmem [resolvable:$true] %s923
          %926 = dma.hbm_to_vmem [thread:$0]  %s25, 16, %s924, [#allocation24]
        $region60: #{forward.1} parent=11 // pred_fallthru
          _
        // Predicated region
        $region61: #{forward.1} parent=11 // pred_check
          %p927 = pneg %p381
        $region62: #{forward.1} parent=11 // pred_check_branch
          %929 = sbr.rel (%p927) target = $region64
        $region63: #{forward.1} parent=11 // pred_region
          _
        $region64: #{forward.1} parent=11 // pred_fallthru
          _
        // Predicated region
        $region65: #{forward.1} parent=11 // pred_check
          %p930 = pneg %p402
        $region66: #{forward.1} parent=11 // pred_check_branch
          %932 = sbr.rel (%p930) target = $region68
        $region67: #{forward.1} parent=11 // pred_region
          %s934 = ssub.s32 16, 16
          %935 = vsyncadd [#allocation24], %s934
          %s937 = sshll.u32 [#allocation25], 4
          %s938 = int_to_ptr.vmem [resolvable:$true] %s937
          %940 = dma.hbm_to_vmem [thread:$0]  %s29, 16, %s938, [#allocation24]
        $region68: #{forward.1} parent=11 // pred_fallthru
          _
        // Predicated region
        $region69: #{forward.1} parent=11 // pred_check
          %p941 = pneg %p423
        $region70: #{forward.1} parent=11 // pred_check_branch
          %943 = sbr.rel (%p941) target = $region72
        $region71: #{forward.1} parent=11 // pred_region
          %s945 = ssub.s32 384, 384
          %946 = vsyncadd [#allocation27], %s945
          %s947 = sshll.u32 [#allocation26], 4
          %s948 = int_to_ptr.vmem [resolvable:$true] %s947
          %953 = dma.hbm_to_vmem [thread:$0]  %s31, 384, %s948, [#allocation27], 64, 64, 4
        $region72: #{forward.1} parent=11 // pred_fallthru
          _
        // Predicated region
        $region73: #{forward.1} parent=11 // pred_check
          %p954 = pneg %p444
        $region74: #{forward.1} parent=11 // pred_check_branch
          %956 = sbr.rel (%p954) target = $region76
        $region75: #{forward.1} parent=11 // pred_region
          %s958 = ssub.s32 16, 16
          %959 = vsyncadd [#allocation27], %s958
          %s961 = sshll.u32 [#allocation28], 4
          %s962 = int_to_ptr.vmem [resolvable:$true] %s961
          %964 = dma.hbm_to_vmem [thread:$0]  %s33, 16, %s962, [#allocation27]
        $region76: #{forward.1} parent=11 // pred_fallthru
          _
        // Predicated region
        $region77: #{forward.1} parent=11 // pred_check
          %p965 = pneg %p465
        $region78: #{forward.1} parent=11 // pred_check_branch
          %967 = sbr.rel (%p965) target = $region80
        $region79: #{forward.1} parent=11 // pred_region
          _
        $region80: #{forward.1} parent=11 // pred_fallthru
          _
        // Predicated region
        $region81: #{forward.1} parent=11 // pred_check
          %p968 = pneg %p486
        $region82: #{forward.1} parent=11 // pred_check_branch
          %970 = sbr.rel (%p968) target = $region84
        $region83: #{forward.1} parent=11 // pred_region
          _
        $region84: #{forward.1} parent=11 // pred_fallthru
          _
        // Predicated region
        $region85: #{forward.1} parent=11 // pred_check
          %p971 = pneg %p507
        $region86: #{forward.1} parent=11 // pred_check_branch
          %973 = sbr.rel (%p971) target = $region88
        $region87: #{forward.1} parent=11 // pred_region
          %s975 = ssub.s32 16, 16
          %976 = vsyncadd [#allocation30], %s975
          %s978 = sshll.u32 [#allocation29], 4
          %s979 = int_to_ptr.vmem [resolvable:$true] %s978
          %981 = dma.hbm_to_vmem [thread:$0]  %s39, 16, %s979, [#allocation30]
        $region88: #{forward.1} parent=11 // pred_fallthru
          _
        // Predicated region
        $region89: #{forward.1} parent=11 // pred_check
          %p982 = pneg %p528
        $region90: #{forward.1} parent=11 // pred_check_branch
          %984 = sbr.rel (%p982) target = $region92
        $region91: #{forward.1} parent=11 // pred_region
          _
        $region92: #{forward.1} parent=11 // pred_fallthru
          _
        // Predicated region
        $region93: #{forward.1} parent=11 // pred_check
          %p985 = pneg %p549
        $region94: #{forward.1} parent=11 // pred_check_branch
          %987 = sbr.rel (%p985) target = $region96
        $region95: #{forward.1} parent=11 // pred_region
          _
        $region96: #{forward.1} parent=11 // pred_fallthru
          _
        // Predicated region
        $region97: #{forward.1} parent=11 // pred_check
          %p988 = pneg %p570
        $region98: #{forward.1} parent=11 // pred_check_branch
          %990 = sbr.rel (%p988) target = $region100
        $region99: #{forward.1} parent=11 // pred_region
          %s992 = ssub.s32 32, 32
          %993 = vsyncadd [#allocation30], %s992
          %s995 = sshll.u32 [#allocation31], 4
          %s996 = int_to_ptr.vmem [resolvable:$true] %s995
          %998 = dma.hbm_to_vmem [thread:$0]  %s45, 32, %s996, [#allocation30]
        $region100: #{forward.1} parent=11 // pred_fallthru
          _
        // Predicated region
        $region101: #{forward.1} parent=11 // pred_check
          %p999 = pneg %p591
        $region102: #{forward.1} parent=11 // pred_check_branch
          %1001 = sbr.rel (%p999) target = $region104
        $region103: #{forward.1} parent=11 // pred_region
          _
        $region104: #{forward.1} parent=11 // pred_fallthru
          _
        // Predicated region
        $region105: #{forward.1} parent=11 // pred_check
          %p1002 = pneg %p612
        $region106: #{forward.1} parent=11 // pred_check_branch
          %1004 = sbr.rel (%p1002) target = $region108
        $region107: #{forward.1} parent=11 // pred_region
          _
        $region108: #{forward.1} parent=11 // pred_fallthru
          _
        // Predicated region
        $region109: #{forward.1} parent=11 // pred_check
          %p1005 = pneg %p633
        $region110: #{forward.1} parent=11 // pred_check_branch
          %1007 = sbr.rel (%p1005) target = $region112
        $region111: #{forward.1} parent=11 // pred_region
          %s1009 = ssub.s32 32, 32
          %1010 = vsyncadd [#allocation33], %s1009
          %s1012 = sshll.u32 [#allocation32], 4
          %s1013 = int_to_ptr.vmem [resolvable:$true] %s1012
          %1015 = dma.hbm_to_vmem [thread:$0]  %s51, 32, %s1013, [#allocation33]
        $region112: #{forward.1} parent=11 // pred_fallthru
          _
        // Predicated region
        $region113: #{forward.1} parent=11 // pred_check
          %p1016 = pneg %p654
        $region114: #{forward.1} parent=11 // pred_check_branch
          %1018 = sbr.rel (%p1016) target = $region116
        $region115: #{forward.1} parent=11 // pred_region
          _
        $region116: #{forward.1} parent=11 // pred_fallthru
          _
        // Predicated region
        $region117: #{forward.1} parent=11 // pred_check
          %p1019 = pneg %p675
        $region118: #{forward.1} parent=11 // pred_check_branch
          %1021 = sbr.rel (%p1019) target = $region120
        $region119: #{forward.1} parent=11 // pred_region
          _
        $region120: #{forward.1} parent=11 // pred_fallthru
          _
        // Predicated region
        $region121: #{forward.1} parent=11 // pred_check
          %p1022 = pneg %p696
        $region122: #{forward.1} parent=11 // pred_check_branch
          %1024 = sbr.rel (%p1022) target = $region124
        $region123: #{forward.1} parent=11 // pred_region
          %s1026 = ssub.s32 16, 16
          %1027 = vsyncadd [#allocation33], %s1026
          %s1029 = sshll.u32 [#allocation34], 4
          %s1030 = int_to_ptr.vmem [resolvable:$true] %s1029
          %1032 = dma.hbm_to_vmem [thread:$0]  %s57, 16, %s1030, [#allocation33]
        $region124: #{forward.1} parent=11 // pred_fallthru
          _
        // Predicated region
        $region125: #{forward.1} parent=11 // pred_check
          %p1033 = pneg %p717
        $region126: #{forward.1} parent=11 // pred_check_branch
          %1035 = sbr.rel (%p1033) target = $region128
        $region127: #{forward.1} parent=11 // pred_region
          _
        $region128: #{forward.1} parent=11 // pred_fallthru
          _
        // Predicated region
        $region129: #{forward.1} parent=11 // pred_check
          %p1036 = pneg %p738
        $region130: #{forward.1} parent=11 // pred_check_branch
          %1038 = sbr.rel (%p1036) target = $region132
        $region131: #{forward.1} parent=11 // pred_region
          %s1040 = ssub.s32 1152, 1152
          %1041 = vsyncadd [#allocation36], %s1040
          %s1042 = sshll.u32 [#allocation35], 4
          %s1043 = int_to_ptr.vmem [resolvable:$true] %s1042
          %1048 = dma.hbm_to_vmem [thread:$0]  %s61, 1152, %s1043, [#allocation36], 64, 64, 4
        $region132: #{forward.1} parent=11 // pred_fallthru
          _
        // Predicated region
        $region133: #{forward.1} parent=11 // pred_check
          %p1049 = pneg %p759
        $region134: #{forward.1} parent=11 // pred_check_branch
          %1051 = sbr.rel (%p1049) target = $region136
        $region135: #{forward.1} parent=11 // pred_region
          %s1053 = ssub.s32 16, 16
          %1054 = vsyncadd [#allocation36], %s1053
          %s1056 = sshll.u32 [#allocation37], 4
          %s1057 = int_to_ptr.vmem [resolvable:$true] %s1056
          %1059 = dma.hbm_to_vmem [thread:$0]  %s63, 16, %s1057, [#allocation36]
        $region136: #{forward.1} parent=11 // pred_fallthru
          _
        // Predicated region
        $region137: #{forward.1} parent=11 // pred_check
          %p1060 = pneg %p780
        $region138: #{forward.1} parent=11 // pred_check_branch
          %1062 = sbr.rel (%p1060) target = $region140
        $region139: #{forward.1} parent=11 // pred_region
          _
        $region140: #{forward.1} parent=11 // pred_fallthru
          _
      $region12: #{forward.1} parent=5 // pred_fallthru
        _
      %p1063 = scmp.lt.s32.totalorder %s82, 2
      // Predicated region
      $region141: #{forward.1} parent=5 // pred_check
        %p1064 = pneg %p1063
      $region142: #{forward.1} parent=5 // pred_check_branch
        %1066 = sbr.rel (%p1064) target = $region144
      $region143: #{forward.1} parent=5 // pred_region
        // Predicated region
        $region145: #{forward.1} parent=143 // pred_check
          %p1067 = pneg %p102
        $region146: #{forward.1} parent=143 // pred_check_branch
          %1069 = sbr.rel (%p1067) target = $region148
        $region147: #{forward.1} parent=143 // pred_region
          %p1070 = scmp.lt.s32.totalorder %s82, 1
          %s1071 = scalar_select %p1070, %s82, 1
          %s1072 = smul.addr %s1071, 2
          %s1073 = smul.addr %s1072, 8
          %s1074 = scalar_lea.vmem %s1, %s1073
        $region148: #{forward.1} parent=143 // pred_fallthru
          _
      $region144: #{forward.1} parent=5 // pred_fallthru
        _
      %p1075 = scmp.le.s32.totalorder 1, %s82
      %p1076 = scmp.lt.s32.totalorder %s82, 3
      %p1077 = pnand %p1075, %p1076
      %p1078 = pneg %p1077
      // Predicated region
      $region149: #{forward.1} parent=5 // pred_check
        _
      $region150: #{forward.1} parent=5 // pred_check_branch
        %1080 = sbr.rel (%p1077) target = $region152
      $region151: #{forward.1} parent=5 // pred_region
        %s1081 = ssub.s32 %s82, 1
        // Predicated region
        $region153: #{forward.1} parent=151 // pred_check
          %p1082 = pneg %p129
        $region154: #{forward.1} parent=151 // pred_check_branch
          %1084 = sbr.rel (%p1082) target = $region156
        $region155: #{forward.1} parent=151 // pred_region
          %1085 = dma.done [#allocation13], 192
        $region156: #{forward.1} parent=151 // pred_fallthru
          _
        // Predicated region
        $region157: #{forward.1} parent=151 // pred_check
          %p1086 = pneg %p171
        $region158: #{forward.1} parent=151 // pred_check_branch
          %1088 = sbr.rel (%p1086) target = $region160
        $region159: #{forward.1} parent=151 // pred_region
          %1089 = dma.done [#allocation15], 32
        $region160: #{forward.1} parent=151 // pred_fallthru
          _
        // Predicated region
        $region161: #{forward.1} parent=151 // pred_check
          %p1090 = pneg %p192
        $region162: #{forward.1} parent=151 // pred_check_branch
          %1092 = sbr.rel (%p1090) target = $region164
        $region163: #{forward.1} parent=151 // pred_region
          %1093 = dma.done [#allocation15], 96
        $region164: #{forward.1} parent=151 // pred_fallthru
          _
        // Predicated region
        $region165: #{forward.1} parent=151 // pred_check
          %p1094 = pneg %p234
        $region166: #{forward.1} parent=151 // pred_check_branch
          %1096 = sbr.rel (%p1094) target = $region168
        $region167: #{forward.1} parent=151 // pred_region
          %1097 = dma.done [#allocation18], 16
        $region168: #{forward.1} parent=151 // pred_fallthru
          _
        // Predicated region
        $region169: #{forward.1} parent=151 // pred_check
          %p1098 = pneg %p276
        $region170: #{forward.1} parent=151 // pred_check_branch
          %1100 = sbr.rel (%p1098) target = $region172
        $region171: #{forward.1} parent=151 // pred_region
          %1101 = dma.done [#allocation18], 32
        $region172: #{forward.1} parent=151 // pred_fallthru
          _
        // Predicated region
        $region173: #{forward.1} parent=151 // pred_check
          %p1102 = pneg %p318
        $region174: #{forward.1} parent=151 // pred_check_branch
          %1104 = sbr.rel (%p1102) target = $region176
        $region175: #{forward.1} parent=151 // pred_region
          %1105 = dma.done [#allocation21], 16
        $region176: #{forward.1} parent=151 // pred_fallthru
          _
        // Predicated region
        $region177: #{forward.1} parent=151 // pred_check
          %p1106 = pneg %p339
        $region178: #{forward.1} parent=151 // pred_check_branch
          %1108 = sbr.rel (%p1106) target = $region180
        $region179: #{forward.1} parent=151 // pred_region
          %1109 = dma.done [#allocation21], 192
        $region180: #{forward.1} parent=151 // pred_fallthru
          _
        // Predicated region
        $region181: #{forward.1} parent=151 // pred_check
          %p1110 = pneg %p360
        $region182: #{forward.1} parent=151 // pred_check_branch
          %1112 = sbr.rel (%p1110) target = $region184
        $region183: #{forward.1} parent=151 // pred_region
          %1113 = dma.done [#allocation24], 16
        $region184: #{forward.1} parent=151 // pred_fallthru
          _
        // Predicated region
        $region185: #{forward.1} parent=151 // pred_check
          %p1114 = pneg %p402
        $region186: #{forward.1} parent=151 // pred_check_branch
          %1116 = sbr.rel (%p1114) target = $region188
        $region187: #{forward.1} parent=151 // pred_region
          %1117 = dma.done [#allocation24], 16
        $region188: #{forward.1} parent=151 // pred_fallthru
          _
        // Predicated region
        $region189: #{forward.1} parent=151 // pred_check
          %p1118 = pneg %p423
        $region190: #{forward.1} parent=151 // pred_check_branch
          %1120 = sbr.rel (%p1118) target = $region192
        $region191: #{forward.1} parent=151 // pred_region
          %1121 = dma.done [#allocation27], 384
        $region192: #{forward.1} parent=151 // pred_fallthru
          _
        // Predicated region
        $region193: #{forward.1} parent=151 // pred_check
          %p1122 = pneg %p444
        $region194: #{forward.1} parent=151 // pred_check_branch
          %1124 = sbr.rel (%p1122) target = $region196
        $region195: #{forward.1} parent=151 // pred_region
          %1125 = dma.done [#allocation27], 16
        $region196: #{forward.1} parent=151 // pred_fallthru
          _
        // Predicated region
        $region197: #{forward.1} parent=151 // pred_check
          %p1126 = pneg %p507
        $region198: #{forward.1} parent=151 // pred_check_branch
          %1128 = sbr.rel (%p1126) target = $region200
        $region199: #{forward.1} parent=151 // pred_region
          %1129 = dma.done [#allocation30], 16
        $region200: #{forward.1} parent=151 // pred_fallthru
          _
        // Predicated region
        $region201: #{forward.1} parent=151 // pred_check
          %p1130 = pneg %p570
        $region202: #{forward.1} parent=151 // pred_check_branch
          %1132 = sbr.rel (%p1130) target = $region204
        $region203: #{forward.1} parent=151 // pred_region
          %1133 = dma.done [#allocation30], 32
        $region204: #{forward.1} parent=151 // pred_fallthru
          _
        // Predicated region
        $region205: #{forward.1} parent=151 // pred_check
          %p1134 = pneg %p633
        $region206: #{forward.1} parent=151 // pred_check_branch
          %1136 = sbr.rel (%p1134) target = $region208
        $region207: #{forward.1} parent=151 // pred_region
          %1137 = dma.done [#allocation33], 32
        $region208: #{forward.1} parent=151 // pred_fallthru
          _
        // Predicated region
        $region209: #{forward.1} parent=151 // pred_check
          %p1138 = pneg %p696
        $region210: #{forward.1} parent=151 // pred_check_branch
          %1140 = sbr.rel (%p1138) target = $region212
        $region211: #{forward.1} parent=151 // pred_region
          %1141 = dma.done [#allocation33], 16
        $region212: #{forward.1} parent=151 // pred_fallthru
          _
        // Predicated region
        $region213: #{forward.1} parent=151 // pred_check
          %p1142 = pneg %p738
        $region214: #{forward.1} parent=151 // pred_check_branch
          %1144 = sbr.rel (%p1142) target = $region216
        $region215: #{forward.1} parent=151 // pred_region
          %1145 = dma.done [#allocation36], 1152
        $region216: #{forward.1} parent=151 // pred_fallthru
          _
        // Predicated region
        $region217: #{forward.1} parent=151 // pred_check
          %p1146 = pneg %p759
        $region218: #{forward.1} parent=151 // pred_check_branch
          %1148 = sbr.rel (%p1146) target = $region220
        $region219: #{forward.1} parent=151 // pred_region
          %1149 = dma.done [#allocation36], 16
        $region220: #{forward.1} parent=151 // pred_fallthru
          _
        %p1150 = scmp.lt.s32.totalorder %s87, 1
        %s1151 = scalar_select %p1150, %s87, 1
        %s1152 = smul.addr %s1151, 2
        %s1153 = smul.addr %s1152, 8
        %s1154 = scalar_lea.vmem %s1, %s1153
        %p1155 = pneg %p108
        %p1156 = pneg %p105
        %p1157 = pneg %p129
        %p1158 = pneg %p126
        %p1159 = pneg %p150
        %p1160 = pneg %p147
        %p1161 = pneg %p171
        %p1162 = pneg %p168
        %p1163 = pneg %p192
        %p1164 = pneg %p189
        %p1165 = pneg %p213
        %p1166 = pneg %p210
        %p1167 = pneg %p234
        %p1168 = pneg %p231
        %p1169 = pneg %p255
        %p1170 = pneg %p252
        %p1171 = pneg %p276
        %p1172 = pneg %p273
        %p1173 = pneg %p297
        %p1174 = pneg %p294
        %p1175 = pneg %p318
        %p1176 = pneg %p315
        %p1177 = pneg %p339
        %p1178 = pneg %p336
        %p1179 = pneg %p360
        %p1180 = pneg %p357
        %p1181 = pneg %p381
        %p1182 = pneg %p378
        %p1183 = pneg %p402
        %p1184 = pneg %p399
        %p1185 = pneg %p423
        %p1186 = pneg %p420
        %p1187 = pneg %p444
        %p1188 = pneg %p441
        %p1189 = pneg %p465
        %p1190 = pneg %p462
        %p1191 = pneg %p486
        %p1192 = pneg %p483
        %p1193 = pneg %p507
        %p1194 = pneg %p504
        %p1195 = pneg %p528
        %p1196 = pneg %p525
        %p1197 = pneg %p549
        %p1198 = pneg %p546
        %p1199 = pneg %p570
        %p1200 = pneg %p567
        %p1201 = pneg %p591
        %p1202 = pneg %p588
        %p1203 = pneg %p612
        %p1204 = pneg %p609
        %p1205 = pneg %p633
        %p1206 = pneg %p630
        %p1207 = pneg %p654
        %p1208 = pneg %p651
        %p1209 = pneg %p675
        %p1210 = pneg %p672
        %p1211 = pneg %p696
        %p1212 = pneg %p693
        %p1213 = pneg %p717
        %p1214 = pneg %p714
        %p1215 = pneg %p738
        %p1216 = pneg %p735
        %p1217 = pneg %p759
        %p1218 = pneg %p756
        %p1219 = pneg %p780
        %p1220 = pneg %p777
        %p1221 = pneg %p806
        %p1222 = pneg %p803
        %p1223 = scmp.lt.s32.totalorder %s87, 1
        %s1224 = scalar_select %p1223, %s87, 1
        %s1225 = smul.addr %s1224, 2
        %s1226 = smul.addr %s1225, 8
        %s1227 = scalar_lea.vmem %s67, %s1226
        %p1228 = scmp.lt.s32.totalorder %s87, 1
        %s1229 = scalar_select %p1228, %s87, 1
        %s1230 = smul.addr %s1229, 2
        %s1231 = smul.addr %s1230, 8
        %s1232 = scalar_lea.vmem %s1, %s1231
        %p1233 = scmp.lt.s32.totalorder %s87, 1
        %s1234 = scalar_select %p1233, %s87, 1
        %s1235 = smul.addr %s1234, 2
        %s1236 = smul.addr %s1235, 8
        %s1237 = scalar_lea.vmem %s67, %s1236
        %v1239 = vld [vmem:[%s1232] sm:$0xff]
        %v1240 = vld [vmem:[%s1232 + $0x8] sm:$0xff]
        %v1241 = vpack.c.bf16 %v1240, %v1239
        %v1242 = vld [vmem:[#allocation12] sm:$0xf]
        %vm1243 = vcmask 130048
        %v1245 = vsel %vm1243, %v1242, 0
        %1247 = vmatprep.subr.bf16.mxu0 0
        %1248 = vmatpush1.bf16.msra.mxu0 %v1241
        %1249 = vmatprep.subr.bf16.mxu0 0
        %1250 = vmatpush1.bf16.msra.mxu0 0
        %1251 = vmatprep.subr.bf16.mxu0 0
        %1252 = vmatpush1.bf16.msra.mxu0 0
        %1253 = vmatprep.subr.bf16.mxu0 0
        %1254 = vmatpush1.bf16.msra.mxu0 0
        %1255 = vmatprep.subr.bf16.mxu0 0
        %1256 = vmatpush1.bf16.msra.mxu0 0
        %1257 = vmatprep.subr.bf16.mxu0 0
        %1258 = vmatpush1.bf16.msra.mxu0 0
        %1259 = vmatprep.subr.bf16.mxu0 0
        %1260 = vmatpush1.bf16.msra.mxu0 0
        %1261 = vmatprep.subr.bf16.mxu0 0
        %1262 = vmatpush1.bf16.msra.mxu0 0
        %1263 = vmatprep.subr.bf16.mxu0 0
        %1264 = vmatpush1.bf16.msra.mxu0 0
        %1265 = vmatprep.subr.bf16.mxu0 0
        %1266 = vmatpush1.bf16.msra.mxu0 0
        %1267 = vmatprep.subr.bf16.mxu0 0
        %1268 = vmatpush1.bf16.msra.mxu0 0
        %1269 = vmatprep.subr.bf16.mxu0 0
        %1270 = vmatpush1.bf16.msra.mxu0 0
        %1271 = vmatprep.subr.bf16.mxu0 0
        %1272 = vmatpush1.bf16.msra.mxu0 0
        %1273 = vmatprep.subr.bf16.mxu0 0
        %1274 = vmatpush1.bf16.msra.mxu0 0
        %1275 = vmatprep.subr.bf16.mxu0 0
        %1276 = vmatpush1.bf16.msra.mxu0 0
        %1277 = vmatprep.subr.bf16.mxu0 0
        %1278 = vmatpush1.bf16.msra.mxu0 0
        %1279 = vmatprep.mubr.bf16.mxu0 0
        %1280 = vmatmul.mubr.bf16.gmra.mrb[0].mxu0 %v1245
        %v1281 = vpop.f32.mrb[0].mxu0
        %v1282 = vadd.f32 0.0, %v1281
        %v1283 = vpop.f32.mrb[0].mxu0
        %v1284 = vpop.f32.mrb[0].mxu0
        %v1285 = vpop.f32.mrb[0].mxu0
        %1286 = vdwg.mxu0
        %v1287 = vpack.c.bf16 %v1282, %v1282
        %v1288 = vld [vmem:[%s5] sm:$0xff]
        %v1289 = vld [vmem:[%s5 + $0x8] sm:$0xff]
        %v1290 = vld [vmem:[%s5 + $0x10] sm:$0xff]
        %v1291 = vld [vmem:[%s5 + $0x18] sm:$0xff]
        %v1292 = vld [vmem:[%s5 + $0x20] sm:$0xff]
        %v1293 = vld [vmem:[%s5 + $0x28] sm:$0xff]
        %s1294 = scalar_lea.vmem [#allocation12], 4
        %v1295 = vld [vmem:[%s1294] sm:$0xf]
        %v1297 = vsel %vm1243, %v1295, 0
        %1299 = vmatprep.subr.bf16.mxu0 0
        %1300 = vmatpush1.bf16.msra.mxu0 %v1241
        %1301 = vmatprep.subr.bf16.mxu0 0
        %1302 = vmatpush1.bf16.msra.mxu0 0
        %1303 = vmatprep.subr.bf16.mxu0 0
        %1304 = vmatpush1.bf16.msra.mxu0 0
        %1305 = vmatprep.subr.bf16.mxu0 0
        %1306 = vmatpush1.bf16.msra.mxu0 0
        %1307 = vmatprep.subr.bf16.mxu0 0
        %1308 = vmatpush1.bf16.msra.mxu0 0
        %1309 = vmatprep.subr.bf16.mxu0 0
        %1310 = vmatpush1.bf16.msra.mxu0 0
        %1311 = vmatprep.subr.bf16.mxu0 0
        %1312 = vmatpush1.bf16.msra.mxu0 0
        %1313 = vmatprep.subr.bf16.mxu0 0
        %1314 = vmatpush1.bf16.msra.mxu0 0
        %1315 = vmatprep.subr.bf16.mxu0 0
        %1316 = vmatpush1.bf16.msra.mxu0 0
        %1317 = vmatprep.subr.bf16.mxu0 0
        %1318 = vmatpush1.bf16.msra.mxu0 0
        %1319 = vmatprep.subr.bf16.mxu0 0
        %1320 = vmatpush1.bf16.msra.mxu0 0
        %1321 = vmatprep.subr.bf16.mxu0 0
        %1322 = vmatpush1.bf16.msra.mxu0 0
        %1323 = vmatprep.subr.bf16.mxu0 0
        %1324 = vmatpush1.bf16.msra.mxu0 0
        %1325 = vmatprep.subr.bf16.mxu0 0
        %1326 = vmatpush1.bf16.msra.mxu0 0
        %1327 = vmatprep.subr.bf16.mxu0 0
        %1328 = vmatpush1.bf16.msra.mxu0 0
        %1329 = vmatprep.subr.bf16.mxu0 0
        %1330 = vmatpush1.bf16.msra.mxu0 0
        %1331 = vmatprep.mubr.bf16.mxu0 0
        %1332 = vmatmul.mubr.bf16.gmra.mrb[0].mxu0 %v1297
        %v1333 = vpop.f32.mrb[0].mxu0
        %v1334 = vadd.f32 0.0, %v1333
        %v1335 = vpop.f32.mrb[0].mxu0
        %v1336 = vpop.f32.mrb[0].mxu0
        %v1337 = vpop.f32.mrb[0].mxu0
        %1338 = vdwg.mxu0
        %v1339 = vpack.c.bf16 %v1334, %v1334
        %s1340 = scalar_lea.vmem %s5, 48
        %v1341 = vld [vmem:[%s1340] sm:$0xff]
        %v1342 = vld [vmem:[%s1340 + $0x8] sm:$0xff]
        %v1343 = vld [vmem:[%s1340 + $0x10] sm:$0xff]
        %v1344 = vld [vmem:[%s1340 + $0x18] sm:$0xff]
        %v1345 = vld [vmem:[%s1340 + $0x20] sm:$0xff]
        %v1346 = vld [vmem:[%s1340 + $0x28] sm:$0xff]
        %v1353 = vunpack.c.l.b16 %v1341
        %v1354 = vunpack.c.h.b16 %v1341
        %v1355 = vunpack.c.l.b16 %v1342
        %v1356 = vunpack.c.h.b16 %v1342
        %v1357 = vunpack.c.l.b16 %v1343
        %v1358 = vunpack.c.h.b16 %v1343
        %v1359 = vunpack.c.l.b16 %v1344
        %v1360 = vunpack.c.h.b16 %v1344
        %v1361 = vunpack.c.l.b16 %v1345
        %v1362 = vunpack.c.h.b16 %v1345
        %v1363 = vunpack.c.l.b16 %v1346
        %v1364 = vunpack.c.h.b16 %v1346
        %v1365 = vpack.c.b16 %v1355, %v1353
        %v1366 = vpack.c.b16 %v1356, %v1354
        %v1367 = vpack.c.b16 %v1359, %v1357
        %v1368 = vpack.c.b16 %v1360, %v1358
        %v1369 = vpack.c.b16 %v1363, %v1361
        %v1370 = vpack.c.b16 %v1364, %v1362
        %vm1377 = vcmask 392192
        %v1379 = vsel %vm1377, %v1339, 0
        %1381 = vmatprep.subr.bf16.mxu0 %v1366
        %1382 = vmatpush1.bf16.msra.mxu0 %v1365
        %1383 = vmatprep.subr.bf16.mxu0 %v1368
        %1384 = vmatpush1.bf16.msra.mxu0 %v1367
        %1385 = vmatprep.subr.bf16.mxu0 %v1370
        %1386 = vmatpush1.bf16.msra.mxu0 %v1369
        %1387 = vmatprep.subr.bf16.mxu0 0
        %1388 = vmatpush1.bf16.msra.mxu0 0
        %1389 = vmatprep.subr.bf16.mxu0 0
        %1390 = vmatpush1.bf16.msra.mxu0 0
        %1391 = vmatprep.subr.bf16.mxu0 0
        %1392 = vmatpush1.bf16.msra.mxu0 0
        %1393 = vmatprep.subr.bf16.mxu0 0
        %1394 = vmatpush1.bf16.msra.mxu0 0
        %1395 = vmatprep.subr.bf16.mxu0 0
        %1396 = vmatpush1.bf16.msra.mxu0 0
        %1397 = vmatprep.subr.bf16.mxu0 0
        %1398 = vmatpush1.bf16.msra.mxu0 0
        %1399 = vmatprep.subr.bf16.mxu0 0
        %1400 = vmatpush1.bf16.msra.mxu0 0
        %1401 = vmatprep.subr.bf16.mxu0 0
        %1402 = vmatpush1.bf16.msra.mxu0 0
        %1403 = vmatprep.subr.bf16.mxu0 0
        %1404 = vmatpush1.bf16.msra.mxu0 0
        %1405 = vmatprep.subr.bf16.mxu0 0
        %1406 = vmatpush1.bf16.msra.mxu0 0
        %1407 = vmatprep.subr.bf16.mxu0 0
        %1408 = vmatpush1.bf16.msra.mxu0 0
        %1409 = vmatprep.subr.bf16.mxu0 0
        %1410 = vmatpush1.bf16.msra.mxu0 0
        %1411 = vmatprep.subr.bf16.mxu0 0
        %1412 = vmatpush1.bf16.msra.mxu0 0
        %1413 = vmatprep.mubr.bf16.mxu0 0
        %1414 = vmatmul.mubr.bf16.gmra.mrb[0].mxu0 %v1379
        %v1415 = vpop.f32.mrb[0].mxu0
        %v1416 = vadd.f32 0.0, %v1415
        %v1417 = vpop.f32.mrb[0].mxu0
        %v1418 = vadd.f32 0.0, %v1417
        %v1419 = vpop.f32.mrb[0].mxu0
        %v1420 = vpop.f32.mrb[0].mxu0
        %1421 = vdwg.mxu0
        %v1428 = vunpack.c.l.b16 %v1288
        %v1429 = vunpack.c.h.b16 %v1288
        %v1430 = vunpack.c.l.b16 %v1289
        %v1431 = vunpack.c.h.b16 %v1289
        %v1432 = vunpack.c.l.b16 %v1290
        %v1433 = vunpack.c.h.b16 %v1290
        %v1434 = vunpack.c.l.b16 %v1291
        %v1435 = vunpack.c.h.b16 %v1291
        %v1436 = vunpack.c.l.b16 %v1292
        %v1437 = vunpack.c.h.b16 %v1292
        %v1438 = vunpack.c.l.b16 %v1293
        %v1439 = vunpack.c.h.b16 %v1293
        %v1440 = vpack.c.b16 %v1430, %v1428
        %v1441 = vpack.c.b16 %v1431, %v1429
        %v1442 = vpack.c.b16 %v1434, %v1432
        %v1443 = vpack.c.b16 %v1435, %v1433
        %v1444 = vpack.c.b16 %v1438, %v1436
        %v1445 = vpack.c.b16 %v1439, %v1437
        %v1453 = vsel %vm1377, %v1287, 0
        %1455 = vmatprep.subr.bf16.mxu0 %v1441
        %1456 = vmatpush1.bf16.msra.mxu0 %v1440
        %1457 = vmatprep.subr.bf16.mxu0 %v1443
        %1458 = vmatpush1.bf16.msra.mxu0 %v1442
        %1459 = vmatprep.subr.bf16.mxu0 %v1445
        %1460 = vmatpush1.bf16.msra.mxu0 %v1444
        %1461 = vmatprep.subr.bf16.mxu0 0
        %1462 = vmatpush1.bf16.msra.mxu0 0
        %1463 = vmatprep.subr.bf16.mxu0 0
        %1464 = vmatpush1.bf16.msra.mxu0 0
        %1465 = vmatprep.subr.bf16.mxu0 0
        %1466 = vmatpush1.bf16.msra.mxu0 0
        %1467 = vmatprep.subr.bf16.mxu0 0
        %1468 = vmatpush1.bf16.msra.mxu0 0
        %1469 = vmatprep.subr.bf16.mxu0 0
        %1470 = vmatpush1.bf16.msra.mxu0 0
        %1471 = vmatprep.subr.bf16.mxu0 0
        %1472 = vmatpush1.bf16.msra.mxu0 0
        %1473 = vmatprep.subr.bf16.mxu0 0
        %1474 = vmatpush1.bf16.msra.mxu0 0
        %1475 = vmatprep.subr.bf16.mxu0 0
        %1476 = vmatpush1.bf16.msra.mxu0 0
        %1477 = vmatprep.subr.bf16.mxu0 0
        %1478 = vmatpush1.bf16.msra.mxu0 0
        %1479 = vmatprep.subr.bf16.mxu0 0
        %1480 = vmatpush1.bf16.msra.mxu0 0
        %1481 = vmatprep.subr.bf16.mxu0 0
        %1482 = vmatpush1.bf16.msra.mxu0 0
        %1483 = vmatprep.subr.bf16.mxu0 0
        %1484 = vmatpush1.bf16.msra.mxu0 0
        %1485 = vmatprep.subr.bf16.mxu0 0
        %1486 = vmatpush1.bf16.msra.mxu0 0
        %1487 = vmatprep.mubr.bf16.mxu0 0
        %1488 = vmatmul.mubr.bf16.gmra.mrb[0].mxu0 %v1453
        %v1489 = vpop.f32.mrb[0].mxu0
        %v1490 = vadd.f32 %v1416, %v1489
        %v1491 = vpop.f32.mrb[0].mxu0
        %v1492 = vadd.f32 %v1418, %v1491
        %v1493 = vpop.f32.mrb[0].mxu0
        %v1494 = vpop.f32.mrb[0].mxu0
        %1495 = vdwg.mxu0
        %s1496 = scalar_lea.vmem [#allocation12], 8
        %v1497 = vld [vmem:[%s1496] sm:$0xf]
        %v1499 = vsel %vm1243, %v1497, 0
        %1501 = vmatprep.subr.bf16.mxu0 0
        %1502 = vmatpush1.bf16.msra.mxu0 %v1241
        %1503 = vmatprep.subr.bf16.mxu0 0
        %1504 = vmatpush1.bf16.msra.mxu0 0
        %1505 = vmatprep.subr.bf16.mxu0 0
        %1506 = vmatpush1.bf16.msra.mxu0 0
        %1507 = vmatprep.subr.bf16.mxu0 0
        %1508 = vmatpush1.bf16.msra.mxu0 0
        %1509 = vmatprep.subr.bf16.mxu0 0
        %1510 = vmatpush1.bf16.msra.mxu0 0
        %1511 = vmatprep.subr.bf16.mxu0 0
        %1512 = vmatpush1.bf16.msra.mxu0 0
        %1513 = vmatprep.subr.bf16.mxu0 0
        %1514 = vmatpush1.bf16.msra.mxu0 0
        %1515 = vmatprep.subr.bf16.mxu0 0
        %1516 = vmatpush1.bf16.msra.mxu0 0
        %1517 = vmatprep.subr.bf16.mxu0 0
        %1518 = vmatpush1.bf16.msra.mxu0 0
        %1519 = vmatprep.subr.bf16.mxu0 0
        %1520 = vmatpush1.bf16.msra.mxu0 0
        %1521 = vmatprep.subr.bf16.mxu0 0
        %1522 = vmatpush1.bf16.msra.mxu0 0
        %1523 = vmatprep.subr.bf16.mxu0 0
        %1524 = vmatpush1.bf16.msra.mxu0 0
        %1525 = vmatprep.subr.bf16.mxu0 0
        %1526 = vmatpush1.bf16.msra.mxu0 0
        %1527 = vmatprep.subr.bf16.mxu0 0
        %1528 = vmatpush1.bf16.msra.mxu0 0
        %1529 = vmatprep.subr.bf16.mxu0 0
        %1530 = vmatpush1.bf16.msra.mxu0 0
        %1531 = vmatprep.subr.bf16.mxu0 0
        %1532 = vmatpush1.bf16.msra.mxu0 0
        %1533 = vmatprep.mubr.bf16.mxu0 0
        %1534 = vmatmul.mubr.bf16.gmra.mrb[0].mxu0 %v1499
        %v1535 = vpop.f32.mrb[0].mxu0
        %v1536 = vadd.f32 0.0, %v1535
        %v1537 = vpop.f32.mrb[0].mxu0
        %v1538 = vpop.f32.mrb[0].mxu0
        %v1539 = vpop.f32.mrb[0].mxu0
        %1540 = vdwg.mxu0
        %v1541 = vpack.c.bf16 %v1536, %v1536
        %s1542 = scalar_lea.vmem %s5, 96
        %v1543 = vld [vmem:[%s1542] sm:$0xff]
        %v1544 = vld [vmem:[%s1542 + $0x8] sm:$0xff]
        %v1545 = vld [vmem:[%s1542 + $0x10] sm:$0xff]
        %v1546 = vld [vmem:[%s1542 + $0x18] sm:$0xff]
        %v1547 = vld [vmem:[%s1542 + $0x20] sm:$0xff]
        %v1548 = vld [vmem:[%s1542 + $0x28] sm:$0xff]
        %v1555 = vunpack.c.l.b16 %v1543
        %v1556 = vunpack.c.h.b16 %v1543
        %v1557 = vunpack.c.l.b16 %v1544
        %v1558 = vunpack.c.h.b16 %v1544
        %v1559 = vunpack.c.l.b16 %v1545
        %v1560 = vunpack.c.h.b16 %v1545
        %v1561 = vunpack.c.l.b16 %v1546
        %v1562 = vunpack.c.h.b16 %v1546
        %v1563 = vunpack.c.l.b16 %v1547
        %v1564 = vunpack.c.h.b16 %v1547
        %v1565 = vunpack.c.l.b16 %v1548
        %v1566 = vunpack.c.h.b16 %v1548
        %v1567 = vpack.c.b16 %v1557, %v1555
        %v1568 = vpack.c.b16 %v1558, %v1556
        %v1569 = vpack.c.b16 %v1561, %v1559
        %v1570 = vpack.c.b16 %v1562, %v1560
        %v1571 = vpack.c.b16 %v1565, %v1563
        %v1572 = vpack.c.b16 %v1566, %v1564
        %v1580 = vsel %vm1377, %v1541, 0
        %1582 = vmatprep.subr.bf16.mxu0 %v1568
        %1583 = vmatpush1.bf16.msra.mxu0 %v1567
        %1584 = vmatprep.subr.bf16.mxu0 %v1570
        %1585 = vmatpush1.bf16.msra.mxu0 %v1569
        %1586 = vmatprep.subr.bf16.mxu0 %v1572
        %1587 = vmatpush1.bf16.msra.mxu0 %v1571
        %1588 = vmatprep.subr.bf16.mxu0 0
        %1589 = vmatpush1.bf16.msra.mxu0 0
        %1590 = vmatprep.subr.bf16.mxu0 0
        %1591 = vmatpush1.bf16.msra.mxu0 0
        %1592 = vmatprep.subr.bf16.mxu0 0
        %1593 = vmatpush1.bf16.msra.mxu0 0
        %1594 = vmatprep.subr.bf16.mxu0 0
        %1595 = vmatpush1.bf16.msra.mxu0 0
        %1596 = vmatprep.subr.bf16.mxu0 0
        %1597 = vmatpush1.bf16.msra.mxu0 0
        %1598 = vmatprep.subr.bf16.mxu0 0
        %1599 = vmatpush1.bf16.msra.mxu0 0
        %1600 = vmatprep.subr.bf16.mxu0 0
        %1601 = vmatpush1.bf16.msra.mxu0 0
        %1602 = vmatprep.subr.bf16.mxu0 0
        %1603 = vmatpush1.bf16.msra.mxu0 0
        %1604 = vmatprep.subr.bf16.mxu0 0
        %1605 = vmatpush1.bf16.msra.mxu0 0
        %1606 = vmatprep.subr.bf16.mxu0 0
        %1607 = vmatpush1.bf16.msra.mxu0 0
        %1608 = vmatprep.subr.bf16.mxu0 0
        %1609 = vmatpush1.bf16.msra.mxu0 0
        %1610 = vmatprep.subr.bf16.mxu0 0
        %1611 = vmatpush1.bf16.msra.mxu0 0
        %1612 = vmatprep.subr.bf16.mxu0 0
        %1613 = vmatpush1.bf16.msra.mxu0 0
        %1614 = vmatprep.mubr.bf16.mxu0 0
        %1615 = vmatmul.mubr.bf16.gmra.mrb[0].mxu0 %v1580
        %v1616 = vpop.f32.mrb[0].mxu0
        %v1617 = vadd.f32 0.0, %v1616
        %v1618 = vpop.f32.mrb[0].mxu0
        %v1619 = vadd.f32 0.0, %v1618
        %v1620 = vpop.f32.mrb[0].mxu0
        %v1621 = vpop.f32.mrb[0].mxu0
        %1622 = vdwg.mxu0
        %v1623 = vadd.f32 %v1490, %v1617
        %v1624 = vadd.f32 %v1492, %v1619
        %v1625 = vld [vmem:[#allocation14] sm:$0x3]
        %v1627 = vlaneseq
        %v1628 = vshrl.u32 %v1627, 7
        %v1629 = vsub.s32 0, %v1628
        %v1630 = vrot.slane %v1625, %v1629
        %v1631 = vlaneseq
        %v1632 = vshrl.u32 %v1631, 7
        %v1633 = vsub.s32 1, %v1632
        %v1634 = vrot.slane %v1625, %v1633
        %v1637 = vadd.f32 %v1623, %v1630
        %v1638 = vadd.f32 %v1624, %v1634
        %v1639 = vmul.f32 %v1637, 0.2
        %v1640 = vmul.f32 %v1638, 0.2
        %v1641 = vmax.f32 %v1637, %v1639
        %v1642 = vmax.f32 %v1638, %v1640
        %v1643 = vpack.c.bf16 %v1641, %v1641
        %v1644 = vpack.c.bf16 %v1642, %v1642
        %v1645 = vld [vmem:[#allocation16] sm:$0x3]
        %vm1646 = vcmask 64512
        %v1648 = vsel %vm1646, %v1645, 0
        %vm1650 = vcmask 1043456
        %v1652 = vsel %vm1650, %v1643, 0
        %v1655 = vsel %vm1650, %v1644, 0
        %1657 = vmatprep.subr.bf16.mxu0 %v1655
        %1658 = vmatpush1.bf16.msra.mxu0 %v1652
        %1659 = vmatprep.subr.bf16.mxu0 0
        %1660 = vmatpush1.bf16.msra.mxu0 0
        %1661 = vmatprep.subr.bf16.mxu0 0
        %1662 = vmatpush1.bf16.msra.mxu0 0
        %1663 = vmatprep.subr.bf16.mxu0 0
        %1664 = vmatpush1.bf16.msra.mxu0 0
        %1665 = vmatprep.subr.bf16.mxu0 0
        %1666 = vmatpush1.bf16.msra.mxu0 0
        %1667 = vmatprep.subr.bf16.mxu0 0
        %1668 = vmatpush1.bf16.msra.mxu0 0
        %1669 = vmatprep.subr.bf16.mxu0 0
        %1670 = vmatpush1.bf16.msra.mxu0 0
        %1671 = vmatprep.subr.bf16.mxu0 0
        %1672 = vmatpush1.bf16.msra.mxu0 0
        %1673 = vmatprep.subr.bf16.mxu0 0
        %1674 = vmatpush1.bf16.msra.mxu0 0
        %1675 = vmatprep.subr.bf16.mxu0 0
        %1676 = vmatpush1.bf16.msra.mxu0 0
        %1677 = vmatprep.subr.bf16.mxu0 0
        %1678 = vmatpush1.bf16.msra.mxu0 0
        %1679 = vmatprep.subr.bf16.mxu0 0
        %1680 = vmatpush1.bf16.msra.mxu0 0
        %1681 = vmatprep.subr.bf16.mxu0 0
        %1682 = vmatpush1.bf16.msra.mxu0 0
        %1683 = vmatprep.subr.bf16.mxu0 0
        %1684 = vmatpush1.bf16.msra.mxu0 0
        %1685 = vmatprep.subr.bf16.mxu0 0
        %1686 = vmatpush1.bf16.msra.mxu0 0
        %1687 = vmatprep.subr.bf16.mxu0 0
        %1688 = vmatpush1.bf16.msra.mxu0 0
        %1689 = vmatprep.mubr.bf16.mxu0 0
        %1690 = vmatmul.mubr.bf16.gmra.mrb[0].mxu0 %v1648
        %v1691 = vpop.f32.mrb[0].mxu0
        %v1692 = vadd.f32 0.0, %v1691
        %v1693 = vpop.f32.mrb[0].mxu0
        %v1694 = vadd.f32 0.0, %v1693
        %v1695 = vpop.f32.mrb[0].mxu0
        %v1696 = vpop.f32.mrb[0].mxu0
        %1697 = vdwg.mxu0
        %v1698 = vpack.c.bf16 %v1692, %v1692
        %v1699 = vpack.c.bf16 %v1694, %v1694
        %v1700 = vld [vmem:[%s11] sm:$0xf]
        %v1701 = vld [vmem:[%s11 + $0x4] sm:$0xf]
        %v1702 = vld [vmem:[%s11 + $0x8] sm:$0xf]
        %v1703 = vld [vmem:[%s11 + $0xc] sm:$0xf]
        %v1704 = vld [vmem:[%s11 + $0x10] sm:$0xf]
        %v1705 = vld [vmem:[%s11 + $0x14] sm:$0xf]
        %v1706 = vld [vmem:[%s11 + $0x18] sm:$0xf]
        %v1707 = vld [vmem:[%s11 + $0x1c] sm:$0xf]
        %v1708 = vld [vmem:[%s11 + $0x20] sm:$0xf]
        %v1709 = vld [vmem:[%s11 + $0x24] sm:$0xf]
        %v1710 = vld [vmem:[%s11 + $0x28] sm:$0xf]
        %v1711 = vld [vmem:[%s11 + $0x2c] sm:$0xf]
        %v1712 = vld [vmem:[%s11 + $0x30] sm:$0xf]
        %v1713 = vld [vmem:[%s11 + $0x34] sm:$0xf]
        %v1714 = vld [vmem:[%s11 + $0x38] sm:$0xf]
        %v1715 = vld [vmem:[%s11 + $0x3c] sm:$0xf]
        %v1716 = vld [vmem:[%s11 + $0x40] sm:$0xf]
        %v1717 = vld [vmem:[%s11 + $0x44] sm:$0xf]
        %v1718 = vld [vmem:[%s11 + $0x48] sm:$0xf]
        %v1719 = vld [vmem:[%s11 + $0x4c] sm:$0xf]
        %v1720 = vld [vmem:[%s11 + $0x50] sm:$0xf]
        %v1721 = vld [vmem:[%s11 + $0x54] sm:$0xf]
        %v1722 = vld [vmem:[%s11 + $0x58] sm:$0xf]
        %v1723 = vld [vmem:[%s11 + $0x5c] sm:$0xf]
        %v1724 = vld [vmem:[%s11 + $0x60] sm:$0xf]
        %v1725 = vld [vmem:[%s11 + $0x64] sm:$0xf]
        %v1726 = vld [vmem:[%s11 + $0x68] sm:$0xf]
        %v1727 = vld [vmem:[%s11 + $0x6c] sm:$0xf]
        %v1728 = vld [vmem:[%s11 + $0x70] sm:$0xf]
        %v1729 = vld [vmem:[%s11 + $0x74] sm:$0xf]
        %v1730 = vld [vmem:[%s11 + $0x78] sm:$0xf]
        %v1731 = vld [vmem:[%s11 + $0x7c] sm:$0xf]
        %s1732 = scalar_lea.vmem [#allocation16], 2
        %v1733 = vld [vmem:[%s1732] sm:$0x3]
        %v1735 = vsel %vm1646, %v1733, 0
        %1737 = vmatprep.subr.bf16.mxu0 %v1655
        %1738 = vmatpush1.bf16.msra.mxu0 %v1652
        %1739 = vmatprep.subr.bf16.mxu0 0
        %1740 = vmatpush1.bf16.msra.mxu0 0
        %1741 = vmatprep.subr.bf16.mxu0 0
        %1742 = vmatpush1.bf16.msra.mxu0 0
        %1743 = vmatprep.subr.bf16.mxu0 0
        %1744 = vmatpush1.bf16.msra.mxu0 0
        %1745 = vmatprep.subr.bf16.mxu0 0
        %1746 = vmatpush1.bf16.msra.mxu0 0
        %1747 = vmatprep.subr.bf16.mxu0 0
        %1748 = vmatpush1.bf16.msra.mxu0 0
        %1749 = vmatprep.subr.bf16.mxu0 0
        %1750 = vmatpush1.bf16.msra.mxu0 0
        %1751 = vmatprep.subr.bf16.mxu0 0
        %1752 = vmatpush1.bf16.msra.mxu0 0
        %1753 = vmatprep.subr.bf16.mxu0 0
        %1754 = vmatpush1.bf16.msra.mxu0 0
        %1755 = vmatprep.subr.bf16.mxu0 0
        %1756 = vmatpush1.bf16.msra.mxu0 0
        %1757 = vmatprep.subr.bf16.mxu0 0
        %1758 = vmatpush1.bf16.msra.mxu0 0
        %1759 = vmatprep.subr.bf16.mxu0 0
        %1760 = vmatpush1.bf16.msra.mxu0 0
        %1761 = vmatprep.subr.bf16.mxu0 0
        %1762 = vmatpush1.bf16.msra.mxu0 0
        %1763 = vmatprep.subr.bf16.mxu0 0
        %1764 = vmatpush1.bf16.msra.mxu0 0
        %1765 = vmatprep.subr.bf16.mxu0 0
        %1766 = vmatpush1.bf16.msra.mxu0 0
        %1767 = vmatprep.subr.bf16.mxu0 0
        %1768 = vmatpush1.bf16.msra.mxu0 0
        %1769 = vmatprep.mubr.bf16.mxu0 0
        %1770 = vmatmul.mubr.bf16.gmra.mrb[0].mxu0 %v1735
        %v1771 = vpop.f32.mrb[0].mxu0
        %v1772 = vadd.f32 0.0, %v1771
        %v1773 = vpop.f32.mrb[0].mxu0
        %v1774 = vadd.f32 0.0, %v1773
        %v1775 = vpop.f32.mrb[0].mxu0
        %v1776 = vpop.f32.mrb[0].mxu0
        %1777 = vdwg.mxu0
        %v1778 = vpack.c.bf16 %v1772, %v1772
        %v1779 = vpack.c.bf16 %v1774, %v1774
        %s1780 = scalar_lea.vmem %s11, 128
        %v1781 = vld [vmem:[%s1780] sm:$0xf]
        %v1782 = vld [vmem:[%s1780 + $0x4] sm:$0xf]
        %v1783 = vld [vmem:[%s1780 + $0x8] sm:$0xf]
        %v1784 = vld [vmem:[%s1780 + $0xc] sm:$0xf]
        %v1785 = vld [vmem:[%s1780 + $0x10] sm:$0xf]
        %v1786 = vld [vmem:[%s1780 + $0x14] sm:$0xf]
        %v1787 = vld [vmem:[%s1780 + $0x18] sm:$0xf]
        %v1788 = vld [vmem:[%s1780 + $0x1c] sm:$0xf]
        %v1789 = vld [vmem:[%s1780 + $0x20] sm:$0xf]
        %v1790 = vld [vmem:[%s1780 + $0x24] sm:$0xf]
        %v1791 = vld [vmem:[%s1780 + $0x28] sm:$0xf]
        %v1792 = vld [vmem:[%s1780 + $0x2c] sm:$0xf]
        %v1793 = vld [vmem:[%s1780 + $0x30] sm:$0xf]
        %v1794 = vld [vmem:[%s1780 + $0x34] sm:$0xf]
        %v1795 = vld [vmem:[%s1780 + $0x38] sm:$0xf]
        %v1796 = vld [vmem:[%s1780 + $0x3c] sm:$0xf]
        %v1797 = vld [vmem:[%s1780 + $0x40] sm:$0xf]
        %v1798 = vld [vmem:[%s1780 + $0x44] sm:$0xf]
        %v1799 = vld [vmem:[%s1780 + $0x48] sm:$0xf]
        %v1800 = vld [vmem:[%s1780 + $0x4c] sm:$0xf]
        %v1801 = vld [vmem:[%s1780 + $0x50] sm:$0xf]
        %v1802 = vld [vmem:[%s1780 + $0x54] sm:$0xf]
        %v1803 = vld [vmem:[%s1780 + $0x58] sm:$0xf]
        %v1804 = vld [vmem:[%s1780 + $0x5c] sm:$0xf]
        %v1805 = vld [vmem:[%s1780 + $0x60] sm:$0xf]
        %v1806 = vld [vmem:[%s1780 + $0x64] sm:$0xf]
        %v1807 = vld [vmem:[%s1780 + $0x68] sm:$0xf]
        %v1808 = vld [vmem:[%s1780 + $0x6c] sm:$0xf]
        %v1809 = vld [vmem:[%s1780 + $0x70] sm:$0xf]
        %v1810 = vld [vmem:[%s1780 + $0x74] sm:$0xf]
        %v1811 = vld [vmem:[%s1780 + $0x78] sm:$0xf]
        %v1812 = vld [vmem:[%s1780 + $0x7c] sm:$0xf]
        %v1845 = vunpack.c.l.b16 %v1781
        %v1846 = vunpack.c.l.b16 %v1782
        %v1847 = vunpack.c.l.b16 %v1783
        %v1848 = vunpack.c.l.b16 %v1784
        %v1849 = vunpack.c.l.b16 %v1785
        %v1850 = vunpack.c.l.b16 %v1786
        %v1851 = vunpack.c.l.b16 %v1787
        %v1852 = vunpack.c.l.b16 %v1788
        %v1853 = vunpack.c.l.b16 %v1789
        %v1854 = vunpack.c.l.b16 %v1790
        %v1855 = vunpack.c.l.b16 %v1791
        %v1856 = vunpack.c.l.b16 %v1792
        %v1857 = vunpack.c.l.b16 %v1793
        %v1858 = vunpack.c.l.b16 %v1794
        %v1859 = vunpack.c.l.b16 %v1795
        %v1860 = vunpack.c.l.b16 %v1796
        %v1861 = vunpack.c.l.b16 %v1797
        %v1862 = vunpack.c.l.b16 %v1798
        %v1863 = vunpack.c.l.b16 %v1799
        %v1864 = vunpack.c.l.b16 %v1800
        %v1865 = vunpack.c.l.b16 %v1801
        %v1866 = vunpack.c.l.b16 %v1802
        %v1867 = vunpack.c.l.b16 %v1803
        %v1868 = vunpack.c.l.b16 %v1804
        %v1869 = vunpack.c.l.b16 %v1805
        %v1870 = vunpack.c.l.b16 %v1806
        %v1871 = vunpack.c.l.b16 %v1807
        %v1872 = vunpack.c.l.b16 %v1808
        %v1873 = vunpack.c.l.b16 %v1809
        %v1874 = vunpack.c.l.b16 %v1810
        %v1875 = vunpack.c.l.b16 %v1811
        %v1876 = vunpack.c.l.b16 %v1812
        %v1877 = vpack.c.b16 %v1846, %v1845
        %v1878 = vpack.c.b16 %v1848, %v1847
        %v1879 = vpack.c.b16 %v1850, %v1849
        %v1880 = vpack.c.b16 %v1852, %v1851
        %v1881 = vpack.c.b16 %v1854, %v1853
        %v1882 = vpack.c.b16 %v1856, %v1855
        %v1883 = vpack.c.b16 %v1858, %v1857
        %v1884 = vpack.c.b16 %v1860, %v1859
        %v1885 = vpack.c.b16 %v1862, %v1861
        %v1886 = vpack.c.b16 %v1864, %v1863
        %v1887 = vpack.c.b16 %v1866, %v1865
        %v1888 = vpack.c.b16 %v1868, %v1867
        %v1889 = vpack.c.b16 %v1870, %v1869
        %v1890 = vpack.c.b16 %v1872, %v1871
        %v1891 = vpack.c.b16 %v1874, %v1873
        %v1892 = vpack.c.b16 %v1876, %v1875
        %1909 = vmatprep.subr.bf16.mxu0 0
        %1910 = vmatpush1.bf16.msra.mxu0 %v1877
        %1911 = vmatprep.subr.bf16.mxu0 0
        %1912 = vmatpush1.bf16.msra.mxu0 %v1878
        %1913 = vmatprep.subr.bf16.mxu0 0
        %1914 = vmatpush1.bf16.msra.mxu0 %v1879
        %1915 = vmatprep.subr.bf16.mxu0 0
        %1916 = vmatpush1.bf16.msra.mxu0 %v1880
        %1917 = vmatprep.subr.bf16.mxu0 0
        %1918 = vmatpush1.bf16.msra.mxu0 %v1881
        %1919 = vmatprep.subr.bf16.mxu0 0
        %1920 = vmatpush1.bf16.msra.mxu0 %v1882
        %1921 = vmatprep.subr.bf16.mxu0 0
        %1922 = vmatpush1.bf16.msra.mxu0 %v1883
        %1923 = vmatprep.subr.bf16.mxu0 0
        %1924 = vmatpush1.bf16.msra.mxu0 %v1884
        %1925 = vmatprep.subr.bf16.mxu0 0
        %1926 = vmatpush1.bf16.msra.mxu0 %v1885
        %1927 = vmatprep.subr.bf16.mxu0 0
        %1928 = vmatpush1.bf16.msra.mxu0 %v1886
        %1929 = vmatprep.subr.bf16.mxu0 0
        %1930 = vmatpush1.bf16.msra.mxu0 %v1887
        %1931 = vmatprep.subr.bf16.mxu0 0
        %1932 = vmatpush1.bf16.msra.mxu0 %v1888
        %1933 = vmatprep.subr.bf16.mxu0 0
        %1934 = vmatpush1.bf16.msra.mxu0 %v1889
        %1935 = vmatprep.subr.bf16.mxu0 0
        %1936 = vmatpush1.bf16.msra.mxu0 %v1890
        %1937 = vmatprep.subr.bf16.mxu0 0
        %1938 = vmatpush1.bf16.msra.mxu0 %v1891
        %1939 = vmatprep.subr.bf16.mxu0 0
        %1940 = vmatpush1.bf16.msra.mxu0 %v1892
        %1941 = vmatprep.mubr.bf16.mxu0 %v1779
        %1942 = vmatmul.mubr.bf16.gmra.mrb[0].mxu0 %v1778
        %v1943 = vpop.f32.mrb[0].mxu0
        %v1944 = vadd.f32 0.0, %v1943
        %v1945 = vpop.f32.mrb[0].mxu0
        %v1946 = vpop.f32.mrb[0].mxu0
        %v1947 = vpop.f32.mrb[0].mxu0
        %1948 = vdwg.mxu0
        %v1981 = vunpack.c.l.b16 %v1700
        %v1982 = vunpack.c.l.b16 %v1701
        %v1983 = vunpack.c.l.b16 %v1702
        %v1984 = vunpack.c.l.b16 %v1703
        %v1985 = vunpack.c.l.b16 %v1704
        %v1986 = vunpack.c.l.b16 %v1705
        %v1987 = vunpack.c.l.b16 %v1706
        %v1988 = vunpack.c.l.b16 %v1707
        %v1989 = vunpack.c.l.b16 %v1708
        %v1990 = vunpack.c.l.b16 %v1709
        %v1991 = vunpack.c.l.b16 %v1710
        %v1992 = vunpack.c.l.b16 %v1711
        %v1993 = vunpack.c.l.b16 %v1712
        %v1994 = vunpack.c.l.b16 %v1713
        %v1995 = vunpack.c.l.b16 %v1714
        %v1996 = vunpack.c.l.b16 %v1715
        %v1997 = vunpack.c.l.b16 %v1716
        %v1998 = vunpack.c.l.b16 %v1717
        %v1999 = vunpack.c.l.b16 %v1718
        %v2000 = vunpack.c.l.b16 %v1719
        %v2001 = vunpack.c.l.b16 %v1720
        %v2002 = vunpack.c.l.b16 %v1721
        %v2003 = vunpack.c.l.b16 %v1722
        %v2004 = vunpack.c.l.b16 %v1723
        %v2005 = vunpack.c.l.b16 %v1724
        %v2006 = vunpack.c.l.b16 %v1725
        %v2007 = vunpack.c.l.b16 %v1726
        %v2008 = vunpack.c.l.b16 %v1727
        %v2009 = vunpack.c.l.b16 %v1728
        %v2010 = vunpack.c.l.b16 %v1729
        %v2011 = vunpack.c.l.b16 %v1730
        %v2012 = vunpack.c.l.b16 %v1731
        %v2013 = vpack.c.b16 %v1982, %v1981
        %v2014 = vpack.c.b16 %v1984, %v1983
        %v2015 = vpack.c.b16 %v1986, %v1985
        %v2016 = vpack.c.b16 %v1988, %v1987
        %v2017 = vpack.c.b16 %v1990, %v1989
        %v2018 = vpack.c.b16 %v1992, %v1991
        %v2019 = vpack.c.b16 %v1994, %v1993
        %v2020 = vpack.c.b16 %v1996, %v1995
        %v2021 = vpack.c.b16 %v1998, %v1997
        %v2022 = vpack.c.b16 %v2000, %v1999
        %v2023 = vpack.c.b16 %v2002, %v2001
        %v2024 = vpack.c.b16 %v2004, %v2003
        %v2025 = vpack.c.b16 %v2006, %v2005
        %v2026 = vpack.c.b16 %v2008, %v2007
        %v2027 = vpack.c.b16 %v2010, %v2009
        %v2028 = vpack.c.b16 %v2012, %v2011
        %2045 = vmatprep.subr.bf16.mxu0 0
        %2046 = vmatpush1.bf16.msra.mxu0 %v2013
        %2047 = vmatprep.subr.bf16.mxu0 0
        %2048 = vmatpush1.bf16.msra.mxu0 %v2014
        %2049 = vmatprep.subr.bf16.mxu0 0
        %2050 = vmatpush1.bf16.msra.mxu0 %v2015
        %2051 = vmatprep.subr.bf16.mxu0 0
        %2052 = vmatpush1.bf16.msra.mxu0 %v2016
        %2053 = vmatprep.subr.bf16.mxu0 0
        %2054 = vmatpush1.bf16.msra.mxu0 %v2017
        %2055 = vmatprep.subr.bf16.mxu0 0
        %2056 = vmatpush1.bf16.msra.mxu0 %v2018
        %2057 = vmatprep.subr.bf16.mxu0 0
        %2058 = vmatpush1.bf16.msra.mxu0 %v2019
        %2059 = vmatprep.subr.bf16.mxu0 0
        %2060 = vmatpush1.bf16.msra.mxu0 %v2020
        %2061 = vmatprep.subr.bf16.mxu0 0
        %2062 = vmatpush1.bf16.msra.mxu0 %v2021
        %2063 = vmatprep.subr.bf16.mxu0 0
        %2064 = vmatpush1.bf16.msra.mxu0 %v2022
        %2065 = vmatprep.subr.bf16.mxu0 0
        %2066 = vmatpush1.bf16.msra.mxu0 %v2023
        %2067 = vmatprep.subr.bf16.mxu0 0
        %2068 = vmatpush1.bf16.msra.mxu0 %v2024
        %2069 = vmatprep.subr.bf16.mxu0 0
        %2070 = vmatpush1.bf16.msra.mxu0 %v2025
        %2071 = vmatprep.subr.bf16.mxu0 0
        %2072 = vmatpush1.bf16.msra.mxu0 %v2026
        %2073 = vmatprep.subr.bf16.mxu0 0
        %2074 = vmatpush1.bf16.msra.mxu0 %v2027
        %2075 = vmatprep.subr.bf16.mxu0 0
        %2076 = vmatpush1.bf16.msra.mxu0 %v2028
        %2077 = vmatprep.mubr.bf16.mxu0 %v1699
        %2078 = vmatmul.mubr.bf16.gmra.mrb[0].mxu0 %v1698
        %v2079 = vpop.f32.mrb[0].mxu0
        %v2080 = vadd.f32 %v1944, %v2079
        %v2081 = vpop.f32.mrb[0].mxu0
        %v2082 = vpop.f32.mrb[0].mxu0
        %v2083 = vpop.f32.mrb[0].mxu0
        %2084 = vdwg.mxu0
        %s2085 = scalar_lea.vmem [#allocation16], 4
        %v2086 = vld [vmem:[%s2085] sm:$0x3]
        %v2088 = vsel %vm1646, %v2086, 0
        %2090 = vmatprep.subr.bf16.mxu0 %v1655
        %2091 = vmatpush1.bf16.msra.mxu0 %v1652
        %2092 = vmatprep.subr.bf16.mxu0 0
        %2093 = vmatpush1.bf16.msra.mxu0 0
        %2094 = vmatprep.subr.bf16.mxu0 0
        %2095 = vmatpush1.bf16.msra.mxu0 0
        %2096 = vmatprep.subr.bf16.mxu0 0
        %2097 = vmatpush1.bf16.msra.mxu0 0
        %2098 = vmatprep.subr.bf16.mxu0 0
        %2099 = vmatpush1.bf16.msra.mxu0 0
        %2100 = vmatprep.subr.bf16.mxu0 0
        %2101 = vmatpush1.bf16.msra.mxu0 0
        %2102 = vmatprep.subr.bf16.mxu0 0
        %2103 = vmatpush1.bf16.msra.mxu0 0
        %2104 = vmatprep.subr.bf16.mxu0 0
        %2105 = vmatpush1.bf16.msra.mxu0 0
        %2106 = vmatprep.subr.bf16.mxu0 0
        %2107 = vmatpush1.bf16.msra.mxu0 0
        %2108 = vmatprep.subr.bf16.mxu0 0
        %2109 = vmatpush1.bf16.msra.mxu0 0
        %2110 = vmatprep.subr.bf16.mxu0 0
        %2111 = vmatpush1.bf16.msra.mxu0 0
        %2112 = vmatprep.subr.bf16.mxu0 0
        %2113 = vmatpush1.bf16.msra.mxu0 0
        %2114 = vmatprep.subr.bf16.mxu0 0
        %2115 = vmatpush1.bf16.msra.mxu0 0
        %2116 = vmatprep.subr.bf16.mxu0 0
        %2117 = vmatpush1.bf16.msra.mxu0 0
        %2118 = vmatprep.subr.bf16.mxu0 0
        %2119 = vmatpush1.bf16.msra.mxu0 0
        %2120 = vmatprep.subr.bf16.mxu0 0
        %2121 = vmatpush1.bf16.msra.mxu0 0
        %2122 = vmatprep.mubr.bf16.mxu0 0
        %2123 = vmatmul.mubr.bf16.gmra.mrb[0].mxu0 %v2088
        %v2124 = vpop.f32.mrb[0].mxu0
        %v2125 = vadd.f32 0.0, %v2124
        %v2126 = vpop.f32.mrb[0].mxu0
        %v2127 = vadd.f32 0.0, %v2126
        %v2128 = vpop.f32.mrb[0].mxu0
        %v2129 = vpop.f32.mrb[0].mxu0
        %2130 = vdwg.mxu0
        %v2131 = vpack.c.bf16 %v2125, %v2125
        %v2132 = vpack.c.bf16 %v2127, %v2127
        %s2133 = scalar_lea.vmem %s11, 256
        %v2134 = vld [vmem:[%s2133] sm:$0xf]
        %v2135 = vld [vmem:[%s2133 + $0x4] sm:$0xf]
        %v2136 = vld [vmem:[%s2133 + $0x8] sm:$0xf]
        %v2137 = vld [vmem:[%s2133 + $0xc] sm:$0xf]
        %v2138 = vld [vmem:[%s2133 + $0x10] sm:$0xf]
        %v2139 = vld [vmem:[%s2133 + $0x14] sm:$0xf]
        %v2140 = vld [vmem:[%s2133 + $0x18] sm:$0xf]
        %v2141 = vld [vmem:[%s2133 + $0x1c] sm:$0xf]
        %v2142 = vld [vmem:[%s2133 + $0x20] sm:$0xf]
        %v2143 = vld [vmem:[%s2133 + $0x24] sm:$0xf]
        %v2144 = vld [vmem:[%s2133 + $0x28] sm:$0xf]
        %v2145 = vld [vmem:[%s2133 + $0x2c] sm:$0xf]
        %v2146 = vld [vmem:[%s2133 + $0x30] sm:$0xf]
        %v2147 = vld [vmem:[%s2133 + $0x34] sm:$0xf]
        %v2148 = vld [vmem:[%s2133 + $0x38] sm:$0xf]
        %v2149 = vld [vmem:[%s2133 + $0x3c] sm:$0xf]
        %v2150 = vld [vmem:[%s2133 + $0x40] sm:$0xf]
        %v2151 = vld [vmem:[%s2133 + $0x44] sm:$0xf]
        %v2152 = vld [vmem:[%s2133 + $0x48] sm:$0xf]
        %v2153 = vld [vmem:[%s2133 + $0x4c] sm:$0xf]
        %v2154 = vld [vmem:[%s2133 + $0x50] sm:$0xf]
        %v2155 = vld [vmem:[%s2133 + $0x54] sm:$0xf]
        %v2156 = vld [vmem:[%s2133 + $0x58] sm:$0xf]
        %v2157 = vld [vmem:[%s2133 + $0x5c] sm:$0xf]
        %v2158 = vld [vmem:[%s2133 + $0x60] sm:$0xf]
        %v2159 = vld [vmem:[%s2133 + $0x64] sm:$0xf]
        %v2160 = vld [vmem:[%s2133 + $0x68] sm:$0xf]
        %v2161 = vld [vmem:[%s2133 + $0x6c] sm:$0xf]
        %v2162 = vld [vmem:[%s2133 + $0x70] sm:$0xf]
        %v2163 = vld [vmem:[%s2133 + $0x74] sm:$0xf]
        %v2164 = vld [vmem:[%s2133 + $0x78] sm:$0xf]
        %v2165 = vld [vmem:[%s2133 + $0x7c] sm:$0xf]
        %v2198 = vunpack.c.l.b16 %v2134
        %v2199 = vunpack.c.l.b16 %v2135
        %v2200 = vunpack.c.l.b16 %v2136
        %v2201 = vunpack.c.l.b16 %v2137
        %v2202 = vunpack.c.l.b16 %v2138
        %v2203 = vunpack.c.l.b16 %v2139
        %v2204 = vunpack.c.l.b16 %v2140
        %v2205 = vunpack.c.l.b16 %v2141
        %v2206 = vunpack.c.l.b16 %v2142
        %v2207 = vunpack.c.l.b16 %v2143
        %v2208 = vunpack.c.l.b16 %v2144
        %v2209 = vunpack.c.l.b16 %v2145
        %v2210 = vunpack.c.l.b16 %v2146
        %v2211 = vunpack.c.l.b16 %v2147
        %v2212 = vunpack.c.l.b16 %v2148
        %v2213 = vunpack.c.l.b16 %v2149
        %v2214 = vunpack.c.l.b16 %v2150
        %v2215 = vunpack.c.l.b16 %v2151
        %v2216 = vunpack.c.l.b16 %v2152
        %v2217 = vunpack.c.l.b16 %v2153
        %v2218 = vunpack.c.l.b16 %v2154
        %v2219 = vunpack.c.l.b16 %v2155
        %v2220 = vunpack.c.l.b16 %v2156
        %v2221 = vunpack.c.l.b16 %v2157
        %v2222 = vunpack.c.l.b16 %v2158
        %v2223 = vunpack.c.l.b16 %v2159
        %v2224 = vunpack.c.l.b16 %v2160
        %v2225 = vunpack.c.l.b16 %v2161
        %v2226 = vunpack.c.l.b16 %v2162
        %v2227 = vunpack.c.l.b16 %v2163
        %v2228 = vunpack.c.l.b16 %v2164
        %v2229 = vunpack.c.l.b16 %v2165
        %v2230 = vpack.c.b16 %v2199, %v2198
        %v2231 = vpack.c.b16 %v2201, %v2200
        %v2232 = vpack.c.b16 %v2203, %v2202
        %v2233 = vpack.c.b16 %v2205, %v2204
        %v2234 = vpack.c.b16 %v2207, %v2206
        %v2235 = vpack.c.b16 %v2209, %v2208
        %v2236 = vpack.c.b16 %v2211, %v2210
        %v2237 = vpack.c.b16 %v2213, %v2212
        %v2238 = vpack.c.b16 %v2215, %v2214
        %v2239 = vpack.c.b16 %v2217, %v2216
        %v2240 = vpack.c.b16 %v2219, %v2218
        %v2241 = vpack.c.b16 %v2221, %v2220
        %v2242 = vpack.c.b16 %v2223, %v2222
        %v2243 = vpack.c.b16 %v2225, %v2224
        %v2244 = vpack.c.b16 %v2227, %v2226
        %v2245 = vpack.c.b16 %v2229, %v2228
        %2262 = vmatprep.subr.bf16.mxu0 0
        %2263 = vmatpush1.bf16.msra.mxu0 %v2230
        %2264 = vmatprep.subr.bf16.mxu0 0
        %2265 = vmatpush1.bf16.msra.mxu0 %v2231
        %2266 = vmatprep.subr.bf16.mxu0 0
        %2267 = vmatpush1.bf16.msra.mxu0 %v2232
        %2268 = vmatprep.subr.bf16.mxu0 0
        %2269 = vmatpush1.bf16.msra.mxu0 %v2233
        %2270 = vmatprep.subr.bf16.mxu0 0
        %2271 = vmatpush1.bf16.msra.mxu0 %v2234
        %2272 = vmatprep.subr.bf16.mxu0 0
        %2273 = vmatpush1.bf16.msra.mxu0 %v2235
        %2274 = vmatprep.subr.bf16.mxu0 0
        %2275 = vmatpush1.bf16.msra.mxu0 %v2236
        %2276 = vmatprep.subr.bf16.mxu0 0
        %2277 = vmatpush1.bf16.msra.mxu0 %v2237
        %2278 = vmatprep.subr.bf16.mxu0 0
        %2279 = vmatpush1.bf16.msra.mxu0 %v2238
        %2280 = vmatprep.subr.bf16.mxu0 0
        %2281 = vmatpush1.bf16.msra.mxu0 %v2239
        %2282 = vmatprep.subr.bf16.mxu0 0
        %2283 = vmatpush1.bf16.msra.mxu0 %v2240
        %2284 = vmatprep.subr.bf16.mxu0 0
        %2285 = vmatpush1.bf16.msra.mxu0 %v2241
        %2286 = vmatprep.subr.bf16.mxu0 0
        %2287 = vmatpush1.bf16.msra.mxu0 %v2242
        %2288 = vmatprep.subr.bf16.mxu0 0
        %2289 = vmatpush1.bf16.msra.mxu0 %v2243
        %2290 = vmatprep.subr.bf16.mxu0 0
        %2291 = vmatpush1.bf16.msra.mxu0 %v2244
        %2292 = vmatprep.subr.bf16.mxu0 0
        %2293 = vmatpush1.bf16.msra.mxu0 %v2245
        %2294 = vmatprep.mubr.bf16.mxu0 %v2132
        %2295 = vmatmul.mubr.bf16.gmra.mrb[0].mxu0 %v2131
        %v2296 = vpop.f32.mrb[0].mxu0
        %v2297 = vadd.f32 0.0, %v2296
        %v2298 = vpop.f32.mrb[0].mxu0
        %v2299 = vpop.f32.mrb[0].mxu0
        %v2300 = vpop.f32.mrb[0].mxu0
        %2301 = vdwg.mxu0
        %v2302 = vadd.f32 %v2080, %v2297
        %v2303 = vld [vmem:[#allocation17] sm:$0x1]
        %v2305 = vlaneseq
        %v2306 = vshrl.u32 %v2305, 7
        %v2307 = vsub.s32 0, %v2306
        %v2308 = vrot.slane %v2303, %v2307
        %v2310 = vadd.f32 %v2302, %v2308
        %v2311 = vmul.f32 %v2310, 0.2
        %v2312 = vmax.f32 %v2310, %v2311
        %vm2313 = vcmask 519168
        %2314 = vst.msk [vmem:[#allocation2] sm:$0xf] %vm2313, %v2312
        %v2315 = vld [vmem:[#allocation2] sm:$0x1]
        %v2316 = vlaneseq
        %vm2317 = vcmp.ge.s32.totalorder %v2316, 0
        %vm2318 = vcmp.lt.s32.totalorder %v2316, 64
        %vm2319 = vmand %vm2317, %vm2318
        %2320 = vst.msk [vmem:[#allocation3] sm:$0x1] %vm2319, %v2315
        %v2321 = vld [vmem:[#allocation2 + $0x1] sm:$0x1]
        %v2324 = vunpack.c.l.s4 1966171168
        %v2325 = vunpack.c.0.s8 %v2324
        %v2326 = vlaneseq
        %v2327 = vshrl.u32 %v2326, 7
        %v2328 = vsub.s32 %v2325, %v2327
        %v2329 = vrot.slane %v2321, %v2328
        %v2331 = vunpack.c.l.s4 1966171168
        %v2332 = vunpack.c.0.s8 %v2331
        %v2333 = vlaneseq
        %v2334 = vshrl.u32 %v2333, 7
        %v2335 = vsub.s32 %v2332, %v2334
        %v2336 = vrot.slane %v2329, %v2335
        %2337 = vrot.lane.b32.xlu0 %v2336, 64
        %v2338 = vpop.permute.xlu0 %2337
        %vm2340 = vcmp.ge.s32.totalorder %v2316, 64
        %vm2341 = vcmp.lt.s32.totalorder %v2316, 128
        %vm2342 = vmand %vm2340, %vm2341
        %2343 = vst.msk [vmem:[#allocation3] sm:$0x1] %vm2342, %v2338
        %v2344 = vld [vmem:[#allocation2 + $0x2] sm:$0x1]
        %2345 = vst.msk [vmem:[#allocation3 + $0x1] sm:$0x1] %vm2319, %v2344
        %v2346 = vld [vmem:[#allocation2 + $0x3] sm:$0x1]
        %v2349 = vunpack.c.l.s4 1966171168
        %v2350 = vunpack.c.0.s8 %v2349
        %v2351 = vlaneseq
        %v2352 = vshrl.u32 %v2351, 7
        %v2353 = vsub.s32 %v2350, %v2352
        %v2354 = vrot.slane %v2346, %v2353
        %v2356 = vunpack.c.l.s4 1966171168
        %v2357 = vunpack.c.0.s8 %v2356
        %v2358 = vlaneseq
        %v2359 = vshrl.u32 %v2358, 7
        %v2360 = vsub.s32 %v2357, %v2359
        %v2361 = vrot.slane %v2354, %v2360
        %2362 = vrot.lane.b32.xlu0 %v2361, 64
        %v2363 = vpop.permute.xlu0 %2362
        %2365 = vst.msk [vmem:[#allocation3 + $0x1] sm:$0x1] %vm2342, %v2363
        %v2366 = vld [vmem:[#allocation3] sm:$0x3]
        %v2368 = vlaneseq
        %v2369 = vshrl.u32 %v2368, 7
        %v2370 = vsub.s32 0, %v2369
        %v2371 = vrot.slane %v2366, %v2370
        %v2372 = vlaneseq
        %v2373 = vshrl.u32 %v2372, 7
        %v2374 = vsub.s32 1, %v2373
        %v2375 = vrot.slane %v2366, %v2374
        %v2378 = vpack.c.bf16 %v2371, %v2371
        %v2379 = vpack.c.bf16 %v2375, %v2375
        %v2380 = vld [vmem:[%s15] sm:$0xff]
        %v2381 = vld [vmem:[%s15 + $0x8] sm:$0xff]
        %v2382 = vld [vmem:[%s15 + $0x10] sm:$0xff]
        %v2383 = vld [vmem:[%s15 + $0x18] sm:$0xff]
        %v2384 = vld [vmem:[%s15 + $0x20] sm:$0xff]
        %v2385 = vld [vmem:[%s15 + $0x28] sm:$0xff]
        %v2386 = vld [vmem:[%s15 + $0x30] sm:$0xff]
        %v2387 = vld [vmem:[%s15 + $0x38] sm:$0xff]
        %v2388 = vld [vmem:[%s15 + $0x40] sm:$0xff]
        %v2389 = vld [vmem:[%s15 + $0x48] sm:$0xff]
        %v2390 = vld [vmem:[%s15 + $0x50] sm:$0xff]
        %v2391 = vld [vmem:[%s15 + $0x58] sm:$0xff]
        %v2392 = vld [vmem:[%s15 + $0x60] sm:$0xff]
        %v2393 = vld [vmem:[%s15 + $0x68] sm:$0xff]
        %v2394 = vld [vmem:[%s15 + $0x70] sm:$0xff]
        %v2395 = vld [vmem:[%s15 + $0x78] sm:$0xff]
        %v2396 = vld [vmem:[%s15 + $0x80] sm:$0xff]
        %v2397 = vld [vmem:[%s15 + $0x88] sm:$0xff]
        %v2398 = vld [vmem:[%s15 + $0x90] sm:$0xff]
        %v2399 = vld [vmem:[%s15 + $0x98] sm:$0xff]
        %v2400 = vld [vmem:[%s15 + $0xa0] sm:$0xff]
        %v2401 = vld [vmem:[%s15 + $0xa8] sm:$0xff]
        %v2402 = vld [vmem:[%s15 + $0xb0] sm:$0xff]
        %v2403 = vld [vmem:[%s15 + $0xb8] sm:$0xff]
        %v2404 = vld [vmem:[%s15 + $0xc0] sm:$0xff]
        %v2405 = vld [vmem:[%s15 + $0xc8] sm:$0xff]
        %v2406 = vld [vmem:[%s15 + $0xd0] sm:$0xff]
        %v2407 = vld [vmem:[%s15 + $0xd8] sm:$0xff]
        %v2408 = vld [vmem:[%s15 + $0xe0] sm:$0xff]
        %v2409 = vld [vmem:[%s15 + $0xe8] sm:$0xff]
        %v2410 = vld [vmem:[%s15 + $0xf0] sm:$0xff]
        %v2411 = vld [vmem:[%s15 + $0xf8] sm:$0xff]
        %v2412 = vld [vmem:[#allocation19] sm:$0x3]
        %v2445 = vunpack.c.l.b16 %v2380
        %v2446 = vunpack.c.h.b16 %v2380
        %v2447 = vunpack.c.l.b16 %v2381
        %v2448 = vunpack.c.h.b16 %v2381
        %v2449 = vunpack.c.l.b16 %v2382
        %v2450 = vunpack.c.h.b16 %v2382
        %v2451 = vunpack.c.l.b16 %v2383
        %v2452 = vunpack.c.h.b16 %v2383
        %v2453 = vunpack.c.l.b16 %v2384
        %v2454 = vunpack.c.h.b16 %v2384
        %v2455 = vunpack.c.l.b16 %v2385
        %v2456 = vunpack.c.h.b16 %v2385
        %v2457 = vunpack.c.l.b16 %v2386
        %v2458 = vunpack.c.h.b16 %v2386
        %v2459 = vunpack.c.l.b16 %v2387
        %v2460 = vunpack.c.h.b16 %v2387
        %v2461 = vunpack.c.l.b16 %v2388
        %v2462 = vunpack.c.h.b16 %v2388
        %v2463 = vunpack.c.l.b16 %v2389
        %v2464 = vunpack.c.h.b16 %v2389
        %v2465 = vunpack.c.l.b16 %v2390
        %v2466 = vunpack.c.h.b16 %v2390
        %v2467 = vunpack.c.l.b16 %v2391
        %v2468 = vunpack.c.h.b16 %v2391
        %v2469 = vunpack.c.l.b16 %v2392
        %v2470 = vunpack.c.h.b16 %v2392
        %v2471 = vunpack.c.l.b16 %v2393
        %v2472 = vunpack.c.h.b16 %v2393
        %v2473 = vunpack.c.l.b16 %v2394
        %v2474 = vunpack.c.h.b16 %v2394
        %v2475 = vunpack.c.l.b16 %v2395
        %v2476 = vunpack.c.h.b16 %v2395
        %v2477 = vunpack.c.l.b16 %v2396
        %v2478 = vunpack.c.h.b16 %v2396
        %v2479 = vunpack.c.l.b16 %v2397
        %v2480 = vunpack.c.h.b16 %v2397
        %v2481 = vunpack.c.l.b16 %v2398
        %v2482 = vunpack.c.h.b16 %v2398
        %v2483 = vunpack.c.l.b16 %v2399
        %v2484 = vunpack.c.h.b16 %v2399
        %v2485 = vunpack.c.l.b16 %v2400
        %v2486 = vunpack.c.h.b16 %v2400
        %v2487 = vunpack.c.l.b16 %v2401
        %v2488 = vunpack.c.h.b16 %v2401
        %v2489 = vunpack.c.l.b16 %v2402
        %v2490 = vunpack.c.h.b16 %v2402
        %v2491 = vunpack.c.l.b16 %v2403
        %v2492 = vunpack.c.h.b16 %v2403
        %v2493 = vunpack.c.l.b16 %v2404
        %v2494 = vunpack.c.h.b16 %v2404
        %v2495 = vunpack.c.l.b16 %v2405
        %v2496 = vunpack.c.h.b16 %v2405
        %v2497 = vunpack.c.l.b16 %v2406
        %v2498 = vunpack.c.h.b16 %v2406
        %v2499 = vunpack.c.l.b16 %v2407
        %v2500 = vunpack.c.h.b16 %v2407
        %v2501 = vunpack.c.l.b16 %v2408
        %v2502 = vunpack.c.h.b16 %v2408
        %v2503 = vunpack.c.l.b16 %v2409
        %v2504 = vunpack.c.h.b16 %v2409
        %v2505 = vunpack.c.l.b16 %v2410
        %v2506 = vunpack.c.h.b16 %v2410
        %v2507 = vunpack.c.l.b16 %v2411
        %v2508 = vunpack.c.h.b16 %v2411
        %v2509 = vpack.c.b16 %v2447, %v2445
        %v2510 = vpack.c.b16 %v2448, %v2446
        %v2511 = vpack.c.b16 %v2451, %v2449
        %v2512 = vpack.c.b16 %v2452, %v2450
        %v2513 = vpack.c.b16 %v2455, %v2453
        %v2514 = vpack.c.b16 %v2456, %v2454
        %v2515 = vpack.c.b16 %v2459, %v2457
        %v2516 = vpack.c.b16 %v2460, %v2458
        %v2517 = vpack.c.b16 %v2463, %v2461
        %v2518 = vpack.c.b16 %v2464, %v2462
        %v2519 = vpack.c.b16 %v2467, %v2465
        %v2520 = vpack.c.b16 %v2468, %v2466
        %v2521 = vpack.c.b16 %v2471, %v2469
        %v2522 = vpack.c.b16 %v2472, %v2470
        %v2523 = vpack.c.b16 %v2475, %v2473
        %v2524 = vpack.c.b16 %v2476, %v2474
        %v2525 = vpack.c.b16 %v2479, %v2477
        %v2526 = vpack.c.b16 %v2480, %v2478
        %v2527 = vpack.c.b16 %v2483, %v2481
        %v2528 = vpack.c.b16 %v2484, %v2482
        %v2529 = vpack.c.b16 %v2487, %v2485
        %v2530 = vpack.c.b16 %v2488, %v2486
        %v2531 = vpack.c.b16 %v2491, %v2489
        %v2532 = vpack.c.b16 %v2492, %v2490
        %v2533 = vpack.c.b16 %v2495, %v2493
        %v2534 = vpack.c.b16 %v2496, %v2494
        %v2535 = vpack.c.b16 %v2499, %v2497
        %v2536 = vpack.c.b16 %v2500, %v2498
        %v2537 = vpack.c.b16 %v2503, %v2501
        %v2538 = vpack.c.b16 %v2504, %v2502
        %v2539 = vpack.c.b16 %v2507, %v2505
        %v2540 = vpack.c.b16 %v2508, %v2506
        %v2574 = vlaneseq
        %v2575 = vshrl.u32 %v2574, 7
        %v2576 = vsub.s32 0, %v2575
        %v2577 = vrot.slane %v2412, %v2576
        %v2578 = vlaneseq
        %v2579 = vshrl.u32 %v2578, 7
        %v2580 = vsub.s32 1, %v2579
        %v2581 = vrot.slane %v2412, %v2580
        %2584 = vmatprep.subr.bf16.mxu0 %v2510
        %2585 = vmatpush1.bf16.msra.mxu0 %v2509
        %2586 = vmatprep.subr.bf16.mxu0 %v2512
        %2587 = vmatpush1.bf16.msra.mxu0 %v2511
        %2588 = vmatprep.subr.bf16.mxu0 %v2514
        %2589 = vmatpush1.bf16.msra.mxu0 %v2513
        %2590 = vmatprep.subr.bf16.mxu0 %v2516
        %2591 = vmatpush1.bf16.msra.mxu0 %v2515
        %2592 = vmatprep.subr.bf16.mxu0 %v2518
        %2593 = vmatpush1.bf16.msra.mxu0 %v2517
        %2594 = vmatprep.subr.bf16.mxu0 %v2520
        %2595 = vmatpush1.bf16.msra.mxu0 %v2519
        %2596 = vmatprep.subr.bf16.mxu0 %v2522
        %2597 = vmatpush1.bf16.msra.mxu0 %v2521
        %2598 = vmatprep.subr.bf16.mxu0 %v2524
        %2599 = vmatpush1.bf16.msra.mxu0 %v2523
        %2600 = vmatprep.subr.bf16.mxu0 %v2526
        %2601 = vmatpush1.bf16.msra.mxu0 %v2525
        %2602 = vmatprep.subr.bf16.mxu0 %v2528
        %2603 = vmatpush1.bf16.msra.mxu0 %v2527
        %2604 = vmatprep.subr.bf16.mxu0 %v2530
        %2605 = vmatpush1.bf16.msra.mxu0 %v2529
        %2606 = vmatprep.subr.bf16.mxu0 %v2532
        %2607 = vmatpush1.bf16.msra.mxu0 %v2531
        %2608 = vmatprep.subr.bf16.mxu0 %v2534
        %2609 = vmatpush1.bf16.msra.mxu0 %v2533
        %2610 = vmatprep.subr.bf16.mxu0 %v2536
        %2611 = vmatpush1.bf16.msra.mxu0 %v2535
        %2612 = vmatprep.subr.bf16.mxu0 %v2538
        %2613 = vmatpush1.bf16.msra.mxu0 %v2537
        %2614 = vmatprep.subr.bf16.mxu0 %v2540
        %2615 = vmatpush1.bf16.msra.mxu0 %v2539
        %2616 = vmatprep.mubr.bf16.mxu0 %v2379
        %2617 = vmatmul.mubr.bf16.gmra.mrb[0].mxu0 %v2378
        %v2618 = vpop.f32.mrb[0].mxu0
        %v2619 = vadd.f32 %v2577, %v2618
        %v2620 = vpop.f32.mrb[0].mxu0
        %v2621 = vadd.f32 %v2581, %v2620
        %v2622 = vpop.f32.mrb[0].mxu0
        %v2623 = vpop.f32.mrb[0].mxu0
        %2624 = vdwg.mxu0
        %v2625 = vmul.f32 %v2619, 0.2
        %v2626 = vmul.f32 %v2621, 0.2
        %v2627 = vmax.f32 %v2619, %v2625
        %v2628 = vmax.f32 %v2621, %v2626
        %v2629 = vpack.c.bf16 %v2627, %v2627
        %v2630 = vpack.c.bf16 %v2628, %v2628
        %v2631 = vld [vmem:[%s19] sm:$0xf]
        %v2632 = vld [vmem:[%s19 + $0x4] sm:$0xf]
        %v2633 = vld [vmem:[%s19 + $0x8] sm:$0xf]
        %v2634 = vld [vmem:[%s19 + $0xc] sm:$0xf]
        %v2635 = vld [vmem:[%s19 + $0x10] sm:$0xf]
        %v2636 = vld [vmem:[%s19 + $0x14] sm:$0xf]
        %v2637 = vld [vmem:[%s19 + $0x18] sm:$0xf]
        %v2638 = vld [vmem:[%s19 + $0x1c] sm:$0xf]
        %v2639 = vld [vmem:[%s19 + $0x20] sm:$0xf]
        %v2640 = vld [vmem:[%s19 + $0x24] sm:$0xf]
        %v2641 = vld [vmem:[%s19 + $0x28] sm:$0xf]
        %v2642 = vld [vmem:[%s19 + $0x2c] sm:$0xf]
        %v2643 = vld [vmem:[%s19 + $0x30] sm:$0xf]
        %v2644 = vld [vmem:[%s19 + $0x34] sm:$0xf]
        %v2645 = vld [vmem:[%s19 + $0x38] sm:$0xf]
        %v2646 = vld [vmem:[%s19 + $0x3c] sm:$0xf]
        %v2647 = vld [vmem:[%s19 + $0x40] sm:$0xf]
        %v2648 = vld [vmem:[%s19 + $0x44] sm:$0xf]
        %v2649 = vld [vmem:[%s19 + $0x48] sm:$0xf]
        %v2650 = vld [vmem:[%s19 + $0x4c] sm:$0xf]
        %v2651 = vld [vmem:[%s19 + $0x50] sm:$0xf]
        %v2652 = vld [vmem:[%s19 + $0x54] sm:$0xf]
        %v2653 = vld [vmem:[%s19 + $0x58] sm:$0xf]
        %v2654 = vld [vmem:[%s19 + $0x5c] sm:$0xf]
        %v2655 = vld [vmem:[%s19 + $0x60] sm:$0xf]
        %v2656 = vld [vmem:[%s19 + $0x64] sm:$0xf]
        %v2657 = vld [vmem:[%s19 + $0x68] sm:$0xf]
        %v2658 = vld [vmem:[%s19 + $0x6c] sm:$0xf]
        %v2659 = vld [vmem:[%s19 + $0x70] sm:$0xf]
        %v2660 = vld [vmem:[%s19 + $0x74] sm:$0xf]
        %v2661 = vld [vmem:[%s19 + $0x78] sm:$0xf]
        %v2662 = vld [vmem:[%s19 + $0x7c] sm:$0xf]
        %v2663 = vld [vmem:[#allocation20] sm:$0x1]
        %v2696 = vunpack.c.l.b16 %v2631
        %v2697 = vunpack.c.l.b16 %v2632
        %v2698 = vunpack.c.l.b16 %v2633
        %v2699 = vunpack.c.l.b16 %v2634
        %v2700 = vunpack.c.l.b16 %v2635
        %v2701 = vunpack.c.l.b16 %v2636
        %v2702 = vunpack.c.l.b16 %v2637
        %v2703 = vunpack.c.l.b16 %v2638
        %v2704 = vunpack.c.l.b16 %v2639
        %v2705 = vunpack.c.l.b16 %v2640
        %v2706 = vunpack.c.l.b16 %v2641
        %v2707 = vunpack.c.l.b16 %v2642
        %v2708 = vunpack.c.l.b16 %v2643
        %v2709 = vunpack.c.l.b16 %v2644
        %v2710 = vunpack.c.l.b16 %v2645
        %v2711 = vunpack.c.l.b16 %v2646
        %v2712 = vunpack.c.l.b16 %v2647
        %v2713 = vunpack.c.l.b16 %v2648
        %v2714 = vunpack.c.l.b16 %v2649
        %v2715 = vunpack.c.l.b16 %v2650
        %v2716 = vunpack.c.l.b16 %v2651
        %v2717 = vunpack.c.l.b16 %v2652
        %v2718 = vunpack.c.l.b16 %v2653
        %v2719 = vunpack.c.l.b16 %v2654
        %v2720 = vunpack.c.l.b16 %v2655
        %v2721 = vunpack.c.l.b16 %v2656
        %v2722 = vunpack.c.l.b16 %v2657
        %v2723 = vunpack.c.l.b16 %v2658
        %v2724 = vunpack.c.l.b16 %v2659
        %v2725 = vunpack.c.l.b16 %v2660
        %v2726 = vunpack.c.l.b16 %v2661
        %v2727 = vunpack.c.l.b16 %v2662
        %v2728 = vpack.c.b16 %v2697, %v2696
        %v2729 = vpack.c.b16 %v2699, %v2698
        %v2730 = vpack.c.b16 %v2701, %v2700
        %v2731 = vpack.c.b16 %v2703, %v2702
        %v2732 = vpack.c.b16 %v2705, %v2704
        %v2733 = vpack.c.b16 %v2707, %v2706
        %v2734 = vpack.c.b16 %v2709, %v2708
        %v2735 = vpack.c.b16 %v2711, %v2710
        %v2736 = vpack.c.b16 %v2713, %v2712
        %v2737 = vpack.c.b16 %v2715, %v2714
        %v2738 = vpack.c.b16 %v2717, %v2716
        %v2739 = vpack.c.b16 %v2719, %v2718
        %v2740 = vpack.c.b16 %v2721, %v2720
        %v2741 = vpack.c.b16 %v2723, %v2722
        %v2742 = vpack.c.b16 %v2725, %v2724
        %v2743 = vpack.c.b16 %v2727, %v2726
        %2760 = vmatprep.subr.bf16.mxu0 0
        %2761 = vmatpush1.bf16.msra.mxu0 %v2728
        %2762 = vmatprep.subr.bf16.mxu0 0
        %2763 = vmatpush1.bf16.msra.mxu0 %v2729
        %2764 = vmatprep.subr.bf16.mxu0 0
        %2765 = vmatpush1.bf16.msra.mxu0 %v2730
        %2766 = vmatprep.subr.bf16.mxu0 0
        %2767 = vmatpush1.bf16.msra.mxu0 %v2731
        %2768 = vmatprep.subr.bf16.mxu0 0
        %2769 = vmatpush1.bf16.msra.mxu0 %v2732
        %2770 = vmatprep.subr.bf16.mxu0 0
        %2771 = vmatpush1.bf16.msra.mxu0 %v2733
        %2772 = vmatprep.subr.bf16.mxu0 0
        %2773 = vmatpush1.bf16.msra.mxu0 %v2734
        %2774 = vmatprep.subr.bf16.mxu0 0
        %2775 = vmatpush1.bf16.msra.mxu0 %v2735
        %2776 = vmatprep.subr.bf16.mxu0 0
        %2777 = vmatpush1.bf16.msra.mxu0 %v2736
        %2778 = vmatprep.subr.bf16.mxu0 0
        %2779 = vmatpush1.bf16.msra.mxu0 %v2737
        %2780 = vmatprep.subr.bf16.mxu0 0
        %2781 = vmatpush1.bf16.msra.mxu0 %v2738
        %2782 = vmatprep.subr.bf16.mxu0 0
        %2783 = vmatpush1.bf16.msra.mxu0 %v2739
        %2784 = vmatprep.subr.bf16.mxu0 0
        %2785 = vmatpush1.bf16.msra.mxu0 %v2740
        %2786 = vmatprep.subr.bf16.mxu0 0
        %2787 = vmatpush1.bf16.msra.mxu0 %v2741
        %2788 = vmatprep.subr.bf16.mxu0 0
        %2789 = vmatpush1.bf16.msra.mxu0 %v2742
        %2790 = vmatprep.subr.bf16.mxu0 0
        %2791 = vmatpush1.bf16.msra.mxu0 %v2743
        %2792 = vmatprep.mubr.bf16.mxu0 %v2630
        %2793 = vmatmul.mubr.bf16.gmra.mrb[0].mxu0 %v2629
        %v2794 = vpop.f32.mrb[0].mxu0
        %v2795 = vadd.f32 %v2663, %v2794
        %v2796 = vpop.f32.mrb[0].mxu0
        %v2797 = vpop.f32.mrb[0].mxu0
        %v2798 = vpop.f32.mrb[0].mxu0
        %2799 = vdwg.mxu0
        %v2800 = vmul.f32 %v2795, 0.2
        %v2801 = vmax.f32 %v2795, %v2800
        %v2802 = vpack.c.bf16 %v2801, %v2801
        %v2803 = vld [vmem:[#allocation22] sm:$0xf]
        %v2804 = vld [vmem:[#allocation22 + $0x4] sm:$0xf]
        %v2805 = vld [vmem:[#allocation22 + $0x8] sm:$0xf]
        %v2806 = vld [vmem:[#allocation23] sm:$0x1]
        %v2810 = vunpack.c.l.b16 %v2803
        %v2811 = vunpack.c.l.b16 %v2804
        %v2812 = vunpack.c.l.b16 %v2805
        %v2813 = vpack.c.b16 %v2811, %v2810
        %v2814 = vpack.c.b16 %v2812, %v2812
        %vm2816 = vcmask 195584
        %v2818 = vsel %vm2816, %v2802, 0
        %v2821 = vsel %vm1650, %v2814, 0
        %2823 = vmatprep.subr.bf16.mxu0 0
        %2824 = vmatpush1.bf16.msra.mxu0 %v2813
        %2825 = vmatprep.subr.bf16.mxu0 0
        %2826 = vmatpush1.bf16.msra.mxu0 %v2821
        %2827 = vmatprep.subr.bf16.mxu0 0
        %2828 = vmatpush1.bf16.msra.mxu0 0
        %2829 = vmatprep.subr.bf16.mxu0 0
        %2830 = vmatpush1.bf16.msra.mxu0 0
        %2831 = vmatprep.subr.bf16.mxu0 0
        %2832 = vmatpush1.bf16.msra.mxu0 0
        %2833 = vmatprep.subr.bf16.mxu0 0
        %2834 = vmatpush1.bf16.msra.mxu0 0
        %2835 = vmatprep.subr.bf16.mxu0 0
        %2836 = vmatpush1.bf16.msra.mxu0 0
        %2837 = vmatprep.subr.bf16.mxu0 0
        %2838 = vmatpush1.bf16.msra.mxu0 0
        %2839 = vmatprep.subr.bf16.mxu0 0
        %2840 = vmatpush1.bf16.msra.mxu0 0
        %2841 = vmatprep.subr.bf16.mxu0 0
        %2842 = vmatpush1.bf16.msra.mxu0 0
        %2843 = vmatprep.subr.bf16.mxu0 0
        %2844 = vmatpush1.bf16.msra.mxu0 0
        %2845 = vmatprep.subr.bf16.mxu0 0
        %2846 = vmatpush1.bf16.msra.mxu0 0
        %2847 = vmatprep.subr.bf16.mxu0 0
        %2848 = vmatpush1.bf16.msra.mxu0 0
        %2849 = vmatprep.subr.bf16.mxu0 0
        %2850 = vmatpush1.bf16.msra.mxu0 0
        %2851 = vmatprep.subr.bf16.mxu0 0
        %2852 = vmatpush1.bf16.msra.mxu0 0
        %2853 = vmatprep.subr.bf16.mxu0 0
        %2854 = vmatpush1.bf16.msra.mxu0 0
        %2855 = vmatprep.mubr.bf16.mxu0 0
        %2856 = vmatmul.mubr.bf16.gmra.mrb[0].mxu0 %v2818
        %v2857 = vpop.f32.mrb[0].mxu0
        %v2858 = vadd.f32 %v2806, %v2857
        %v2859 = vpop.f32.mrb[0].mxu0
        %v2860 = vpop.f32.mrb[0].mxu0
        %v2861 = vpop.f32.mrb[0].mxu0
        %2862 = vdwg.mxu0
        %v2863 = vmul.f32 %v2858, 0.2
        %v2864 = vmax.f32 %v2858, %v2863
        %v2865 = vpack.c.bf16 %v2864, %v2864
        %v2866 = vld [vmem:[%s27] sm:$0xf]
        %v2867 = vld [vmem:[%s27 + $0x4] sm:$0xf]
        %v2868 = vld [vmem:[%s27 + $0x8] sm:$0xf]
        %v2869 = vld [vmem:[%s27 + $0xc] sm:$0xf]
        %v2870 = vld [vmem:[%s27 + $0x10] sm:$0xf]
        %v2871 = vld [vmem:[%s27 + $0x14] sm:$0xf]
        %v2872 = vld [vmem:[%s27 + $0x18] sm:$0xf]
        %v2873 = vld [vmem:[%s27 + $0x1c] sm:$0xf]
        %v2874 = vld [vmem:[%s27 + $0x20] sm:$0xf]
        %v2875 = vld [vmem:[%s27 + $0x24] sm:$0xf]
        %v2876 = vld [vmem:[%s27 + $0x28] sm:$0xf]
        %v2877 = vld [vmem:[%s27 + $0x2c] sm:$0xf]
        %v2878 = vld [vmem:[%s27 + $0x30] sm:$0xf]
        %v2879 = vld [vmem:[%s27 + $0x34] sm:$0xf]
        %v2880 = vld [vmem:[%s27 + $0x38] sm:$0xf]
        %v2881 = vld [vmem:[%s27 + $0x3c] sm:$0xf]
        %v2882 = vld [vmem:[#allocation25] sm:$0x1]
        %v2899 = vunpack.c.l.b16 %v2866
        %v2900 = vunpack.c.l.b16 %v2867
        %v2901 = vunpack.c.l.b16 %v2868
        %v2902 = vunpack.c.l.b16 %v2869
        %v2903 = vunpack.c.l.b16 %v2870
        %v2904 = vunpack.c.l.b16 %v2871
        %v2905 = vunpack.c.l.b16 %v2872
        %v2906 = vunpack.c.l.b16 %v2873
        %v2907 = vunpack.c.l.b16 %v2874
        %v2908 = vunpack.c.l.b16 %v2875
        %v2909 = vunpack.c.l.b16 %v2876
        %v2910 = vunpack.c.l.b16 %v2877
        %v2911 = vunpack.c.l.b16 %v2878
        %v2912 = vunpack.c.l.b16 %v2879
        %v2913 = vunpack.c.l.b16 %v2880
        %v2914 = vunpack.c.l.b16 %v2881
        %v2915 = vpack.c.b16 %v2900, %v2899
        %v2916 = vpack.c.b16 %v2902, %v2901
        %v2917 = vpack.c.b16 %v2904, %v2903
        %v2918 = vpack.c.b16 %v2906, %v2905
        %v2919 = vpack.c.b16 %v2908, %v2907
        %v2920 = vpack.c.b16 %v2910, %v2909
        %v2921 = vpack.c.b16 %v2912, %v2911
        %v2922 = vpack.c.b16 %v2914, %v2913
        %2931 = vmatprep.subr.bf16.mxu0 0
        %2932 = vmatpush1.bf16.msra.mxu0 %v2915
        %2933 = vmatprep.subr.bf16.mxu0 0
        %2934 = vmatpush1.bf16.msra.mxu0 %v2916
        %2935 = vmatprep.subr.bf16.mxu0 0
        %2936 = vmatpush1.bf16.msra.mxu0 %v2917
        %2937 = vmatprep.subr.bf16.mxu0 0
        %2938 = vmatpush1.bf16.msra.mxu0 %v2918
        %2939 = vmatprep.subr.bf16.mxu0 0
        %2940 = vmatpush1.bf16.msra.mxu0 %v2919
        %2941 = vmatprep.subr.bf16.mxu0 0
        %2942 = vmatpush1.bf16.msra.mxu0 %v2920
        %2943 = vmatprep.subr.bf16.mxu0 0
        %2944 = vmatpush1.bf16.msra.mxu0 %v2921
        %2945 = vmatprep.subr.bf16.mxu0 0
        %2946 = vmatpush1.bf16.msra.mxu0 %v2922
        %2947 = vmatprep.subr.bf16.mxu0 0
        %2948 = vmatpush1.bf16.msra.mxu0 0
        %2949 = vmatprep.subr.bf16.mxu0 0
        %2950 = vmatpush1.bf16.msra.mxu0 0
        %2951 = vmatprep.subr.bf16.mxu0 0
        %2952 = vmatpush1.bf16.msra.mxu0 0
        %2953 = vmatprep.subr.bf16.mxu0 0
        %2954 = vmatpush1.bf16.msra.mxu0 0
        %2955 = vmatprep.subr.bf16.mxu0 0
        %2956 = vmatpush1.bf16.msra.mxu0 0
        %2957 = vmatprep.subr.bf16.mxu0 0
        %2958 = vmatpush1.bf16.msra.mxu0 0
        %2959 = vmatprep.subr.bf16.mxu0 0
        %2960 = vmatpush1.bf16.msra.mxu0 0
        %2961 = vmatprep.subr.bf16.mxu0 0
        %2962 = vmatpush1.bf16.msra.mxu0 0
        %2963 = vmatprep.mubr.bf16.mxu0 0
        %2964 = vmatmul.mubr.bf16.gmra.mrb[0].mxu0 %v2865
        %v2965 = vpop.f32.mrb[0].mxu0
        %v2966 = vadd.f32 %v2882, %v2965
        %v2967 = vpop.f32.mrb[0].mxu0
        %v2968 = vpop.f32.mrb[0].mxu0
        %v2969 = vpop.f32.mrb[0].mxu0
        %2970 = vdwg.mxu0
        %v2971 = vmul.f32 %v2966, 0.2
        %v2972 = vmax.f32 %v2966, %v2971
        %2973 = vst [vmem:[#allocation4] sm:$0x1] %v2972
        %2974 = vst.msk [vmem:[#allocation5] sm:$0xff] %vm1243, 0.0
        %2975 = vst.msk [vmem:[#allocation5 + $0x8] sm:$0xff] %vm1243, 0.0
        %v2976 = vld [vmem:[#allocation4] sm:$0x1]
        %vm2977 = vcmask 122880
        %2978 = vst.msk [vmem:[#allocation5 + $0x1] sm:$0x1] %vm2977, %v2976
        %v2979 = vld [vmem:[#allocation4] sm:$0x1]
        %v2981 = vlaneseq
        %v2982 = vshrl.u32 %v2981, 7
        %v2983 = vsub.s32 0, %v2982
        %v2984 = vrot.slane %v2979, %v2983
        %2985 = vrot.lane.b32.xlu0 %v2984, 112
        %v2986 = vpop.permute.xlu0 %2985
        %2988 = vst.msk [vmem:[#allocation5 + $0x2] sm:$0x1] %vm2977, %v2986
        %v2989 = vld [vmem:[#allocation4] sm:$0x1]
        %v2991 = vlaneseq
        %v2992 = vshrl.u32 %v2991, 7
        %v2993 = vsub.s32 0, %v2992
        %v2994 = vrot.slane %v2989, %v2993
        %2995 = vrot.lane.b32.xlu0 %v2994, 96
        %v2996 = vpop.permute.xlu0 %2995
        %2998 = vst.msk [vmem:[#allocation5 + $0x5] sm:$0x1] %vm2977, %v2996
        %v2999 = vld [vmem:[#allocation4] sm:$0x1]
        %v3001 = vlaneseq
        %v3002 = vshrl.u32 %v3001, 7
        %v3003 = vsub.s32 0, %v3002
        %v3004 = vrot.slane %v2999, %v3003
        %3005 = vrot.lane.b32.xlu0 %v3004, 80
        %v3006 = vpop.permute.xlu0 %3005
        %3008 = vst.msk [vmem:[#allocation5 + $0x6] sm:$0x1] %vm2977, %v3006
        %v3009 = vld [vmem:[#allocation4] sm:$0x1]
        %v3011 = vlaneseq
        %v3012 = vshrl.u32 %v3011, 7
        %v3013 = vsub.s32 0, %v3012
        %v3014 = vrot.slane %v3009, %v3013
        %3015 = vrot.lane.b32.xlu0 %v3014, 64
        %v3016 = vpop.permute.xlu0 %3015
        %3018 = vst.msk [vmem:[#allocation5 + $0x9] sm:$0x1] %vm2977, %v3016
        %v3019 = vld [vmem:[#allocation4] sm:$0x1]
        %v3021 = vlaneseq
        %v3022 = vshrl.u32 %v3021, 7
        %v3023 = vsub.s32 0, %v3022
        %v3024 = vrot.slane %v3019, %v3023
        %3025 = vrot.lane.b32.xlu0 %v3024, 48
        %v3026 = vpop.permute.xlu0 %3025
        %3028 = vst.msk [vmem:[#allocation5 + $0xa] sm:$0x1] %vm2977, %v3026
        %v3029 = vld [vmem:[#allocation4] sm:$0x1]
        %v3031 = vlaneseq
        %v3032 = vshrl.u32 %v3031, 7
        %v3033 = vsub.s32 0, %v3032
        %v3034 = vrot.slane %v3029, %v3033
        %3035 = vrot.lane.b32.xlu0 %v3034, 32
        %v3036 = vpop.permute.xlu0 %3035
        %3038 = vst.msk [vmem:[#allocation5 + $0xd] sm:$0x1] %vm2977, %v3036
        %v3039 = vld [vmem:[#allocation4] sm:$0x1]
        %v3041 = vlaneseq
        %v3042 = vshrl.u32 %v3041, 7
        %v3043 = vsub.s32 0, %v3042
        %v3044 = vrot.slane %v3039, %v3043
        %3045 = vrot.lane.b32.xlu0 %v3044, 16
        %v3046 = vpop.permute.xlu0 %3045
        %3048 = vst.msk [vmem:[#allocation5 + $0xe] sm:$0x1] %vm2977, %v3046
        %v3049 = vld [vmem:[#allocation5] sm:$0xff]
        %v3050 = vld [vmem:[#allocation5 + $0x8] sm:$0x3f]
        %v3051 = vpack.c.bf16 %v3050, %v3049
        %v3052 = vld [vmem:[#allocation26] sm:$0xf]
        %v3053 = vld [vmem:[#allocation26 + $0x4] sm:$0xf]
        %v3054 = vld [vmem:[#allocation5 + $0x1] sm:$0xff]
        %v3055 = vld [vmem:[#allocation5 + $0x9] sm:$0x3f]
        %v3056 = vpack.c.bf16 %v3055, %v3054
        %s3057 = scalar_lea.vmem [#allocation26], 8
        %v3058 = vld [vmem:[%s3057] sm:$0xf]
        %v3059 = vld [vmem:[%s3057 + $0x4] sm:$0xf]
        %v3062 = vunpack.c.l.b16 %v3058
        %v3063 = vunpack.c.l.b16 %v3059
        %v3064 = vpack.c.b16 %v3063, %v3062
        %v3067 = vsel %vm1243, %v3056, 0
        %3069 = vmatprep.subr.bf16.mxu0 0
        %3070 = vmatpush1.bf16.msra.mxu0 %v3064
        %3071 = vmatprep.subr.bf16.mxu0 0
        %3072 = vmatpush1.bf16.msra.mxu0 0
        %3073 = vmatprep.subr.bf16.mxu0 0
        %3074 = vmatpush1.bf16.msra.mxu0 0
        %3075 = vmatprep.subr.bf16.mxu0 0
        %3076 = vmatpush1.bf16.msra.mxu0 0
        %3077 = vmatprep.subr.bf16.mxu0 0
        %3078 = vmatpush1.bf16.msra.mxu0 0
        %3079 = vmatprep.subr.bf16.mxu0 0
        %3080 = vmatpush1.bf16.msra.mxu0 0
        %3081 = vmatprep.subr.bf16.mxu0 0
        %3082 = vmatpush1.bf16.msra.mxu0 0
        %3083 = vmatprep.subr.bf16.mxu0 0
        %3084 = vmatpush1.bf16.msra.mxu0 0
        %3085 = vmatprep.subr.bf16.mxu0 0
        %3086 = vmatpush1.bf16.msra.mxu0 0
        %3087 = vmatprep.subr.bf16.mxu0 0
        %3088 = vmatpush1.bf16.msra.mxu0 0
        %3089 = vmatprep.subr.bf16.mxu0 0
        %3090 = vmatpush1.bf16.msra.mxu0 0
        %3091 = vmatprep.subr.bf16.mxu0 0
        %3092 = vmatpush1.bf16.msra.mxu0 0
        %3093 = vmatprep.subr.bf16.mxu0 0
        %3094 = vmatpush1.bf16.msra.mxu0 0
        %3095 = vmatprep.subr.bf16.mxu0 0
        %3096 = vmatpush1.bf16.msra.mxu0 0
        %3097 = vmatprep.subr.bf16.mxu0 0
        %3098 = vmatpush1.bf16.msra.mxu0 0
        %3099 = vmatprep.subr.bf16.mxu0 0
        %3100 = vmatpush1.bf16.msra.mxu0 0
        %3101 = vmatprep.mubr.bf16.mxu0 0
        %3102 = vmatmul.mubr.bf16.gmra.mrb[0].mxu0 %v3067
        %v3103 = vpop.f32.mrb[0].mxu0
        %v3104 = vadd.f32 0.0, %v3103
        %v3105 = vpop.f32.mrb[0].mxu0
        %v3106 = vpop.f32.mrb[0].mxu0
        %v3107 = vadd.f32 0.0, %v3106
        %v3108 = vpop.f32.mrb[0].mxu0
        %3109 = vdwg.mxu0
        %v3112 = vunpack.c.l.b16 %v3052
        %v3113 = vunpack.c.l.b16 %v3053
        %v3114 = vpack.c.b16 %v3113, %v3112
        %v3117 = vsel %vm1243, %v3051, 0
        %3119 = vmatprep.subr.bf16.mxu0 0
        %3120 = vmatpush1.bf16.msra.mxu0 %v3114
        %3121 = vmatprep.subr.bf16.mxu0 0
        %3122 = vmatpush1.bf16.msra.mxu0 0
        %3123 = vmatprep.subr.bf16.mxu0 0
        %3124 = vmatpush1.bf16.msra.mxu0 0
        %3125 = vmatprep.subr.bf16.mxu0 0
        %3126 = vmatpush1.bf16.msra.mxu0 0
        %3127 = vmatprep.subr.bf16.mxu0 0
        %3128 = vmatpush1.bf16.msra.mxu0 0
        %3129 = vmatprep.subr.bf16.mxu0 0
        %3130 = vmatpush1.bf16.msra.mxu0 0
        %3131 = vmatprep.subr.bf16.mxu0 0
        %3132 = vmatpush1.bf16.msra.mxu0 0
        %3133 = vmatprep.subr.bf16.mxu0 0
        %3134 = vmatpush1.bf16.msra.mxu0 0
        %3135 = vmatprep.subr.bf16.mxu0 0
        %3136 = vmatpush1.bf16.msra.mxu0 0
        %3137 = vmatprep.subr.bf16.mxu0 0
        %3138 = vmatpush1.bf16.msra.mxu0 0
        %3139 = vmatprep.subr.bf16.mxu0 0
        %3140 = vmatpush1.bf16.msra.mxu0 0
        %3141 = vmatprep.subr.bf16.mxu0 0
        %3142 = vmatpush1.bf16.msra.mxu0 0
        %3143 = vmatprep.subr.bf16.mxu0 0
        %3144 = vmatpush1.bf16.msra.mxu0 0
        %3145 = vmatprep.subr.bf16.mxu0 0
        %3146 = vmatpush1.bf16.msra.mxu0 0
        %3147 = vmatprep.subr.bf16.mxu0 0
        %3148 = vmatpush1.bf16.msra.mxu0 0
        %3149 = vmatprep.subr.bf16.mxu0 0
        %3150 = vmatpush1.bf16.msra.mxu0 0
        %3151 = vmatprep.mubr.bf16.mxu0 0
        %3152 = vmatmul.mubr.bf16.gmra.mrb[0].mxu0 %v3117
        %v3153 = vpop.f32.mrb[0].mxu0
        %v3154 = vadd.f32 %v3104, %v3153
        %v3155 = vpop.f32.mrb[0].mxu0
        %v3156 = vpop.f32.mrb[0].mxu0
        %v3157 = vadd.f32 %v3107, %v3156
        %v3158 = vpop.f32.mrb[0].mxu0
        %3159 = vdwg.mxu0
        %v3160 = vld [vmem:[#allocation5 + $0x2] sm:$0xff]
        %v3161 = vld [vmem:[#allocation5 + $0xa] sm:$0x3f]
        %v3162 = vpack.c.bf16 %v3161, %v3160
        %s3163 = scalar_lea.vmem [#allocation26], 16
        %v3164 = vld [vmem:[%s3163] sm:$0xf]
        %v3165 = vld [vmem:[%s3163 + $0x4] sm:$0xf]
        %v3168 = vunpack.c.l.b16 %v3164
        %v3169 = vunpack.c.l.b16 %v3165
        %v3170 = vpack.c.b16 %v3169, %v3168
        %v3173 = vsel %vm1243, %v3162, 0
        %3175 = vmatprep.subr.bf16.mxu0 0
        %3176 = vmatpush1.bf16.msra.mxu0 %v3170
        %3177 = vmatprep.subr.bf16.mxu0 0
        %3178 = vmatpush1.bf16.msra.mxu0 0
        %3179 = vmatprep.subr.bf16.mxu0 0
        %3180 = vmatpush1.bf16.msra.mxu0 0
        %3181 = vmatprep.subr.bf16.mxu0 0
        %3182 = vmatpush1.bf16.msra.mxu0 0
        %3183 = vmatprep.subr.bf16.mxu0 0
        %3184 = vmatpush1.bf16.msra.mxu0 0
        %3185 = vmatprep.subr.bf16.mxu0 0
        %3186 = vmatpush1.bf16.msra.mxu0 0
        %3187 = vmatprep.subr.bf16.mxu0 0
        %3188 = vmatpush1.bf16.msra.mxu0 0
        %3189 = vmatprep.subr.bf16.mxu0 0
        %3190 = vmatpush1.bf16.msra.mxu0 0
        %3191 = vmatprep.subr.bf16.mxu0 0
        %3192 = vmatpush1.bf16.msra.mxu0 0
        %3193 = vmatprep.subr.bf16.mxu0 0
        %3194 = vmatpush1.bf16.msra.mxu0 0
        %3195 = vmatprep.subr.bf16.mxu0 0
        %3196 = vmatpush1.bf16.msra.mxu0 0
        %3197 = vmatprep.subr.bf16.mxu0 0
        %3198 = vmatpush1.bf16.msra.mxu0 0
        %3199 = vmatprep.subr.bf16.mxu0 0
        %3200 = vmatpush1.bf16.msra.mxu0 0
        %3201 = vmatprep.subr.bf16.mxu0 0
        %3202 = vmatpush1.bf16.msra.mxu0 0
        %3203 = vmatprep.subr.bf16.mxu0 0
        %3204 = vmatpush1.bf16.msra.mxu0 0
        %3205 = vmatprep.subr.bf16.mxu0 0
        %3206 = vmatpush1.bf16.msra.mxu0 0
        %3207 = vmatprep.mubr.bf16.mxu0 0
        %3208 = vmatmul.mubr.bf16.gmra.mrb[0].mxu0 %v3173
        %v3209 = vpop.f32.mrb[0].mxu0
        %v3210 = vadd.f32 0.0, %v3209
        %v3211 = vpop.f32.mrb[0].mxu0
        %v3212 = vpop.f32.mrb[0].mxu0
        %v3213 = vadd.f32 0.0, %v3212
        %v3214 = vpop.f32.mrb[0].mxu0
        %3215 = vdwg.mxu0
        %v3216 = vadd.f32 %v3154, %v3210
        %v3217 = vadd.f32 %v3157, %v3213
        %v3218 = vld [vmem:[#allocation28] sm:$0x1]
        %v3220 = vlaneseq
        %v3221 = vshrl.u32 %v3220, 7
        %v3222 = vsub.s32 0, %v3221
        %v3223 = vrot.slane %v3218, %v3222
        %v3225 = vadd.f32 %v3216, %v3223
        %v3226 = vadd.f32 %v3217, %v3223
        %v3227 = vpack.c.bf16 %v3226, %v3225
        %v3228 = vld [vmem:[%s35] sm:$0xf]
        %v3229 = vld [vmem:[%s35 + $0x4] sm:$0xf]
        %v3230 = vld [vmem:[%s35 + $0x8] sm:$0xf]
        %v3231 = vld [vmem:[%s35 + $0xc] sm:$0x1]
        %v3236 = vunpack.c.l.b16 %v3228
        %v3237 = vunpack.c.l.b16 %v3229
        %v3238 = vunpack.c.l.b16 %v3230
        %v3239 = vunpack.c.l.b16 %v3231
        %v3240 = vpack.c.b16 %v3237, %v3236
        %v3241 = vpack.c.b16 %v3239, %v3238
        %vm3242 = vcmask 113664
        %v3244 = vsel %vm3242, %v3240, 0
        %v3247 = vsel %vm3242, %v3241, 0
        %vm3249 = vcmask 1046528
        %v3251 = vsel %vm3249, %v3227, 0
        %3253 = vmatprep.subr.bf16.mxu0 0
        %3254 = vmatpush1.bf16.msra.mxu0 %v3251
        %3255 = vmatprep.subr.bf16.mxu0 0
        %3256 = vmatpush1.bf16.msra.mxu0 0
        %3257 = vmatprep.subr.bf16.mxu0 0
        %3258 = vmatpush1.bf16.msra.mxu0 0
        %3259 = vmatprep.subr.bf16.mxu0 0
        %3260 = vmatpush1.bf16.msra.mxu0 0
        %3261 = vmatprep.subr.bf16.mxu0 0
        %3262 = vmatpush1.bf16.msra.mxu0 0
        %3263 = vmatprep.subr.bf16.mxu0 0
        %3264 = vmatpush1.bf16.msra.mxu0 0
        %3265 = vmatprep.subr.bf16.mxu0 0
        %3266 = vmatpush1.bf16.msra.mxu0 0
        %3267 = vmatprep.subr.bf16.mxu0 0
        %3268 = vmatpush1.bf16.msra.mxu0 0
        %3269 = vmatprep.subr.bf16.mxu0 0
        %3270 = vmatpush1.bf16.msra.mxu0 0
        %3271 = vmatprep.subr.bf16.mxu0 0
        %3272 = vmatpush1.bf16.msra.mxu0 0
        %3273 = vmatprep.subr.bf16.mxu0 0
        %3274 = vmatpush1.bf16.msra.mxu0 0
        %3275 = vmatprep.subr.bf16.mxu0 0
        %3276 = vmatpush1.bf16.msra.mxu0 0
        %3277 = vmatprep.subr.bf16.mxu0 0
        %3278 = vmatpush1.bf16.msra.mxu0 0
        %3279 = vmatprep.subr.bf16.mxu0 0
        %3280 = vmatpush1.bf16.msra.mxu0 0
        %3281 = vmatprep.subr.bf16.mxu0 0
        %3282 = vmatpush1.bf16.msra.mxu0 0
        %3283 = vmatprep.subr.bf16.mxu0 0
        %3284 = vmatpush1.bf16.msra.mxu0 0
        %3285 = vmatprep.mubr.bf16.mxu0 0
        %3286 = vmatmul.mubr.bf16.gmra.mrb[0].mxu0 %v3244
        %v3287 = vpop.f32.mrb[0].mxu0
        %v3288 = vadd.f32 0.0, %v3287
        %v3289 = vpop.f32.mrb[0].mxu0
        %v3290 = vpop.f32.mrb[0].mxu0
        %v3291 = vadd.f32 0.0, %v3290
        %v3292 = vpop.f32.mrb[0].mxu0
        %3293 = vmatprep.mubr.bf16.mxu0 0
        %3294 = vmatmul.mubr.bf16.gmra.mrb[0].mxu0 %v3247
        %v3295 = vpop.f32.mrb[0].mxu0
        %v3296 = vadd.f32 0.0, %v3295
        %v3297 = vpop.f32.mrb[0].mxu0
        %v3298 = vpop.f32.mrb[0].mxu0
        %v3299 = vadd.f32 0.0, %v3298
        %v3300 = vpop.f32.mrb[0].mxu0
        %3301 = vdwg.mxu0
        %v3302 = vmul.f32 %v3288, 0.2
        %v3303 = vmul.f32 %v3291, 0.2
        %v3304 = vmul.f32 %v3296, 0.2
        %v3305 = vmul.f32 %v3299, 0.2
        %v3306 = vmax.f32 %v3288, %v3302
        %v3307 = vmax.f32 %v3291, %v3303
        %v3308 = vmax.f32 %v3296, %v3304
        %v3309 = vmax.f32 %v3299, %v3305
        %vm3310 = vcmask 523264
        %3311 = vst.msk [vmem:[#allocation6] sm:$0xff] %vm3310, %v3306
        %3312 = vst.msk [vmem:[#allocation6 + $0x8] sm:$0xff] %vm3310, %v3307
        %3313 = vst.msk [vmem:[#allocation6 + $0x10] sm:$0xff] %vm3310, %v3308
        %vm3314 = vcmask 517120
        %3315 = vst.msk [vmem:[#allocation6 + $0x18] sm:$0x3] %vm3314, %v3309
        %v3316 = vld [vmem:[#allocation6] sm:$0xff]
        %v3317 = vld [vmem:[#allocation6 + $0x8] sm:$0xff]
        %v3318 = vld [vmem:[#allocation6 + $0x10] sm:$0xff]
        %v3319 = vpack.c.bf16 %v3317, %v3316
        %v3320 = vpack.c.bf16 %v3318, %v3318
        %v3321 = vld [vmem:[%s37] sm:$0xf]
        %v3322 = vld [vmem:[%s37 + $0x4] sm:$0xf]
        %v3323 = vld [vmem:[%s37 + $0x8] sm:$0xf]
        %v3324 = vld [vmem:[%s37 + $0xc] sm:$0xf]
        %v3325 = vld [vmem:[%s37 + $0x10] sm:$0xf]
        %v3326 = vld [vmem:[%s37 + $0x14] sm:$0xf]
        %v3327 = vld [vmem:[%s37 + $0x18] sm:$0xf]
        %v3328 = vld [vmem:[%s37 + $0x1c] sm:$0xf]
        %v3329 = vld [vmem:[#allocation6 + $0x1] sm:$0xff]
        %v3330 = vld [vmem:[#allocation6 + $0x9] sm:$0xff]
        %v3331 = vld [vmem:[#allocation6 + $0x11] sm:$0xff]
        %v3332 = vpack.c.bf16 %v3330, %v3329
        %v3333 = vpack.c.bf16 %v3331, %v3331
        %s3334 = scalar_lea.vmem %s37, 32
        %v3335 = vld [vmem:[%s3334] sm:$0xf]
        %v3336 = vld [vmem:[%s3334 + $0x4] sm:$0xf]
        %v3337 = vld [vmem:[%s3334 + $0x8] sm:$0xf]
        %v3338 = vld [vmem:[%s3334 + $0xc] sm:$0xf]
        %v3339 = vld [vmem:[%s3334 + $0x10] sm:$0xf]
        %v3340 = vld [vmem:[%s3334 + $0x14] sm:$0xf]
        %v3341 = vld [vmem:[%s3334 + $0x18] sm:$0xf]
        %v3342 = vld [vmem:[%s3334 + $0x1c] sm:$0xf]
        %v3351 = vunpack.c.l.b16 %v3335
        %v3352 = vunpack.c.l.b16 %v3336
        %v3353 = vunpack.c.l.b16 %v3337
        %v3354 = vunpack.c.l.b16 %v3338
        %v3355 = vunpack.c.l.b16 %v3339
        %v3356 = vunpack.c.l.b16 %v3340
        %v3357 = vunpack.c.l.b16 %v3341
        %v3358 = vunpack.c.l.b16 %v3342
        %v3359 = vpack.c.b16 %v3352, %v3351
        %v3360 = vpack.c.b16 %v3354, %v3353
        %v3361 = vpack.c.b16 %v3356, %v3355
        %v3362 = vpack.c.b16 %v3358, %v3357
        %v3368 = vsel %vm3310, %v3332, 0
        %v3371 = vsel %vm3310, %v3333, 0
        %3373 = vmatprep.subr.bf16.mxu0 0
        %3374 = vmatpush1.bf16.msra.mxu0 %v3359
        %3375 = vmatprep.subr.bf16.mxu0 0
        %3376 = vmatpush1.bf16.msra.mxu0 %v3360
        %3377 = vmatprep.subr.bf16.mxu0 0
        %3378 = vmatpush1.bf16.msra.mxu0 %v3361
        %3379 = vmatprep.subr.bf16.mxu0 0
        %3380 = vmatpush1.bf16.msra.mxu0 %v3362
        %3381 = vmatprep.subr.bf16.mxu0 0
        %3382 = vmatpush1.bf16.msra.mxu0 0
        %3383 = vmatprep.subr.bf16.mxu0 0
        %3384 = vmatpush1.bf16.msra.mxu0 0
        %3385 = vmatprep.subr.bf16.mxu0 0
        %3386 = vmatpush1.bf16.msra.mxu0 0
        %3387 = vmatprep.subr.bf16.mxu0 0
        %3388 = vmatpush1.bf16.msra.mxu0 0
        %3389 = vmatprep.subr.bf16.mxu0 0
        %3390 = vmatpush1.bf16.msra.mxu0 0
        %3391 = vmatprep.subr.bf16.mxu0 0
        %3392 = vmatpush1.bf16.msra.mxu0 0
        %3393 = vmatprep.subr.bf16.mxu0 0
        %3394 = vmatpush1.bf16.msra.mxu0 0
        %3395 = vmatprep.subr.bf16.mxu0 0
        %3396 = vmatpush1.bf16.msra.mxu0 0
        %3397 = vmatprep.subr.bf16.mxu0 0
        %3398 = vmatpush1.bf16.msra.mxu0 0
        %3399 = vmatprep.subr.bf16.mxu0 0
        %3400 = vmatpush1.bf16.msra.mxu0 0
        %3401 = vmatprep.subr.bf16.mxu0 0
        %3402 = vmatpush1.bf16.msra.mxu0 0
        %3403 = vmatprep.subr.bf16.mxu0 0
        %3404 = vmatpush1.bf16.msra.mxu0 0
        %3405 = vmatprep.mubr.bf16.mxu0 0
        %3406 = vmatmul.mubr.bf16.gmra.mrb[0].mxu0 %v3368
        %v3407 = vpop.f32.mrb[0].mxu0
        %v3408 = vadd.f32 0.0, %v3407
        %v3409 = vpop.f32.mrb[0].mxu0
        %v3410 = vpop.f32.mrb[0].mxu0
        %v3411 = vadd.f32 0.0, %v3410
        %v3412 = vpop.f32.mrb[0].mxu0
        %3413 = vmatprep.mubr.bf16.mxu0 0
        %3414 = vmatmul.mubr.bf16.gmra.mrb[0].mxu0 %v3371
        %v3415 = vpop.f32.mrb[0].mxu0
        %v3416 = vadd.f32 0.0, %v3415
        %v3417 = vpop.f32.mrb[0].mxu0
        %v3418 = vpop.f32.mrb[0].mxu0
        %v3419 = vpop.f32.mrb[0].mxu0
        %3420 = vdwg.mxu0
        %v3429 = vunpack.c.l.b16 %v3321
        %v3430 = vunpack.c.l.b16 %v3322
        %v3431 = vunpack.c.l.b16 %v3323
        %v3432 = vunpack.c.l.b16 %v3324
        %v3433 = vunpack.c.l.b16 %v3325
        %v3434 = vunpack.c.l.b16 %v3326
        %v3435 = vunpack.c.l.b16 %v3327
        %v3436 = vunpack.c.l.b16 %v3328
        %v3437 = vpack.c.b16 %v3430, %v3429
        %v3438 = vpack.c.b16 %v3432, %v3431
        %v3439 = vpack.c.b16 %v3434, %v3433
        %v3440 = vpack.c.b16 %v3436, %v3435
        %v3446 = vsel %vm3310, %v3319, 0
        %v3449 = vsel %vm3310, %v3320, 0
        %3451 = vmatprep.subr.bf16.mxu0 0
        %3452 = vmatpush1.bf16.msra.mxu0 %v3437
        %3453 = vmatprep.subr.bf16.mxu0 0
        %3454 = vmatpush1.bf16.msra.mxu0 %v3438
        %3455 = vmatprep.subr.bf16.mxu0 0
        %3456 = vmatpush1.bf16.msra.mxu0 %v3439
        %3457 = vmatprep.subr.bf16.mxu0 0
        %3458 = vmatpush1.bf16.msra.mxu0 %v3440
        %3459 = vmatprep.subr.bf16.mxu0 0
        %3460 = vmatpush1.bf16.msra.mxu0 0
        %3461 = vmatprep.subr.bf16.mxu0 0
        %3462 = vmatpush1.bf16.msra.mxu0 0
        %3463 = vmatprep.subr.bf16.mxu0 0
        %3464 = vmatpush1.bf16.msra.mxu0 0
        %3465 = vmatprep.subr.bf16.mxu0 0
        %3466 = vmatpush1.bf16.msra.mxu0 0
        %3467 = vmatprep.subr.bf16.mxu0 0
        %3468 = vmatpush1.bf16.msra.mxu0 0
        %3469 = vmatprep.subr.bf16.mxu0 0
        %3470 = vmatpush1.bf16.msra.mxu0 0
        %3471 = vmatprep.subr.bf16.mxu0 0
        %3472 = vmatpush1.bf16.msra.mxu0 0
        %3473 = vmatprep.subr.bf16.mxu0 0
        %3474 = vmatpush1.bf16.msra.mxu0 0
        %3475 = vmatprep.subr.bf16.mxu0 0
        %3476 = vmatpush1.bf16.msra.mxu0 0
        %3477 = vmatprep.subr.bf16.mxu0 0
        %3478 = vmatpush1.bf16.msra.mxu0 0
        %3479 = vmatprep.subr.bf16.mxu0 0
        %3480 = vmatpush1.bf16.msra.mxu0 0
        %3481 = vmatprep.subr.bf16.mxu0 0
        %3482 = vmatpush1.bf16.msra.mxu0 0
        %3483 = vmatprep.mubr.bf16.mxu0 0
        %3484 = vmatmul.mubr.bf16.gmra.mrb[0].mxu0 %v3446
        %v3485 = vpop.f32.mrb[0].mxu0
        %v3486 = vadd.f32 %v3408, %v3485
        %v3487 = vpop.f32.mrb[0].mxu0
        %v3488 = vpop.f32.mrb[0].mxu0
        %v3489 = vadd.f32 %v3411, %v3488
        %v3490 = vpop.f32.mrb[0].mxu0
        %3491 = vmatprep.mubr.bf16.mxu0 0
        %3492 = vmatmul.mubr.bf16.gmra.mrb[0].mxu0 %v3449
        %v3493 = vpop.f32.mrb[0].mxu0
        %v3494 = vadd.f32 %v3416, %v3493
        %v3495 = vpop.f32.mrb[0].mxu0
        %v3496 = vpop.f32.mrb[0].mxu0
        %v3497 = vpop.f32.mrb[0].mxu0
        %3498 = vdwg.mxu0
        %v3499 = vld [vmem:[#allocation6 + $0x2] sm:$0xff]
        %v3500 = vld [vmem:[#allocation6 + $0xa] sm:$0xff]
        %v3501 = vld [vmem:[#allocation6 + $0x12] sm:$0xff]
        %v3502 = vpack.c.bf16 %v3500, %v3499
        %v3503 = vpack.c.bf16 %v3501, %v3501
        %s3504 = scalar_lea.vmem %s37, 64
        %v3505 = vld [vmem:[%s3504] sm:$0xf]
        %v3506 = vld [vmem:[%s3504 + $0x4] sm:$0xf]
        %v3507 = vld [vmem:[%s3504 + $0x8] sm:$0xf]
        %v3508 = vld [vmem:[%s3504 + $0xc] sm:$0xf]
        %v3509 = vld [vmem:[%s3504 + $0x10] sm:$0xf]
        %v3510 = vld [vmem:[%s3504 + $0x14] sm:$0xf]
        %v3511 = vld [vmem:[%s3504 + $0x18] sm:$0xf]
        %v3512 = vld [vmem:[%s3504 + $0x1c] sm:$0xf]
        %v3521 = vunpack.c.l.b16 %v3505
        %v3522 = vunpack.c.l.b16 %v3506
        %v3523 = vunpack.c.l.b16 %v3507
        %v3524 = vunpack.c.l.b16 %v3508
        %v3525 = vunpack.c.l.b16 %v3509
        %v3526 = vunpack.c.l.b16 %v3510
        %v3527 = vunpack.c.l.b16 %v3511
        %v3528 = vunpack.c.l.b16 %v3512
        %v3529 = vpack.c.b16 %v3522, %v3521
        %v3530 = vpack.c.b16 %v3524, %v3523
        %v3531 = vpack.c.b16 %v3526, %v3525
        %v3532 = vpack.c.b16 %v3528, %v3527
        %v3538 = vsel %vm3310, %v3502, 0
        %v3541 = vsel %vm3310, %v3503, 0
        %3543 = vmatprep.subr.bf16.mxu0 0
        %3544 = vmatpush1.bf16.msra.mxu0 %v3529
        %3545 = vmatprep.subr.bf16.mxu0 0
        %3546 = vmatpush1.bf16.msra.mxu0 %v3530
        %3547 = vmatprep.subr.bf16.mxu0 0
        %3548 = vmatpush1.bf16.msra.mxu0 %v3531
        %3549 = vmatprep.subr.bf16.mxu0 0
        %3550 = vmatpush1.bf16.msra.mxu0 %v3532
        %3551 = vmatprep.subr.bf16.mxu0 0
        %3552 = vmatpush1.bf16.msra.mxu0 0
        %3553 = vmatprep.subr.bf16.mxu0 0
        %3554 = vmatpush1.bf16.msra.mxu0 0
        %3555 = vmatprep.subr.bf16.mxu0 0
        %3556 = vmatpush1.bf16.msra.mxu0 0
        %3557 = vmatprep.subr.bf16.mxu0 0
        %3558 = vmatpush1.bf16.msra.mxu0 0
        %3559 = vmatprep.subr.bf16.mxu0 0
        %3560 = vmatpush1.bf16.msra.mxu0 0
        %3561 = vmatprep.subr.bf16.mxu0 0
        %3562 = vmatpush1.bf16.msra.mxu0 0
        %3563 = vmatprep.subr.bf16.mxu0 0
        %3564 = vmatpush1.bf16.msra.mxu0 0
        %3565 = vmatprep.subr.bf16.mxu0 0
        %3566 = vmatpush1.bf16.msra.mxu0 0
        %3567 = vmatprep.subr.bf16.mxu0 0
        %3568 = vmatpush1.bf16.msra.mxu0 0
        %3569 = vmatprep.subr.bf16.mxu0 0
        %3570 = vmatpush1.bf16.msra.mxu0 0
        %3571 = vmatprep.subr.bf16.mxu0 0
        %3572 = vmatpush1.bf16.msra.mxu0 0
        %3573 = vmatprep.subr.bf16.mxu0 0
        %3574 = vmatpush1.bf16.msra.mxu0 0
        %3575 = vmatprep.mubr.bf16.mxu0 0
        %3576 = vmatmul.mubr.bf16.gmra.mrb[0].mxu0 %v3538
        %v3577 = vpop.f32.mrb[0].mxu0
        %v3578 = vadd.f32 0.0, %v3577
        %v3579 = vpop.f32.mrb[0].mxu0
        %v3580 = vpop.f32.mrb[0].mxu0
        %v3581 = vadd.f32 0.0, %v3580
        %v3582 = vpop.f32.mrb[0].mxu0
        %3583 = vmatprep.mubr.bf16.mxu0 0
        %3584 = vmatmul.mubr.bf16.gmra.mrb[0].mxu0 %v3541
        %v3585 = vpop.f32.mrb[0].mxu0
        %v3586 = vadd.f32 0.0, %v3585
        %v3587 = vpop.f32.mrb[0].mxu0
        %v3588 = vpop.f32.mrb[0].mxu0
        %v3589 = vpop.f32.mrb[0].mxu0
        %3590 = vdwg.mxu0
        %v3591 = vadd.f32 %v3486, %v3578
        %v3592 = vadd.f32 %v3489, %v3581
        %v3593 = vadd.f32 %v3494, %v3586
        %v3594 = vld [vmem:[#allocation29] sm:$0x1]
        %v3596 = vlaneseq
        %v3597 = vshrl.u32 %v3596, 7
        %v3598 = vsub.s32 0, %v3597
        %v3599 = vrot.slane %v3594, %v3598
        %v3601 = vadd.f32 %v3591, %v3599
        %v3602 = vadd.f32 %v3592, %v3599
        %v3603 = vadd.f32 %v3593, %v3599
        %v3604 = vmul.f32 %v3601, 0.2
        %v3605 = vmul.f32 %v3602, 0.2
        %v3606 = vmul.f32 %v3603, 0.2
        %v3607 = vmax.f32 %v3601, %v3604
        %v3608 = vmax.f32 %v3602, %v3605
        %v3609 = vmax.f32 %v3603, %v3606
        %v3610 = vld [vmem:[%s41] sm:$0xff]
        %v3611 = vld [vmem:[%s41 + $0x8] sm:$0xff]
        %v3612 = vld [vmem:[%s41 + $0x10] sm:$0xff]
        %3614 = vset.pattern.permute.xlu0 0
        %3615 = vperm.xlu0 %3614, %v3610
        %v3616 = vpop.permute.xlu0 %3615
        %3619 = vset.pattern.permute.xlu0 0
        %3620 = vperm.xlu0 %3619, %v3611
        %v3621 = vpop.permute.xlu0 %3620
        %3624 = vset.pattern.permute.xlu0 0
        %3625 = vperm.xlu0 %3624, %v3612
        %v3626 = vpop.permute.xlu0 %3625
        %v3628 = vmul.f32 %v3607, %v3616
        %v3629 = vmul.f32 %v3608, %v3621
        %v3630 = vmul.f32 %v3609, %v3626
        %3631 = vst.msk [vmem:[#allocation7] sm:$0xff] %vm3310, %v3628
        %3632 = vst.msk [vmem:[#allocation7 + $0x8] sm:$0xff] %vm3310, %v3629
        %3633 = vst.msk [vmem:[#allocation7 + $0x10] sm:$0xff] %vm3310, %v3630
        %v3634 = vld [vmem:[#allocation7] sm:$0xff]
        %v3635 = vld [vmem:[#allocation7 + $0x8] sm:$0xff]
        %v3636 = vld [vmem:[#allocation7 + $0x10] sm:$0x3f]
        %v3637 = vpack.c.bf16 %v3635, %v3634
        %v3638 = vpack.c.bf16 %v3636, %v3636
        %v3639 = vld [vmem:[%s43] sm:$0xff]
        %v3640 = vld [vmem:[%s43 + $0x8] sm:$0xff]
        %v3641 = vld [vmem:[%s43 + $0x10] sm:$0xff]
        %v3642 = vld [vmem:[%s43 + $0x18] sm:$0xff]
        %v3643 = vld [vmem:[%s43 + $0x20] sm:$0xff]
        %v3644 = vld [vmem:[%s43 + $0x28] sm:$0xff]
        %v3645 = vld [vmem:[%s43 + $0x30] sm:$0xff]
        %v3646 = vld [vmem:[%s43 + $0x38] sm:$0xff]
        %v3647 = vld [vmem:[#allocation7 + $0x1] sm:$0xff]
        %v3648 = vld [vmem:[#allocation7 + $0x9] sm:$0xff]
        %v3649 = vld [vmem:[#allocation7 + $0x11] sm:$0x3f]
        %v3650 = vpack.c.bf16 %v3648, %v3647
        %v3651 = vpack.c.bf16 %v3649, %v3649
        %s3652 = scalar_lea.vmem %s43, 64
        %v3653 = vld [vmem:[%s3652] sm:$0xff]
        %v3654 = vld [vmem:[%s3652 + $0x8] sm:$0xff]
        %v3655 = vld [vmem:[%s3652 + $0x10] sm:$0xff]
        %v3656 = vld [vmem:[%s3652 + $0x18] sm:$0xff]
        %v3657 = vld [vmem:[%s3652 + $0x20] sm:$0xff]
        %v3658 = vld [vmem:[%s3652 + $0x28] sm:$0xff]
        %v3659 = vld [vmem:[%s3652 + $0x30] sm:$0xff]
        %v3660 = vld [vmem:[%s3652 + $0x38] sm:$0xff]
        %v3669 = vunpack.c.l.b16 %v3653
        %v3670 = vunpack.c.h.b16 %v3653
        %v3671 = vunpack.c.l.b16 %v3654
        %v3672 = vunpack.c.h.b16 %v3654
        %v3673 = vunpack.c.l.b16 %v3655
        %v3674 = vunpack.c.h.b16 %v3655
        %v3675 = vunpack.c.l.b16 %v3656
        %v3676 = vunpack.c.h.b16 %v3656
        %v3677 = vunpack.c.l.b16 %v3657
        %v3678 = vunpack.c.h.b16 %v3657
        %v3679 = vunpack.c.l.b16 %v3658
        %v3680 = vunpack.c.h.b16 %v3658
        %v3681 = vunpack.c.l.b16 %v3659
        %v3682 = vunpack.c.h.b16 %v3659
        %v3683 = vunpack.c.l.b16 %v3660
        %v3684 = vunpack.c.h.b16 %v3660
        %v3685 = vpack.c.b16 %v3671, %v3669
        %v3686 = vpack.c.b16 %v3672, %v3670
        %v3687 = vpack.c.b16 %v3675, %v3673
        %v3688 = vpack.c.b16 %v3676, %v3674
        %v3689 = vpack.c.b16 %v3679, %v3677
        %v3690 = vpack.c.b16 %v3680, %v3678
        %v3691 = vpack.c.b16 %v3683, %v3681
        %v3692 = vpack.c.b16 %v3684, %v3682
        %v3702 = vsel %vm3310, %v3650, 0
        %v3705 = vsel %vm3310, %v3651, 0
        %3707 = vmatprep.subr.bf16.mxu0 %v3686
        %3708 = vmatpush1.bf16.msra.mxu0 %v3685
        %3709 = vmatprep.subr.bf16.mxu0 %v3688
        %3710 = vmatpush1.bf16.msra.mxu0 %v3687
        %3711 = vmatprep.subr.bf16.mxu0 %v3690
        %3712 = vmatpush1.bf16.msra.mxu0 %v3689
        %3713 = vmatprep.subr.bf16.mxu0 %v3692
        %3714 = vmatpush1.bf16.msra.mxu0 %v3691
        %3715 = vmatprep.subr.bf16.mxu0 0
        %3716 = vmatpush1.bf16.msra.mxu0 0
        %3717 = vmatprep.subr.bf16.mxu0 0
        %3718 = vmatpush1.bf16.msra.mxu0 0
        %3719 = vmatprep.subr.bf16.mxu0 0
        %3720 = vmatpush1.bf16.msra.mxu0 0
        %3721 = vmatprep.subr.bf16.mxu0 0
        %3722 = vmatpush1.bf16.msra.mxu0 0
        %3723 = vmatprep.subr.bf16.mxu0 0
        %3724 = vmatpush1.bf16.msra.mxu0 0
        %3725 = vmatprep.subr.bf16.mxu0 0
        %3726 = vmatpush1.bf16.msra.mxu0 0
        %3727 = vmatprep.subr.bf16.mxu0 0
        %3728 = vmatpush1.bf16.msra.mxu0 0
        %3729 = vmatprep.subr.bf16.mxu0 0
        %3730 = vmatpush1.bf16.msra.mxu0 0
        %3731 = vmatprep.subr.bf16.mxu0 0
        %3732 = vmatpush1.bf16.msra.mxu0 0
        %3733 = vmatprep.subr.bf16.mxu0 0
        %3734 = vmatpush1.bf16.msra.mxu0 0
        %3735 = vmatprep.subr.bf16.mxu0 0
        %3736 = vmatpush1.bf16.msra.mxu0 0
        %3737 = vmatprep.subr.bf16.mxu0 0
        %3738 = vmatpush1.bf16.msra.mxu0 0
        %3739 = vmatprep.mubr.bf16.mxu0 0
        %3740 = vmatmul.mubr.bf16.gmra.mrb[0].mxu0 %v3702
        %v3741 = vpop.f32.mrb[0].mxu0
        %v3742 = vadd.f32 0.0, %v3741
        %v3743 = vpop.f32.mrb[0].mxu0
        %v3744 = vadd.f32 0.0, %v3743
        %v3745 = vpop.f32.mrb[0].mxu0
        %v3746 = vadd.f32 0.0, %v3745
        %v3747 = vpop.f32.mrb[0].mxu0
        %v3748 = vadd.f32 0.0, %v3747
        %3749 = vmatprep.mubr.bf16.mxu0 0
        %3750 = vmatmul.mubr.bf16.gmra.mrb[0].mxu0 %v3705
        %v3751 = vpop.f32.mrb[0].mxu0
        %v3752 = vadd.f32 0.0, %v3751
        %v3753 = vpop.f32.mrb[0].mxu0
        %v3754 = vadd.f32 0.0, %v3753
        %v3755 = vpop.f32.mrb[0].mxu0
        %v3756 = vpop.f32.mrb[0].mxu0
        %3757 = vdwg.mxu0
        %v3766 = vunpack.c.l.b16 %v3639
        %v3767 = vunpack.c.h.b16 %v3639
        %v3768 = vunpack.c.l.b16 %v3640
        %v3769 = vunpack.c.h.b16 %v3640
        %v3770 = vunpack.c.l.b16 %v3641
        %v3771 = vunpack.c.h.b16 %v3641
        %v3772 = vunpack.c.l.b16 %v3642
        %v3773 = vunpack.c.h.b16 %v3642
        %v3774 = vunpack.c.l.b16 %v3643
        %v3775 = vunpack.c.h.b16 %v3643
        %v3776 = vunpack.c.l.b16 %v3644
        %v3777 = vunpack.c.h.b16 %v3644
        %v3778 = vunpack.c.l.b16 %v3645
        %v3779 = vunpack.c.h.b16 %v3645
        %v3780 = vunpack.c.l.b16 %v3646
        %v3781 = vunpack.c.h.b16 %v3646
        %v3782 = vpack.c.b16 %v3768, %v3766
        %v3783 = vpack.c.b16 %v3769, %v3767
        %v3784 = vpack.c.b16 %v3772, %v3770
        %v3785 = vpack.c.b16 %v3773, %v3771
        %v3786 = vpack.c.b16 %v3776, %v3774
        %v3787 = vpack.c.b16 %v3777, %v3775
        %v3788 = vpack.c.b16 %v3780, %v3778
        %v3789 = vpack.c.b16 %v3781, %v3779
        %v3799 = vsel %vm3310, %v3637, 0
        %v3802 = vsel %vm3310, %v3638, 0
        %3804 = vmatprep.subr.bf16.mxu0 %v3783
        %3805 = vmatpush1.bf16.msra.mxu0 %v3782
        %3806 = vmatprep.subr.bf16.mxu0 %v3785
        %3807 = vmatpush1.bf16.msra.mxu0 %v3784
        %3808 = vmatprep.subr.bf16.mxu0 %v3787
        %3809 = vmatpush1.bf16.msra.mxu0 %v3786
        %3810 = vmatprep.subr.bf16.mxu0 %v3789
        %3811 = vmatpush1.bf16.msra.mxu0 %v3788
        %3812 = vmatprep.subr.bf16.mxu0 0
        %3813 = vmatpush1.bf16.msra.mxu0 0
        %3814 = vmatprep.subr.bf16.mxu0 0
        %3815 = vmatpush1.bf16.msra.mxu0 0
        %3816 = vmatprep.subr.bf16.mxu0 0
        %3817 = vmatpush1.bf16.msra.mxu0 0
        %3818 = vmatprep.subr.bf16.mxu0 0
        %3819 = vmatpush1.bf16.msra.mxu0 0
        %3820 = vmatprep.subr.bf16.mxu0 0
        %3821 = vmatpush1.bf16.msra.mxu0 0
        %3822 = vmatprep.subr.bf16.mxu0 0
        %3823 = vmatpush1.bf16.msra.mxu0 0
        %3824 = vmatprep.subr.bf16.mxu0 0
        %3825 = vmatpush1.bf16.msra.mxu0 0
        %3826 = vmatprep.subr.bf16.mxu0 0
        %3827 = vmatpush1.bf16.msra.mxu0 0
        %3828 = vmatprep.subr.bf16.mxu0 0
        %3829 = vmatpush1.bf16.msra.mxu0 0
        %3830 = vmatprep.subr.bf16.mxu0 0
        %3831 = vmatpush1.bf16.msra.mxu0 0
        %3832 = vmatprep.subr.bf16.mxu0 0
        %3833 = vmatpush1.bf16.msra.mxu0 0
        %3834 = vmatprep.subr.bf16.mxu0 0
        %3835 = vmatpush1.bf16.msra.mxu0 0
        %3836 = vmatprep.mubr.bf16.mxu0 0
        %3837 = vmatmul.mubr.bf16.gmra.mrb[0].mxu0 %v3799
        %v3838 = vpop.f32.mrb[0].mxu0
        %v3839 = vadd.f32 %v3742, %v3838
        %v3840 = vpop.f32.mrb[0].mxu0
        %v3841 = vadd.f32 %v3744, %v3840
        %v3842 = vpop.f32.mrb[0].mxu0
        %v3843 = vadd.f32 %v3746, %v3842
        %v3844 = vpop.f32.mrb[0].mxu0
        %v3845 = vadd.f32 %v3748, %v3844
        %3846 = vmatprep.mubr.bf16.mxu0 0
        %3847 = vmatmul.mubr.bf16.gmra.mrb[0].mxu0 %v3802
        %v3848 = vpop.f32.mrb[0].mxu0
        %v3849 = vadd.f32 %v3752, %v3848
        %v3850 = vpop.f32.mrb[0].mxu0
        %v3851 = vadd.f32 %v3754, %v3850
        %v3852 = vpop.f32.mrb[0].mxu0
        %v3853 = vpop.f32.mrb[0].mxu0
        %3854 = vdwg.mxu0
        %v3855 = vld [vmem:[#allocation7 + $0x2] sm:$0xff]
        %v3856 = vld [vmem:[#allocation7 + $0xa] sm:$0xff]
        %v3857 = vld [vmem:[#allocation7 + $0x12] sm:$0x3f]
        %v3858 = vpack.c.bf16 %v3856, %v3855
        %v3859 = vpack.c.bf16 %v3857, %v3857
        %s3860 = scalar_lea.vmem %s43, 128
        %v3861 = vld [vmem:[%s3860] sm:$0xff]
        %v3862 = vld [vmem:[%s3860 + $0x8] sm:$0xff]
        %v3863 = vld [vmem:[%s3860 + $0x10] sm:$0xff]
        %v3864 = vld [vmem:[%s3860 + $0x18] sm:$0xff]
        %v3865 = vld [vmem:[%s3860 + $0x20] sm:$0xff]
        %v3866 = vld [vmem:[%s3860 + $0x28] sm:$0xff]
        %v3867 = vld [vmem:[%s3860 + $0x30] sm:$0xff]
        %v3868 = vld [vmem:[%s3860 + $0x38] sm:$0xff]
        %v3877 = vunpack.c.l.b16 %v3861
        %v3878 = vunpack.c.h.b16 %v3861
        %v3879 = vunpack.c.l.b16 %v3862
        %v3880 = vunpack.c.h.b16 %v3862
        %v3881 = vunpack.c.l.b16 %v3863
        %v3882 = vunpack.c.h.b16 %v3863
        %v3883 = vunpack.c.l.b16 %v3864
        %v3884 = vunpack.c.h.b16 %v3864
        %v3885 = vunpack.c.l.b16 %v3865
        %v3886 = vunpack.c.h.b16 %v3865
        %v3887 = vunpack.c.l.b16 %v3866
        %v3888 = vunpack.c.h.b16 %v3866
        %v3889 = vunpack.c.l.b16 %v3867
        %v3890 = vunpack.c.h.b16 %v3867
        %v3891 = vunpack.c.l.b16 %v3868
        %v3892 = vunpack.c.h.b16 %v3868
        %v3893 = vpack.c.b16 %v3879, %v3877
        %v3894 = vpack.c.b16 %v3880, %v3878
        %v3895 = vpack.c.b16 %v3883, %v3881
        %v3896 = vpack.c.b16 %v3884, %v3882
        %v3897 = vpack.c.b16 %v3887, %v3885
        %v3898 = vpack.c.b16 %v3888, %v3886
        %v3899 = vpack.c.b16 %v3891, %v3889
        %v3900 = vpack.c.b16 %v3892, %v3890
        %v3910 = vsel %vm3310, %v3858, 0
        %v3913 = vsel %vm3310, %v3859, 0
        %3915 = vmatprep.subr.bf16.mxu0 %v3894
        %3916 = vmatpush1.bf16.msra.mxu0 %v3893
        %3917 = vmatprep.subr.bf16.mxu0 %v3896
        %3918 = vmatpush1.bf16.msra.mxu0 %v3895
        %3919 = vmatprep.subr.bf16.mxu0 %v3898
        %3920 = vmatpush1.bf16.msra.mxu0 %v3897
        %3921 = vmatprep.subr.bf16.mxu0 %v3900
        %3922 = vmatpush1.bf16.msra.mxu0 %v3899
        %3923 = vmatprep.subr.bf16.mxu0 0
        %3924 = vmatpush1.bf16.msra.mxu0 0
        %3925 = vmatprep.subr.bf16.mxu0 0
        %3926 = vmatpush1.bf16.msra.mxu0 0
        %3927 = vmatprep.subr.bf16.mxu0 0
        %3928 = vmatpush1.bf16.msra.mxu0 0
        %3929 = vmatprep.subr.bf16.mxu0 0
        %3930 = vmatpush1.bf16.msra.mxu0 0
        %3931 = vmatprep.subr.bf16.mxu0 0
        %3932 = vmatpush1.bf16.msra.mxu0 0
        %3933 = vmatprep.subr.bf16.mxu0 0
        %3934 = vmatpush1.bf16.msra.mxu0 0
        %3935 = vmatprep.subr.bf16.mxu0 0
        %3936 = vmatpush1.bf16.msra.mxu0 0
        %3937 = vmatprep.subr.bf16.mxu0 0
        %3938 = vmatpush1.bf16.msra.mxu0 0
        %3939 = vmatprep.subr.bf16.mxu0 0
        %3940 = vmatpush1.bf16.msra.mxu0 0
        %3941 = vmatprep.subr.bf16.mxu0 0
        %3942 = vmatpush1.bf16.msra.mxu0 0
        %3943 = vmatprep.subr.bf16.mxu0 0
        %3944 = vmatpush1.bf16.msra.mxu0 0
        %3945 = vmatprep.subr.bf16.mxu0 0
        %3946 = vmatpush1.bf16.msra.mxu0 0
        %3947 = vmatprep.mubr.bf16.mxu0 0
        %3948 = vmatmul.mubr.bf16.gmra.mrb[0].mxu0 %v3910
        %v3949 = vpop.f32.mrb[0].mxu0
        %v3950 = vadd.f32 0.0, %v3949
        %v3951 = vpop.f32.mrb[0].mxu0
        %v3952 = vadd.f32 0.0, %v3951
        %v3953 = vpop.f32.mrb[0].mxu0
        %v3954 = vadd.f32 0.0, %v3953
        %v3955 = vpop.f32.mrb[0].mxu0
        %v3956 = vadd.f32 0.0, %v3955
        %3957 = vmatprep.mubr.bf16.mxu0 0
        %3958 = vmatmul.mubr.bf16.gmra.mrb[0].mxu0 %v3913
        %v3959 = vpop.f32.mrb[0].mxu0
        %v3960 = vadd.f32 0.0, %v3959
        %v3961 = vpop.f32.mrb[0].mxu0
        %v3962 = vadd.f32 0.0, %v3961
        %v3963 = vpop.f32.mrb[0].mxu0
        %v3964 = vpop.f32.mrb[0].mxu0
        %3965 = vdwg.mxu0
        %v3966 = vadd.f32 %v3839, %v3950
        %v3967 = vadd.f32 %v3841, %v3952
        %v3968 = vadd.f32 %v3843, %v3954
        %v3969 = vadd.f32 %v3845, %v3956
        %v3970 = vadd.f32 %v3849, %v3960
        %v3971 = vadd.f32 %v3851, %v3962
        %v3972 = vld [vmem:[#allocation31] sm:$0x3]
        %v3974 = vlaneseq
        %v3975 = vshrl.u32 %v3974, 7
        %v3976 = vsub.s32 0, %v3975
        %v3977 = vrot.slane %v3972, %v3976
        %v3978 = vlaneseq
        %v3979 = vshrl.u32 %v3978, 7
        %v3980 = vsub.s32 1, %v3979
        %v3981 = vrot.slane %v3972, %v3980
        %v3984 = vadd.f32 %v3966, %v3977
        %v3985 = vadd.f32 %v3967, %v3981
        %v3986 = vadd.f32 %v3968, %v3977
        %v3987 = vadd.f32 %v3969, %v3981
        %v3988 = vadd.f32 %v3970, %v3977
        %v3989 = vadd.f32 %v3971, %v3981
        %v3990 = vpack.c.bf16 %v3986, %v3984
        %v3991 = vpack.c.bf16 %v3987, %v3985
        %v3992 = vpack.c.bf16 %v3988, %v3988
        %v3993 = vpack.c.bf16 %v3989, %v3989
        %v3994 = vld [vmem:[%s47] sm:$0xf]
        %v3995 = vld [vmem:[%s47 + $0x4] sm:$0xf]
        %v3996 = vld [vmem:[%s47 + $0x8] sm:$0xf]
        %v3997 = vld [vmem:[%s47 + $0xc] sm:$0xf]
        %v3998 = vld [vmem:[%s47 + $0x10] sm:$0xf]
        %v3999 = vld [vmem:[%s47 + $0x14] sm:$0x1]
        %v4006 = vunpack.c.l.b16 %v3994
        %v4007 = vunpack.c.l.b16 %v3995
        %v4008 = vunpack.c.l.b16 %v3996
        %v4009 = vunpack.c.l.b16 %v3997
        %v4010 = vunpack.c.l.b16 %v3998
        %v4011 = vunpack.c.l.b16 %v3999
        %v4012 = vpack.c.b16 %v4007, %v4006
        %v4013 = vpack.c.b16 %v4009, %v4008
        %v4014 = vpack.c.b16 %v4011, %v4010
        %vm4015 = vcmask 179200
        %v4017 = vsel %vm4015, %v4012, 0
        %v4020 = vsel %vm4015, %v4013, 0
        %v4023 = vsel %vm4015, %v4014, 0
        %vm4025 = vcmask 1042432
        %v4027 = vsel %vm4025, %v3992, 0
        %v4030 = vsel %vm4025, %v3993, 0
        %4032 = vmatprep.subr.bf16.mxu0 %v3991
        %4033 = vmatpush1.bf16.msra.mxu0 %v3990
        %4034 = vmatprep.subr.bf16.mxu0 %v4030
        %4035 = vmatpush1.bf16.msra.mxu0 %v4027
        %4036 = vmatprep.subr.bf16.mxu0 0
        %4037 = vmatpush1.bf16.msra.mxu0 0
        %4038 = vmatprep.subr.bf16.mxu0 0
        %4039 = vmatpush1.bf16.msra.mxu0 0
        %4040 = vmatprep.subr.bf16.mxu0 0
        %4041 = vmatpush1.bf16.msra.mxu0 0
        %4042 = vmatprep.subr.bf16.mxu0 0
        %4043 = vmatpush1.bf16.msra.mxu0 0
        %4044 = vmatprep.subr.bf16.mxu0 0
        %4045 = vmatpush1.bf16.msra.mxu0 0
        %4046 = vmatprep.subr.bf16.mxu0 0
        %4047 = vmatpush1.bf16.msra.mxu0 0
        %4048 = vmatprep.subr.bf16.mxu0 0
        %4049 = vmatpush1.bf16.msra.mxu0 0
        %4050 = vmatprep.subr.bf16.mxu0 0
        %4051 = vmatpush1.bf16.msra.mxu0 0
        %4052 = vmatprep.subr.bf16.mxu0 0
        %4053 = vmatpush1.bf16.msra.mxu0 0
        %4054 = vmatprep.subr.bf16.mxu0 0
        %4055 = vmatpush1.bf16.msra.mxu0 0
        %4056 = vmatprep.subr.bf16.mxu0 0
        %4057 = vmatpush1.bf16.msra.mxu0 0
        %4058 = vmatprep.subr.bf16.mxu0 0
        %4059 = vmatpush1.bf16.msra.mxu0 0
        %4060 = vmatprep.subr.bf16.mxu0 0
        %4061 = vmatpush1.bf16.msra.mxu0 0
        %4062 = vmatprep.subr.bf16.mxu0 0
        %4063 = vmatpush1.bf16.msra.mxu0 0
        %4064 = vmatprep.mubr.bf16.mxu0 0
        %4065 = vmatmul.mubr.bf16.gmra.mrb[0].mxu0 %v4017
        %v4066 = vpop.f32.mrb[0].mxu0
        %v4067 = vadd.f32 0.0, %v4066
        %v4068 = vpop.f32.mrb[0].mxu0
        %v4069 = vadd.f32 0.0, %v4068
        %v4070 = vpop.f32.mrb[0].mxu0
        %v4071 = vadd.f32 0.0, %v4070
        %v4072 = vpop.f32.mrb[0].mxu0
        %v4073 = vadd.f32 0.0, %v4072
        %4074 = vmatprep.mubr.bf16.mxu0 0
        %4075 = vmatmul.mubr.bf16.gmra.mrb[0].mxu0 %v4020
        %v4076 = vpop.f32.mrb[0].mxu0
        %v4077 = vadd.f32 0.0, %v4076
        %v4078 = vpop.f32.mrb[0].mxu0
        %v4079 = vadd.f32 0.0, %v4078
        %v4080 = vpop.f32.mrb[0].mxu0
        %v4081 = vadd.f32 0.0, %v4080
        %v4082 = vpop.f32.mrb[0].mxu0
        %v4083 = vadd.f32 0.0, %v4082
        %4084 = vmatprep.mubr.bf16.mxu0 0
        %4085 = vmatmul.mubr.bf16.gmra.mrb[0].mxu0 %v4023
        %v4086 = vpop.f32.mrb[0].mxu0
        %v4087 = vadd.f32 0.0, %v4086
        %v4088 = vpop.f32.mrb[0].mxu0
        %v4089 = vadd.f32 0.0, %v4088
        %v4090 = vpop.f32.mrb[0].mxu0
        %v4091 = vadd.f32 0.0, %v4090
        %v4092 = vpop.f32.mrb[0].mxu0
        %v4093 = vadd.f32 0.0, %v4092
        %4094 = vdwg.mxu0
        %v4095 = vmul.f32 %v4067, 0.2
        %v4096 = vmul.f32 %v4069, 0.2
        %v4097 = vmul.f32 %v4071, 0.2
        %v4098 = vmul.f32 %v4073, 0.2
        %v4099 = vmul.f32 %v4077, 0.2
        %v4100 = vmul.f32 %v4079, 0.2
        %v4101 = vmul.f32 %v4081, 0.2
        %v4102 = vmul.f32 %v4083, 0.2
        %v4103 = vmul.f32 %v4087, 0.2
        %v4104 = vmul.f32 %v4089, 0.2
        %v4105 = vmul.f32 %v4091, 0.2
        %v4106 = vmul.f32 %v4093, 0.2
        %v4107 = vmax.f32 %v4067, %v4095
        %v4108 = vmax.f32 %v4069, %v4096
        %v4109 = vmax.f32 %v4071, %v4097
        %v4110 = vmax.f32 %v4073, %v4098
        %v4111 = vmax.f32 %v4077, %v4099
        %v4112 = vmax.f32 %v4079, %v4100
        %v4113 = vmax.f32 %v4081, %v4101
        %v4114 = vmax.f32 %v4083, %v4102
        %v4115 = vmax.f32 %v4087, %v4103
        %v4116 = vmax.f32 %v4089, %v4104
        %v4117 = vmax.f32 %v4091, %v4105
        %v4118 = vmax.f32 %v4093, %v4106
        %4119 = vst [vmem:[#allocation8] sm:$0xff] %v4107
        %4120 = vst [vmem:[#allocation8 + $0x8] sm:$0xff] %v4108
        %4121 = vst [vmem:[#allocation8 + $0x10] sm:$0xff] %v4109
        %4122 = vst [vmem:[#allocation8 + $0x18] sm:$0xff] %v4110
        %4123 = vst [vmem:[#allocation8 + $0x20] sm:$0xff] %v4111
        %4124 = vst [vmem:[#allocation8 + $0x28] sm:$0xff] %v4112
        %4125 = vst [vmem:[#allocation8 + $0x30] sm:$0xff] %v4113
        %4126 = vst [vmem:[#allocation8 + $0x38] sm:$0xff] %v4114
        %4127 = vst [vmem:[#allocation8 + $0x40] sm:$0xff] %v4115
        %4128 = vst [vmem:[#allocation8 + $0x48] sm:$0xff] %v4116
        %4129 = vst [vmem:[#allocation8 + $0x50] sm:$0x3] %v4117
        %4130 = vst [vmem:[#allocation8 + $0x58] sm:$0x3] %v4118
        %v4131 = vld [vmem:[#allocation8] sm:$0xff]
        %v4132 = vld [vmem:[#allocation8 + $0x8] sm:$0xff]
        %v4133 = vld [vmem:[#allocation8 + $0x10] sm:$0xff]
        %v4134 = vld [vmem:[#allocation8 + $0x18] sm:$0xff]
        %v4135 = vld [vmem:[#allocation8 + $0x20] sm:$0xff]
        %v4136 = vld [vmem:[#allocation8 + $0x28] sm:$0xff]
        %v4137 = vld [vmem:[#allocation8 + $0x30] sm:$0xff]
        %v4138 = vld [vmem:[#allocation8 + $0x38] sm:$0xff]
        %v4139 = vld [vmem:[#allocation8 + $0x40] sm:$0xff]
        %v4140 = vld [vmem:[#allocation8 + $0x48] sm:$0xff]
        %v4141 = vpack.c.bf16 %v4133, %v4131
        %v4142 = vpack.c.bf16 %v4134, %v4132
        %v4143 = vpack.c.bf16 %v4137, %v4135
        %v4144 = vpack.c.bf16 %v4138, %v4136
        %v4145 = vpack.c.bf16 %v4139, %v4139
        %v4146 = vpack.c.bf16 %v4140, %v4140
        %v4147 = vld [vmem:[%s49] sm:$0xff]
        %v4148 = vld [vmem:[%s49 + $0x8] sm:$0xff]
        %v4149 = vld [vmem:[%s49 + $0x10] sm:$0xff]
        %v4150 = vld [vmem:[%s49 + $0x18] sm:$0xff]
        %v4151 = vld [vmem:[%s49 + $0x20] sm:$0xff]
        %v4152 = vld [vmem:[%s49 + $0x28] sm:$0xff]
        %v4153 = vld [vmem:[%s49 + $0x30] sm:$0xff]
        %v4154 = vld [vmem:[%s49 + $0x38] sm:$0xff]
        %v4155 = vld [vmem:[%s49 + $0x40] sm:$0xff]
        %v4156 = vld [vmem:[%s49 + $0x48] sm:$0xff]
        %v4157 = vld [vmem:[%s49 + $0x50] sm:$0xff]
        %v4158 = vld [vmem:[%s49 + $0x58] sm:$0xff]
        %v4159 = vld [vmem:[%s49 + $0x60] sm:$0xff]
        %v4160 = vld [vmem:[%s49 + $0x68] sm:$0xff]
        %v4161 = vld [vmem:[%s49 + $0x70] sm:$0xff]
        %v4162 = vld [vmem:[%s49 + $0x78] sm:$0xff]
        %v4163 = vld [vmem:[%s49 + $0x80] sm:$0xff]
        %v4164 = vld [vmem:[%s49 + $0x88] sm:$0xff]
        %v4165 = vld [vmem:[%s49 + $0x90] sm:$0xff]
        %v4166 = vld [vmem:[%s49 + $0x98] sm:$0xff]
        %v4167 = vld [vmem:[%s49 + $0xa0] sm:$0xff]
        %v4168 = vld [vmem:[%s49 + $0xa8] sm:$0xff]
        %v4169 = vld [vmem:[%s49 + $0xb0] sm:$0xff]
        %v4170 = vld [vmem:[%s49 + $0xb8] sm:$0xff]
        %v4171 = vld [vmem:[%s49 + $0xc0] sm:$0xff]
        %v4172 = vld [vmem:[%s49 + $0xc8] sm:$0xff]
        %v4173 = vld [vmem:[%s49 + $0xd0] sm:$0xff]
        %v4174 = vld [vmem:[%s49 + $0xd8] sm:$0xff]
        %v4175 = vld [vmem:[%s49 + $0xe0] sm:$0xff]
        %v4176 = vld [vmem:[%s49 + $0xe8] sm:$0xff]
        %v4177 = vld [vmem:[%s49 + $0xf0] sm:$0xff]
        %v4178 = vld [vmem:[%s49 + $0xf8] sm:$0xff]
        %v4179 = vld [vmem:[#allocation8] sm:$0xfe]
        %v4180 = vld [vmem:[#allocation8 + $0x8] sm:$0xfe]
        %v4181 = vld [vmem:[#allocation8 + $0x50] sm:$0x1]
        %v4182 = vld [vmem:[#allocation8 + $0x58] sm:$0x1]
        %v4183 = vpack.c.bf16 %v4133, %v4179
        %v4184 = vpack.c.bf16 %v4134, %v4180
        %v4185 = vpack.c.bf16 %v4181, %v4139
        %v4186 = vpack.c.bf16 %v4182, %v4140
        %s4187 = scalar_lea.vmem %s49, 256
        %v4188 = vld [vmem:[%s4187] sm:$0xff]
        %v4189 = vld [vmem:[%s4187 + $0x8] sm:$0xff]
        %v4190 = vld [vmem:[%s4187 + $0x10] sm:$0xff]
        %v4191 = vld [vmem:[%s4187 + $0x18] sm:$0xff]
        %v4192 = vld [vmem:[%s4187 + $0x20] sm:$0xff]
        %v4193 = vld [vmem:[%s4187 + $0x28] sm:$0xff]
        %v4194 = vld [vmem:[%s4187 + $0x30] sm:$0xff]
        %v4195 = vld [vmem:[%s4187 + $0x38] sm:$0xff]
        %v4196 = vld [vmem:[%s4187 + $0x40] sm:$0xff]
        %v4197 = vld [vmem:[%s4187 + $0x48] sm:$0xff]
        %v4198 = vld [vmem:[%s4187 + $0x50] sm:$0xff]
        %v4199 = vld [vmem:[%s4187 + $0x58] sm:$0xff]
        %v4200 = vld [vmem:[%s4187 + $0x60] sm:$0xff]
        %v4201 = vld [vmem:[%s4187 + $0x68] sm:$0xff]
        %v4202 = vld [vmem:[%s4187 + $0x70] sm:$0xff]
        %v4203 = vld [vmem:[%s4187 + $0x78] sm:$0xff]
        %v4204 = vld [vmem:[%s4187 + $0x80] sm:$0xff]
        %v4205 = vld [vmem:[%s4187 + $0x88] sm:$0xff]
        %v4206 = vld [vmem:[%s4187 + $0x90] sm:$0xff]
        %v4207 = vld [vmem:[%s4187 + $0x98] sm:$0xff]
        %v4208 = vld [vmem:[%s4187 + $0xa0] sm:$0xff]
        %v4209 = vld [vmem:[%s4187 + $0xa8] sm:$0xff]
        %v4210 = vld [vmem:[%s4187 + $0xb0] sm:$0xff]
        %v4211 = vld [vmem:[%s4187 + $0xb8] sm:$0xff]
        %v4212 = vld [vmem:[%s4187 + $0xc0] sm:$0xff]
        %v4213 = vld [vmem:[%s4187 + $0xc8] sm:$0xff]
        %v4214 = vld [vmem:[%s4187 + $0xd0] sm:$0xff]
        %v4215 = vld [vmem:[%s4187 + $0xd8] sm:$0xff]
        %v4216 = vld [vmem:[%s4187 + $0xe0] sm:$0xff]
        %v4217 = vld [vmem:[%s4187 + $0xe8] sm:$0xff]
        %v4218 = vld [vmem:[%s4187 + $0xf0] sm:$0xff]
        %v4219 = vld [vmem:[%s4187 + $0xf8] sm:$0xff]
        %vm4220 = vsmask.f32 7424
        %v4222 = vshrl.u32 %v4183, 16
        %v4224 = vshll.u32 %v4183, 16
        %v4226 = vrot.slane %v4224, 1
        %v4227 = vor.u32 %v4222, %v4226
        %v4229 = vshll.u32 %v4143, 16
        %v4231 = vrot.slane %v4229, 1
        %v4232 = vsel %vm4220, %v4227, %v4231
        %v4234 = vshrl.u32 %v4184, 16
        %v4236 = vshll.u32 %v4184, 16
        %v4238 = vrot.slane %v4236, 1
        %v4239 = vor.u32 %v4234, %v4238
        %v4241 = vshll.u32 %v4144, 16
        %v4243 = vrot.slane %v4241, 1
        %v4244 = vsel %vm4220, %v4239, %v4243
        %v4245 = vshrl.u32 %v4143, 16
        %v4247 = vor.u32 %v4245, %v4231
        %v4249 = vshll.u32 %v4185, 16
        %v4251 = vrot.slane %v4249, 1
        %v4252 = vsel %vm4220, %v4247, %v4251
        %v4253 = vshrl.u32 %v4144, 16
        %v4255 = vor.u32 %v4253, %v4243
        %v4257 = vshll.u32 %v4186, 16
        %v4259 = vrot.slane %v4257, 1
        %v4260 = vsel %vm4220, %v4255, %v4259
        %v4261 = vshrl.u32 %v4185, 16
        %v4263 = vor.u32 %v4261, %v4251
        %v4264 = vshrl.u32 %v4186, 16
        %v4266 = vor.u32 %v4264, %v4259
        %v4305 = vunpack.c.l.b16 %v4188
        %v4306 = vunpack.c.h.b16 %v4188
        %v4307 = vunpack.c.l.b16 %v4189
        %v4308 = vunpack.c.h.b16 %v4189
        %v4309 = vunpack.c.l.b16 %v4190
        %v4310 = vunpack.c.h.b16 %v4190
        %v4311 = vunpack.c.l.b16 %v4191
        %v4312 = vunpack.c.h.b16 %v4191
        %v4313 = vunpack.c.l.b16 %v4192
        %v4314 = vunpack.c.h.b16 %v4192
        %v4315 = vunpack.c.l.b16 %v4193
        %v4316 = vunpack.c.h.b16 %v4193
        %v4317 = vunpack.c.l.b16 %v4194
        %v4318 = vunpack.c.h.b16 %v4194
        %v4319 = vunpack.c.l.b16 %v4195
        %v4320 = vunpack.c.h.b16 %v4195
        %v4321 = vunpack.c.l.b16 %v4196
        %v4322 = vunpack.c.h.b16 %v4196
        %v4323 = vunpack.c.l.b16 %v4197
        %v4324 = vunpack.c.h.b16 %v4197
        %v4325 = vunpack.c.l.b16 %v4198
        %v4326 = vunpack.c.h.b16 %v4198
        %v4327 = vunpack.c.l.b16 %v4199
        %v4328 = vunpack.c.h.b16 %v4199
        %v4329 = vunpack.c.l.b16 %v4200
        %v4330 = vunpack.c.h.b16 %v4200
        %v4331 = vunpack.c.l.b16 %v4201
        %v4332 = vunpack.c.h.b16 %v4201
        %v4333 = vunpack.c.l.b16 %v4202
        %v4334 = vunpack.c.h.b16 %v4202
        %v4335 = vunpack.c.l.b16 %v4203
        %v4336 = vunpack.c.h.b16 %v4203
        %v4337 = vunpack.c.l.b16 %v4204
        %v4338 = vunpack.c.h.b16 %v4204
        %v4339 = vunpack.c.l.b16 %v4205
        %v4340 = vunpack.c.h.b16 %v4205
        %v4341 = vunpack.c.l.b16 %v4206
        %v4342 = vunpack.c.h.b16 %v4206
        %v4343 = vunpack.c.l.b16 %v4207
        %v4344 = vunpack.c.h.b16 %v4207
        %v4345 = vunpack.c.l.b16 %v4208
        %v4346 = vunpack.c.h.b16 %v4208
        %v4347 = vunpack.c.l.b16 %v4209
        %v4348 = vunpack.c.h.b16 %v4209
        %v4349 = vunpack.c.l.b16 %v4210
        %v4350 = vunpack.c.h.b16 %v4210
        %v4351 = vunpack.c.l.b16 %v4211
        %v4352 = vunpack.c.h.b16 %v4211
        %v4353 = vunpack.c.l.b16 %v4212
        %v4354 = vunpack.c.h.b16 %v4212
        %v4355 = vunpack.c.l.b16 %v4213
        %v4356 = vunpack.c.h.b16 %v4213
        %v4357 = vunpack.c.l.b16 %v4214
        %v4358 = vunpack.c.h.b16 %v4214
        %v4359 = vunpack.c.l.b16 %v4215
        %v4360 = vunpack.c.h.b16 %v4215
        %v4361 = vunpack.c.l.b16 %v4216
        %v4362 = vunpack.c.h.b16 %v4216
        %v4363 = vunpack.c.l.b16 %v4217
        %v4364 = vunpack.c.h.b16 %v4217
        %v4365 = vunpack.c.l.b16 %v4218
        %v4366 = vunpack.c.h.b16 %v4218
        %v4367 = vunpack.c.l.b16 %v4219
        %v4368 = vunpack.c.h.b16 %v4219
        %v4369 = vpack.c.b16 %v4307, %v4305
        %v4370 = vpack.c.b16 %v4308, %v4306
        %v4371 = vpack.c.b16 %v4311, %v4309
        %v4372 = vpack.c.b16 %v4312, %v4310
        %v4373 = vpack.c.b16 %v4315, %v4313
        %v4374 = vpack.c.b16 %v4316, %v4314
        %v4375 = vpack.c.b16 %v4319, %v4317
        %v4376 = vpack.c.b16 %v4320, %v4318
        %v4377 = vpack.c.b16 %v4323, %v4321
        %v4378 = vpack.c.b16 %v4324, %v4322
        %v4379 = vpack.c.b16 %v4327, %v4325
        %v4380 = vpack.c.b16 %v4328, %v4326
        %v4381 = vpack.c.b16 %v4331, %v4329
        %v4382 = vpack.c.b16 %v4332, %v4330
        %v4383 = vpack.c.b16 %v4335, %v4333
        %v4384 = vpack.c.b16 %v4336, %v4334
        %v4385 = vpack.c.b16 %v4339, %v4337
        %v4386 = vpack.c.b16 %v4340, %v4338
        %v4387 = vpack.c.b16 %v4343, %v4341
        %v4388 = vpack.c.b16 %v4344, %v4342
        %v4389 = vpack.c.b16 %v4347, %v4345
        %v4390 = vpack.c.b16 %v4348, %v4346
        %v4391 = vpack.c.b16 %v4351, %v4349
        %v4392 = vpack.c.b16 %v4352, %v4350
        %v4393 = vpack.c.b16 %v4355, %v4353
        %v4394 = vpack.c.b16 %v4356, %v4354
        %v4395 = vpack.c.b16 %v4359, %v4357
        %v4396 = vpack.c.b16 %v4360, %v4358
        %v4397 = vpack.c.b16 %v4363, %v4361
        %v4398 = vpack.c.b16 %v4364, %v4362
        %v4399 = vpack.c.b16 %v4367, %v4365
        %v4400 = vpack.c.b16 %v4368, %v4366
        %4433 = vmatprep.subr.bf16.mxu0 %v4370
        %4434 = vmatpush1.bf16.msra.mxu0 %v4369
        %4435 = vmatprep.subr.bf16.mxu0 %v4372
        %4436 = vmatpush1.bf16.msra.mxu0 %v4371
        %4437 = vmatprep.subr.bf16.mxu0 %v4374
        %4438 = vmatpush1.bf16.msra.mxu0 %v4373
        %4439 = vmatprep.subr.bf16.mxu0 %v4376
        %4440 = vmatpush1.bf16.msra.mxu0 %v4375
        %4441 = vmatprep.subr.bf16.mxu0 %v4378
        %4442 = vmatpush1.bf16.msra.mxu0 %v4377
        %4443 = vmatprep.subr.bf16.mxu0 %v4380
        %4444 = vmatpush1.bf16.msra.mxu0 %v4379
        %4445 = vmatprep.subr.bf16.mxu0 %v4382
        %4446 = vmatpush1.bf16.msra.mxu0 %v4381
        %4447 = vmatprep.subr.bf16.mxu0 %v4384
        %4448 = vmatpush1.bf16.msra.mxu0 %v4383
        %4449 = vmatprep.subr.bf16.mxu0 %v4386
        %4450 = vmatpush1.bf16.msra.mxu0 %v4385
        %4451 = vmatprep.subr.bf16.mxu0 %v4388
        %4452 = vmatpush1.bf16.msra.mxu0 %v4387
        %4453 = vmatprep.subr.bf16.mxu0 %v4390
        %4454 = vmatpush1.bf16.msra.mxu0 %v4389
        %4455 = vmatprep.subr.bf16.mxu0 %v4392
        %4456 = vmatpush1.bf16.msra.mxu0 %v4391
        %4457 = vmatprep.subr.bf16.mxu0 %v4394
        %4458 = vmatpush1.bf16.msra.mxu0 %v4393
        %4459 = vmatprep.subr.bf16.mxu0 %v4396
        %4460 = vmatpush1.bf16.msra.mxu0 %v4395
        %4461 = vmatprep.subr.bf16.mxu0 %v4398
        %4462 = vmatpush1.bf16.msra.mxu0 %v4397
        %4463 = vmatprep.subr.bf16.mxu0 %v4400
        %4464 = vmatpush1.bf16.msra.mxu0 %v4399
        %4465 = vmatprep.mubr.bf16.mxu0 %v4244
        %4466 = vmatmul.mubr.bf16.gmra.mrb[0].mxu0 %v4232
        %v4467 = vpop.f32.mrb[0].mxu0
        %v4468 = vadd.f32 0.0, %v4467
        %v4469 = vpop.f32.mrb[0].mxu0
        %v4470 = vadd.f32 0.0, %v4469
        %v4471 = vpop.f32.mrb[0].mxu0
        %v4472 = vadd.f32 0.0, %v4471
        %v4473 = vpop.f32.mrb[0].mxu0
        %v4474 = vadd.f32 0.0, %v4473
        %4475 = vmatprep.mubr.bf16.mxu0 %v4260
        %4476 = vmatmul.mubr.bf16.gmra.mrb[0].mxu0 %v4252
        %v4477 = vpop.f32.mrb[0].mxu0
        %v4478 = vadd.f32 0.0, %v4477
        %v4479 = vpop.f32.mrb[0].mxu0
        %v4480 = vadd.f32 0.0, %v4479
        %v4481 = vpop.f32.mrb[0].mxu0
        %v4482 = vadd.f32 0.0, %v4481
        %v4483 = vpop.f32.mrb[0].mxu0
        %v4484 = vadd.f32 0.0, %v4483
        %4485 = vmatprep.mubr.bf16.mxu0 %v4266
        %4486 = vmatmul.mubr.bf16.gmra.mrb[0].mxu0 %v4263
        %v4487 = vpop.f32.mrb[0].mxu0
        %v4488 = vadd.f32 0.0, %v4487
        %v4489 = vpop.f32.mrb[0].mxu0
        %v4490 = vadd.f32 0.0, %v4489
        %v4491 = vpop.f32.mrb[0].mxu0
        %v4492 = vpop.f32.mrb[0].mxu0
        %4493 = vdwg.mxu0
        %v4526 = vunpack.c.l.b16 %v4147
        %v4527 = vunpack.c.h.b16 %v4147
        %v4528 = vunpack.c.l.b16 %v4148
        %v4529 = vunpack.c.h.b16 %v4148
        %v4530 = vunpack.c.l.b16 %v4149
        %v4531 = vunpack.c.h.b16 %v4149
        %v4532 = vunpack.c.l.b16 %v4150
        %v4533 = vunpack.c.h.b16 %v4150
        %v4534 = vunpack.c.l.b16 %v4151
        %v4535 = vunpack.c.h.b16 %v4151
        %v4536 = vunpack.c.l.b16 %v4152
        %v4537 = vunpack.c.h.b16 %v4152
        %v4538 = vunpack.c.l.b16 %v4153
        %v4539 = vunpack.c.h.b16 %v4153
        %v4540 = vunpack.c.l.b16 %v4154
        %v4541 = vunpack.c.h.b16 %v4154
        %v4542 = vunpack.c.l.b16 %v4155
        %v4543 = vunpack.c.h.b16 %v4155
        %v4544 = vunpack.c.l.b16 %v4156
        %v4545 = vunpack.c.h.b16 %v4156
        %v4546 = vunpack.c.l.b16 %v4157
        %v4547 = vunpack.c.h.b16 %v4157
        %v4548 = vunpack.c.l.b16 %v4158
        %v4549 = vunpack.c.h.b16 %v4158
        %v4550 = vunpack.c.l.b16 %v4159
        %v4551 = vunpack.c.h.b16 %v4159
        %v4552 = vunpack.c.l.b16 %v4160
        %v4553 = vunpack.c.h.b16 %v4160
        %v4554 = vunpack.c.l.b16 %v4161
        %v4555 = vunpack.c.h.b16 %v4161
        %v4556 = vunpack.c.l.b16 %v4162
        %v4557 = vunpack.c.h.b16 %v4162
        %v4558 = vunpack.c.l.b16 %v4163
        %v4559 = vunpack.c.h.b16 %v4163
        %v4560 = vunpack.c.l.b16 %v4164
        %v4561 = vunpack.c.h.b16 %v4164
        %v4562 = vunpack.c.l.b16 %v4165
        %v4563 = vunpack.c.h.b16 %v4165
        %v4564 = vunpack.c.l.b16 %v4166
        %v4565 = vunpack.c.h.b16 %v4166
        %v4566 = vunpack.c.l.b16 %v4167
        %v4567 = vunpack.c.h.b16 %v4167
        %v4568 = vunpack.c.l.b16 %v4168
        %v4569 = vunpack.c.h.b16 %v4168
        %v4570 = vunpack.c.l.b16 %v4169
        %v4571 = vunpack.c.h.b16 %v4169
        %v4572 = vunpack.c.l.b16 %v4170
        %v4573 = vunpack.c.h.b16 %v4170
        %v4574 = vunpack.c.l.b16 %v4171
        %v4575 = vunpack.c.h.b16 %v4171
        %v4576 = vunpack.c.l.b16 %v4172
        %v4577 = vunpack.c.h.b16 %v4172
        %v4578 = vunpack.c.l.b16 %v4173
        %v4579 = vunpack.c.h.b16 %v4173
        %v4580 = vunpack.c.l.b16 %v4174
        %v4581 = vunpack.c.h.b16 %v4174
        %v4582 = vunpack.c.l.b16 %v4175
        %v4583 = vunpack.c.h.b16 %v4175
        %v4584 = vunpack.c.l.b16 %v4176
        %v4585 = vunpack.c.h.b16 %v4176
        %v4586 = vunpack.c.l.b16 %v4177
        %v4587 = vunpack.c.h.b16 %v4177
        %v4588 = vunpack.c.l.b16 %v4178
        %v4589 = vunpack.c.h.b16 %v4178
        %v4590 = vpack.c.b16 %v4528, %v4526
        %v4591 = vpack.c.b16 %v4529, %v4527
        %v4592 = vpack.c.b16 %v4532, %v4530
        %v4593 = vpack.c.b16 %v4533, %v4531
        %v4594 = vpack.c.b16 %v4536, %v4534
        %v4595 = vpack.c.b16 %v4537, %v4535
        %v4596 = vpack.c.b16 %v4540, %v4538
        %v4597 = vpack.c.b16 %v4541, %v4539
        %v4598 = vpack.c.b16 %v4544, %v4542
        %v4599 = vpack.c.b16 %v4545, %v4543
        %v4600 = vpack.c.b16 %v4548, %v4546
        %v4601 = vpack.c.b16 %v4549, %v4547
        %v4602 = vpack.c.b16 %v4552, %v4550
        %v4603 = vpack.c.b16 %v4553, %v4551
        %v4604 = vpack.c.b16 %v4556, %v4554
        %v4605 = vpack.c.b16 %v4557, %v4555
        %v4606 = vpack.c.b16 %v4560, %v4558
        %v4607 = vpack.c.b16 %v4561, %v4559
        %v4608 = vpack.c.b16 %v4564, %v4562
        %v4609 = vpack.c.b16 %v4565, %v4563
        %v4610 = vpack.c.b16 %v4568, %v4566
        %v4611 = vpack.c.b16 %v4569, %v4567
        %v4612 = vpack.c.b16 %v4572, %v4570
        %v4613 = vpack.c.b16 %v4573, %v4571
        %v4614 = vpack.c.b16 %v4576, %v4574
        %v4615 = vpack.c.b16 %v4577, %v4575
        %v4616 = vpack.c.b16 %v4580, %v4578
        %v4617 = vpack.c.b16 %v4581, %v4579
        %v4618 = vpack.c.b16 %v4584, %v4582
        %v4619 = vpack.c.b16 %v4585, %v4583
        %v4620 = vpack.c.b16 %v4588, %v4586
        %v4621 = vpack.c.b16 %v4589, %v4587
        %4654 = vmatprep.subr.bf16.mxu0 %v4591
        %4655 = vmatpush1.bf16.msra.mxu0 %v4590
        %4656 = vmatprep.subr.bf16.mxu0 %v4593
        %4657 = vmatpush1.bf16.msra.mxu0 %v4592
        %4658 = vmatprep.subr.bf16.mxu0 %v4595
        %4659 = vmatpush1.bf16.msra.mxu0 %v4594
        %4660 = vmatprep.subr.bf16.mxu0 %v4597
        %4661 = vmatpush1.bf16.msra.mxu0 %v4596
        %4662 = vmatprep.subr.bf16.mxu0 %v4599
        %4663 = vmatpush1.bf16.msra.mxu0 %v4598
        %4664 = vmatprep.subr.bf16.mxu0 %v4601
        %4665 = vmatpush1.bf16.msra.mxu0 %v4600
        %4666 = vmatprep.subr.bf16.mxu0 %v4603
        %4667 = vmatpush1.bf16.msra.mxu0 %v4602
        %4668 = vmatprep.subr.bf16.mxu0 %v4605
        %4669 = vmatpush1.bf16.msra.mxu0 %v4604
        %4670 = vmatprep.subr.bf16.mxu0 %v4607
        %4671 = vmatpush1.bf16.msra.mxu0 %v4606
        %4672 = vmatprep.subr.bf16.mxu0 %v4609
        %4673 = vmatpush1.bf16.msra.mxu0 %v4608
        %4674 = vmatprep.subr.bf16.mxu0 %v4611
        %4675 = vmatpush1.bf16.msra.mxu0 %v4610
        %4676 = vmatprep.subr.bf16.mxu0 %v4613
        %4677 = vmatpush1.bf16.msra.mxu0 %v4612
        %4678 = vmatprep.subr.bf16.mxu0 %v4615
        %4679 = vmatpush1.bf16.msra.mxu0 %v4614
        %4680 = vmatprep.subr.bf16.mxu0 %v4617
        %4681 = vmatpush1.bf16.msra.mxu0 %v4616
        %4682 = vmatprep.subr.bf16.mxu0 %v4619
        %4683 = vmatpush1.bf16.msra.mxu0 %v4618
        %4684 = vmatprep.subr.bf16.mxu0 %v4621
        %4685 = vmatpush1.bf16.msra.mxu0 %v4620
        %4686 = vmatprep.mubr.bf16.mxu0 %v4142
        %4687 = vmatmul.mubr.bf16.gmra.mrb[0].mxu0 %v4141
        %v4688 = vpop.f32.mrb[0].mxu0
        %v4689 = vadd.f32 %v4468, %v4688
        %v4690 = vpop.f32.mrb[0].mxu0
        %v4691 = vadd.f32 %v4470, %v4690
        %v4692 = vpop.f32.mrb[0].mxu0
        %v4693 = vadd.f32 %v4472, %v4692
        %v4694 = vpop.f32.mrb[0].mxu0
        %v4695 = vadd.f32 %v4474, %v4694
        %4696 = vmatprep.mubr.bf16.mxu0 %v4144
        %4697 = vmatmul.mubr.bf16.gmra.mrb[0].mxu0 %v4143
        %v4698 = vpop.f32.mrb[0].mxu0
        %v4699 = vadd.f32 %v4478, %v4698
        %v4700 = vpop.f32.mrb[0].mxu0
        %v4701 = vadd.f32 %v4480, %v4700
        %v4702 = vpop.f32.mrb[0].mxu0
        %v4703 = vadd.f32 %v4482, %v4702
        %v4704 = vpop.f32.mrb[0].mxu0
        %v4705 = vadd.f32 %v4484, %v4704
        %4706 = vmatprep.mubr.bf16.mxu0 %v4146
        %4707 = vmatmul.mubr.bf16.gmra.mrb[0].mxu0 %v4145
        %v4708 = vpop.f32.mrb[0].mxu0
        %v4709 = vadd.f32 %v4488, %v4708
        %v4710 = vpop.f32.mrb[0].mxu0
        %v4711 = vadd.f32 %v4490, %v4710
        %v4712 = vpop.f32.mrb[0].mxu0
        %v4713 = vpop.f32.mrb[0].mxu0
        %4714 = vdwg.mxu0
        %v4715 = vld [vmem:[#allocation8] sm:$0xfc]
        %v4716 = vld [vmem:[#allocation8 + $0x8] sm:$0xfc]
        %v4717 = vld [vmem:[#allocation8 + $0x50] sm:$0x3]
        %v4718 = vld [vmem:[#allocation8 + $0x58] sm:$0x3]
        %v4719 = vpack.c.bf16 %v4133, %v4715
        %v4720 = vpack.c.bf16 %v4134, %v4716
        %v4721 = vpack.c.bf16 %v4717, %v4139
        %v4722 = vpack.c.bf16 %v4718, %v4140
        %s4723 = scalar_lea.vmem %s49, 512
        %v4724 = vld [vmem:[%s4723] sm:$0xff]
        %v4725 = vld [vmem:[%s4723 + $0x8] sm:$0xff]
        %v4726 = vld [vmem:[%s4723 + $0x10] sm:$0xff]
        %v4727 = vld [vmem:[%s4723 + $0x18] sm:$0xff]
        %v4728 = vld [vmem:[%s4723 + $0x20] sm:$0xff]
        %v4729 = vld [vmem:[%s4723 + $0x28] sm:$0xff]
        %v4730 = vld [vmem:[%s4723 + $0x30] sm:$0xff]
        %v4731 = vld [vmem:[%s4723 + $0x38] sm:$0xff]
        %v4732 = vld [vmem:[%s4723 + $0x40] sm:$0xff]
        %v4733 = vld [vmem:[%s4723 + $0x48] sm:$0xff]
        %v4734 = vld [vmem:[%s4723 + $0x50] sm:$0xff]
        %v4735 = vld [vmem:[%s4723 + $0x58] sm:$0xff]
        %v4736 = vld [vmem:[%s4723 + $0x60] sm:$0xff]
        %v4737 = vld [vmem:[%s4723 + $0x68] sm:$0xff]
        %v4738 = vld [vmem:[%s4723 + $0x70] sm:$0xff]
        %v4739 = vld [vmem:[%s4723 + $0x78] sm:$0xff]
        %v4740 = vld [vmem:[%s4723 + $0x80] sm:$0xff]
        %v4741 = vld [vmem:[%s4723 + $0x88] sm:$0xff]
        %v4742 = vld [vmem:[%s4723 + $0x90] sm:$0xff]
        %v4743 = vld [vmem:[%s4723 + $0x98] sm:$0xff]
        %v4744 = vld [vmem:[%s4723 + $0xa0] sm:$0xff]
        %v4745 = vld [vmem:[%s4723 + $0xa8] sm:$0xff]
        %v4746 = vld [vmem:[%s4723 + $0xb0] sm:$0xff]
        %v4747 = vld [vmem:[%s4723 + $0xb8] sm:$0xff]
        %v4748 = vld [vmem:[%s4723 + $0xc0] sm:$0xff]
        %v4749 = vld [vmem:[%s4723 + $0xc8] sm:$0xff]
        %v4750 = vld [vmem:[%s4723 + $0xd0] sm:$0xff]
        %v4751 = vld [vmem:[%s4723 + $0xd8] sm:$0xff]
        %v4752 = vld [vmem:[%s4723 + $0xe0] sm:$0xff]
        %v4753 = vld [vmem:[%s4723 + $0xe8] sm:$0xff]
        %v4754 = vld [vmem:[%s4723 + $0xf0] sm:$0xff]
        %v4755 = vld [vmem:[%s4723 + $0xf8] sm:$0xff]
        %vm4762 = vcmask 1046528
        %v4763 = vrot.slane %v4719, 1
        %v4764 = vrot.slane %v4143, 1
        %v4765 = vsel %vm4762, %v4763, %v4764
        %v4766 = vrot.slane %v4720, 1
        %v4767 = vrot.slane %v4144, 1
        %v4768 = vsel %vm4762, %v4766, %v4767
        %v4769 = vrot.slane %v4721, 1
        %v4770 = vsel %vm4762, %v4764, %v4769
        %v4771 = vrot.slane %v4722, 1
        %v4772 = vsel %vm4762, %v4767, %v4771
        %v4811 = vunpack.c.l.b16 %v4724
        %v4812 = vunpack.c.h.b16 %v4724
        %v4813 = vunpack.c.l.b16 %v4725
        %v4814 = vunpack.c.h.b16 %v4725
        %v4815 = vunpack.c.l.b16 %v4726
        %v4816 = vunpack.c.h.b16 %v4726
        %v4817 = vunpack.c.l.b16 %v4727
        %v4818 = vunpack.c.h.b16 %v4727
        %v4819 = vunpack.c.l.b16 %v4728
        %v4820 = vunpack.c.h.b16 %v4728
        %v4821 = vunpack.c.l.b16 %v4729
        %v4822 = vunpack.c.h.b16 %v4729
        %v4823 = vunpack.c.l.b16 %v4730
        %v4824 = vunpack.c.h.b16 %v4730
        %v4825 = vunpack.c.l.b16 %v4731
        %v4826 = vunpack.c.h.b16 %v4731
        %v4827 = vunpack.c.l.b16 %v4732
        %v4828 = vunpack.c.h.b16 %v4732
        %v4829 = vunpack.c.l.b16 %v4733
        %v4830 = vunpack.c.h.b16 %v4733
        %v4831 = vunpack.c.l.b16 %v4734
        %v4832 = vunpack.c.h.b16 %v4734
        %v4833 = vunpack.c.l.b16 %v4735
        %v4834 = vunpack.c.h.b16 %v4735
        %v4835 = vunpack.c.l.b16 %v4736
        %v4836 = vunpack.c.h.b16 %v4736
        %v4837 = vunpack.c.l.b16 %v4737
        %v4838 = vunpack.c.h.b16 %v4737
        %v4839 = vunpack.c.l.b16 %v4738
        %v4840 = vunpack.c.h.b16 %v4738
        %v4841 = vunpack.c.l.b16 %v4739
        %v4842 = vunpack.c.h.b16 %v4739
        %v4843 = vunpack.c.l.b16 %v4740
        %v4844 = vunpack.c.h.b16 %v4740
        %v4845 = vunpack.c.l.b16 %v4741
        %v4846 = vunpack.c.h.b16 %v4741
        %v4847 = vunpack.c.l.b16 %v4742
        %v4848 = vunpack.c.h.b16 %v4742
        %v4849 = vunpack.c.l.b16 %v4743
        %v4850 = vunpack.c.h.b16 %v4743
        %v4851 = vunpack.c.l.b16 %v4744
        %v4852 = vunpack.c.h.b16 %v4744
        %v4853 = vunpack.c.l.b16 %v4745
        %v4854 = vunpack.c.h.b16 %v4745
        %v4855 = vunpack.c.l.b16 %v4746
        %v4856 = vunpack.c.h.b16 %v4746
        %v4857 = vunpack.c.l.b16 %v4747
        %v4858 = vunpack.c.h.b16 %v4747
        %v4859 = vunpack.c.l.b16 %v4748
        %v4860 = vunpack.c.h.b16 %v4748
        %v4861 = vunpack.c.l.b16 %v4749
        %v4862 = vunpack.c.h.b16 %v4749
        %v4863 = vunpack.c.l.b16 %v4750
        %v4864 = vunpack.c.h.b16 %v4750
        %v4865 = vunpack.c.l.b16 %v4751
        %v4866 = vunpack.c.h.b16 %v4751
        %v4867 = vunpack.c.l.b16 %v4752
        %v4868 = vunpack.c.h.b16 %v4752
        %v4869 = vunpack.c.l.b16 %v4753
        %v4870 = vunpack.c.h.b16 %v4753
        %v4871 = vunpack.c.l.b16 %v4754
        %v4872 = vunpack.c.h.b16 %v4754
        %v4873 = vunpack.c.l.b16 %v4755
        %v4874 = vunpack.c.h.b16 %v4755
        %v4875 = vpack.c.b16 %v4813, %v4811
        %v4876 = vpack.c.b16 %v4814, %v4812
        %v4877 = vpack.c.b16 %v4817, %v4815
        %v4878 = vpack.c.b16 %v4818, %v4816
        %v4879 = vpack.c.b16 %v4821, %v4819
        %v4880 = vpack.c.b16 %v4822, %v4820
        %v4881 = vpack.c.b16 %v4825, %v4823
        %v4882 = vpack.c.b16 %v4826, %v4824
        %v4883 = vpack.c.b16 %v4829, %v4827
        %v4884 = vpack.c.b16 %v4830, %v4828
        %v4885 = vpack.c.b16 %v4833, %v4831
        %v4886 = vpack.c.b16 %v4834, %v4832
        %v4887 = vpack.c.b16 %v4837, %v4835
        %v4888 = vpack.c.b16 %v4838, %v4836
        %v4889 = vpack.c.b16 %v4841, %v4839
        %v4890 = vpack.c.b16 %v4842, %v4840
        %v4891 = vpack.c.b16 %v4845, %v4843
        %v4892 = vpack.c.b16 %v4846, %v4844
        %v4893 = vpack.c.b16 %v4849, %v4847
        %v4894 = vpack.c.b16 %v4850, %v4848
        %v4895 = vpack.c.b16 %v4853, %v4851
        %v4896 = vpack.c.b16 %v4854, %v4852
        %v4897 = vpack.c.b16 %v4857, %v4855
        %v4898 = vpack.c.b16 %v4858, %v4856
        %v4899 = vpack.c.b16 %v4861, %v4859
        %v4900 = vpack.c.b16 %v4862, %v4860
        %v4901 = vpack.c.b16 %v4865, %v4863
        %v4902 = vpack.c.b16 %v4866, %v4864
        %v4903 = vpack.c.b16 %v4869, %v4867
        %v4904 = vpack.c.b16 %v4870, %v4868
        %v4905 = vpack.c.b16 %v4873, %v4871
        %v4906 = vpack.c.b16 %v4874, %v4872
        %4939 = vmatprep.subr.bf16.mxu0 %v4876
        %4940 = vmatpush1.bf16.msra.mxu0 %v4875
        %4941 = vmatprep.subr.bf16.mxu0 %v4878
        %4942 = vmatpush1.bf16.msra.mxu0 %v4877
        %4943 = vmatprep.subr.bf16.mxu0 %v4880
        %4944 = vmatpush1.bf16.msra.mxu0 %v4879
        %4945 = vmatprep.subr.bf16.mxu0 %v4882
        %4946 = vmatpush1.bf16.msra.mxu0 %v4881
        %4947 = vmatprep.subr.bf16.mxu0 %v4884
        %4948 = vmatpush1.bf16.msra.mxu0 %v4883
        %4949 = vmatprep.subr.bf16.mxu0 %v4886
        %4950 = vmatpush1.bf16.msra.mxu0 %v4885
        %4951 = vmatprep.subr.bf16.mxu0 %v4888
        %4952 = vmatpush1.bf16.msra.mxu0 %v4887
        %4953 = vmatprep.subr.bf16.mxu0 %v4890
        %4954 = vmatpush1.bf16.msra.mxu0 %v4889
        %4955 = vmatprep.subr.bf16.mxu0 %v4892
        %4956 = vmatpush1.bf16.msra.mxu0 %v4891
        %4957 = vmatprep.subr.bf16.mxu0 %v4894
        %4958 = vmatpush1.bf16.msra.mxu0 %v4893
        %4959 = vmatprep.subr.bf16.mxu0 %v4896
        %4960 = vmatpush1.bf16.msra.mxu0 %v4895
        %4961 = vmatprep.subr.bf16.mxu0 %v4898
        %4962 = vmatpush1.bf16.msra.mxu0 %v4897
        %4963 = vmatprep.subr.bf16.mxu0 %v4900
        %4964 = vmatpush1.bf16.msra.mxu0 %v4899
        %4965 = vmatprep.subr.bf16.mxu0 %v4902
        %4966 = vmatpush1.bf16.msra.mxu0 %v4901
        %4967 = vmatprep.subr.bf16.mxu0 %v4904
        %4968 = vmatpush1.bf16.msra.mxu0 %v4903
        %4969 = vmatprep.subr.bf16.mxu0 %v4906
        %4970 = vmatpush1.bf16.msra.mxu0 %v4905
        %4971 = vmatprep.mubr.bf16.mxu0 %v4768
        %4972 = vmatmul.mubr.bf16.gmra.mrb[0].mxu0 %v4765
        %v4973 = vpop.f32.mrb[0].mxu0
        %v4974 = vadd.f32 0.0, %v4973
        %v4975 = vpop.f32.mrb[0].mxu0
        %v4976 = vadd.f32 0.0, %v4975
        %v4977 = vpop.f32.mrb[0].mxu0
        %v4978 = vadd.f32 0.0, %v4977
        %v4979 = vpop.f32.mrb[0].mxu0
        %v4980 = vadd.f32 0.0, %v4979
        %4981 = vmatprep.mubr.bf16.mxu0 %v4772
        %4982 = vmatmul.mubr.bf16.gmra.mrb[0].mxu0 %v4770
        %v4983 = vpop.f32.mrb[0].mxu0
        %v4984 = vadd.f32 0.0, %v4983
        %v4985 = vpop.f32.mrb[0].mxu0
        %v4986 = vadd.f32 0.0, %v4985
        %v4987 = vpop.f32.mrb[0].mxu0
        %v4988 = vadd.f32 0.0, %v4987
        %v4989 = vpop.f32.mrb[0].mxu0
        %v4990 = vadd.f32 0.0, %v4989
        %4991 = vmatprep.mubr.bf16.mxu0 %v4771
        %4992 = vmatmul.mubr.bf16.gmra.mrb[0].mxu0 %v4769
        %v4993 = vpop.f32.mrb[0].mxu0
        %v4994 = vadd.f32 0.0, %v4993
        %v4995 = vpop.f32.mrb[0].mxu0
        %v4996 = vadd.f32 0.0, %v4995
        %v4997 = vpop.f32.mrb[0].mxu0
        %v4998 = vpop.f32.mrb[0].mxu0
        %4999 = vdwg.mxu0
        %v5000 = vadd.f32 %v4689, %v4974
        %v5001 = vadd.f32 %v4691, %v4976
        %v5002 = vadd.f32 %v4693, %v4978
        %v5003 = vadd.f32 %v4695, %v4980
        %v5004 = vadd.f32 %v4699, %v4984
        %v5005 = vadd.f32 %v4701, %v4986
        %v5006 = vadd.f32 %v4703, %v4988
        %v5007 = vadd.f32 %v4705, %v4990
        %v5008 = vadd.f32 %v4709, %v4994
        %v5009 = vadd.f32 %v4711, %v4996
        %v5010 = vld [vmem:[#allocation32] sm:$0x3]
        %v5012 = vlaneseq
        %v5013 = vshrl.u32 %v5012, 7
        %v5014 = vsub.s32 0, %v5013
        %v5015 = vrot.slane %v5010, %v5014
        %v5016 = vlaneseq
        %v5017 = vshrl.u32 %v5016, 7
        %v5018 = vsub.s32 1, %v5017
        %v5019 = vrot.slane %v5010, %v5018
        %v5022 = vadd.f32 %v5000, %v5015
        %v5023 = vadd.f32 %v5001, %v5019
        %v5024 = vadd.f32 %v5002, %v5015
        %v5025 = vadd.f32 %v5003, %v5019
        %v5026 = vadd.f32 %v5004, %v5015
        %v5027 = vadd.f32 %v5005, %v5019
        %v5028 = vadd.f32 %v5006, %v5015
        %v5029 = vadd.f32 %v5007, %v5019
        %v5030 = vadd.f32 %v5008, %v5015
        %v5031 = vadd.f32 %v5009, %v5019
        %v5032 = vmul.f32 %v5022, 0.2
        %v5033 = vmul.f32 %v5023, 0.2
        %v5034 = vmul.f32 %v5024, 0.2
        %v5035 = vmul.f32 %v5025, 0.2
        %v5036 = vmul.f32 %v5026, 0.2
        %v5037 = vmul.f32 %v5027, 0.2
        %v5038 = vmul.f32 %v5028, 0.2
        %v5039 = vmul.f32 %v5029, 0.2
        %v5040 = vmul.f32 %v5030, 0.2
        %v5041 = vmul.f32 %v5031, 0.2
        %v5042 = vmax.f32 %v5022, %v5032
        %v5043 = vmax.f32 %v5023, %v5033
        %v5044 = vmax.f32 %v5024, %v5034
        %v5045 = vmax.f32 %v5025, %v5035
        %v5046 = vmax.f32 %v5026, %v5036
        %v5047 = vmax.f32 %v5027, %v5037
        %v5048 = vmax.f32 %v5028, %v5038
        %v5049 = vmax.f32 %v5029, %v5039
        %v5050 = vmax.f32 %v5030, %v5040
        %v5051 = vmax.f32 %v5031, %v5041
        %v5052 = vld [vmem:[%s53] sm:$0xff]
        %v5053 = vld [vmem:[%s53 + $0x8] sm:$0xff]
        %v5054 = vld [vmem:[%s53 + $0x10] sm:$0xff]
        %v5055 = vld [vmem:[%s53 + $0x18] sm:$0xff]
        %v5056 = vld [vmem:[%s53 + $0x20] sm:$0xff]
        %5058 = vset.pattern.permute.xlu0 0
        %5059 = vperm.xlu0 %5058, %v5052
        %v5060 = vpop.permute.xlu0 %5059
        %5063 = vset.pattern.permute.xlu0 0
        %5064 = vperm.xlu0 %5063, %v5053
        %v5065 = vpop.permute.xlu0 %5064
        %5068 = vset.pattern.permute.xlu0 0
        %5069 = vperm.xlu0 %5068, %v5054
        %v5070 = vpop.permute.xlu0 %5069
        %5073 = vset.pattern.permute.xlu0 0
        %5074 = vperm.xlu0 %5073, %v5055
        %v5075 = vpop.permute.xlu0 %5074
        %5078 = vset.pattern.permute.xlu0 0
        %5079 = vperm.xlu0 %5078, %v5056
        %v5080 = vpop.permute.xlu0 %5079
        %v5082 = vmul.f32 %v5042, %v5060
        %v5083 = vmul.f32 %v5043, %v5060
        %v5084 = vmul.f32 %v5044, %v5065
        %v5085 = vmul.f32 %v5045, %v5065
        %v5086 = vmul.f32 %v5046, %v5070
        %v5087 = vmul.f32 %v5047, %v5070
        %v5088 = vmul.f32 %v5048, %v5075
        %v5089 = vmul.f32 %v5049, %v5075
        %v5090 = vmul.f32 %v5050, %v5080
        %v5091 = vmul.f32 %v5051, %v5080
        %5092 = vst [vmem:[#allocation9] sm:$0xff] %v5082
        %5093 = vst [vmem:[#allocation9 + $0x8] sm:$0xff] %v5083
        %5094 = vst [vmem:[#allocation9 + $0x10] sm:$0xff] %v5084
        %5095 = vst [vmem:[#allocation9 + $0x18] sm:$0xff] %v5085
        %5096 = vst [vmem:[#allocation9 + $0x20] sm:$0xff] %v5086
        %5097 = vst [vmem:[#allocation9 + $0x28] sm:$0xff] %v5087
        %5098 = vst [vmem:[#allocation9 + $0x30] sm:$0xff] %v5088
        %5099 = vst [vmem:[#allocation9 + $0x38] sm:$0xff] %v5089
        %5100 = vst [vmem:[#allocation9 + $0x40] sm:$0xff] %v5090
        %5101 = vst [vmem:[#allocation9 + $0x48] sm:$0xff] %v5091
        %v5102 = vld [vmem:[#allocation9] sm:$0xff]
        %v5103 = vld [vmem:[#allocation9 + $0x8] sm:$0xff]
        %v5104 = vld [vmem:[#allocation9 + $0x10] sm:$0xff]
        %v5105 = vld [vmem:[#allocation9 + $0x18] sm:$0xff]
        %v5106 = vld [vmem:[#allocation9 + $0x20] sm:$0xff]
        %v5107 = vld [vmem:[#allocation9 + $0x28] sm:$0xff]
        %v5108 = vld [vmem:[#allocation9 + $0x30] sm:$0xff]
        %v5109 = vld [vmem:[#allocation9 + $0x38] sm:$0xff]
        %v5110 = vld [vmem:[#allocation9 + $0x40] sm:$0x3f]
        %v5111 = vld [vmem:[#allocation9 + $0x48] sm:$0x3f]
        %v5112 = vpack.c.bf16 %v5104, %v5102
        %v5113 = vpack.c.bf16 %v5105, %v5103
        %v5114 = vpack.c.bf16 %v5108, %v5106
        %v5115 = vpack.c.bf16 %v5109, %v5107
        %v5116 = vpack.c.bf16 %v5110, %v5110
        %v5117 = vpack.c.bf16 %v5111, %v5111
        %v5118 = vld [vmem:[%s55] sm:$0xf]
        %v5119 = vld [vmem:[%s55 + $0x4] sm:$0xf]
        %v5120 = vld [vmem:[%s55 + $0x8] sm:$0xf]
        %v5121 = vld [vmem:[%s55 + $0xc] sm:$0xf]
        %v5122 = vld [vmem:[%s55 + $0x10] sm:$0xf]
        %v5123 = vld [vmem:[%s55 + $0x14] sm:$0xf]
        %v5124 = vld [vmem:[%s55 + $0x18] sm:$0xf]
        %v5125 = vld [vmem:[%s55 + $0x1c] sm:$0xf]
        %v5126 = vld [vmem:[%s55 + $0x20] sm:$0xf]
        %v5127 = vld [vmem:[%s55 + $0x24] sm:$0xf]
        %v5128 = vld [vmem:[%s55 + $0x28] sm:$0xf]
        %v5129 = vld [vmem:[%s55 + $0x2c] sm:$0xf]
        %v5130 = vld [vmem:[%s55 + $0x30] sm:$0xf]
        %v5131 = vld [vmem:[%s55 + $0x34] sm:$0xf]
        %v5132 = vld [vmem:[%s55 + $0x38] sm:$0xf]
        %v5133 = vld [vmem:[%s55 + $0x3c] sm:$0xf]
        %v5134 = vld [vmem:[%s55 + $0x40] sm:$0xf]
        %v5135 = vld [vmem:[%s55 + $0x44] sm:$0xf]
        %v5136 = vld [vmem:[%s55 + $0x48] sm:$0xf]
        %v5137 = vld [vmem:[%s55 + $0x4c] sm:$0xf]
        %v5138 = vld [vmem:[%s55 + $0x50] sm:$0xf]
        %v5139 = vld [vmem:[%s55 + $0x54] sm:$0xf]
        %v5140 = vld [vmem:[%s55 + $0x58] sm:$0xf]
        %v5141 = vld [vmem:[%s55 + $0x5c] sm:$0xf]
        %v5142 = vld [vmem:[%s55 + $0x60] sm:$0xf]
        %v5143 = vld [vmem:[%s55 + $0x64] sm:$0xf]
        %v5144 = vld [vmem:[%s55 + $0x68] sm:$0xf]
        %v5145 = vld [vmem:[%s55 + $0x6c] sm:$0xf]
        %v5146 = vld [vmem:[%s55 + $0x70] sm:$0xf]
        %v5147 = vld [vmem:[%s55 + $0x74] sm:$0xf]
        %v5148 = vld [vmem:[%s55 + $0x78] sm:$0xf]
        %v5149 = vld [vmem:[%s55 + $0x7c] sm:$0xf]
        %v5150 = vld [vmem:[#allocation9] sm:$0xfe]
        %v5151 = vld [vmem:[#allocation9 + $0x8] sm:$0xfe]
        %v5152 = vld [vmem:[#allocation9 + $0x40] sm:$0x7f]
        %v5153 = vld [vmem:[#allocation9 + $0x48] sm:$0x7f]
        %v5154 = vpack.c.bf16 %v5104, %v5150
        %v5155 = vpack.c.bf16 %v5105, %v5151
        %v5156 = vpack.c.bf16 %v5152, %v5152
        %v5157 = vpack.c.bf16 %v5153, %v5153
        %s5158 = scalar_lea.vmem %s55, 128
        %v5159 = vld [vmem:[%s5158] sm:$0xf]
        %v5160 = vld [vmem:[%s5158 + $0x4] sm:$0xf]
        %v5161 = vld [vmem:[%s5158 + $0x8] sm:$0xf]
        %v5162 = vld [vmem:[%s5158 + $0xc] sm:$0xf]
        %v5163 = vld [vmem:[%s5158 + $0x10] sm:$0xf]
        %v5164 = vld [vmem:[%s5158 + $0x14] sm:$0xf]
        %v5165 = vld [vmem:[%s5158 + $0x18] sm:$0xf]
        %v5166 = vld [vmem:[%s5158 + $0x1c] sm:$0xf]
        %v5167 = vld [vmem:[%s5158 + $0x20] sm:$0xf]
        %v5168 = vld [vmem:[%s5158 + $0x24] sm:$0xf]
        %v5169 = vld [vmem:[%s5158 + $0x28] sm:$0xf]
        %v5170 = vld [vmem:[%s5158 + $0x2c] sm:$0xf]
        %v5171 = vld [vmem:[%s5158 + $0x30] sm:$0xf]
        %v5172 = vld [vmem:[%s5158 + $0x34] sm:$0xf]
        %v5173 = vld [vmem:[%s5158 + $0x38] sm:$0xf]
        %v5174 = vld [vmem:[%s5158 + $0x3c] sm:$0xf]
        %v5175 = vld [vmem:[%s5158 + $0x40] sm:$0xf]
        %v5176 = vld [vmem:[%s5158 + $0x44] sm:$0xf]
        %v5177 = vld [vmem:[%s5158 + $0x48] sm:$0xf]
        %v5178 = vld [vmem:[%s5158 + $0x4c] sm:$0xf]
        %v5179 = vld [vmem:[%s5158 + $0x50] sm:$0xf]
        %v5180 = vld [vmem:[%s5158 + $0x54] sm:$0xf]
        %v5181 = vld [vmem:[%s5158 + $0x58] sm:$0xf]
        %v5182 = vld [vmem:[%s5158 + $0x5c] sm:$0xf]
        %v5183 = vld [vmem:[%s5158 + $0x60] sm:$0xf]
        %v5184 = vld [vmem:[%s5158 + $0x64] sm:$0xf]
        %v5185 = vld [vmem:[%s5158 + $0x68] sm:$0xf]
        %v5186 = vld [vmem:[%s5158 + $0x6c] sm:$0xf]
        %v5187 = vld [vmem:[%s5158 + $0x70] sm:$0xf]
        %v5188 = vld [vmem:[%s5158 + $0x74] sm:$0xf]
        %v5189 = vld [vmem:[%s5158 + $0x78] sm:$0xf]
        %v5190 = vld [vmem:[%s5158 + $0x7c] sm:$0xf]
        %v5192 = vshrl.u32 %v5154, 16
        %v5194 = vshll.u32 %v5154, 16
        %v5196 = vrot.slane %v5194, 1
        %v5197 = vor.u32 %v5192, %v5196
        %v5199 = vshll.u32 %v5114, 16
        %v5201 = vrot.slane %v5199, 1
        %v5202 = vsel %vm4220, %v5197, %v5201
        %v5204 = vshrl.u32 %v5155, 16
        %v5206 = vshll.u32 %v5155, 16
        %v5208 = vrot.slane %v5206, 1
        %v5209 = vor.u32 %v5204, %v5208
        %v5211 = vshll.u32 %v5115, 16
        %v5213 = vrot.slane %v5211, 1
        %v5214 = vsel %vm4220, %v5209, %v5213
        %v5215 = vshrl.u32 %v5114, 16
        %v5217 = vor.u32 %v5215, %v5201
        %v5219 = vshll.u32 %v5156, 16
        %v5221 = vrot.slane %v5219, 1
        %v5222 = vsel %vm4220, %v5217, %v5221
        %v5223 = vshrl.u32 %v5115, 16
        %v5225 = vor.u32 %v5223, %v5213
        %v5227 = vshll.u32 %v5157, 16
        %v5229 = vrot.slane %v5227, 1
        %v5230 = vsel %vm4220, %v5225, %v5229
        %v5231 = vshrl.u32 %v5156, 16
        %v5233 = vor.u32 %v5231, %v5221
        %v5234 = vshrl.u32 %v5157, 16
        %v5236 = vor.u32 %v5234, %v5229
        %v5275 = vunpack.c.l.b16 %v5159
        %v5276 = vunpack.c.l.b16 %v5160
        %v5277 = vunpack.c.l.b16 %v5161
        %v5278 = vunpack.c.l.b16 %v5162
        %v5279 = vunpack.c.l.b16 %v5163
        %v5280 = vunpack.c.l.b16 %v5164
        %v5281 = vunpack.c.l.b16 %v5165
        %v5282 = vunpack.c.l.b16 %v5166
        %v5283 = vunpack.c.l.b16 %v5167
        %v5284 = vunpack.c.l.b16 %v5168
        %v5285 = vunpack.c.l.b16 %v5169
        %v5286 = vunpack.c.l.b16 %v5170
        %v5287 = vunpack.c.l.b16 %v5171
        %v5288 = vunpack.c.l.b16 %v5172
        %v5289 = vunpack.c.l.b16 %v5173
        %v5290 = vunpack.c.l.b16 %v5174
        %v5291 = vunpack.c.l.b16 %v5175
        %v5292 = vunpack.c.l.b16 %v5176
        %v5293 = vunpack.c.l.b16 %v5177
        %v5294 = vunpack.c.l.b16 %v5178
        %v5295 = vunpack.c.l.b16 %v5179
        %v5296 = vunpack.c.l.b16 %v5180
        %v5297 = vunpack.c.l.b16 %v5181
        %v5298 = vunpack.c.l.b16 %v5182
        %v5299 = vunpack.c.l.b16 %v5183
        %v5300 = vunpack.c.l.b16 %v5184
        %v5301 = vunpack.c.l.b16 %v5185
        %v5302 = vunpack.c.l.b16 %v5186
        %v5303 = vunpack.c.l.b16 %v5187
        %v5304 = vunpack.c.l.b16 %v5188
        %v5305 = vunpack.c.l.b16 %v5189
        %v5306 = vunpack.c.l.b16 %v5190
        %v5307 = vpack.c.b16 %v5276, %v5275
        %v5308 = vpack.c.b16 %v5278, %v5277
        %v5309 = vpack.c.b16 %v5280, %v5279
        %v5310 = vpack.c.b16 %v5282, %v5281
        %v5311 = vpack.c.b16 %v5284, %v5283
        %v5312 = vpack.c.b16 %v5286, %v5285
        %v5313 = vpack.c.b16 %v5288, %v5287
        %v5314 = vpack.c.b16 %v5290, %v5289
        %v5315 = vpack.c.b16 %v5292, %v5291
        %v5316 = vpack.c.b16 %v5294, %v5293
        %v5317 = vpack.c.b16 %v5296, %v5295
        %v5318 = vpack.c.b16 %v5298, %v5297
        %v5319 = vpack.c.b16 %v5300, %v5299
        %v5320 = vpack.c.b16 %v5302, %v5301
        %v5321 = vpack.c.b16 %v5304, %v5303
        %v5322 = vpack.c.b16 %v5306, %v5305
        %5339 = vmatprep.subr.bf16.mxu0 0
        %5340 = vmatpush1.bf16.msra.mxu0 %v5307
        %5341 = vmatprep.subr.bf16.mxu0 0
        %5342 = vmatpush1.bf16.msra.mxu0 %v5308
        %5343 = vmatprep.subr.bf16.mxu0 0
        %5344 = vmatpush1.bf16.msra.mxu0 %v5309
        %5345 = vmatprep.subr.bf16.mxu0 0
        %5346 = vmatpush1.bf16.msra.mxu0 %v5310
        %5347 = vmatprep.subr.bf16.mxu0 0
        %5348 = vmatpush1.bf16.msra.mxu0 %v5311
        %5349 = vmatprep.subr.bf16.mxu0 0
        %5350 = vmatpush1.bf16.msra.mxu0 %v5312
        %5351 = vmatprep.subr.bf16.mxu0 0
        %5352 = vmatpush1.bf16.msra.mxu0 %v5313
        %5353 = vmatprep.subr.bf16.mxu0 0
        %5354 = vmatpush1.bf16.msra.mxu0 %v5314
        %5355 = vmatprep.subr.bf16.mxu0 0
        %5356 = vmatpush1.bf16.msra.mxu0 %v5315
        %5357 = vmatprep.subr.bf16.mxu0 0
        %5358 = vmatpush1.bf16.msra.mxu0 %v5316
        %5359 = vmatprep.subr.bf16.mxu0 0
        %5360 = vmatpush1.bf16.msra.mxu0 %v5317
        %5361 = vmatprep.subr.bf16.mxu0 0
        %5362 = vmatpush1.bf16.msra.mxu0 %v5318
        %5363 = vmatprep.subr.bf16.mxu0 0
        %5364 = vmatpush1.bf16.msra.mxu0 %v5319
        %5365 = vmatprep.subr.bf16.mxu0 0
        %5366 = vmatpush1.bf16.msra.mxu0 %v5320
        %5367 = vmatprep.subr.bf16.mxu0 0
        %5368 = vmatpush1.bf16.msra.mxu0 %v5321
        %5369 = vmatprep.subr.bf16.mxu0 0
        %5370 = vmatpush1.bf16.msra.mxu0 %v5322
        %5371 = vmatprep.mubr.bf16.mxu0 %v5214
        %5372 = vmatmul.mubr.bf16.gmra.mrb[0].mxu0 %v5202
        %v5373 = vpop.f32.mrb[0].mxu0
        %v5374 = vadd.f32 0.0, %v5373
        %v5375 = vpop.f32.mrb[0].mxu0
        %v5376 = vpop.f32.mrb[0].mxu0
        %v5377 = vadd.f32 0.0, %v5376
        %v5378 = vpop.f32.mrb[0].mxu0
        %5379 = vmatprep.mubr.bf16.mxu0 %v5230
        %5380 = vmatmul.mubr.bf16.gmra.mrb[0].mxu0 %v5222
        %v5381 = vpop.f32.mrb[0].mxu0
        %v5382 = vadd.f32 0.0, %v5381
        %v5383 = vpop.f32.mrb[0].mxu0
        %v5384 = vpop.f32.mrb[0].mxu0
        %v5385 = vadd.f32 0.0, %v5384
        %v5386 = vpop.f32.mrb[0].mxu0
        %5387 = vmatprep.mubr.bf16.mxu0 %v5236
        %5388 = vmatmul.mubr.bf16.gmra.mrb[0].mxu0 %v5233
        %v5389 = vpop.f32.mrb[0].mxu0
        %v5390 = vadd.f32 0.0, %v5389
        %v5391 = vpop.f32.mrb[0].mxu0
        %v5392 = vpop.f32.mrb[0].mxu0
        %v5393 = vpop.f32.mrb[0].mxu0
        %5394 = vdwg.mxu0
        %v5427 = vunpack.c.l.b16 %v5118
        %v5428 = vunpack.c.l.b16 %v5119
        %v5429 = vunpack.c.l.b16 %v5120
        %v5430 = vunpack.c.l.b16 %v5121
        %v5431 = vunpack.c.l.b16 %v5122
        %v5432 = vunpack.c.l.b16 %v5123
        %v5433 = vunpack.c.l.b16 %v5124
        %v5434 = vunpack.c.l.b16 %v5125
        %v5435 = vunpack.c.l.b16 %v5126
        %v5436 = vunpack.c.l.b16 %v5127
        %v5437 = vunpack.c.l.b16 %v5128
        %v5438 = vunpack.c.l.b16 %v5129
        %v5439 = vunpack.c.l.b16 %v5130
        %v5440 = vunpack.c.l.b16 %v5131
        %v5441 = vunpack.c.l.b16 %v5132
        %v5442 = vunpack.c.l.b16 %v5133
        %v5443 = vunpack.c.l.b16 %v5134
        %v5444 = vunpack.c.l.b16 %v5135
        %v5445 = vunpack.c.l.b16 %v5136
        %v5446 = vunpack.c.l.b16 %v5137
        %v5447 = vunpack.c.l.b16 %v5138
        %v5448 = vunpack.c.l.b16 %v5139
        %v5449 = vunpack.c.l.b16 %v5140
        %v5450 = vunpack.c.l.b16 %v5141
        %v5451 = vunpack.c.l.b16 %v5142
        %v5452 = vunpack.c.l.b16 %v5143
        %v5453 = vunpack.c.l.b16 %v5144
        %v5454 = vunpack.c.l.b16 %v5145
        %v5455 = vunpack.c.l.b16 %v5146
        %v5456 = vunpack.c.l.b16 %v5147
        %v5457 = vunpack.c.l.b16 %v5148
        %v5458 = vunpack.c.l.b16 %v5149
        %v5459 = vpack.c.b16 %v5428, %v5427
        %v5460 = vpack.c.b16 %v5430, %v5429
        %v5461 = vpack.c.b16 %v5432, %v5431
        %v5462 = vpack.c.b16 %v5434, %v5433
        %v5463 = vpack.c.b16 %v5436, %v5435
        %v5464 = vpack.c.b16 %v5438, %v5437
        %v5465 = vpack.c.b16 %v5440, %v5439
        %v5466 = vpack.c.b16 %v5442, %v5441
        %v5467 = vpack.c.b16 %v5444, %v5443
        %v5468 = vpack.c.b16 %v5446, %v5445
        %v5469 = vpack.c.b16 %v5448, %v5447
        %v5470 = vpack.c.b16 %v5450, %v5449
        %v5471 = vpack.c.b16 %v5452, %v5451
        %v5472 = vpack.c.b16 %v5454, %v5453
        %v5473 = vpack.c.b16 %v5456, %v5455
        %v5474 = vpack.c.b16 %v5458, %v5457
        %5491 = vmatprep.subr.bf16.mxu0 0
        %5492 = vmatpush1.bf16.msra.mxu0 %v5459
        %5493 = vmatprep.subr.bf16.mxu0 0
        %5494 = vmatpush1.bf16.msra.mxu0 %v5460
        %5495 = vmatprep.subr.bf16.mxu0 0
        %5496 = vmatpush1.bf16.msra.mxu0 %v5461
        %5497 = vmatprep.subr.bf16.mxu0 0
        %5498 = vmatpush1.bf16.msra.mxu0 %v5462
        %5499 = vmatprep.subr.bf16.mxu0 0
        %5500 = vmatpush1.bf16.msra.mxu0 %v5463
        %5501 = vmatprep.subr.bf16.mxu0 0
        %5502 = vmatpush1.bf16.msra.mxu0 %v5464
        %5503 = vmatprep.subr.bf16.mxu0 0
        %5504 = vmatpush1.bf16.msra.mxu0 %v5465
        %5505 = vmatprep.subr.bf16.mxu0 0
        %5506 = vmatpush1.bf16.msra.mxu0 %v5466
        %5507 = vmatprep.subr.bf16.mxu0 0
        %5508 = vmatpush1.bf16.msra.mxu0 %v5467
        %5509 = vmatprep.subr.bf16.mxu0 0
        %5510 = vmatpush1.bf16.msra.mxu0 %v5468
        %5511 = vmatprep.subr.bf16.mxu0 0
        %5512 = vmatpush1.bf16.msra.mxu0 %v5469
        %5513 = vmatprep.subr.bf16.mxu0 0
        %5514 = vmatpush1.bf16.msra.mxu0 %v5470
        %5515 = vmatprep.subr.bf16.mxu0 0
        %5516 = vmatpush1.bf16.msra.mxu0 %v5471
        %5517 = vmatprep.subr.bf16.mxu0 0
        %5518 = vmatpush1.bf16.msra.mxu0 %v5472
        %5519 = vmatprep.subr.bf16.mxu0 0
        %5520 = vmatpush1.bf16.msra.mxu0 %v5473
        %5521 = vmatprep.subr.bf16.mxu0 0
        %5522 = vmatpush1.bf16.msra.mxu0 %v5474
        %5523 = vmatprep.mubr.bf16.mxu0 %v5113
        %5524 = vmatmul.mubr.bf16.gmra.mrb[0].mxu0 %v5112
        %v5525 = vpop.f32.mrb[0].mxu0
        %v5526 = vadd.f32 %v5374, %v5525
        %v5527 = vpop.f32.mrb[0].mxu0
        %v5528 = vpop.f32.mrb[0].mxu0
        %v5529 = vadd.f32 %v5377, %v5528
        %v5530 = vpop.f32.mrb[0].mxu0
        %5531 = vmatprep.mubr.bf16.mxu0 %v5115
        %5532 = vmatmul.mubr.bf16.gmra.mrb[0].mxu0 %v5114
        %v5533 = vpop.f32.mrb[0].mxu0
        %v5534 = vadd.f32 %v5382, %v5533
        %v5535 = vpop.f32.mrb[0].mxu0
        %v5536 = vpop.f32.mrb[0].mxu0
        %v5537 = vadd.f32 %v5385, %v5536
        %v5538 = vpop.f32.mrb[0].mxu0
        %5539 = vmatprep.mubr.bf16.mxu0 %v5117
        %5540 = vmatmul.mubr.bf16.gmra.mrb[0].mxu0 %v5116
        %v5541 = vpop.f32.mrb[0].mxu0
        %v5542 = vadd.f32 %v5390, %v5541
        %v5543 = vpop.f32.mrb[0].mxu0
        %v5544 = vpop.f32.mrb[0].mxu0
        %v5545 = vpop.f32.mrb[0].mxu0
        %5546 = vdwg.mxu0
        %v5547 = vld [vmem:[#allocation9] sm:$0xfc]
        %v5548 = vld [vmem:[#allocation9 + $0x8] sm:$0xfc]
        %v5549 = vld [vmem:[#allocation9 + $0x40] sm:$0xff]
        %v5550 = vld [vmem:[#allocation9 + $0x48] sm:$0xff]
        %v5551 = vpack.c.bf16 %v5104, %v5547
        %v5552 = vpack.c.bf16 %v5105, %v5548
        %v5553 = vpack.c.bf16 %v5549, %v5549
        %v5554 = vpack.c.bf16 %v5550, %v5550
        %s5555 = scalar_lea.vmem %s55, 256
        %v5556 = vld [vmem:[%s5555] sm:$0xf]
        %v5557 = vld [vmem:[%s5555 + $0x4] sm:$0xf]
        %v5558 = vld [vmem:[%s5555 + $0x8] sm:$0xf]
        %v5559 = vld [vmem:[%s5555 + $0xc] sm:$0xf]
        %v5560 = vld [vmem:[%s5555 + $0x10] sm:$0xf]
        %v5561 = vld [vmem:[%s5555 + $0x14] sm:$0xf]
        %v5562 = vld [vmem:[%s5555 + $0x18] sm:$0xf]
        %v5563 = vld [vmem:[%s5555 + $0x1c] sm:$0xf]
        %v5564 = vld [vmem:[%s5555 + $0x20] sm:$0xf]
        %v5565 = vld [vmem:[%s5555 + $0x24] sm:$0xf]
        %v5566 = vld [vmem:[%s5555 + $0x28] sm:$0xf]
        %v5567 = vld [vmem:[%s5555 + $0x2c] sm:$0xf]
        %v5568 = vld [vmem:[%s5555 + $0x30] sm:$0xf]
        %v5569 = vld [vmem:[%s5555 + $0x34] sm:$0xf]
        %v5570 = vld [vmem:[%s5555 + $0x38] sm:$0xf]
        %v5571 = vld [vmem:[%s5555 + $0x3c] sm:$0xf]
        %v5572 = vld [vmem:[%s5555 + $0x40] sm:$0xf]
        %v5573 = vld [vmem:[%s5555 + $0x44] sm:$0xf]
        %v5574 = vld [vmem:[%s5555 + $0x48] sm:$0xf]
        %v5575 = vld [vmem:[%s5555 + $0x4c] sm:$0xf]
        %v5576 = vld [vmem:[%s5555 + $0x50] sm:$0xf]
        %v5577 = vld [vmem:[%s5555 + $0x54] sm:$0xf]
        %v5578 = vld [vmem:[%s5555 + $0x58] sm:$0xf]
        %v5579 = vld [vmem:[%s5555 + $0x5c] sm:$0xf]
        %v5580 = vld [vmem:[%s5555 + $0x60] sm:$0xf]
        %v5581 = vld [vmem:[%s5555 + $0x64] sm:$0xf]
        %v5582 = vld [vmem:[%s5555 + $0x68] sm:$0xf]
        %v5583 = vld [vmem:[%s5555 + $0x6c] sm:$0xf]
        %v5584 = vld [vmem:[%s5555 + $0x70] sm:$0xf]
        %v5585 = vld [vmem:[%s5555 + $0x74] sm:$0xf]
        %v5586 = vld [vmem:[%s5555 + $0x78] sm:$0xf]
        %v5587 = vld [vmem:[%s5555 + $0x7c] sm:$0xf]
        %v5594 = vrot.slane %v5551, 1
        %v5595 = vrot.slane %v5114, 1
        %v5596 = vsel %vm4762, %v5594, %v5595
        %v5597 = vrot.slane %v5552, 1
        %v5598 = vrot.slane %v5115, 1
        %v5599 = vsel %vm4762, %v5597, %v5598
        %v5600 = vrot.slane %v5553, 1
        %v5601 = vsel %vm4762, %v5595, %v5600
        %v5602 = vrot.slane %v5554, 1
        %v5603 = vsel %vm4762, %v5598, %v5602
        %v5642 = vunpack.c.l.b16 %v5556
        %v5643 = vunpack.c.l.b16 %v5557
        %v5644 = vunpack.c.l.b16 %v5558
        %v5645 = vunpack.c.l.b16 %v5559
        %v5646 = vunpack.c.l.b16 %v5560
        %v5647 = vunpack.c.l.b16 %v5561
        %v5648 = vunpack.c.l.b16 %v5562
        %v5649 = vunpack.c.l.b16 %v5563
        %v5650 = vunpack.c.l.b16 %v5564
        %v5651 = vunpack.c.l.b16 %v5565
        %v5652 = vunpack.c.l.b16 %v5566
        %v5653 = vunpack.c.l.b16 %v5567
        %v5654 = vunpack.c.l.b16 %v5568
        %v5655 = vunpack.c.l.b16 %v5569
        %v5656 = vunpack.c.l.b16 %v5570
        %v5657 = vunpack.c.l.b16 %v5571
        %v5658 = vunpack.c.l.b16 %v5572
        %v5659 = vunpack.c.l.b16 %v5573
        %v5660 = vunpack.c.l.b16 %v5574
        %v5661 = vunpack.c.l.b16 %v5575
        %v5662 = vunpack.c.l.b16 %v5576
        %v5663 = vunpack.c.l.b16 %v5577
        %v5664 = vunpack.c.l.b16 %v5578
        %v5665 = vunpack.c.l.b16 %v5579
        %v5666 = vunpack.c.l.b16 %v5580
        %v5667 = vunpack.c.l.b16 %v5581
        %v5668 = vunpack.c.l.b16 %v5582
        %v5669 = vunpack.c.l.b16 %v5583
        %v5670 = vunpack.c.l.b16 %v5584
        %v5671 = vunpack.c.l.b16 %v5585
        %v5672 = vunpack.c.l.b16 %v5586
        %v5673 = vunpack.c.l.b16 %v5587
        %v5674 = vpack.c.b16 %v5643, %v5642
        %v5675 = vpack.c.b16 %v5645, %v5644
        %v5676 = vpack.c.b16 %v5647, %v5646
        %v5677 = vpack.c.b16 %v5649, %v5648
        %v5678 = vpack.c.b16 %v5651, %v5650
        %v5679 = vpack.c.b16 %v5653, %v5652
        %v5680 = vpack.c.b16 %v5655, %v5654
        %v5681 = vpack.c.b16 %v5657, %v5656
        %v5682 = vpack.c.b16 %v5659, %v5658
        %v5683 = vpack.c.b16 %v5661, %v5660
        %v5684 = vpack.c.b16 %v5663, %v5662
        %v5685 = vpack.c.b16 %v5665, %v5664
        %v5686 = vpack.c.b16 %v5667, %v5666
        %v5687 = vpack.c.b16 %v5669, %v5668
        %v5688 = vpack.c.b16 %v5671, %v5670
        %v5689 = vpack.c.b16 %v5673, %v5672
        %5706 = vmatprep.subr.bf16.mxu0 0
        %5707 = vmatpush1.bf16.msra.mxu0 %v5674
        %5708 = vmatprep.subr.bf16.mxu0 0
        %5709 = vmatpush1.bf16.msra.mxu0 %v5675
        %5710 = vmatprep.subr.bf16.mxu0 0
        %5711 = vmatpush1.bf16.msra.mxu0 %v5676
        %5712 = vmatprep.subr.bf16.mxu0 0
        %5713 = vmatpush1.bf16.msra.mxu0 %v5677
        %5714 = vmatprep.subr.bf16.mxu0 0
        %5715 = vmatpush1.bf16.msra.mxu0 %v5678
        %5716 = vmatprep.subr.bf16.mxu0 0
        %5717 = vmatpush1.bf16.msra.mxu0 %v5679
        %5718 = vmatprep.subr.bf16.mxu0 0
        %5719 = vmatpush1.bf16.msra.mxu0 %v5680
        %5720 = vmatprep.subr.bf16.mxu0 0
        %5721 = vmatpush1.bf16.msra.mxu0 %v5681
        %5722 = vmatprep.subr.bf16.mxu0 0
        %5723 = vmatpush1.bf16.msra.mxu0 %v5682
        %5724 = vmatprep.subr.bf16.mxu0 0
        %5725 = vmatpush1.bf16.msra.mxu0 %v5683
        %5726 = vmatprep.subr.bf16.mxu0 0
        %5727 = vmatpush1.bf16.msra.mxu0 %v5684
        %5728 = vmatprep.subr.bf16.mxu0 0
        %5729 = vmatpush1.bf16.msra.mxu0 %v5685
        %5730 = vmatprep.subr.bf16.mxu0 0
        %5731 = vmatpush1.bf16.msra.mxu0 %v5686
        %5732 = vmatprep.subr.bf16.mxu0 0
        %5733 = vmatpush1.bf16.msra.mxu0 %v5687
        %5734 = vmatprep.subr.bf16.mxu0 0
        %5735 = vmatpush1.bf16.msra.mxu0 %v5688
        %5736 = vmatprep.subr.bf16.mxu0 0
        %5737 = vmatpush1.bf16.msra.mxu0 %v5689
        %5738 = vmatprep.mubr.bf16.mxu0 %v5599
        %5739 = vmatmul.mubr.bf16.gmra.mrb[0].mxu0 %v5596
        %v5740 = vpop.f32.mrb[0].mxu0
        %v5741 = vadd.f32 0.0, %v5740
        %v5742 = vpop.f32.mrb[0].mxu0
        %v5743 = vpop.f32.mrb[0].mxu0
        %v5744 = vadd.f32 0.0, %v5743
        %v5745 = vpop.f32.mrb[0].mxu0
        %5746 = vmatprep.mubr.bf16.mxu0 %v5603
        %5747 = vmatmul.mubr.bf16.gmra.mrb[0].mxu0 %v5601
        %v5748 = vpop.f32.mrb[0].mxu0
        %v5749 = vadd.f32 0.0, %v5748
        %v5750 = vpop.f32.mrb[0].mxu0
        %v5751 = vpop.f32.mrb[0].mxu0
        %v5752 = vadd.f32 0.0, %v5751
        %v5753 = vpop.f32.mrb[0].mxu0
        %5754 = vmatprep.mubr.bf16.mxu0 %v5602
        %5755 = vmatmul.mubr.bf16.gmra.mrb[0].mxu0 %v5600
        %v5756 = vpop.f32.mrb[0].mxu0
        %v5757 = vadd.f32 0.0, %v5756
        %v5758 = vpop.f32.mrb[0].mxu0
        %v5759 = vpop.f32.mrb[0].mxu0
        %v5760 = vpop.f32.mrb[0].mxu0
        %5761 = vdwg.mxu0
        %v5762 = vadd.f32 %v5526, %v5741
        %v5763 = vadd.f32 %v5529, %v5744
        %v5764 = vadd.f32 %v5534, %v5749
        %v5765 = vadd.f32 %v5537, %v5752
        %v5766 = vadd.f32 %v5542, %v5757
        %v5767 = vld [vmem:[#allocation34] sm:$0x1]
        %v5769 = vlaneseq
        %v5770 = vshrl.u32 %v5769, 7
        %v5771 = vsub.s32 0, %v5770
        %v5772 = vrot.slane %v5767, %v5771
        %v5774 = vadd.f32 %v5762, %v5772
        %v5775 = vadd.f32 %v5763, %v5772
        %v5776 = vadd.f32 %v5764, %v5772
        %v5777 = vadd.f32 %v5765, %v5772
        %v5778 = vadd.f32 %v5766, %v5772
        %v5779 = vpack.c.bf16 %v5775, %v5774
        %v5780 = vpack.c.bf16 %v5777, %v5776
        %v5781 = vpack.c.bf16 %v5778, %v5778
        %v5782 = vld [vmem:[%s59] sm:$0xf]
        %v5783 = vld [vmem:[%s59 + $0x4] sm:$0xf]
        %v5784 = vld [vmem:[%s59 + $0x8] sm:$0xf]
        %v5785 = vld [vmem:[%s59 + $0xc] sm:$0xf]
        %v5786 = vld [vmem:[%s59 + $0x10] sm:$0xf]
        %v5787 = vld [vmem:[%s59 + $0x14] sm:$0xf]
        %v5788 = vld [vmem:[%s59 + $0x18] sm:$0xf]
        %v5789 = vld [vmem:[%s59 + $0x1c] sm:$0xf]
        %v5790 = vld [vmem:[%s59 + $0x20] sm:$0xf]
        %v5791 = vld [vmem:[%s59 + $0x24] sm:$0x1]
        %v5802 = vunpack.c.l.b16 %v5782
        %v5803 = vunpack.c.l.b16 %v5783
        %v5804 = vunpack.c.l.b16 %v5784
        %v5805 = vunpack.c.l.b16 %v5785
        %v5806 = vunpack.c.l.b16 %v5786
        %v5807 = vunpack.c.l.b16 %v5787
        %v5808 = vunpack.c.l.b16 %v5788
        %v5809 = vunpack.c.l.b16 %v5789
        %v5810 = vunpack.c.l.b16 %v5790
        %v5811 = vunpack.c.l.b16 %v5791
        %v5812 = vpack.c.b16 %v5803, %v5802
        %v5813 = vpack.c.b16 %v5805, %v5804
        %v5814 = vpack.c.b16 %v5807, %v5806
        %v5815 = vpack.c.b16 %v5809, %v5808
        %v5816 = vpack.c.b16 %v5811, %v5810
        %vm5817 = vcmask 310272
        %v5819 = vsel %vm5817, %v5812, 0
        %v5822 = vsel %vm5817, %v5813, 0
        %v5825 = vsel %vm5817, %v5814, 0
        %v5828 = vsel %vm5817, %v5815, 0
        %v5831 = vsel %vm5817, %v5816, 0
        %v5834 = vsel %vm4025, %v5781, 0
        %5836 = vmatprep.subr.bf16.mxu0 0
        %5837 = vmatpush1.bf16.msra.mxu0 %v5779
        %5838 = vmatprep.subr.bf16.mxu0 0
        %5839 = vmatpush1.bf16.msra.mxu0 %v5780
        %5840 = vmatprep.subr.bf16.mxu0 0
        %5841 = vmatpush1.bf16.msra.mxu0 %v5834
        %5842 = vmatprep.subr.bf16.mxu0 0
        %5843 = vmatpush1.bf16.msra.mxu0 0
        %5844 = vmatprep.subr.bf16.mxu0 0
        %5845 = vmatpush1.bf16.msra.mxu0 0
        %5846 = vmatprep.subr.bf16.mxu0 0
        %5847 = vmatpush1.bf16.msra.mxu0 0
        %5848 = vmatprep.subr.bf16.mxu0 0
        %5849 = vmatpush1.bf16.msra.mxu0 0
        %5850 = vmatprep.subr.bf16.mxu0 0
        %5851 = vmatpush1.bf16.msra.mxu0 0
        %5852 = vmatprep.subr.bf16.mxu0 0
        %5853 = vmatpush1.bf16.msra.mxu0 0
        %5854 = vmatprep.subr.bf16.mxu0 0
        %5855 = vmatpush1.bf16.msra.mxu0 0
        %5856 = vmatprep.subr.bf16.mxu0 0
        %5857 = vmatpush1.bf16.msra.mxu0 0
        %5858 = vmatprep.subr.bf16.mxu0 0
        %5859 = vmatpush1.bf16.msra.mxu0 0
        %5860 = vmatprep.subr.bf16.mxu0 0
        %5861 = vmatpush1.bf16.msra.mxu0 0
        %5862 = vmatprep.subr.bf16.mxu0 0
        %5863 = vmatpush1.bf16.msra.mxu0 0
        %5864 = vmatprep.subr.bf16.mxu0 0
        %5865 = vmatpush1.bf16.msra.mxu0 0
        %5866 = vmatprep.subr.bf16.mxu0 0
        %5867 = vmatpush1.bf16.msra.mxu0 0
        %5868 = vmatprep.mubr.bf16.mxu0 0
        %5869 = vmatmul.mubr.bf16.gmra.mrb[0].mxu0 %v5819
        %v5870 = vpop.f32.mrb[0].mxu0
        %v5871 = vadd.f32 0.0, %v5870
        %v5872 = vpop.f32.mrb[0].mxu0
        %v5873 = vpop.f32.mrb[0].mxu0
        %v5874 = vadd.f32 0.0, %v5873
        %v5875 = vpop.f32.mrb[0].mxu0
        %5876 = vmatprep.mubr.bf16.mxu0 0
        %5877 = vmatmul.mubr.bf16.gmra.mrb[0].mxu0 %v5822
        %v5878 = vpop.f32.mrb[0].mxu0
        %v5879 = vadd.f32 0.0, %v5878
        %v5880 = vpop.f32.mrb[0].mxu0
        %v5881 = vpop.f32.mrb[0].mxu0
        %v5882 = vadd.f32 0.0, %v5881
        %v5883 = vpop.f32.mrb[0].mxu0
        %5884 = vmatprep.mubr.bf16.mxu0 0
        %5885 = vmatmul.mubr.bf16.gmra.mrb[0].mxu0 %v5825
        %v5886 = vpop.f32.mrb[0].mxu0
        %v5887 = vadd.f32 0.0, %v5886
        %v5888 = vpop.f32.mrb[0].mxu0
        %v5889 = vpop.f32.mrb[0].mxu0
        %v5890 = vadd.f32 0.0, %v5889
        %v5891 = vpop.f32.mrb[0].mxu0
        %5892 = vmatprep.mubr.bf16.mxu0 0
        %5893 = vmatmul.mubr.bf16.gmra.mrb[0].mxu0 %v5828
        %v5894 = vpop.f32.mrb[0].mxu0
        %v5895 = vadd.f32 0.0, %v5894
        %v5896 = vpop.f32.mrb[0].mxu0
        %v5897 = vpop.f32.mrb[0].mxu0
        %v5898 = vadd.f32 0.0, %v5897
        %v5899 = vpop.f32.mrb[0].mxu0
        %5900 = vmatprep.mubr.bf16.mxu0 0
        %5901 = vmatmul.mubr.bf16.gmra.mrb[0].mxu0 %v5831
        %v5902 = vpop.f32.mrb[0].mxu0
        %v5903 = vadd.f32 0.0, %v5902
        %v5904 = vpop.f32.mrb[0].mxu0
        %v5905 = vpop.f32.mrb[0].mxu0
        %v5906 = vadd.f32 0.0, %v5905
        %v5907 = vpop.f32.mrb[0].mxu0
        %5908 = vdwg.mxu0
        %v5909 = vmul.f32 %v5871, 0.2
        %v5910 = vmul.f32 %v5874, 0.2
        %v5911 = vmul.f32 %v5879, 0.2
        %v5912 = vmul.f32 %v5882, 0.2
        %v5913 = vmul.f32 %v5887, 0.2
        %v5914 = vmul.f32 %v5890, 0.2
        %v5915 = vmul.f32 %v5895, 0.2
        %v5916 = vmul.f32 %v5898, 0.2
        %v5917 = vmul.f32 %v5903, 0.2
        %v5918 = vmul.f32 %v5906, 0.2
        %v5919 = vmax.f32 %v5871, %v5909
        %v5920 = vmax.f32 %v5874, %v5910
        %v5921 = vmax.f32 %v5879, %v5911
        %v5922 = vmax.f32 %v5882, %v5912
        %v5923 = vmax.f32 %v5887, %v5913
        %v5924 = vmax.f32 %v5890, %v5914
        %v5925 = vmax.f32 %v5895, %v5915
        %v5926 = vmax.f32 %v5898, %v5916
        %v5927 = vmax.f32 %v5903, %v5917
        %v5928 = vmax.f32 %v5906, %v5918
        %5929 = vst.msk [vmem:[#allocation10] sm:$0xff] %vm1377, %v5919
        %5930 = vst.msk [vmem:[#allocation10 + $0x8] sm:$0xff] %vm1377, %v5920
        %5931 = vst.msk [vmem:[#allocation10 + $0x10] sm:$0xff] %vm1377, %v5921
        %5932 = vst.msk [vmem:[#allocation10 + $0x18] sm:$0xff] %vm1377, %v5922
        %5933 = vst.msk [vmem:[#allocation10 + $0x20] sm:$0xff] %vm1377, %v5923
        %5934 = vst.msk [vmem:[#allocation10 + $0x28] sm:$0xff] %vm1377, %v5924
        %5935 = vst.msk [vmem:[#allocation10 + $0x30] sm:$0xff] %vm1377, %v5925
        %5936 = vst.msk [vmem:[#allocation10 + $0x38] sm:$0xff] %vm1377, %v5926
        %5937 = vst.msk [vmem:[#allocation10 + $0x40] sm:$0xff] %vm1377, %v5927
        %vm5938 = vcmask 386048
        %5939 = vst.msk [vmem:[#allocation10 + $0x48] sm:$0x3] %vm5938, %v5928
        %v5940 = vld [vmem:[#allocation10] sm:$0xff]
        %v5941 = vld [vmem:[#allocation10 + $0x8] sm:$0xff]
        %v5942 = vld [vmem:[#allocation10 + $0x10] sm:$0xff]
        %v5943 = vld [vmem:[#allocation10 + $0x18] sm:$0xff]
        %v5944 = vld [vmem:[#allocation10 + $0x20] sm:$0xff]
        %v5945 = vld [vmem:[#allocation10 + $0x28] sm:$0xff]
        %v5946 = vld [vmem:[#allocation10 + $0x30] sm:$0xff]
        %v5947 = vld [vmem:[#allocation10 + $0x38] sm:$0xff]
        %v5948 = vld [vmem:[#allocation10 + $0x40] sm:$0xff]
        %v5949 = vpack.c.bf16 %v5941, %v5940
        %v5950 = vpack.c.bf16 %v5943, %v5942
        %v5951 = vpack.c.bf16 %v5945, %v5944
        %v5952 = vpack.c.bf16 %v5947, %v5946
        %v5953 = vpack.c.bf16 %v5948, %v5948
        %v5954 = vld [vmem:[#allocation35] sm:$0xf]
        %v5955 = vld [vmem:[#allocation35 + $0x4] sm:$0xf]
        %v5956 = vld [vmem:[#allocation35 + $0x8] sm:$0xf]
        %v5957 = vld [vmem:[#allocation35 + $0xc] sm:$0xf]
        %v5958 = vld [vmem:[#allocation35 + $0x10] sm:$0xf]
        %v5959 = vld [vmem:[#allocation35 + $0x14] sm:$0xf]
        %v5960 = vld [vmem:[#allocation10 + $0x1] sm:$0xff]
        %v5961 = vld [vmem:[#allocation10 + $0x9] sm:$0xff]
        %v5962 = vld [vmem:[#allocation10 + $0x11] sm:$0xff]
        %v5963 = vld [vmem:[#allocation10 + $0x19] sm:$0xff]
        %v5964 = vld [vmem:[#allocation10 + $0x21] sm:$0xff]
        %v5965 = vld [vmem:[#allocation10 + $0x29] sm:$0xff]
        %v5966 = vld [vmem:[#allocation10 + $0x31] sm:$0xff]
        %v5967 = vld [vmem:[#allocation10 + $0x39] sm:$0xff]
        %v5968 = vld [vmem:[#allocation10 + $0x41] sm:$0xff]
        %v5969 = vpack.c.bf16 %v5961, %v5960
        %v5970 = vpack.c.bf16 %v5963, %v5962
        %v5971 = vpack.c.bf16 %v5965, %v5964
        %v5972 = vpack.c.bf16 %v5967, %v5966
        %v5973 = vpack.c.bf16 %v5968, %v5968
        %s5974 = scalar_lea.vmem [#allocation35], 24
        %v5975 = vld [vmem:[%s5974] sm:$0xf]
        %v5976 = vld [vmem:[%s5974 + $0x4] sm:$0xf]
        %v5977 = vld [vmem:[%s5974 + $0x8] sm:$0xf]
        %v5978 = vld [vmem:[%s5974 + $0xc] sm:$0xf]
        %v5979 = vld [vmem:[%s5974 + $0x10] sm:$0xf]
        %v5980 = vld [vmem:[%s5974 + $0x14] sm:$0xf]
        %v5987 = vunpack.c.l.b16 %v5975
        %v5988 = vunpack.c.l.b16 %v5976
        %v5989 = vunpack.c.l.b16 %v5977
        %v5990 = vunpack.c.l.b16 %v5978
        %v5991 = vunpack.c.l.b16 %v5979
        %v5992 = vunpack.c.l.b16 %v5980
        %v5993 = vpack.c.b16 %v5988, %v5987
        %v5994 = vpack.c.b16 %v5990, %v5989
        %v5995 = vpack.c.b16 %v5992, %v5991
        %v6000 = vsel %vm1377, %v5969, 0
        %v6003 = vsel %vm1377, %v5970, 0
        %v6006 = vsel %vm1377, %v5971, 0
        %v6009 = vsel %vm1377, %v5972, 0
        %v6012 = vsel %vm1377, %v5973, 0
        %6014 = vmatprep.subr.bf16.mxu0 0
        %6015 = vmatpush1.bf16.msra.mxu0 %v5993
        %6016 = vmatprep.subr.bf16.mxu0 0
        %6017 = vmatpush1.bf16.msra.mxu0 %v5994
        %6018 = vmatprep.subr.bf16.mxu0 0
        %6019 = vmatpush1.bf16.msra.mxu0 %v5995
        %6020 = vmatprep.subr.bf16.mxu0 0
        %6021 = vmatpush1.bf16.msra.mxu0 0
        %6022 = vmatprep.subr.bf16.mxu0 0
        %6023 = vmatpush1.bf16.msra.mxu0 0
        %6024 = vmatprep.subr.bf16.mxu0 0
        %6025 = vmatpush1.bf16.msra.mxu0 0
        %6026 = vmatprep.subr.bf16.mxu0 0
        %6027 = vmatpush1.bf16.msra.mxu0 0
        %6028 = vmatprep.subr.bf16.mxu0 0
        %6029 = vmatpush1.bf16.msra.mxu0 0
        %6030 = vmatprep.subr.bf16.mxu0 0
        %6031 = vmatpush1.bf16.msra.mxu0 0
        %6032 = vmatprep.subr.bf16.mxu0 0
        %6033 = vmatpush1.bf16.msra.mxu0 0
        %6034 = vmatprep.subr.bf16.mxu0 0
        %6035 = vmatpush1.bf16.msra.mxu0 0
        %6036 = vmatprep.subr.bf16.mxu0 0
        %6037 = vmatpush1.bf16.msra.mxu0 0
        %6038 = vmatprep.subr.bf16.mxu0 0
        %6039 = vmatpush1.bf16.msra.mxu0 0
        %6040 = vmatprep.subr.bf16.mxu0 0
        %6041 = vmatpush1.bf16.msra.mxu0 0
        %6042 = vmatprep.subr.bf16.mxu0 0
        %6043 = vmatpush1.bf16.msra.mxu0 0
        %6044 = vmatprep.subr.bf16.mxu0 0
        %6045 = vmatpush1.bf16.msra.mxu0 0
        %6046 = vmatprep.mubr.bf16.mxu0 0
        %6047 = vmatmul.mubr.bf16.gmra.mrb[0].mxu0 %v6000
        %v6048 = vpop.f32.mrb[0].mxu0
        %v6049 = vadd.f32 0.0, %v6048
        %v6050 = vpop.f32.mrb[0].mxu0
        %v6051 = vpop.f32.mrb[0].mxu0
        %v6052 = vadd.f32 0.0, %v6051
        %v6053 = vpop.f32.mrb[0].mxu0
        %6054 = vmatprep.mubr.bf16.mxu0 0
        %6055 = vmatmul.mubr.bf16.gmra.mrb[0].mxu0 %v6003
        %v6056 = vpop.f32.mrb[0].mxu0
        %v6057 = vadd.f32 0.0, %v6056
        %v6058 = vpop.f32.mrb[0].mxu0
        %v6059 = vpop.f32.mrb[0].mxu0
        %v6060 = vadd.f32 0.0, %v6059
        %v6061 = vpop.f32.mrb[0].mxu0
        %6062 = vmatprep.mubr.bf16.mxu0 0
        %6063 = vmatmul.mubr.bf16.gmra.mrb[0].mxu0 %v6006
        %v6064 = vpop.f32.mrb[0].mxu0
        %v6065 = vadd.f32 0.0, %v6064
        %v6066 = vpop.f32.mrb[0].mxu0
        %v6067 = vpop.f32.mrb[0].mxu0
        %v6068 = vadd.f32 0.0, %v6067
        %v6069 = vpop.f32.mrb[0].mxu0
        %6070 = vmatprep.mubr.bf16.mxu0 0
        %6071 = vmatmul.mubr.bf16.gmra.mrb[0].mxu0 %v6009
        %v6072 = vpop.f32.mrb[0].mxu0
        %v6073 = vadd.f32 0.0, %v6072
        %v6074 = vpop.f32.mrb[0].mxu0
        %v6075 = vpop.f32.mrb[0].mxu0
        %v6076 = vadd.f32 0.0, %v6075
        %v6077 = vpop.f32.mrb[0].mxu0
        %6078 = vmatprep.mubr.bf16.mxu0 0
        %6079 = vmatmul.mubr.bf16.gmra.mrb[0].mxu0 %v6012
        %v6080 = vpop.f32.mrb[0].mxu0
        %v6081 = vadd.f32 0.0, %v6080
        %v6082 = vpop.f32.mrb[0].mxu0
        %v6083 = vpop.f32.mrb[0].mxu0
        %v6084 = vpop.f32.mrb[0].mxu0
        %6085 = vdwg.mxu0
        %v6092 = vunpack.c.l.b16 %v5954
        %v6093 = vunpack.c.l.b16 %v5955
        %v6094 = vunpack.c.l.b16 %v5956
        %v6095 = vunpack.c.l.b16 %v5957
        %v6096 = vunpack.c.l.b16 %v5958
        %v6097 = vunpack.c.l.b16 %v5959
        %v6098 = vpack.c.b16 %v6093, %v6092
        %v6099 = vpack.c.b16 %v6095, %v6094
        %v6100 = vpack.c.b16 %v6097, %v6096
        %v6105 = vsel %vm1377, %v5949, 0
        %v6108 = vsel %vm1377, %v5950, 0
        %v6111 = vsel %vm1377, %v5951, 0
        %v6114 = vsel %vm1377, %v5952, 0
        %v6117 = vsel %vm1377, %v5953, 0
        %6119 = vmatprep.subr.bf16.mxu0 0
        %6120 = vmatpush1.bf16.msra.mxu0 %v6098
        %6121 = vmatprep.subr.bf16.mxu0 0
        %6122 = vmatpush1.bf16.msra.mxu0 %v6099
        %6123 = vmatprep.subr.bf16.mxu0 0
        %6124 = vmatpush1.bf16.msra.mxu0 %v6100
        %6125 = vmatprep.subr.bf16.mxu0 0
        %6126 = vmatpush1.bf16.msra.mxu0 0
        %6127 = vmatprep.subr.bf16.mxu0 0
        %6128 = vmatpush1.bf16.msra.mxu0 0
        %6129 = vmatprep.subr.bf16.mxu0 0
        %6130 = vmatpush1.bf16.msra.mxu0 0
        %6131 = vmatprep.subr.bf16.mxu0 0
        %6132 = vmatpush1.bf16.msra.mxu0 0
        %6133 = vmatprep.subr.bf16.mxu0 0
        %6134 = vmatpush1.bf16.msra.mxu0 0
        %6135 = vmatprep.subr.bf16.mxu0 0
        %6136 = vmatpush1.bf16.msra.mxu0 0
        %6137 = vmatprep.subr.bf16.mxu0 0
        %6138 = vmatpush1.bf16.msra.mxu0 0
        %6139 = vmatprep.subr.bf16.mxu0 0
        %6140 = vmatpush1.bf16.msra.mxu0 0
        %6141 = vmatprep.subr.bf16.mxu0 0
        %6142 = vmatpush1.bf16.msra.mxu0 0
        %6143 = vmatprep.subr.bf16.mxu0 0
        %6144 = vmatpush1.bf16.msra.mxu0 0
        %6145 = vmatprep.subr.bf16.mxu0 0
        %6146 = vmatpush1.bf16.msra.mxu0 0
        %6147 = vmatprep.subr.bf16.mxu0 0
        %6148 = vmatpush1.bf16.msra.mxu0 0
        %6149 = vmatprep.subr.bf16.mxu0 0
        %6150 = vmatpush1.bf16.msra.mxu0 0
        %6151 = vmatprep.mubr.bf16.mxu0 0
        %6152 = vmatmul.mubr.bf16.gmra.mrb[0].mxu0 %v6105
        %v6153 = vpop.f32.mrb[0].mxu0
        %v6154 = vadd.f32 %v6049, %v6153
        %v6155 = vpop.f32.mrb[0].mxu0
        %v6156 = vpop.f32.mrb[0].mxu0
        %v6157 = vadd.f32 %v6052, %v6156
        %v6158 = vpop.f32.mrb[0].mxu0
        %6159 = vmatprep.mubr.bf16.mxu0 0
        %6160 = vmatmul.mubr.bf16.gmra.mrb[0].mxu0 %v6108
        %v6161 = vpop.f32.mrb[0].mxu0
        %v6162 = vadd.f32 %v6057, %v6161
        %v6163 = vpop.f32.mrb[0].mxu0
        %v6164 = vpop.f32.mrb[0].mxu0
        %v6165 = vadd.f32 %v6060, %v6164
        %v6166 = vpop.f32.mrb[0].mxu0
        %6167 = vmatprep.mubr.bf16.mxu0 0
        %6168 = vmatmul.mubr.bf16.gmra.mrb[0].mxu0 %v6111
        %v6169 = vpop.f32.mrb[0].mxu0
        %v6170 = vadd.f32 %v6065, %v6169
        %v6171 = vpop.f32.mrb[0].mxu0
        %v6172 = vpop.f32.mrb[0].mxu0
        %v6173 = vadd.f32 %v6068, %v6172
        %v6174 = vpop.f32.mrb[0].mxu0
        %6175 = vmatprep.mubr.bf16.mxu0 0
        %6176 = vmatmul.mubr.bf16.gmra.mrb[0].mxu0 %v6114
        %v6177 = vpop.f32.mrb[0].mxu0
        %v6178 = vadd.f32 %v6073, %v6177
        %v6179 = vpop.f32.mrb[0].mxu0
        %v6180 = vpop.f32.mrb[0].mxu0
        %v6181 = vadd.f32 %v6076, %v6180
        %v6182 = vpop.f32.mrb[0].mxu0
        %6183 = vmatprep.mubr.bf16.mxu0 0
        %6184 = vmatmul.mubr.bf16.gmra.mrb[0].mxu0 %v6117
        %v6185 = vpop.f32.mrb[0].mxu0
        %v6186 = vadd.f32 %v6081, %v6185
        %v6187 = vpop.f32.mrb[0].mxu0
        %v6188 = vpop.f32.mrb[0].mxu0
        %v6189 = vpop.f32.mrb[0].mxu0
        %6190 = vdwg.mxu0
        %v6191 = vld [vmem:[#allocation10 + $0x2] sm:$0xff]
        %v6192 = vld [vmem:[#allocation10 + $0xa] sm:$0xff]
        %v6193 = vld [vmem:[#allocation10 + $0x12] sm:$0xff]
        %v6194 = vld [vmem:[#allocation10 + $0x1a] sm:$0xff]
        %v6195 = vld [vmem:[#allocation10 + $0x22] sm:$0xff]
        %v6196 = vld [vmem:[#allocation10 + $0x2a] sm:$0xff]
        %v6197 = vld [vmem:[#allocation10 + $0x32] sm:$0xff]
        %v6198 = vld [vmem:[#allocation10 + $0x3a] sm:$0xff]
        %v6199 = vld [vmem:[#allocation10 + $0x42] sm:$0xff]
        %v6200 = vpack.c.bf16 %v6192, %v6191
        %v6201 = vpack.c.bf16 %v6194, %v6193
        %v6202 = vpack.c.bf16 %v6196, %v6195
        %v6203 = vpack.c.bf16 %v6198, %v6197
        %v6204 = vpack.c.bf16 %v6199, %v6199
        %s6205 = scalar_lea.vmem [#allocation35], 48
        %v6206 = vld [vmem:[%s6205] sm:$0xf]
        %v6207 = vld [vmem:[%s6205 + $0x4] sm:$0xf]
        %v6208 = vld [vmem:[%s6205 + $0x8] sm:$0xf]
        %v6209 = vld [vmem:[%s6205 + $0xc] sm:$0xf]
        %v6210 = vld [vmem:[%s6205 + $0x10] sm:$0xf]
        %v6211 = vld [vmem:[%s6205 + $0x14] sm:$0xf]
        %v6218 = vunpack.c.l.b16 %v6206
        %v6219 = vunpack.c.l.b16 %v6207
        %v6220 = vunpack.c.l.b16 %v6208
        %v6221 = vunpack.c.l.b16 %v6209
        %v6222 = vunpack.c.l.b16 %v6210
        %v6223 = vunpack.c.l.b16 %v6211
        %v6224 = vpack.c.b16 %v6219, %v6218
        %v6225 = vpack.c.b16 %v6221, %v6220
        %v6226 = vpack.c.b16 %v6223, %v6222
        %v6231 = vsel %vm1377, %v6200, 0
        %v6234 = vsel %vm1377, %v6201, 0
        %v6237 = vsel %vm1377, %v6202, 0
        %v6240 = vsel %vm1377, %v6203, 0
        %v6243 = vsel %vm1377, %v6204, 0
        %6245 = vmatprep.subr.bf16.mxu0 0
        %6246 = vmatpush1.bf16.msra.mxu0 %v6224
        %6247 = vmatprep.subr.bf16.mxu0 0
        %6248 = vmatpush1.bf16.msra.mxu0 %v6225
        %6249 = vmatprep.subr.bf16.mxu0 0
        %6250 = vmatpush1.bf16.msra.mxu0 %v6226
        %6251 = vmatprep.subr.bf16.mxu0 0
        %6252 = vmatpush1.bf16.msra.mxu0 0
        %6253 = vmatprep.subr.bf16.mxu0 0
        %6254 = vmatpush1.bf16.msra.mxu0 0
        %6255 = vmatprep.subr.bf16.mxu0 0
        %6256 = vmatpush1.bf16.msra.mxu0 0
        %6257 = vmatprep.subr.bf16.mxu0 0
        %6258 = vmatpush1.bf16.msra.mxu0 0
        %6259 = vmatprep.subr.bf16.mxu0 0
        %6260 = vmatpush1.bf16.msra.mxu0 0
        %6261 = vmatprep.subr.bf16.mxu0 0
        %6262 = vmatpush1.bf16.msra.mxu0 0
        %6263 = vmatprep.subr.bf16.mxu0 0
        %6264 = vmatpush1.bf16.msra.mxu0 0
        %6265 = vmatprep.subr.bf16.mxu0 0
        %6266 = vmatpush1.bf16.msra.mxu0 0
        %6267 = vmatprep.subr.bf16.mxu0 0
        %6268 = vmatpush1.bf16.msra.mxu0 0
        %6269 = vmatprep.subr.bf16.mxu0 0
        %6270 = vmatpush1.bf16.msra.mxu0 0
        %6271 = vmatprep.subr.bf16.mxu0 0
        %6272 = vmatpush1.bf16.msra.mxu0 0
        %6273 = vmatprep.subr.bf16.mxu0 0
        %6274 = vmatpush1.bf16.msra.mxu0 0
        %6275 = vmatprep.subr.bf16.mxu0 0
        %6276 = vmatpush1.bf16.msra.mxu0 0
        %6277 = vmatprep.mubr.bf16.mxu0 0
        %6278 = vmatmul.mubr.bf16.gmra.mrb[0].mxu0 %v6231
        %v6279 = vpop.f32.mrb[0].mxu0
        %v6280 = vadd.f32 0.0, %v6279
        %v6281 = vpop.f32.mrb[0].mxu0
        %v6282 = vpop.f32.mrb[0].mxu0
        %v6283 = vadd.f32 0.0, %v6282
        %v6284 = vpop.f32.mrb[0].mxu0
        %6285 = vmatprep.mubr.bf16.mxu0 0
        %6286 = vmatmul.mubr.bf16.gmra.mrb[0].mxu0 %v6234
        %v6287 = vpop.f32.mrb[0].mxu0
        %v6288 = vadd.f32 0.0, %v6287
        %v6289 = vpop.f32.mrb[0].mxu0
        %v6290 = vpop.f32.mrb[0].mxu0
        %v6291 = vadd.f32 0.0, %v6290
        %v6292 = vpop.f32.mrb[0].mxu0
        %6293 = vmatprep.mubr.bf16.mxu0 0
        %6294 = vmatmul.mubr.bf16.gmra.mrb[0].mxu0 %v6237
        %v6295 = vpop.f32.mrb[0].mxu0
        %v6296 = vadd.f32 0.0, %v6295
        %v6297 = vpop.f32.mrb[0].mxu0
        %v6298 = vpop.f32.mrb[0].mxu0
        %v6299 = vadd.f32 0.0, %v6298
        %v6300 = vpop.f32.mrb[0].mxu0
        %6301 = vmatprep.mubr.bf16.mxu0 0
        %6302 = vmatmul.mubr.bf16.gmra.mrb[0].mxu0 %v6240
        %v6303 = vpop.f32.mrb[0].mxu0
        %v6304 = vadd.f32 0.0, %v6303
        %v6305 = vpop.f32.mrb[0].mxu0
        %v6306 = vpop.f32.mrb[0].mxu0
        %v6307 = vadd.f32 0.0, %v6306
        %v6308 = vpop.f32.mrb[0].mxu0
        %6309 = vmatprep.mubr.bf16.mxu0 0
        %6310 = vmatmul.mubr.bf16.gmra.mrb[0].mxu0 %v6243
        %v6311 = vpop.f32.mrb[0].mxu0
        %v6312 = vadd.f32 0.0, %v6311
        %v6313 = vpop.f32.mrb[0].mxu0
        %v6314 = vpop.f32.mrb[0].mxu0
        %v6315 = vpop.f32.mrb[0].mxu0
        %6316 = vdwg.mxu0
        %v6317 = vadd.f32 %v6154, %v6280
        %v6318 = vadd.f32 %v6157, %v6283
        %v6319 = vadd.f32 %v6162, %v6288
        %v6320 = vadd.f32 %v6165, %v6291
        %v6321 = vadd.f32 %v6170, %v6296
        %v6322 = vadd.f32 %v6173, %v6299
        %v6323 = vadd.f32 %v6178, %v6304
        %v6324 = vadd.f32 %v6181, %v6307
        %v6325 = vadd.f32 %v6186, %v6312
        %v6326 = vld [vmem:[#allocation37] sm:$0x1]
        %v6328 = vlaneseq
        %v6329 = vshrl.u32 %v6328, 7
        %v6330 = vsub.s32 0, %v6329
        %v6331 = vrot.slane %v6326, %v6330
        %v6333 = vadd.f32 %v6317, %v6331
        %v6334 = vadd.f32 %v6318, %v6331
        %v6335 = vadd.f32 %v6319, %v6331
        %v6336 = vadd.f32 %v6320, %v6331
        %v6337 = vadd.f32 %v6321, %v6331
        %v6338 = vadd.f32 %v6322, %v6331
        %v6339 = vadd.f32 %v6323, %v6331
        %v6340 = vadd.f32 %v6324, %v6331
        %v6341 = vadd.f32 %v6325, %v6331
        %v6342 = vmul.f32 %v6333, 0.2
        %v6343 = vmul.f32 %v6334, 0.2
        %v6344 = vmul.f32 %v6335, 0.2
        %v6345 = vmul.f32 %v6336, 0.2
        %v6346 = vmul.f32 %v6337, 0.2
        %v6347 = vmul.f32 %v6338, 0.2
        %v6348 = vmul.f32 %v6339, 0.2
        %v6349 = vmul.f32 %v6340, 0.2
        %v6350 = vmul.f32 %v6341, 0.2
        %v6351 = vmax.f32 %v6333, %v6342
        %v6352 = vmax.f32 %v6334, %v6343
        %v6353 = vmax.f32 %v6335, %v6344
        %v6354 = vmax.f32 %v6336, %v6345
        %v6355 = vmax.f32 %v6337, %v6346
        %v6356 = vmax.f32 %v6338, %v6347
        %v6357 = vmax.f32 %v6339, %v6348
        %v6358 = vmax.f32 %v6340, %v6349
        %v6359 = vmax.f32 %v6341, %v6350
        %6360 = vst.msk [vmem:[#allocation11] sm:$0xff] %vm1377, %v6351
        %6361 = vst.msk [vmem:[#allocation11 + $0x8] sm:$0xff] %vm1377, %v6352
        %6362 = vst.msk [vmem:[#allocation11 + $0x10] sm:$0xff] %vm1377, %v6353
        %6363 = vst.msk [vmem:[#allocation11 + $0x18] sm:$0xff] %vm1377, %v6354
        %6364 = vst.msk [vmem:[#allocation11 + $0x20] sm:$0xff] %vm1377, %v6355
        %6365 = vst.msk [vmem:[#allocation11 + $0x28] sm:$0xff] %vm1377, %v6356
        %6366 = vst.msk [vmem:[#allocation11 + $0x30] sm:$0xff] %vm1377, %v6357
        %6367 = vst.msk [vmem:[#allocation11 + $0x38] sm:$0xff] %vm1377, %v6358
        %6368 = vst.msk [vmem:[#allocation11 + $0x40] sm:$0xff] %vm1377, %v6359
        %v6369 = vld [vmem:[#allocation11 + $0x1] sm:$0xff]
        %v6370 = vld [vmem:[#allocation11 + $0x9] sm:$0xff]
        %v6371 = vld [vmem:[#allocation11 + $0x13] sm:$0xff]
        %v6372 = vld [vmem:[#allocation11 + $0x1b] sm:$0xff]
        %v6373 = vadd.f32 %v6369, %v6371
        %v6374 = vadd.f32 %v6370, %v6372
        %v6375 = vld [vmem:[#allocation11 + $0x25] sm:$0xff]
        %v6376 = vld [vmem:[#allocation11 + $0x2d] sm:$0xff]
        %v6377 = vadd.f32 %v6373, %v6375
        %v6378 = vadd.f32 %v6374, %v6376
        %v6379 = vld [vmem:[#allocation11 + $0x37] sm:$0xff]
        %v6380 = vld [vmem:[#allocation11 + $0x3f] sm:$0xff]
        %v6381 = vadd.f32 %v6377, %v6379
        %v6382 = vadd.f32 %v6378, %v6380
        %6383 = vst.msk [vmem:[%s1237] sm:$0xff] %vm1377, %v6381
        %6384 = vst.msk [vmem:[%s1237 + $0x8] sm:$0xff] %vm1377, %v6382
        %p6385 = scmp.lt.s32.totalorder %s87, 1
        %s6386 = scalar_select %p6385, %s87, 1
        %s6387 = smul.addr %s6386, 2
        %s6388 = smul.addr %s6387, 8
        %s6389 = scalar_lea.vmem %s67, %s6388
        // Predicated region
        $region221: #{forward.1} parent=151 // pred_check
          %p6390 = pneg %p803
        $region222: #{forward.1} parent=151 // pred_check_branch
          %6392 = sbr.rel (%p6390) target = $region224
        $region223: #{forward.1} parent=151 // pred_region
          _
        $region224: #{forward.1} parent=151 // pred_fallthru
          _
      $region152: #{forward.1} parent=5 // pred_fallthru
        _
      %p6393 = scmp.le.s32.totalorder 2, %s82
      // Predicated region
      $region225: #{forward.1} parent=5 // pred_check
        %p6394 = pneg %p6393
      $region226: #{forward.1} parent=5 // pred_check_branch
        %6396 = sbr.rel (%p6394) target = $region228
      $region227: #{forward.1} parent=5 // pred_region
        %s6397 = ssub.s32 %s82, 2
        // Predicated region
        $region229: #{forward.1} parent=227 // pred_check
          %p6398 = pneg %p809
        $region230: #{forward.1} parent=227 // pred_check_branch
          %6400 = sbr.rel (%p6398) target = $region232
        $region231: #{forward.1} parent=227 // pred_region
          %p6401 = scmp.lt.s32.totalorder %s88, 1
          %s6402 = scalar_select %p6401, %s88, 1
          %s6403 = smul.addr %s6402, 2
          %s6404 = smul.addr %s6403, 8
          %s6405 = scalar_lea.vmem %s67, %s6404
        $region232: #{forward.1} parent=227 // pred_fallthru
          _
      $region228: #{forward.1} parent=5 // pred_fallthru
        _
    $region6: #{forward.1} parent=1 // loop_footer
      %s86 = sadd.s32 1, %s82
    $region7: #{forward.1} parent=1 // loop_footer_branch
      %81 = sbr.rel target = $region3
    $region8: #{forward.1} parent=1 // loop_exit
      _
    %6406 = vsyncpa [#allocation13], 1
    %s6407 = scalar_lea.sflag [#allocation13], 1
    %6408 = vsyncpa %s6407, 1
    %6409 = vsyncpa [#allocation15], 1
    %6410 = vsyncpa [#allocation18], 1
    %6411 = vsyncpa [#allocation21], 1
    %6412 = vsyncpa [#allocation24], 1
    %6413 = vsyncpa [#allocation27], 1
    %6414 = vsyncpa [#allocation30], 1
    %6415 = vsyncpa [#allocation33], 1
    %6416 = vsyncpa [#allocation36], 1

</llo_original>
